<compile_context>
chip_gen: v7x
topology: tpu7x:2x2x1
jax: 0.10.0
libtpu: 0.0.40
codegen_flags: <defaults>
</compile_context>

<pallas_src>
import functools

import numpy as np
import jax
import jax.numpy as jnp
from jax.experimental import pallas as pl
from jax.experimental.pallas import tpu as pltpu

COMPUTE_DTYPE = jnp.bfloat16          # matmul operands / activations (f32 accum)
STAGE_CHANNELS = (16, 32, 64, 128)    # synthetic backbone.out_channels
PLANES = 64                           # SAMFPN planes (scaled down from 256)
EXPANSION = 2
EPS = 1e-6

VMEM_CAP = 40 << 20          # scoped-VMEM request cap (v7x: 64 MiB physical/TC)
ROW_BUDGET = 6 << 20         # per-tile streamed + intermediate byte budget
MIN_GRID_STEPS = 4           # prefer >=4 grid steps (megacore + DMA overlap)


# ----------------------------- static helpers ------------------------------

def _pack_factor(n_out, m_pixels, cap=16):
    """Pixels packed per slab row: smallest power-of-two g (dividing the pixel
    count) such that the output width g*n_out is a multiple of 128 (unmasked
    lane-dense stores).  Kept at the 128-lane target so the same packing is
    optimal on v5e's 128-wide MXU; v6e/v7x could pack to 256 lanes."""
    g = 1
    while (g * n_out) % 128 != 0 and g < cap and m_pixels % (2 * g) == 0:
        g *= 2
    if (g * n_out) % 128 != 0:
        g = 1            # fallback: correct, just masked stores (perf only)
    return g


def _pick_tile_rows(m_rows, row_bytes, min_steps=MIN_GRID_STEPS,
                    budget=ROW_BUDGET):
    """Row-tile that divides m_rows exactly (no padding), keeps the per-tile
    footprint under `budget`, and (when possible) yields >= min_steps grid
    steps so both v7x TensorCores get work and the tile DMA is hidden."""
    if m_rows % 16:
        return m_rows
    cap = max(16, min(m_rows, (budget // max(row_bytes, 1)) // 16 * 16))
    divs = [d for d in range(16, m_rows + 1, 16)
            if m_rows % d == 0 and d <= cap]
    if not divs:
        return m_rows
    good = [d for d in divs if m_rows // d >= min_steps]
    return max(good) if good else min(divs)


def _vmem_limit(stream_bytes, resident_bytes):
    """Exact double-buffered streamed need + resident operands + headroom,
    capped well under v7x's 64 MiB physical VMEM."""
    need = 2 * int(stream_bytes) + int(resident_bytes) + (8 << 20)
    return int(min(max(need, 16 << 20), VMEM_CAP))


def _packed_weight(w, g):
    """Block-diagonal kron(I_g, W): applies W per packed pixel in one matmul."""
    if g == 1:
        return w.astype(COMPUTE_DTYPE)
    return jnp.kron(jnp.eye(g, dtype=jnp.float32), w).astype(COMPUTE_DTYPE)


def _tile_vec(v, g):
    return jnp.tile(v, g)


def _segment_mean_matrix(width, seg):
    """Resident bf16 matrix whose matmul computes the per-`seg`-segment mean of
    a packed row (block-diagonal 1/seg).  Precomputed once on the host so the
    kernel never builds iotas / compares per grid step."""
    idx = np.arange(width) // seg
    m = (idx[:, None] == idx[None, :]).astype(np.float32) / float(seg)
    return jnp.asarray(m, dtype=COMPUTE_DTYPE)


# ----------------------------- in-kernel math -------------------------------

def _ln_mxu(x_f32, smat, gamma_row, beta_row, eps=EPS):
    """Per-segment LayerNorm.  Mean / E[cent^2] via the resident bf16 segment
    matrix on the MXU (f32 accumulation): the packed lane-dense layout never
    leaves its lanes and the VALU sees only the cheap elementwise tail."""
    mean = jnp.dot(x_f32.astype(smat.dtype), smat,
                   preferred_element_type=jnp.float32)
    cent = x_f32 - mean
    var = jnp.dot((cent * cent).astype(smat.dtype), smat,
                  preferred_element_type=jnp.float32)
    return cent * jax.lax.rsqrt(var + eps) * gamma_row + beta_row


def _ln_lane(x_f32, gamma_row, beta_row, eps=EPS):
    """LayerNorm over the full lane axis (width == segment)."""
    mean = jnp.mean(x_f32, axis=-1, keepdims=True)
    cent = x_f32 - mean
    var = jnp.mean(cent * cent, axis=-1, keepdims=True)
    return cent * jax.lax.rsqrt(var + eps) * gamma_row + beta_row


# ------------------------------ Pallas kernels ------------------------------

def _stage_kernel(x_ref, wp_ref, w1_ref, w2_ref, vc_ref, b1_ref, smat_ref,
                  o_ref):
    """One whole backbone stage per row tile:
       h = LN0(x @ Wp + bp); y = GELU(LN1(h) @ W1 + b1); out = y @ W2 + b2 + h.
    All intermediates stay in VMEM/vregs (f32); one read + one write in HBM."""
    xv = x_ref[...]                                   # (tm, g*Kp) bf16
    vc = vc_ref[...].astype(jnp.float32)              # (6, g*C) rows
    smat = smat_ref[...]                              # (g*C, g*C) bf16

    h = jnp.dot(xv, wp_ref[...], preferred_element_type=jnp.float32)
    h = _ln_mxu(h + vc[0:1], smat, vc[1:2], vc[2:3])

    z = _ln_mxu(h, smat, vc[3:4], vc[4:5])
    y = jnp.dot(z.astype(w1_ref.dtype), w1_ref[...],
                preferred_element_type=jnp.float32)
    # TODO(synk): tanh-approx GELU; PyTorch nn.GELU default is exact erf.
    y = jax.nn.gelu(y + b1_ref[...].astype(jnp.float32))

    out = jnp.dot(y.astype(w2_ref.dtype), w2_ref[...],
                  preferred_element_type=jnp.float32)
    o_ref[...] = (out + vc[5:6] + h).astype(o_ref.dtype)


def _make_lateral_kernel(has_residual):
    """1x1 lateral conv (bias=False) + LayerNorm2d (+ fused FPN-sum residual)."""
    def kernel(*refs):
        if has_residual:
            x_ref, w_ref, vec_ref, smat_ref, r_ref, o_ref = refs
        else:
            x_ref, w_ref, vec_ref, smat_ref, o_ref = refs
        acc = jnp.dot(x_ref[...], w_ref[...],
                      preferred_element_type=jnp.float32)
        vec = vec_ref[...].astype(jnp.float32)
        y = _ln_mxu(acc, smat_ref[...], vec[0:1], vec[1:2])
        if has_residual:
            y = y + r_ref[...].astype(jnp.float32)
        o_ref[...] = y.astype(o_ref.dtype)
    return kernel


def _neck_out_kernel(x_ref, w3_ref, w1_ref, ln_ref, o_ref, *, H, Wp, C):
    """conv3x3 (single K=9C dot on an in-VMEM concat of the 9 shifted taps)
    + LN + 1x1 conv + LN, for one batch item.  No im2col ever touches HBM."""
    nrows = H * Wp
    taps = [x_ref[pl.ds((t // 3) * Wp + (t % 3), nrows), :] for t in range(9)]
    lhs = jnp.concatenate(taps, axis=-1)              # (nrows, 9*C) bf16
    acc = jnp.dot(lhs, w3_ref[...], preferred_element_type=jnp.float32)
    ln = ln_ref[...].astype(jnp.float32)
    y = _ln_lane(acc, ln[0:1], ln[1:2])
    acc2 = jnp.dot(y.astype(w1_ref.dtype), w1_ref[...],
                   preferred_element_type=jnp.float32)
    o_ref[...] = _ln_lane(acc2, ln[2:3], ln[3:4]).astype(o_ref.dtype)


# ------------------------------ kernel wrappers -----------------------------

def _stage_apply(xs2d, arrs, *, g, Kp, C, Cexp):
    Mr, Kw = xs2d.shape                    # Kw = g*Kp
    Nw, New = g * C, g * Cexp
    row_bytes = 2 * (Kw + Nw) * 2 + 4 * (3 * Nw + 2 * New)
    tm = _pick_tile_rows(Mr, row_bytes)
    resident = 2 * (Kw * Nw + Nw * New + New * Nw + Nw * Nw) \
        + 4 * (6 * Nw + New)
    vmem = _vmem_limit(tm * row_bytes, resident)
    return pl.pallas_call(
        _stage_kernel,
        out_shape=jax.ShapeDtypeStruct((Mr, Nw), COMPUTE_DTYPE),
        grid_spec=pltpu.PrefetchScalarGridSpec(
            num_scalar_prefetch=0, grid=(Mr // tm,),
            in_specs=[
                pl.BlockSpec((tm, Kw), lambda i: (i, 0)),
                pl.BlockSpec((Kw, Nw), lambda i: (0, 0)),    # resident weights
                pl.BlockSpec((Nw, New), lambda i: (0, 0)),
                pl.BlockSpec((New, Nw), lambda i: (0, 0)),
                pl.BlockSpec((6, Nw), lambda i: (0, 0)),     # packed bias/LN rows
                pl.BlockSpec((1, New), lambda i: (0, 0)),
                pl.BlockSpec((Nw, Nw), lambda i: (0, 0)),    # segment-mean matrix
            ],
            out_specs=pl.BlockSpec((tm, Nw), lambda i: (i, 0))),
        compiler_params=pltpu.CompilerParams(
            dimension_semantics=("parallel",), vmem_limit_bytes=vmem),
    )(xs2d, arrs["wp"], arrs["w1"], arrs["w2"], arrs["vc"], arrs["b1"],
      arrs["smat"])


def _lateral_apply(f_nhwc, larr, *, g, planes, residual=None):
    B, H, W, C = f_nhwc.shape
    M = B * H * W
    Mr, Kw, Nw = M // g, g * C, g * planes
    xs = f_nhwc.reshape(Mr, Kw)
    res = residual.reshape(Mr, Nw) if residual is not None else None
    row_bytes = 2 * (Kw * 2 + Nw * 2 + (Nw * 2 if res is not None else 0)) \
        + 4 * 3 * Nw
    tm = _pick_tile_rows(Mr, row_bytes)
    resident = Kw * Nw * 2 + Nw * Nw * 2 + 2 * Nw * 4
    vmem = _vmem_limit(tm * row_bytes, resident)

    in_specs = [pl.BlockSpec((tm, Kw), lambda i: (i, 0)),
                pl.BlockSpec((Kw, Nw), lambda i: (0, 0)),
                pl.BlockSpec((2, Nw), lambda i: (0, 0)),
                pl.BlockSpec((Nw, Nw), lambda i: (0, 0))]
    inputs = [xs, larr["w"], larr["vec"], larr["smat"]]
    if res is not None:
        in_specs.append(pl.BlockSpec((tm, Nw), lambda i: (i, 0)))
        inputs.append(res)

    out = pl.pallas_call(
        _make_lateral_kernel(res is not None),
        out_shape=jax.ShapeDtypeStruct((Mr, Nw), COMPUTE_DTYPE),
        grid_spec=pltpu.PrefetchScalarGridSpec(
            num_scalar_prefetch=0, grid=(Mr // tm,),
            in_specs=in_specs,
            out_specs=pl.BlockSpec((tm, Nw), lambda i: (i, 0))),
        compiler_params=pltpu.CompilerParams(
            dimension_semantics=("parallel",), vmem_limit_bytes=vmem),
    )(*inputs)
    return out.reshape(B, H, W, planes)


def _neck_out_apply(fused_nhwc, narr, planes):
    B, H, W, C = fused_nhwc.shape
    Hp, Wp = H + 2, W + 2
    xp = jnp.pad(fused_nhwc, ((0, 0), (1, 1), (1, 1), (0, 0)))
    # flatten per batch and add one guard pixel-row each side so every tap is a
    # static, in-bounds row shift inside the kernel.
    xs = jnp.pad(xp.reshape(B, Hp * Wp, C), ((0, 0), (1, 1), (0, 0)))
    nrows = H * Wp
    stream = (Hp * Wp + 2) * C * 2 + nrows * planes * 4 + nrows * 9 * C * 2
    resident = 9 * C * planes * 2 + C * planes * 2 + 4 * planes * 4
    vmem = _vmem_limit(stream, resident)

    out = pl.pallas_call(
        functools.partial(_neck_out_kernel, H=H, Wp=Wp, C=C),
        out_shape=jax.ShapeDtypeStruct((B, nrows, planes), jnp.float32),
        grid_spec=pltpu.PrefetchScalarGridSpec(
            num_scalar_prefetch=0, grid=(B,),
            in_specs=[
                pl.BlockSpec((None, Hp * Wp + 2, C), lambda b: (b, 0, 0)),
                pl.BlockSpec((9 * C, planes), lambda b: (0, 0)),
                pl.BlockSpec((C, planes), lambda b: (0, 0)),
                pl.BlockSpec((4, planes), lambda b: (0, 0)),
            ],
            out_specs=pl.BlockSpec((None, nrows, planes), lambda b: (b, 0, 0))),
        compiler_params=pltpu.CompilerParams(
            dimension_semantics=("parallel",), vmem_limit_bytes=vmem),
    )(xs, narr["w3"], narr["w1"], narr["ln"])

    # drop the pad columns that were computed alongside the valid ones
    return out.reshape(B, H, Wp, planes)[:, :, 1:1 + W, :]


# ----------------------------- model definition -----------------------------

def init_light_image_encoder_params(key, in_ch=3,
                                    stage_channels=STAGE_CHANNELS,
                                    planes=PLANES, expansion=EXPANSION):
    keys = iter(jax.random.split(key, 64))

    def dense(fan_in, fan_out):
        w = jax.random.normal(next(keys), (fan_in, fan_out), jnp.float32)
        return w / jnp.sqrt(jnp.float32(fan_in))

    params = {"stages": [], "lat_w": [], "lat_ln_g": [], "lat_ln_b": []}
    cin = in_ch
    for i, c in enumerate(stage_channels):
        patch = 4 if i == 0 else 2
        params["stages"].append({
            "patch_w": dense(patch * patch * cin, c),
            "patch_b": jnp.zeros((c,), jnp.float32),
            "ln0_g": jnp.ones((c,), jnp.float32),
            "ln0_b": jnp.zeros((c,), jnp.float32),
            "ln1_g": jnp.ones((c,), jnp.float32),
            "ln1_b": jnp.zeros((c,), jnp.float32),
            "fc1_w": dense(c, c * expansion),
            "fc1_b": jnp.zeros((c * expansion,), jnp.float32),
            "fc2_w": dense(c * expansion, c),
            "fc2_b": jnp.zeros((c,), jnp.float32),
        })
        cin = c

    for c in stage_channels:
        params["lat_w"].append(dense(c, planes))
        params["lat_ln_g"].append(jnp.ones((planes,), jnp.float32))
        params["lat_ln_b"].append(jnp.zeros((planes,), jnp.float32))

    w3 = jax.random.normal(next(keys), (3, 3, planes, planes), jnp.float32)
    params["out_conv3_w"] = w3 / jnp.sqrt(jnp.float32(9 * planes))
    params["out_ln1_g"] = jnp.ones((planes,), jnp.float32)
    params["out_ln1_b"] = jnp.zeros((planes,), jnp.float32)
    params["out_conv1_w"] = dense(planes, planes)
    params["out_ln2_g"] = jnp.ones((planes,), jnp.float32)
    params["out_ln2_b"] = jnp.zeros((planes,), jnp.float32)
    return params


def build_encoder_plan(params, batch, height, width,
                       stage_channels=STAGE_CHANNELS, planes=PLANES):
    """Eagerly precompute everything shape-/weight-derived: kron-packed bf16
    weights, packed bias/LN row blocks, segment-mean matrices and pack factors.
    Runs once at setup; the jitted forward only consumes device arrays."""
    cfg = {"planes": planes, "stages": [], "laterals": []}
    arrays = {"stages": [], "laterals": [], "neck": {}}

    cin, H, W, B = 3, height, width, batch
    feat_hw = []
    for i, sp in enumerate(params["stages"]):
        patch = 4 if i == 0 else 2
        C, Cexp = sp["fc2_w"].shape[1], sp["fc1_w"].shape[1]
        Kp = patch * patch * cin
        Ho, Wo = H // patch, W // patch
        M = B * Ho * Wo
        g = _pack_factor(C, M)
        cfg["stages"].append(dict(patch=patch, g=g, Kp=Kp, C=C, Cexp=Cexp))
        arrays["stages"].append(dict(
            wp=_packed_weight(sp["patch_w"], g),
            w1=_packed_weight(sp["fc1_w"], g),
            w2=_packed_weight(sp["fc2_w"], g),
            vc=jnp.stack([_tile_vec(sp["patch_b"], g),
                          _tile_vec(sp["ln0_g"], g), _tile_vec(sp["ln0_b"], g),
                          _tile_vec(sp["ln1_g"], g), _tile_vec(sp["ln1_b"], g),
                          _tile_vec(sp["fc2_b"], g)]).astype(jnp.float32),
            b1=_tile_vec(sp["fc1_b"], g).reshape(1, -1).astype(jnp.float32),
            smat=_segment_mean_matrix(g * C, C),
        ))
        feat_hw.append((Ho, Wo))
        H, W, cin = Ho, Wo, C

    for i, C in enumerate(stage_channels):
        Ho, Wo = feat_hw[i]
        M = B * Ho * Wo
        g = _pack_factor(planes, M)
        cfg["laterals"].append(dict(g=g, C=C))
        arrays["laterals"].append(dict(
            w=_packed_weight(params["lat_w"][i], g),
            vec=jnp.stack([_tile_vec(params["lat_ln_g"][i], g),
                           _tile_vec(params["lat_ln_b"][i], g)]
                          ).astype(jnp.float32),
            smat=_segment_mean_matrix(g * planes, planes),
        ))

    arrays["neck"] = dict(
        w3=params["out_conv3_w"].reshape(9 * planes, planes).astype(COMPUTE_DTYPE),
        w1=params["out_conv1_w"].astype(COMPUTE_DTYPE),
        ln=jnp.stack([params["out_ln1_g"], params["out_ln1_b"],
                      params["out_ln2_g"], params["out_ln2_b"]]
                     ).astype(jnp.float32),
    )
    return arrays, cfg


def _avgpool(p, k):
    B, H, W, C = p.shape
    return p.reshape(B, H // k, k, W // k, k, C).astype(jnp.float32).mean(
        axis=(2, 4)).astype(p.dtype)


def light_image_encoder_forward(arrays, x_nchw, *, cfg):
    planes = cfg["planes"]
    cur = jnp.transpose(x_nchw, (0, 2, 3, 1)).astype(COMPUTE_DTYPE)  # NHWC

    feats = []
    for scfg, sarr in zip(cfg["stages"], arrays["stages"]):
        patch, g, Kp, C = scfg["patch"], scfg["g"], scfg["Kp"], scfg["C"]
        B, H, W, cin = cur.shape
        Ho, Wo = H // patch, W // patch
        M = B * Ho * Wo
        # TODO(synk): space-to-depth is still an XLA transpose (one extra HBM
        # round trip per stage); fusing it needs a banded (patch,W,cin) input
        # BlockSpec + in-kernel rearrange.
        xs = cur.reshape(B, Ho, patch, Wo, patch, cin)
        xs = xs.transpose(0, 1, 3, 2, 4, 5).reshape(M // g, g * Kp)
        h = _stage_apply(xs, sarr, g=g, Kp=Kp, C=C, Cexp=scfg["Cexp"])
        cur = h.reshape(B, Ho, Wo, C)
        feats.append(cur)

    # SAM-style FPN neck: project each level, fuse at stride 16, refine.
    lat = lambda i, f, r=None: _lateral_apply(
        f, arrays["laterals"][i], g=cfg["laterals"][i]["g"],
        planes=planes, residual=r)
    p0, p1, p3 = lat(0, feats[0]), lat(1, feats[1]), lat(3, feats[3])
    # TODO(synk): avg-pool down / nearest-repeat up resize kept as XLA glue.
    s = (_avgpool(p0, 4) + _avgpool(p1, 2)
         + jnp.repeat(jnp.repeat(p3, 2, axis=1), 2, axis=2))
    fused = lat(2, feats[2], s)                       # multi-scale sum fused in

    out = _neck_out_apply(fused, arrays["neck"], planes)  # (B, H16, W16, P) f32
    return jnp.transpose(out, (0, 3, 1, 2))               # -> NCHW


# ------------------------------ f32 reference -------------------------------

def _layernorm_ref(x, gamma, beta, eps=EPS):
    mean = jnp.mean(x, axis=-1, keepdims=True)
    var = jnp.mean((x - mean) ** 2, axis=-1, keepdims=True)
    return (x - mean) * jax.lax.rsqrt(var + eps) * gamma + beta


def reference_forward(params, x_nchw, planes=PLANES):
    cur = jnp.transpose(x_nchw, (0, 2, 3, 1)).astype(jnp.float32)
    feats = []
    for i, sp in enumerate(params["stages"]):
        patch = 4 if i == 0 else 2
        B, H, W, cin = cur.shape
        Ho, Wo = H // patch, W // patch
        xs = cur.reshape(B, Ho, patch, Wo, patch, cin).transpose(0, 1, 3, 2, 4, 5)
        xs = xs.reshape(B, Ho, Wo, patch * patch * cin)
        h = _layernorm_ref(xs @ sp["patch_w"] + sp["patch_b"],
                           sp["ln0_g"], sp["ln0_b"])
        z = _layernorm_ref(h, sp["ln1_g"], sp["ln1_b"])
        y = jax.nn.gelu(z @ sp["fc1_w"] + sp["fc1_b"])
        cur = h + y @ sp["fc2_w"] + sp["fc2_b"]
        feats.append(cur)

    def lateral(i, f):
        return _layernorm_ref(f @ params["lat_w"][i],
                              params["lat_ln_g"][i], params["lat_ln_b"][i])

    p0, p1, p2, p3 = (lateral(i, feats[i]) for i in range(4))
    s = (_avgpool(p0, 4) + _avgpool(p1, 2)
         + jnp.repeat(jnp.repeat(p3, 2, axis=1), 2, axis=2))
    fused = p2 + s
    out = jax.lax.conv_general_dilated(
        fused, params["out_conv3_w"], (1, 1), "SAME",
        dimension_numbers=("NHWC", "HWIO", "NHWC"))
    out = _layernorm_ref(out, params["out_ln1_g"], params["out_ln1_b"])
    out = _layernorm_ref(out @ params["out_conv1_w"],
                         params["out_ln2_g"], params["out_ln2_b"])
    return jnp.transpose(out, (0, 3, 1, 2))


# ----------------------------------- main -----------------------------------

if __name__ == "__main__":
    key = jax.random.PRNGKey(0)
    pkey, xkey = jax.random.split(key)

    params = init_light_image_encoder_params(pkey)
    x = jax.random.normal(xkey, (2, 3, 64, 64), jnp.float32)

    arrays, cfg = build_encoder_plan(params, batch=2, height=64, width=64)

    fwd = jax.jit(functools.partial(light_image_encoder_forward, cfg=cfg))
    out = fwd(arrays, x)
    jax.block_until_ready(out)

    assert out.shape == (2, PLANES, 4, 4), out.shape
    assert out.dtype == jnp.float32
    assert bool(jnp.all(jnp.isfinite(out)))

    # bf16 kernels vs f32 pure-JAX reference (loose tolerance for dtype drift)
    ref = jax.jit(reference_forward)(params, x)
    jax.block_until_ready(ref)
    num = jnp.sqrt(jnp.sum((out.astype(jnp.float32) - ref) ** 2))
    den = jnp.sqrt(jnp.sum(ref ** 2)) + 1e-12
    rel = float(num / den)
    assert rel < 0.2, f"relative error vs f32 reference too large: {rel}"

    print("KERNEL_OK")
</pallas_src>

<mosaic_0001>
module attributes {stable_mosaic.version = 11 : i64} {
  func.func @_stage_kernel(%arg0: i32, %arg1: memref<16x384xbf16, #tpu.memory_space<vmem>>, %arg2: memref<384x128xbf16, #tpu.memory_space<vmem>>, %arg3: memref<128x256xbf16, #tpu.memory_space<vmem>>, %arg4: memref<256x128xbf16, #tpu.memory_space<vmem>>, %arg5: memref<6x128xf32, #tpu.memory_space<vmem>>, %arg6: memref<1x256xf32, #tpu.memory_space<vmem>>, %arg7: memref<128x128xbf16, #tpu.memory_space<vmem>>, %arg8: memref<16x128xbf16, #tpu.memory_space<vmem>>) attributes {dimension_semantics = [#tpu.dimension_semantics<parallel>], iteration_bounds = array<i64: 4>, scalar_prefetch = 0 : i64, scratch_operands = 0 : i64, tpu.core_type = #tpu.core_type<tc>, window_params = [{transform_indices = @transform_0, window_bounds = array<i64: 16, 384>}, {pipeline_mode = #tpu.pipeline_mode<synchronous>, transform_indices = @transform_1, window_bounds = array<i64: 384, 128>}, {pipeline_mode = #tpu.pipeline_mode<synchronous>, transform_indices = @transform_2, window_bounds = array<i64: 128, 256>}, {pipeline_mode = #tpu.pipeline_mode<synchronous>, transform_indices = @transform_3, window_bounds = array<i64: 256, 128>}, {pipeline_mode = #tpu.pipeline_mode<synchronous>, transform_indices = @transform_4, window_bounds = array<i64: 6, 128>}, {pipeline_mode = #tpu.pipeline_mode<synchronous>, transform_indices = @transform_5, window_bounds = array<i64: 1, 256>}, {pipeline_mode = #tpu.pipeline_mode<synchronous>, transform_indices = @transform_6, window_bounds = array<i64: 128, 128>}, {transform_indices = @transform_7, window_bounds = array<i64: 16, 128>}]} {
    %c0 = arith.constant 0 : index
    %c0_0 = arith.constant 0 : index
    %0 = vector.load %arg1[%c0, %c0_0] : memref<16x384xbf16, #tpu.memory_space<vmem>>, vector<16x384xbf16>
    %c0_1 = arith.constant 0 : index
    %c0_2 = arith.constant 0 : index
    %1 = vector.load %arg5[%c0_1, %c0_2] : memref<6x128xf32, #tpu.memory_space<vmem>>, vector<6x128xf32>
    %c0_3 = arith.constant 0 : index
    %c0_4 = arith.constant 0 : index
    %2 = vector.load %arg7[%c0_3, %c0_4] : memref<128x128xbf16, #tpu.memory_space<vmem>>, vector<128x128xbf16>
    %c0_5 = arith.constant 0 : index
    %c0_6 = arith.constant 0 : index
    %3 = vector.load %arg2[%c0_5, %c0_6] : memref<384x128xbf16, #tpu.memory_space<vmem>>, vector<384x128xbf16>
    %cst = arith.constant dense<0.000000e+00> : vector<16x128xf32>
    %4 = tpu.matmul %0, %3, %cst {dimension_numbers = #tpu.dot_dimension_numbers<[1], [0], [0], [1], [0, 0, 1, 1], [], []>} : vector<16x384xbf16>, vector<384x128xbf16>, vector<16x128xf32> -> vector<16x128xf32>
    %5 = vector.extract_strided_slice %1 {offsets = [0, 0], sizes = [1, 128], strides = [1, 1]} : vector<6x128xf32> to vector<1x128xf32>
    %6 = vector.broadcast %5 : vector<1x128xf32> to vector<16x128xf32>
    %7 = arith.addf %4, %6 : vector<16x128xf32>
    %8 = vector.extract_strided_slice %1 {offsets = [1, 0], sizes = [1, 128], strides = [1, 1]} : vector<6x128xf32> to vector<1x128xf32>
    %9 = vector.extract_strided_slice %1 {offsets = [2, 0], sizes = [1, 128], strides = [1, 1]} : vector<6x128xf32> to vector<1x128xf32>
    %10 = arith.truncf %7 : vector<16x128xf32> to vector<16x128xbf16>
    %cst_7 = arith.constant dense<0.000000e+00> : vector<16x128xf32>
    %11 = tpu.matmul %10, %2, %cst_7 {dimension_numbers = #tpu.dot_dimension_numbers<[1], [0], [0], [1], [0, 0, 1, 1], [], []>} : vector<16x128xbf16>, vector<128x128xbf16>, vector<16x128xf32> -> vector<16x128xf32>
    %12 = arith.subf %7, %11 : vector<16x128xf32>
    %13 = arith.mulf %12, %12 : vector<16x128xf32>
    %14 = arith.truncf %13 : vector<16x128xf32> to vector<16x128xbf16>
    %cst_8 = arith.constant dense<0.000000e+00> : vector<16x128xf32>
    %15 = tpu.matmul %14, %2, %cst_8 {dimension_numbers = #tpu.dot_dimension_numbers<[1], [0], [0], [1], [0, 0, 1, 1], [], []>} : vector<16x128xbf16>, vector<128x128xbf16>, vector<16x128xf32> -> vector<16x128xf32>
    %cst_9 = arith.constant 9.99999997E-7 : f32
    %16 = vector.broadcast %cst_9 : f32 to vector<16x128xf32>
    %17 = arith.addf %15, %16 : vector<16x128xf32>
    %18 = math.rsqrt %17 : vector<16x128xf32>
    %19 = arith.mulf %12, %18 : vector<16x128xf32>
    %20 = vector.broadcast %8 : vector<1x128xf32> to vector<16x128xf32>
    %21 = arith.mulf %19, %20 : vector<16x128xf32>
    %22 = vector.broadcast %9 : vector<1x128xf32> to vector<16x128xf32>
    %23 = arith.addf %21, %22 : vector<16x128xf32>
    %24 = vector.extract_strided_slice %1 {offsets = [3, 0], sizes = [1, 128], strides = [1, 1]} : vector<6x128xf32> to vector<1x128xf32>
    %25 = vector.extract_strided_slice %1 {offsets = [4, 0], sizes = [1, 128], strides = [1, 1]} : vector<6x128xf32> to vector<1x128xf32>
    %26 = arith.truncf %23 : vector<16x128xf32> to vector<16x128xbf16>
    %cst_10 = arith.constant dense<0.000000e+00> : vector<16x128xf32>
    %27 = tpu.matmul %26, %2, %cst_10 {dimension_numbers = #tpu.dot_dimension_numbers<[1], [0], [0], [1], [0, 0, 1, 1], [], []>} : vector<16x128xbf16>, vector<128x128xbf16>, vector<16x128xf32> -> vector<16x128xf32>
    %28 = arith.subf %23, %27 : vector<16x128xf32>
    %29 = arith.mulf %28, %28 : vector<16x128xf32>
    %30 = arith.truncf %29 : vector<16x128xf32> to vector<16x128xbf16>
    %cst_11 = arith.constant dense<0.000000e+00> : vector<16x128xf32>
    %31 = tpu.matmul %30, %2, %cst_11 {dimension_numbers = #tpu.dot_dimension_numbers<[1], [0], [0], [1], [0, 0, 1, 1], [], []>} : vector<16x128xbf16>, vector<128x128xbf16>, vector<16x128xf32> -> vector<16x128xf32>
    %cst_12 = arith.constant 9.99999997E-7 : f32
    %32 = vector.broadcast %cst_12 : f32 to vector<16x128xf32>
    %33 = arith.addf %31, %32 : vector<16x128xf32>
    %34 = math.rsqrt %33 : vector<16x128xf32>
    %35 = arith.mulf %28, %34 : vector<16x128xf32>
    %36 = vector.broadcast %24 : vector<1x128xf32> to vector<16x128xf32>
    %37 = arith.mulf %35, %36 : vector<16x128xf32>
    %38 = vector.broadcast %25 : vector<1x128xf32> to vector<16x128xf32>
    %39 = arith.addf %37, %38 : vector<16x128xf32>
    %40 = arith.truncf %39 : vector<16x128xf32> to vector<16x128xbf16>
    %c0_13 = arith.constant 0 : index
    %c0_14 = arith.constant 0 : index
    %41 = vector.load %arg3[%c0_13, %c0_14] : memref<128x256xbf16, #tpu.memory_space<vmem>>, vector<128x256xbf16>
    %cst_15 = arith.constant dense<0.000000e+00> : vector<16x256xf32>
    %42 = tpu.matmul %40, %41, %cst_15 {dimension_numbers = #tpu.dot_dimension_numbers<[1], [0], [0], [1], [0, 0, 1, 1], [], []>} : vector<16x128xbf16>, vector<128x256xbf16>, vector<16x256xf32> -> vector<16x256xf32>
    %c0_16 = arith.constant 0 : index
    %c0_17 = arith.constant 0 : index
    %43 = vector.load %arg6[%c0_16, %c0_17] : memref<1x256xf32, #tpu.memory_space<vmem>>, vector<1x256xf32>
    %44 = vector.broadcast %43 : vector<1x256xf32> to vector<16x256xf32>
    %45 = arith.addf %42, %44 : vector<16x256xf32>
    %46 = arith.mulf %45, %45 : vector<16x256xf32>
    %47 = arith.mulf %45, %46 : vector<16x256xf32>
    %cst_18 = arith.constant 4.471500e-02 : f32
    %48 = vector.broadcast %cst_18 : f32 to vector<16x256xf32>
    %49 = arith.mulf %48, %47 : vector<16x256xf32>
    %50 = arith.addf %45, %49 : vector<16x256xf32>
    %cst_19 = arith.constant 0.797884583 : f32
    %51 = vector.broadcast %cst_19 : f32 to vector<16x256xf32>
    %52 = arith.mulf %51, %50 : vector<16x256xf32>
    %53 = math.tanh %52 : vector<16x256xf32>
    %cst_20 = arith.constant 1.000000e+00 : f32
    %54 = vector.broadcast %cst_20 : f32 to vector<16x256xf32>
    %55 = arith.addf %54, %53 : vector<16x256xf32>
    %cst_21 = arith.constant 5.000000e-01 : f32
    %56 = vector.broadcast %cst_21 : f32 to vector<16x256xf32>
    %57 = arith.mulf %56, %55 : vector<16x256xf32>
    %58 = arith.mulf %45, %57 : vector<16x256xf32>
    %59 = arith.truncf %58 : vector<16x256xf32> to vector<16x256xbf16>
    %c0_22 = arith.constant 0 : index
    %c0_23 = arith.constant 0 : index
    %60 = vector.load %arg4[%c0_22, %c0_23] : memref<256x128xbf16, #tpu.memory_space<vmem>>, vector<256x128xbf16>
    %cst_24 = arith.constant dense<0.000000e+00> : vector<16x128xf32>
    %61 = tpu.matmul %59, %60, %cst_24 {dimension_numbers = #tpu.dot_dimension_numbers<[1], [0], [0], [1], [0, 0, 1, 1], [], []>} : vector<16x256xbf16>, vector<256x128xbf16>, vector<16x128xf32> -> vector<16x128xf32>
    %62 = vector.extract_strided_slice %1 {offsets = [5, 0], sizes = [1, 128], strides = [1, 1]} : vector<6x128xf32> to vector<1x128xf32>
    %63 = vector.broadcast %62 : vector<1x128xf32> to vector<16x128xf32>
    %64 = arith.addf %61, %63 : vector<16x128xf32>
    %65 = arith.addf %64, %23 : vector<16x128xf32>
    %66 = arith.truncf %65 : vector<16x128xf32> to vector<16x128xbf16>
    %c0_25 = arith.constant 0 : index
    %c0_26 = arith.constant 0 : index
    %67 = vector.load %arg8[%c0_25, %c0_26] : memref<16x128xbf16, #tpu.memory_space<vmem>>, vector<16x128xbf16>
    tpu.vector_store %arg8[%c0_25, %c0_26], %66 {strides = array<i32>} : memref<16x128xbf16, #tpu.memory_space<vmem>>, vector<16x128xbf16>,
    return
  }
  func.func @transform_0(%arg0: i32) -> (i32, i32) {
    %c0_i32 = arith.constant 0 : i32
    %c0_i32_0 = arith.constant 0 : i32
    return %arg0, %c0_i32 : i32, i32
  }
  func.func @transform_1(%arg0: i32) -> (i32, i32) {
    %c0_i32 = arith.constant 0 : i32
    %c0_i32_0 = arith.constant 0 : i32
    %c0_i32_1 = arith.constant 0 : i32
    return %c0_i32, %c0_i32_0 : i32, i32
  }
  func.func @transform_2(%arg0: i32) -> (i32, i32) {
    %c0_i32 = arith.constant 0 : i32
    %c0_i32_0 = arith.constant 0 : i32
    %c0_i32_1 = arith.constant 0 : i32
    return %c0_i32, %c0_i32_0 : i32, i32
  }
  func.func @transform_3(%arg0: i32) -> (i32, i32) {
    %c0_i32 = arith.constant 0 : i32
    %c0_i32_0 = arith.constant 0 : i32
    %c0_i32_1 = arith.constant 0 : i32
    return %c0_i32, %c0_i32_0 : i32, i32
  }
  func.func @transform_4(%arg0: i32) -> (i32, i32) {
    %c0_i32 = arith.constant 0 : i32
    %c0_i32_0 = arith.constant 0 : i32
    %c0_i32_1 = arith.constant 0 : i32
    return %c0_i32, %c0_i32_0 : i32, i32
  }
  func.func @transform_5(%arg0: i32) -> (i32, i32) {
    %c0_i32 = arith.constant 0 : i32
    %c0_i32_0 = arith.constant 0 : i32
    %c0_i32_1 = arith.constant 0 : i32
    return %c0_i32, %c0_i32_0 : i32, i32
  }
  func.func @transform_6(%arg0: i32) -> (i32, i32) {
    %c0_i32 = arith.constant 0 : i32
    %c0_i32_0 = arith.constant 0 : i32
    %c0_i32_1 = arith.constant 0 : i32
    return %c0_i32, %c0_i32_0 : i32, i32
  }
  func.func @transform_7(%arg0: i32) -> (i32, i32) {
    %c0_i32 = arith.constant 0 : i32
    %c0_i32_0 = arith.constant 0 : i32
    return %arg0, %c0_i32 : i32, i32
  }
}

module attributes {stable_mosaic.version = 11 : i64} {
  func.func @_stage_kernel(%arg0: i32, %arg1: memref<16x256xbf16, #tpu.memory_space<vmem>>, %arg2: memref<256x128xbf16, #tpu.memory_space<vmem>>, %arg3: memref<128x256xbf16, #tpu.memory_space<vmem>>, %arg4: memref<256x128xbf16, #tpu.memory_space<vmem>>, %arg5: memref<6x128xf32, #tpu.memory_space<vmem>>, %arg6: memref<1x256xf32, #tpu.memory_space<vmem>>, %arg7: memref<128x128xbf16, #tpu.memory_space<vmem>>, %arg8: memref<16x128xbf16, #tpu.memory_space<vmem>>) attributes {dimension_semantics = [#tpu.dimension_semantics<parallel>], iteration_bounds = array<i64: 2>, scalar_prefetch = 0 : i64, scratch_operands = 0 : i64, tpu.core_type = #tpu.core_type<tc>, window_params = [{transform_indices = @transform_0, window_bounds = array<i64: 16, 256>}, {pipeline_mode = #tpu.pipeline_mode<synchronous>, transform_indices = @transform_1, window_bounds = array<i64: 256, 128>}, {pipeline_mode = #tpu.pipeline_mode<synchronous>, transform_indices = @transform_2, window_bounds = array<i64: 128, 256>}, {pipeline_mode = #tpu.pipeline_mode<synchronous>, transform_indices = @transform_3, window_bounds = array<i64: 256, 128>}, {pipeline_mode = #tpu.pipeline_mode<synchronous>, transform_indices = @transform_4, window_bounds = array<i64: 6, 128>}, {pipeline_mode = #tpu.pipeline_mode<synchronous>, transform_indices = @transform_5, window_bounds = array<i64: 1, 256>}, {pipeline_mode = #tpu.pipeline_mode<synchronous>, transform_indices = @transform_6, window_bounds = array<i64: 128, 128>}, {transform_indices = @transform_7, window_bounds = array<i64: 16, 128>}]} {
    %c0 = arith.constant 0 : index
    %c0_0 = arith.constant 0 : index
    %0 = vector.load %arg1[%c0, %c0_0] : memref<16x256xbf16, #tpu.memory_space<vmem>>, vector<16x256xbf16>
    %c0_1 = arith.constant 0 : index
    %c0_2 = arith.constant 0 : index
    %1 = vector.load %arg5[%c0_1, %c0_2] : memref<6x128xf32, #tpu.memory_space<vmem>>, vector<6x128xf32>
    %c0_3 = arith.constant 0 : index
    %c0_4 = arith.constant 0 : index
    %2 = vector.load %arg7[%c0_3, %c0_4] : memref<128x128xbf16, #tpu.memory_space<vmem>>, vector<128x128xbf16>
    %c0_5 = arith.constant 0 : index
    %c0_6 = arith.constant 0 : index
    %3 = vector.load %arg2[%c0_5, %c0_6] : memref<256x128xbf16, #tpu.memory_space<vmem>>, vector<256x128xbf16>
    %cst = arith.constant dense<0.000000e+00> : vector<16x128xf32>
    %4 = tpu.matmul %0, %3, %cst {dimension_numbers = #tpu.dot_dimension_numbers<[1], [0], [0], [1], [0, 0, 1, 1], [], []>} : vector<16x256xbf16>, vector<256x128xbf16>, vector<16x128xf32> -> vector<16x128xf32>
    %5 = vector.extract_strided_slice %1 {offsets = [0, 0], sizes = [1, 128], strides = [1, 1]} : vector<6x128xf32> to vector<1x128xf32>
    %6 = vector.broadcast %5 : vector<1x128xf32> to vector<16x128xf32>
    %7 = arith.addf %4, %6 : vector<16x128xf32>
    %8 = vector.extract_strided_slice %1 {offsets = [1, 0], sizes = [1, 128], strides = [1, 1]} : vector<6x128xf32> to vector<1x128xf32>
    %9 = vector.extract_strided_slice %1 {offsets = [2, 0], sizes = [1, 128], strides = [1, 1]} : vector<6x128xf32> to vector<1x128xf32>
    %10 = arith.truncf %7 : vector<16x128xf32> to vector<16x128xbf16>
    %cst_7 = arith.constant dense<0.000000e+00> : vector<16x128xf32>
    %11 = tpu.matmul %10, %2, %cst_7 {dimension_numbers = #tpu.dot_dimension_numbers<[1], [0], [0], [1], [0, 0, 1, 1], [], []>} : vector<16x128xbf16>, vector<128x128xbf16>, vector<16x128xf32> -> vector<16x128xf32>
    %12 = arith.subf %7, %11 : vector<16x128xf32>
    %13 = arith.mulf %12, %12 : vector<16x128xf32>
    %14 = arith.truncf %13 : vector<16x128xf32> to vector<16x128xbf16>
    %cst_8 = arith.constant dense<0.000000e+00> : vector<16x128xf32>
    %15 = tpu.matmul %14, %2, %cst_8 {dimension_numbers = #tpu.dot_dimension_numbers<[1], [0], [0], [1], [0, 0, 1, 1], [], []>} : vector<16x128xbf16>, vector<128x128xbf16>, vector<16x128xf32> -> vector<16x128xf32>
    %cst_9 = arith.constant 9.99999997E-7 : f32
    %16 = vector.broadcast %cst_9 : f32 to vector<16x128xf32>
    %17 = arith.addf %15, %16 : vector<16x128xf32>
    %18 = math.rsqrt %17 : vector<16x128xf32>
    %19 = arith.mulf %12, %18 : vector<16x128xf32>
    %20 = vector.broadcast %8 : vector<1x128xf32> to vector<16x128xf32>
    %21 = arith.mulf %19, %20 : vector<16x128xf32>
    %22 = vector.broadcast %9 : vector<1x128xf32> to vector<16x128xf32>
    %23 = arith.addf %21, %22 : vector<16x128xf32>
    %24 = vector.extract_strided_slice %1 {offsets = [3, 0], sizes = [1, 128], strides = [1, 1]} : vector<6x128xf32> to vector<1x128xf32>
    %25 = vector.extract_strided_slice %1 {offsets = [4, 0], sizes = [1, 128], strides = [1, 1]} : vector<6x128xf32> to vector<1x128xf32>
    %26 = arith.truncf %23 : vector<16x128xf32> to vector<16x128xbf16>
    %cst_10 = arith.constant dense<0.000000e+00> : vector<16x128xf32>
    %27 = tpu.matmul %26, %2, %cst_10 {dimension_numbers = #tpu.dot_dimension_numbers<[1], [0], [0], [1], [0, 0, 1, 1], [], []>} : vector<16x128xbf16>, vector<128x128xbf16>, vector<16x128xf32> -> vector<16x128xf32>
    %28 = arith.subf %23, %27 : vector<16x128xf32>
    %29 = arith.mulf %28, %28 : vector<16x128xf32>
    %30 = arith.truncf %29 : vector<16x128xf32> to vector<16x128xbf16>
    %cst_11 = arith.constant dense<0.000000e+00> : vector<16x128xf32>
    %31 = tpu.matmul %30, %2, %cst_11 {dimension_numbers = #tpu.dot_dimension_numbers<[1], [0], [0], [1], [0, 0, 1, 1], [], []>} : vector<16x128xbf16>, vector<128x128xbf16>, vector<16x128xf32> -> vector<16x128xf32>
    %cst_12 = arith.constant 9.99999997E-7 : f32
    %32 = vector.broadcast %cst_12 : f32 to vector<16x128xf32>
    %33 = arith.addf %31, %32 : vector<16x128xf32>
    %34 = math.rsqrt %33 : vector<16x128xf32>
    %35 = arith.mulf %28, %34 : vector<16x128xf32>
    %36 = vector.broadcast %24 : vector<1x128xf32> to vector<16x128xf32>
    %37 = arith.mulf %35, %36 : vector<16x128xf32>
    %38 = vector.broadcast %25 : vector<1x128xf32> to vector<16x128xf32>
    %39 = arith.addf %37, %38 : vector<16x128xf32>
    %40 = arith.truncf %39 : vector<16x128xf32> to vector<16x128xbf16>
    %c0_13 = arith.constant 0 : index
    %c0_14 = arith.constant 0 : index
    %41 = vector.load %arg3[%c0_13, %c0_14] : memref<128x256xbf16, #tpu.memory_space<vmem>>, vector<128x256xbf16>
    %cst_15 = arith.constant dense<0.000000e+00> : vector<16x256xf32>
    %42 = tpu.matmul %40, %41, %cst_15 {dimension_numbers = #tpu.dot_dimension_numbers<[1], [0], [0], [1], [0, 0, 1, 1], [], []>} : vector<16x128xbf16>, vector<128x256xbf16>, vector<16x256xf32> -> vector<16x256xf32>
    %c0_16 = arith.constant 0 : index
    %c0_17 = arith.constant 0 : index
    %43 = vector.load %arg6[%c0_16, %c0_17] : memref<1x256xf32, #tpu.memory_space<vmem>>, vector<1x256xf32>
    %44 = vector.broadcast %43 : vector<1x256xf32> to vector<16x256xf32>
    %45 = arith.addf %42, %44 : vector<16x256xf32>
    %46 = arith.mulf %45, %45 : vector<16x256xf32>
    %47 = arith.mulf %45, %46 : vector<16x256xf32>
    %cst_18 = arith.constant 4.471500e-02 : f32
    %48 = vector.broadcast %cst_18 : f32 to vector<16x256xf32>
    %49 = arith.mulf %48, %47 : vector<16x256xf32>
    %50 = arith.addf %45, %49 : vector<16x256xf32>
    %cst_19 = arith.constant 0.797884583 : f32
    %51 = vector.broadcast %cst_19 : f32 to vector<16x256xf32>
    %52 = arith.mulf %51, %50 : vector<16x256xf32>
    %53 = math.tanh %52 : vector<16x256xf32>
    %cst_20 = arith.constant 1.000000e+00 : f32
    %54 = vector.broadcast %cst_20 : f32 to vector<16x256xf32>
    %55 = arith.addf %54, %53 : vector<16x256xf32>
    %cst_21 = arith.constant 5.000000e-01 : f32
    %56 = vector.broadcast %cst_21 : f32 to vector<16x256xf32>
    %57 = arith.mulf %56, %55 : vector<16x256xf32>
    %58 = arith.mulf %45, %57 : vector<16x256xf32>
    %59 = arith.truncf %58 : vector<16x256xf32> to vector<16x256xbf16>
    %c0_22 = arith.constant 0 : index
    %c0_23 = arith.constant 0 : index
    %60 = vector.load %arg4[%c0_22, %c0_23] : memref<256x128xbf16, #tpu.memory_space<vmem>>, vector<256x128xbf16>
    %cst_24 = arith.constant dense<0.000000e+00> : vector<16x128xf32>
    %61 = tpu.matmul %59, %60, %cst_24 {dimension_numbers = #tpu.dot_dimension_numbers<[1], [0], [0], [1], [0, 0, 1, 1], [], []>} : vector<16x256xbf16>, vector<256x128xbf16>, vector<16x128xf32> -> vector<16x128xf32>
    %62 = vector.extract_strided_slice %1 {offsets = [5, 0], sizes = [1, 128], strides = [1, 1]} : vector<6x128xf32> to vector<1x128xf32>
    %63 = vector.broadcast %62 : vector<1x128xf32> to vector<16x128xf32>
    %64 = arith.addf %61, %63 : vector<16x128xf32>
    %65 = arith.addf %64, %23 : vector<16x128xf32>
    %66 = arith.truncf %65 : vector<16x128xf32> to vector<16x128xbf16>
    %c0_25 = arith.constant 0 : index
    %c0_26 = arith.constant 0 : index
    %67 = vector.load %arg8[%c0_25, %c0_26] : memref<16x128xbf16, #tpu.memory_space<vmem>>, vector<16x128xbf16>
    tpu.vector_store %arg8[%c0_25, %c0_26], %66 {strides = array<i32>} : memref<16x128xbf16, #tpu.memory_space<vmem>>, vector<16x128xbf16>,
    return
  }
  func.func @transform_0(%arg0: i32) -> (i32, i32) {
    %c0_i32 = arith.constant 0 : i32
    %c0_i32_0 = arith.constant 0 : i32
    return %arg0, %c0_i32 : i32, i32
  }
  func.func @transform_1(%arg0: i32) -> (i32, i32) {
    %c0_i32 = arith.constant 0 : i32
    %c0_i32_0 = arith.constant 0 : i32
    %c0_i32_1 = arith.constant 0 : i32
    return %c0_i32, %c0_i32_0 : i32, i32
  }
  func.func @transform_2(%arg0: i32) -> (i32, i32) {
    %c0_i32 = arith.constant 0 : i32
    %c0_i32_0 = arith.constant 0 : i32
    %c0_i32_1 = arith.constant 0 : i32
    return %c0_i32, %c0_i32_0 : i32, i32
  }
  func.func @transform_3(%arg0: i32) -> (i32, i32) {
    %c0_i32 = arith.constant 0 : i32
    %c0_i32_0 = arith.constant 0 : i32
    %c0_i32_1 = arith.constant 0 : i32
    return %c0_i32, %c0_i32_0 : i32, i32
  }
  func.func @transform_4(%arg0: i32) -> (i32, i32) {
    %c0_i32 = arith.constant 0 : i32
    %c0_i32_0 = arith.constant 0 : i32
    %c0_i32_1 = arith.constant 0 : i32
    return %c0_i32, %c0_i32_0 : i32, i32
  }
  func.func @transform_5(%arg0: i32) -> (i32, i32) {
    %c0_i32 = arith.constant 0 : i32
    %c0_i32_0 = arith.constant 0 : i32
    %c0_i32_1 = arith.constant 0 : i32
    return %c0_i32, %c0_i32_0 : i32, i32
  }
  func.func @transform_6(%arg0: i32) -> (i32, i32) {
    %c0_i32 = arith.constant 0 : i32
    %c0_i32_0 = arith.constant 0 : i32
    %c0_i32_1 = arith.constant 0 : i32
    return %c0_i32, %c0_i32_0 : i32, i32
  }
  func.func @transform_7(%arg0: i32) -> (i32, i32) {
    %c0_i32 = arith.constant 0 : i32
    %c0_i32_0 = arith.constant 0 : i32
    return %arg0, %c0_i32 : i32, i32
  }
}

module attributes {stable_mosaic.version = 11 : i64} {
  func.func @kernel(%arg0: i32, %arg1: memref<16x64xbf16, #tpu.memory_space<vmem>>, %arg2: memref<64x128xbf16, #tpu.memory_space<vmem>>, %arg3: memref<2x128xf32, #tpu.memory_space<vmem>>, %arg4: memref<128x128xbf16, #tpu.memory_space<vmem>>, %arg5: memref<16x128xbf16, #tpu.memory_space<vmem>>) attributes {dimension_semantics = [#tpu.dimension_semantics<parallel>], iteration_bounds = array<i64: 4>, scalar_prefetch = 0 : i64, scratch_operands = 0 : i64, tpu.core_type = #tpu.core_type<tc>, window_params = [{transform_indices = @transform_0, window_bounds = array<i64: 16, 64>}, {pipeline_mode = #tpu.pipeline_mode<synchronous>, transform_indices = @transform_1, window_bounds = array<i64: 64, 128>}, {pipeline_mode = #tpu.pipeline_mode<synchronous>, transform_indices = @transform_2, window_bounds = array<i64: 2, 128>}, {pipeline_mode = #tpu.pipeline_mode<synchronous>, transform_indices = @transform_3, window_bounds = array<i64: 128, 128>}, {transform_indices = @transform_4, window_bounds = array<i64: 16, 128>}]} {
    %c0 = arith.constant 0 : index
    %c0_0 = arith.constant 0 : index
    %0 = vector.load %arg1[%c0, %c0_0] : memref<16x64xbf16, #tpu.memory_space<vmem>>, vector<16x64xbf16>
    %c0_1 = arith.constant 0 : index
    %c0_2 = arith.constant 0 : index
    %1 = vector.load %arg2[%c0_1, %c0_2] : memref<64x128xbf16, #tpu.memory_space<vmem>>, vector<64x128xbf16>
    %cst = arith.constant dense<0.000000e+00> : vector<16x128xf32>
    %2 = tpu.matmul %0, %1, %cst {dimension_numbers = #tpu.dot_dimension_numbers<[1], [0], [0], [1], [0, 0, 1, 1], [], []>} : vector<16x64xbf16>, vector<64x128xbf16>, vector<16x128xf32> -> vector<16x128xf32>
    %c0_3 = arith.constant 0 : index
    %c0_4 = arith.constant 0 : index
    %3 = vector.load %arg3[%c0_3, %c0_4] : memref<2x128xf32, #tpu.memory_space<vmem>>, vector<2x128xf32>
    %c0_5 = arith.constant 0 : index
    %c0_6 = arith.constant 0 : index
    %4 = vector.load %arg4[%c0_5, %c0_6] : memref<128x128xbf16, #tpu.memory_space<vmem>>, vector<128x128xbf16>
    %5 = vector.extract_strided_slice %3 {offsets = [0, 0], sizes = [1, 128], strides = [1, 1]} : vector<2x128xf32> to vector<1x128xf32>
    %6 = vector.extract_strided_slice %3 {offsets = [1, 0], sizes = [1, 128], strides = [1, 1]} : vector<2x128xf32> to vector<1x128xf32>
    %7 = arith.truncf %2 : vector<16x128xf32> to vector<16x128xbf16>
    %cst_7 = arith.constant dense<0.000000e+00> : vector<16x128xf32>
    %8 = tpu.matmul %7, %4, %cst_7 {dimension_numbers = #tpu.dot_dimension_numbers<[1], [0], [0], [1], [0, 0, 1, 1], [], []>} : vector<16x128xbf16>, vector<128x128xbf16>, vector<16x128xf32> -> vector<16x128xf32>
    %9 = arith.subf %2, %8 : vector<16x128xf32>
    %10 = arith.mulf %9, %9 : vector<16x128xf32>
    %11 = arith.truncf %10 : vector<16x128xf32> to vector<16x128xbf16>
    %cst_8 = arith.constant dense<0.000000e+00> : vector<16x128xf32>
    %12 = tpu.matmul %11, %4, %cst_8 {dimension_numbers = #tpu.dot_dimension_numbers<[1], [0], [0], [1], [0, 0, 1, 1], [], []>} : vector<16x128xbf16>, vector<128x128xbf16>, vector<16x128xf32> -> vector<16x128xf32>
    %cst_9 = arith.constant 9.99999997E-7 : f32
    %13 = vector.broadcast %cst_9 : f32 to vector<16x128xf32>
    %14 = arith.addf %12, %13 : vector<16x128xf32>
    %15 = math.rsqrt %14 : vector<16x128xf32>
    %16 = arith.mulf %9, %15 : vector<16x128xf32>
    %17 = vector.broadcast %5 : vector<1x128xf32> to vector<16x128xf32>
    %18 = arith.mulf %16, %17 : vector<16x128xf32>
    %19 = vector.broadcast %6 : vector<1x128xf32> to vector<16x128xf32>
    %20 = arith.addf %18, %19 : vector<16x128xf32>
    %21 = arith.truncf %20 : vector<16x128xf32> to vector<16x128xbf16>
    %c0_10 = arith.constant 0 : index
    %c0_11 = arith.constant 0 : index
    %22 = vector.load %arg5[%c0_10, %c0_11] : memref<16x128xbf16, #tpu.memory_space<vmem>>, vector<16x128xbf16>
    tpu.vector_store %arg5[%c0_10, %c0_11], %21 {strides = array<i32>} : memref<16x128xbf16, #tpu.memory_space<vmem>>, vector<16x128xbf16>,
    return
  }
  func.func @transform_0(%arg0: i32) -> (i32, i32) {
    %c0_i32 = arith.constant 0 : i32
    %c0_i32_0 = arith.constant 0 : i32
    return %arg0, %c0_i32 : i32, i32
  }
  func.func @transform_1(%arg0: i32) -> (i32, i32) {
    %c0_i32 = arith.constant 0 : i32
    %c0_i32_0 = arith.constant 0 : i32
    %c0_i32_1 = arith.constant 0 : i32
    return %c0_i32, %c0_i32_0 : i32, i32
  }
  func.func @transform_2(%arg0: i32) -> (i32, i32) {
    %c0_i32 = arith.constant 0 : i32
    %c0_i32_0 = arith.constant 0 : i32
    %c0_i32_1 = arith.constant 0 : i32
    return %c0_i32, %c0_i32_0 : i32, i32
  }
  func.func @transform_3(%arg0: i32) -> (i32, i32) {
    %c0_i32 = arith.constant 0 : i32
    %c0_i32_0 = arith.constant 0 : i32
    %c0_i32_1 = arith.constant 0 : i32
    return %c0_i32, %c0_i32_0 : i32, i32
  }
  func.func @transform_4(%arg0: i32) -> (i32, i32) {
    %c0_i32 = arith.constant 0 : i32
    %c0_i32_0 = arith.constant 0 : i32
    return %arg0, %c0_i32 : i32, i32
  }
}

module attributes {stable_mosaic.version = 11 : i64} {
  func.func @kernel(%arg0: i32, %arg1: memref<64x32xbf16, #tpu.memory_space<vmem>>, %arg2: memref<32x128xbf16, #tpu.memory_space<vmem>>, %arg3: memref<2x128xf32, #tpu.memory_space<vmem>>, %arg4: memref<128x128xbf16, #tpu.memory_space<vmem>>, %arg5: memref<64x128xbf16, #tpu.memory_space<vmem>>) attributes {dimension_semantics = [#tpu.dimension_semantics<parallel>], iteration_bounds = array<i64: 4>, scalar_prefetch = 0 : i64, scratch_operands = 0 : i64, tpu.core_type = #tpu.core_type<tc>, window_params = [{transform_indices = @transform_0, window_bounds = array<i64: 64, 32>}, {pipeline_mode = #tpu.pipeline_mode<synchronous>, transform_indices = @transform_1, window_bounds = array<i64: 32, 128>}, {pipeline_mode = #tpu.pipeline_mode<synchronous>, transform_indices = @transform_2, window_bounds = array<i64: 2, 128>}, {pipeline_mode = #tpu.pipeline_mode<synchronous>, transform_indices = @transform_3, window_bounds = array<i64: 128, 128>}, {transform_indices = @transform_4, window_bounds = array<i64: 64, 128>}]} {
    %c0 = arith.constant 0 : index
    %c0_0 = arith.constant 0 : index
    %0 = vector.load %arg1[%c0, %c0_0] : memref<64x32xbf16, #tpu.memory_space<vmem>>, vector<64x32xbf16>
    %c0_1 = arith.constant 0 : index
    %c0_2 = arith.constant 0 : index
    %1 = vector.load %arg2[%c0_1, %c0_2] : memref<32x128xbf16, #tpu.memory_space<vmem>>, vector<32x128xbf16>
    %cst = arith.constant dense<0.000000e+00> : vector<64x128xf32>
    %2 = tpu.matmul %0, %1, %cst {dimension_numbers = #tpu.dot_dimension_numbers<[1], [0], [0], [1], [0, 0, 1, 1], [], []>} : vector<64x32xbf16>, vector<32x128xbf16>, vector<64x128xf32> -> vector<64x128xf32>
    %c0_3 = arith.constant 0 : index
    %c0_4 = arith.constant 0 : index
    %3 = vector.load %arg3[%c0_3, %c0_4] : memref<2x128xf32, #tpu.memory_space<vmem>>, vector<2x128xf32>
    %c0_5 = arith.constant 0 : index
    %c0_6 = arith.constant 0 : index
    %4 = vector.load %arg4[%c0_5, %c0_6] : memref<128x128xbf16, #tpu.memory_space<vmem>>, vector<128x128xbf16>
    %5 = vector.extract_strided_slice %3 {offsets = [0, 0], sizes = [1, 128], strides = [1, 1]} : vector<2x128xf32> to vector<1x128xf32>
    %6 = vector.extract_strided_slice %3 {offsets = [1, 0], sizes = [1, 128], strides = [1, 1]} : vector<2x128xf32> to vector<1x128xf32>
    %7 = arith.truncf %2 : vector<64x128xf32> to vector<64x128xbf16>
    %cst_7 = arith.constant dense<0.000000e+00> : vector<64x128xf32>
    %8 = tpu.matmul %7, %4, %cst_7 {dimension_numbers = #tpu.dot_dimension_numbers<[1], [0], [0], [1], [0, 0, 1, 1], [], []>} : vector<64x128xbf16>, vector<128x128xbf16>, vector<64x128xf32> -> vector<64x128xf32>
    %9 = arith.subf %2, %8 : vector<64x128xf32>
    %10 = arith.mulf %9, %9 : vector<64x128xf32>
    %11 = arith.truncf %10 : vector<64x128xf32> to vector<64x128xbf16>
    %cst_8 = arith.constant dense<0.000000e+00> : vector<64x128xf32>
    %12 = tpu.matmul %11, %4, %cst_8 {dimension_numbers = #tpu.dot_dimension_numbers<[1], [0], [0], [1], [0, 0, 1, 1], [], []>} : vector<64x128xbf16>, vector<128x128xbf16>, vector<64x128xf32> -> vector<64x128xf32>
    %cst_9 = arith.constant 9.99999997E-7 : f32
    %13 = vector.broadcast %cst_9 : f32 to vector<64x128xf32>
    %14 = arith.addf %12, %13 : vector<64x128xf32>
    %15 = math.rsqrt %14 : vector<64x128xf32>
    %16 = arith.mulf %9, %15 : vector<64x128xf32>
    %17 = vector.broadcast %5 : vector<1x128xf32> to vector<64x128xf32>
    %18 = arith.mulf %16, %17 : vector<64x128xf32>
    %19 = vector.broadcast %6 : vector<1x128xf32> to vector<64x128xf32>
    %20 = arith.addf %18, %19 : vector<64x128xf32>
    %21 = arith.truncf %20 : vector<64x128xf32> to vector<64x128xbf16>
    %c0_10 = arith.constant 0 : index
    %c0_11 = arith.constant 0 : index
    %22 = vector.load %arg5[%c0_10, %c0_11] : memref<64x128xbf16, #tpu.memory_space<vmem>>, vector<64x128xbf16>
    tpu.vector_store %arg5[%c0_10, %c0_11], %21 {strides = array<i32>} : memref<64x128xbf16, #tpu.memory_space<vmem>>, vector<64x128xbf16>,
    return
  }
  func.func @transform_0(%arg0: i32) -> (i32, i32) {
    %c0_i32 = arith.constant 0 : i32
    %c0_i32_0 = arith.constant 0 : i32
    return %arg0, %c0_i32 : i32, i32
  }
  func.func @transform_1(%arg0: i32) -> (i32, i32) {
    %c0_i32 = arith.constant 0 : i32
    %c0_i32_0 = arith.constant 0 : i32
    %c0_i32_1 = arith.constant 0 : i32
    return %c0_i32, %c0_i32_0 : i32, i32
  }
  func.func @transform_2(%arg0: i32) -> (i32, i32) {
    %c0_i32 = arith.constant 0 : i32
    %c0_i32_0 = arith.constant 0 : i32
    %c0_i32_1 = arith.constant 0 : i32
    return %c0_i32, %c0_i32_0 : i32, i32
  }
  func.func @transform_3(%arg0: i32) -> (i32, i32) {
    %c0_i32 = arith.constant 0 : i32
    %c0_i32_0 = arith.constant 0 : i32
    %c0_i32_1 = arith.constant 0 : i32
    return %c0_i32, %c0_i32_0 : i32, i32
  }
  func.func @transform_4(%arg0: i32) -> (i32, i32) {
    %c0_i32 = arith.constant 0 : i32
    %c0_i32_0 = arith.constant 0 : i32
    return %arg0, %c0_i32 : i32, i32
  }
}

module attributes {stable_mosaic.version = 11 : i64} {
  func.func @_stage_kernel(%arg0: i32, %arg1: memref<16x256xbf16, #tpu.memory_space<vmem>>, %arg2: memref<256x128xbf16, #tpu.memory_space<vmem>>, %arg3: memref<128x256xbf16, #tpu.memory_space<vmem>>, %arg4: memref<256x128xbf16, #tpu.memory_space<vmem>>, %arg5: memref<6x128xf32, #tpu.memory_space<vmem>>, %arg6: memref<1x256xf32, #tpu.memory_space<vmem>>, %arg7: memref<128x128xbf16, #tpu.memory_space<vmem>>, %arg8: memref<16x128xbf16, #tpu.memory_space<vmem>>) attributes {dimension_semantics = [#tpu.dimension_semantics<parallel>], iteration_bounds = array<i64: 1>, scalar_prefetch = 0 : i64, scratch_operands = 0 : i64, tpu.core_type = #tpu.core_type<tc>, window_params = [{transform_indices = @transform_0, window_bounds = array<i64: 16, 256>}, {pipeline_mode = #tpu.pipeline_mode<synchronous>, transform_indices = @transform_1, window_bounds = array<i64: 256, 128>}, {pipeline_mode = #tpu.pipeline_mode<synchronous>, transform_indices = @transform_2, window_bounds = array<i64: 128, 256>}, {pipeline_mode = #tpu.pipeline_mode<synchronous>, transform_indices = @transform_3, window_bounds = array<i64: 256, 128>}, {pipeline_mode = #tpu.pipeline_mode<synchronous>, transform_indices = @transform_4, window_bounds = array<i64: 6, 128>}, {pipeline_mode = #tpu.pipeline_mode<synchronous>, transform_indices = @transform_5, window_bounds = array<i64: 1, 256>}, {pipeline_mode = #tpu.pipeline_mode<synchronous>, transform_indices = @transform_6, window_bounds = array<i64: 128, 128>}, {transform_indices = @transform_7, window_bounds = array<i64: 16, 128>}]} {
    %c0 = arith.constant 0 : index
    %c0_0 = arith.constant 0 : index
    %0 = vector.load %arg1[%c0, %c0_0] : memref<16x256xbf16, #tpu.memory_space<vmem>>, vector<16x256xbf16>
    %c0_1 = arith.constant 0 : index
    %c0_2 = arith.constant 0 : index
    %1 = vector.load %arg5[%c0_1, %c0_2] : memref<6x128xf32, #tpu.memory_space<vmem>>, vector<6x128xf32>
    %c0_3 = arith.constant 0 : index
    %c0_4 = arith.constant 0 : index
    %2 = vector.load %arg7[%c0_3, %c0_4] : memref<128x128xbf16, #tpu.memory_space<vmem>>, vector<128x128xbf16>
    %c0_5 = arith.constant 0 : index
    %c0_6 = arith.constant 0 : index
    %3 = vector.load %arg2[%c0_5, %c0_6] : memref<256x128xbf16, #tpu.memory_space<vmem>>, vector<256x128xbf16>
    %cst = arith.constant dense<0.000000e+00> : vector<16x128xf32>
    %4 = tpu.matmul %0, %3, %cst {dimension_numbers = #tpu.dot_dimension_numbers<[1], [0], [0], [1], [0, 0, 1, 1], [], []>} : vector<16x256xbf16>, vector<256x128xbf16>, vector<16x128xf32> -> vector<16x128xf32>
    %5 = vector.extract_strided_slice %1 {offsets = [0, 0], sizes = [1, 128], strides = [1, 1]} : vector<6x128xf32> to vector<1x128xf32>
    %6 = vector.broadcast %5 : vector<1x128xf32> to vector<16x128xf32>
    %7 = arith.addf %4, %6 : vector<16x128xf32>
    %8 = vector.extract_strided_slice %1 {offsets = [1, 0], sizes = [1, 128], strides = [1, 1]} : vector<6x128xf32> to vector<1x128xf32>
    %9 = vector.extract_strided_slice %1 {offsets = [2, 0], sizes = [1, 128], strides = [1, 1]} : vector<6x128xf32> to vector<1x128xf32>
    %10 = arith.truncf %7 : vector<16x128xf32> to vector<16x128xbf16>
    %cst_7 = arith.constant dense<0.000000e+00> : vector<16x128xf32>
    %11 = tpu.matmul %10, %2, %cst_7 {dimension_numbers = #tpu.dot_dimension_numbers<[1], [0], [0], [1], [0, 0, 1, 1], [], []>} : vector<16x128xbf16>, vector<128x128xbf16>, vector<16x128xf32> -> vector<16x128xf32>
    %12 = arith.subf %7, %11 : vector<16x128xf32>
    %13 = arith.mulf %12, %12 : vector<16x128xf32>
    %14 = arith.truncf %13 : vector<16x128xf32> to vector<16x128xbf16>
    %cst_8 = arith.constant dense<0.000000e+00> : vector<16x128xf32>
    %15 = tpu.matmul %14, %2, %cst_8 {dimension_numbers = #tpu.dot_dimension_numbers<[1], [0], [0], [1], [0, 0, 1, 1], [], []>} : vector<16x128xbf16>, vector<128x128xbf16>, vector<16x128xf32> -> vector<16x128xf32>
    %cst_9 = arith.constant 9.99999997E-7 : f32
    %16 = vector.broadcast %cst_9 : f32 to vector<16x128xf32>
    %17 = arith.addf %15, %16 : vector<16x128xf32>
    %18 = math.rsqrt %17 : vector<16x128xf32>
    %19 = arith.mulf %12, %18 : vector<16x128xf32>
    %20 = vector.broadcast %8 : vector<1x128xf32> to vector<16x128xf32>
    %21 = arith.mulf %19, %20 : vector<16x128xf32>
    %22 = vector.broadcast %9 : vector<1x128xf32> to vector<16x128xf32>
    %23 = arith.addf %21, %22 : vector<16x128xf32>
    %24 = vector.extract_strided_slice %1 {offsets = [3, 0], sizes = [1, 128], strides = [1, 1]} : vector<6x128xf32> to vector<1x128xf32>
    %25 = vector.extract_strided_slice %1 {offsets = [4, 0], sizes = [1, 128], strides = [1, 1]} : vector<6x128xf32> to vector<1x128xf32>
    %26 = arith.truncf %23 : vector<16x128xf32> to vector<16x128xbf16>
    %cst_10 = arith.constant dense<0.000000e+00> : vector<16x128xf32>
    %27 = tpu.matmul %26, %2, %cst_10 {dimension_numbers = #tpu.dot_dimension_numbers<[1], [0], [0], [1], [0, 0, 1, 1], [], []>} : vector<16x128xbf16>, vector<128x128xbf16>, vector<16x128xf32> -> vector<16x128xf32>
    %28 = arith.subf %23, %27 : vector<16x128xf32>
    %29 = arith.mulf %28, %28 : vector<16x128xf32>
    %30 = arith.truncf %29 : vector<16x128xf32> to vector<16x128xbf16>
    %cst_11 = arith.constant dense<0.000000e+00> : vector<16x128xf32>
    %31 = tpu.matmul %30, %2, %cst_11 {dimension_numbers = #tpu.dot_dimension_numbers<[1], [0], [0], [1], [0, 0, 1, 1], [], []>} : vector<16x128xbf16>, vector<128x128xbf16>, vector<16x128xf32> -> vector<16x128xf32>
    %cst_12 = arith.constant 9.99999997E-7 : f32
    %32 = vector.broadcast %cst_12 : f32 to vector<16x128xf32>
    %33 = arith.addf %31, %32 : vector<16x128xf32>
    %34 = math.rsqrt %33 : vector<16x128xf32>
    %35 = arith.mulf %28, %34 : vector<16x128xf32>
    %36 = vector.broadcast %24 : vector<1x128xf32> to vector<16x128xf32>
    %37 = arith.mulf %35, %36 : vector<16x128xf32>
    %38 = vector.broadcast %25 : vector<1x128xf32> to vector<16x128xf32>
    %39 = arith.addf %37, %38 : vector<16x128xf32>
    %40 = arith.truncf %39 : vector<16x128xf32> to vector<16x128xbf16>
    %c0_13 = arith.constant 0 : index
    %c0_14 = arith.constant 0 : index
    %41 = vector.load %arg3[%c0_13, %c0_14] : memref<128x256xbf16, #tpu.memory_space<vmem>>, vector<128x256xbf16>
    %cst_15 = arith.constant dense<0.000000e+00> : vector<16x256xf32>
    %42 = tpu.matmul %40, %41, %cst_15 {dimension_numbers = #tpu.dot_dimension_numbers<[1], [0], [0], [1], [0, 0, 1, 1], [], []>} : vector<16x128xbf16>, vector<128x256xbf16>, vector<16x256xf32> -> vector<16x256xf32>
    %c0_16 = arith.constant 0 : index
    %c0_17 = arith.constant 0 : index
    %43 = vector.load %arg6[%c0_16, %c0_17] : memref<1x256xf32, #tpu.memory_space<vmem>>, vector<1x256xf32>
    %44 = vector.broadcast %43 : vector<1x256xf32> to vector<16x256xf32>
    %45 = arith.addf %42, %44 : vector<16x256xf32>
    %46 = arith.mulf %45, %45 : vector<16x256xf32>
    %47 = arith.mulf %45, %46 : vector<16x256xf32>
    %cst_18 = arith.constant 4.471500e-02 : f32
    %48 = vector.broadcast %cst_18 : f32 to vector<16x256xf32>
    %49 = arith.mulf %48, %47 : vector<16x256xf32>
    %50 = arith.addf %45, %49 : vector<16x256xf32>
    %cst_19 = arith.constant 0.797884583 : f32
    %51 = vector.broadcast %cst_19 : f32 to vector<16x256xf32>
    %52 = arith.mulf %51, %50 : vector<16x256xf32>
    %53 = math.tanh %52 : vector<16x256xf32>
    %cst_20 = arith.constant 1.000000e+00 : f32
    %54 = vector.broadcast %cst_20 : f32 to vector<16x256xf32>
    %55 = arith.addf %54, %53 : vector<16x256xf32>
    %cst_21 = arith.constant 5.000000e-01 : f32
    %56 = vector.broadcast %cst_21 : f32 to vector<16x256xf32>
    %57 = arith.mulf %56, %55 : vector<16x256xf32>
    %58 = arith.mulf %45, %57 : vector<16x256xf32>
    %59 = arith.truncf %58 : vector<16x256xf32> to vector<16x256xbf16>
    %c0_22 = arith.constant 0 : index
    %c0_23 = arith.constant 0 : index
    %60 = vector.load %arg4[%c0_22, %c0_23] : memref<256x128xbf16, #tpu.memory_space<vmem>>, vector<256x128xbf16>
    %cst_24 = arith.constant dense<0.000000e+00> : vector<16x128xf32>
    %61 = tpu.matmul %59, %60, %cst_24 {dimension_numbers = #tpu.dot_dimension_numbers<[1], [0], [0], [1], [0, 0, 1, 1], [], []>} : vector<16x256xbf16>, vector<256x128xbf16>, vector<16x128xf32> -> vector<16x128xf32>
    %62 = vector.extract_strided_slice %1 {offsets = [5, 0], sizes = [1, 128], strides = [1, 1]} : vector<6x128xf32> to vector<1x128xf32>
    %63 = vector.broadcast %62 : vector<1x128xf32> to vector<16x128xf32>
    %64 = arith.addf %61, %63 : vector<16x128xf32>
    %65 = arith.addf %64, %23 : vector<16x128xf32>
    %66 = arith.truncf %65 : vector<16x128xf32> to vector<16x128xbf16>
    %c0_25 = arith.constant 0 : index
    %c0_26 = arith.constant 0 : index
    %67 = vector.load %arg8[%c0_25, %c0_26] : memref<16x128xbf16, #tpu.memory_space<vmem>>, vector<16x128xbf16>
    tpu.vector_store %arg8[%c0_25, %c0_26], %66 {strides = array<i32>} : memref<16x128xbf16, #tpu.memory_space<vmem>>, vector<16x128xbf16>,
    return
  }
  func.func @transform_0(%arg0: i32) -> (i32, i32) {
    %c0_i32 = arith.constant 0 : i32
    %c0_i32_0 = arith.constant 0 : i32
    return %arg0, %c0_i32 : i32, i32
  }
  func.func @transform_1(%arg0: i32) -> (i32, i32) {
    %c0_i32 = arith.constant 0 : i32
    %c0_i32_0 = arith.constant 0 : i32
    %c0_i32_1 = arith.constant 0 : i32
    return %c0_i32, %c0_i32_0 : i32, i32
  }
  func.func @transform_2(%arg0: i32) -> (i32, i32) {
    %c0_i32 = arith.constant 0 : i32
    %c0_i32_0 = arith.constant 0 : i32
    %c0_i32_1 = arith.constant 0 : i32
    return %c0_i32, %c0_i32_0 : i32, i32
  }
  func.func @transform_3(%arg0: i32) -> (i32, i32) {
    %c0_i32 = arith.constant 0 : i32
    %c0_i32_0 = arith.constant 0 : i32
    %c0_i32_1 = arith.constant 0 : i32
    return %c0_i32, %c0_i32_0 : i32, i32
  }
  func.func @transform_4(%arg0: i32) -> (i32, i32) {
    %c0_i32 = arith.constant 0 : i32
    %c0_i32_0 = arith.constant 0 : i32
    %c0_i32_1 = arith.constant 0 : i32
    return %c0_i32, %c0_i32_0 : i32, i32
  }
  func.func @transform_5(%arg0: i32) -> (i32, i32) {
    %c0_i32 = arith.constant 0 : i32
    %c0_i32_0 = arith.constant 0 : i32
    %c0_i32_1 = arith.constant 0 : i32
    return %c0_i32, %c0_i32_0 : i32, i32
  }
  func.func @transform_6(%arg0: i32) -> (i32, i32) {
    %c0_i32 = arith.constant 0 : i32
    %c0_i32_0 = arith.constant 0 : i32
    %c0_i32_1 = arith.constant 0 : i32
    return %c0_i32, %c0_i32_0 : i32, i32
  }
  func.func @transform_7(%arg0: i32) -> (i32, i32) {
    %c0_i32 = arith.constant 0 : i32
    %c0_i32_0 = arith.constant 0 : i32
    return %arg0, %c0_i32 : i32, i32
  }
}

module attributes {stable_mosaic.version = 11 : i64} {
  func.func @_stage_kernel(%arg0: i32, %arg1: memref<8x256xbf16, #tpu.memory_space<vmem>>, %arg2: memref<256x128xbf16, #tpu.memory_space<vmem>>, %arg3: memref<128x256xbf16, #tpu.memory_space<vmem>>, %arg4: memref<256x128xbf16, #tpu.memory_space<vmem>>, %arg5: memref<6x128xf32, #tpu.memory_space<vmem>>, %arg6: memref<1x256xf32, #tpu.memory_space<vmem>>, %arg7: memref<128x128xbf16, #tpu.memory_space<vmem>>, %arg8: memref<8x128xbf16, #tpu.memory_space<vmem>>) attributes {dimension_semantics = [#tpu.dimension_semantics<parallel>], iteration_bounds = array<i64: 1>, scalar_prefetch = 0 : i64, scratch_operands = 0 : i64, tpu.core_type = #tpu.core_type<tc>, window_params = [{transform_indices = @transform_0, window_bounds = array<i64: 8, 256>}, {pipeline_mode = #tpu.pipeline_mode<synchronous>, transform_indices = @transform_1, window_bounds = array<i64: 256, 128>}, {pipeline_mode = #tpu.pipeline_mode<synchronous>, transform_indices = @transform_2, window_bounds = array<i64: 128, 256>}, {pipeline_mode = #tpu.pipeline_mode<synchronous>, transform_indices = @transform_3, window_bounds = array<i64: 256, 128>}, {pipeline_mode = #tpu.pipeline_mode<synchronous>, transform_indices = @transform_4, window_bounds = array<i64: 6, 128>}, {pipeline_mode = #tpu.pipeline_mode<synchronous>, transform_indices = @transform_5, window_bounds = array<i64: 1, 256>}, {pipeline_mode = #tpu.pipeline_mode<synchronous>, transform_indices = @transform_6, window_bounds = array<i64: 128, 128>}, {transform_indices = @transform_7, window_bounds = array<i64: 8, 128>}]} {
    %c0 = arith.constant 0 : index
    %c0_0 = arith.constant 0 : index
    %0 = vector.load %arg1[%c0, %c0_0] : memref<8x256xbf16, #tpu.memory_space<vmem>>, vector<8x256xbf16>
    %c0_1 = arith.constant 0 : index
    %c0_2 = arith.constant 0 : index
    %1 = vector.load %arg5[%c0_1, %c0_2] : memref<6x128xf32, #tpu.memory_space<vmem>>, vector<6x128xf32>
    %c0_3 = arith.constant 0 : index
    %c0_4 = arith.constant 0 : index
    %2 = vector.load %arg7[%c0_3, %c0_4] : memref<128x128xbf16, #tpu.memory_space<vmem>>, vector<128x128xbf16>
    %c0_5 = arith.constant 0 : index
    %c0_6 = arith.constant 0 : index
    %3 = vector.load %arg2[%c0_5, %c0_6] : memref<256x128xbf16, #tpu.memory_space<vmem>>, vector<256x128xbf16>
    %cst = arith.constant dense<0.000000e+00> : vector<8x128xf32>
    %4 = tpu.matmul %0, %3, %cst {dimension_numbers = #tpu.dot_dimension_numbers<[1], [0], [0], [1], [0, 0, 1, 1], [], []>} : vector<8x256xbf16>, vector<256x128xbf16>, vector<8x128xf32> -> vector<8x128xf32>
    %5 = vector.extract_strided_slice %1 {offsets = [0, 0], sizes = [1, 128], strides = [1, 1]} : vector<6x128xf32> to vector<1x128xf32>
    %6 = vector.broadcast %5 : vector<1x128xf32> to vector<8x128xf32>
    %7 = arith.addf %4, %6 : vector<8x128xf32>
    %8 = vector.extract_strided_slice %1 {offsets = [1, 0], sizes = [1, 128], strides = [1, 1]} : vector<6x128xf32> to vector<1x128xf32>
    %9 = vector.extract_strided_slice %1 {offsets = [2, 0], sizes = [1, 128], strides = [1, 1]} : vector<6x128xf32> to vector<1x128xf32>
    %10 = arith.truncf %7 : vector<8x128xf32> to vector<8x128xbf16>
    %cst_7 = arith.constant dense<0.000000e+00> : vector<8x128xf32>
    %11 = tpu.matmul %10, %2, %cst_7 {dimension_numbers = #tpu.dot_dimension_numbers<[1], [0], [0], [1], [0, 0, 1, 1], [], []>} : vector<8x128xbf16>, vector<128x128xbf16>, vector<8x128xf32> -> vector<8x128xf32>
    %12 = arith.subf %7, %11 : vector<8x128xf32>
    %13 = arith.mulf %12, %12 : vector<8x128xf32>
    %14 = arith.truncf %13 : vector<8x128xf32> to vector<8x128xbf16>
    %cst_8 = arith.constant dense<0.000000e+00> : vector<8x128xf32>
    %15 = tpu.matmul %14, %2, %cst_8 {dimension_numbers = #tpu.dot_dimension_numbers<[1], [0], [0], [1], [0, 0, 1, 1], [], []>} : vector<8x128xbf16>, vector<128x128xbf16>, vector<8x128xf32> -> vector<8x128xf32>
    %cst_9 = arith.constant 9.99999997E-7 : f32
    %16 = vector.broadcast %cst_9 : f32 to vector<8x128xf32>
    %17 = arith.addf %15, %16 : vector<8x128xf32>
    %18 = math.rsqrt %17 : vector<8x128xf32>
    %19 = arith.mulf %12, %18 : vector<8x128xf32>
    %20 = vector.broadcast %8 : vector<1x128xf32> to vector<8x128xf32>
    %21 = arith.mulf %19, %20 : vector<8x128xf32>
    %22 = vector.broadcast %9 : vector<1x128xf32> to vector<8x128xf32>
    %23 = arith.addf %21, %22 : vector<8x128xf32>
    %24 = vector.extract_strided_slice %1 {offsets = [3, 0], sizes = [1, 128], strides = [1, 1]} : vector<6x128xf32> to vector<1x128xf32>
    %25 = vector.extract_strided_slice %1 {offsets = [4, 0], sizes = [1, 128], strides = [1, 1]} : vector<6x128xf32> to vector<1x128xf32>
    %26 = arith.truncf %23 : vector<8x128xf32> to vector<8x128xbf16>
    %cst_10 = arith.constant dense<0.000000e+00> : vector<8x128xf32>
    %27 = tpu.matmul %26, %2, %cst_10 {dimension_numbers = #tpu.dot_dimension_numbers<[1], [0], [0], [1], [0, 0, 1, 1], [], []>} : vector<8x128xbf16>, vector<128x128xbf16>, vector<8x128xf32> -> vector<8x128xf32>
    %28 = arith.subf %23, %27 : vector<8x128xf32>
    %29 = arith.mulf %28, %28 : vector<8x128xf32>
    %30 = arith.truncf %29 : vector<8x128xf32> to vector<8x128xbf16>
    %cst_11 = arith.constant dense<0.000000e+00> : vector<8x128xf32>
    %31 = tpu.matmul %30, %2, %cst_11 {dimension_numbers = #tpu.dot_dimension_numbers<[1], [0], [0], [1], [0, 0, 1, 1], [], []>} : vector<8x128xbf16>, vector<128x128xbf16>, vector<8x128xf32> -> vector<8x128xf32>
    %cst_12 = arith.constant 9.99999997E-7 : f32
    %32 = vector.broadcast %cst_12 : f32 to vector<8x128xf32>
    %33 = arith.addf %31, %32 : vector<8x128xf32>
    %34 = math.rsqrt %33 : vector<8x128xf32>
    %35 = arith.mulf %28, %34 : vector<8x128xf32>
    %36 = vector.broadcast %24 : vector<1x128xf32> to vector<8x128xf32>
    %37 = arith.mulf %35, %36 : vector<8x128xf32>
    %38 = vector.broadcast %25 : vector<1x128xf32> to vector<8x128xf32>
    %39 = arith.addf %37, %38 : vector<8x128xf32>
    %40 = arith.truncf %39 : vector<8x128xf32> to vector<8x128xbf16>
    %c0_13 = arith.constant 0 : index
    %c0_14 = arith.constant 0 : index
    %41 = vector.load %arg3[%c0_13, %c0_14] : memref<128x256xbf16, #tpu.memory_space<vmem>>, vector<128x256xbf16>
    %cst_15 = arith.constant dense<0.000000e+00> : vector<8x256xf32>
    %42 = tpu.matmul %40, %41, %cst_15 {dimension_numbers = #tpu.dot_dimension_numbers<[1], [0], [0], [1], [0, 0, 1, 1], [], []>} : vector<8x128xbf16>, vector<128x256xbf16>, vector<8x256xf32> -> vector<8x256xf32>
    %c0_16 = arith.constant 0 : index
    %c0_17 = arith.constant 0 : index
    %43 = vector.load %arg6[%c0_16, %c0_17] : memref<1x256xf32, #tpu.memory_space<vmem>>, vector<1x256xf32>
    %44 = vector.broadcast %43 : vector<1x256xf32> to vector<8x256xf32>
    %45 = arith.addf %42, %44 : vector<8x256xf32>
    %46 = arith.mulf %45, %45 : vector<8x256xf32>
    %47 = arith.mulf %45, %46 : vector<8x256xf32>
    %cst_18 = arith.constant 4.471500e-02 : f32
    %48 = vector.broadcast %cst_18 : f32 to vector<8x256xf32>
    %49 = arith.mulf %48, %47 : vector<8x256xf32>
    %50 = arith.addf %45, %49 : vector<8x256xf32>
    %cst_19 = arith.constant 0.797884583 : f32
    %51 = vector.broadcast %cst_19 : f32 to vector<8x256xf32>
    %52 = arith.mulf %51, %50 : vector<8x256xf32>
    %53 = math.tanh %52 : vector<8x256xf32>
    %cst_20 = arith.constant 1.000000e+00 : f32
    %54 = vector.broadcast %cst_20 : f32 to vector<8x256xf32>
    %55 = arith.addf %54, %53 : vector<8x256xf32>
    %cst_21 = arith.constant 5.000000e-01 : f32
    %56 = vector.broadcast %cst_21 : f32 to vector<8x256xf32>
    %57 = arith.mulf %56, %55 : vector<8x256xf32>
    %58 = arith.mulf %45, %57 : vector<8x256xf32>
    %59 = arith.truncf %58 : vector<8x256xf32> to vector<8x256xbf16>
    %c0_22 = arith.constant 0 : index
    %c0_23 = arith.constant 0 : index
    %60 = vector.load %arg4[%c0_22, %c0_23] : memref<256x128xbf16, #tpu.memory_space<vmem>>, vector<256x128xbf16>
    %cst_24 = arith.constant dense<0.000000e+00> : vector<8x128xf32>
    %61 = tpu.matmul %59, %60, %cst_24 {dimension_numbers = #tpu.dot_dimension_numbers<[1], [0], [0], [1], [0, 0, 1, 1], [], []>} : vector<8x256xbf16>, vector<256x128xbf16>, vector<8x128xf32> -> vector<8x128xf32>
    %62 = vector.extract_strided_slice %1 {offsets = [5, 0], sizes = [1, 128], strides = [1, 1]} : vector<6x128xf32> to vector<1x128xf32>
    %63 = vector.broadcast %62 : vector<1x128xf32> to vector<8x128xf32>
    %64 = arith.addf %61, %63 : vector<8x128xf32>
    %65 = arith.addf %64, %23 : vector<8x128xf32>
    %66 = arith.truncf %65 : vector<8x128xf32> to vector<8x128xbf16>
    %c0_25 = arith.constant 0 : index
    %c0_26 = arith.constant 0 : index
    %67 = vector.load %arg8[%c0_25, %c0_26] : memref<8x128xbf16, #tpu.memory_space<vmem>>, vector<8x128xbf16>
    tpu.vector_store %arg8[%c0_25, %c0_26], %66 {strides = array<i32>} : memref<8x128xbf16, #tpu.memory_space<vmem>>, vector<8x128xbf16>,
    return
  }
  func.func @transform_0(%arg0: i32) -> (i32, i32) {
    %c0_i32 = arith.constant 0 : i32
    %c0_i32_0 = arith.constant 0 : i32
    return %arg0, %c0_i32 : i32, i32
  }
  func.func @transform_1(%arg0: i32) -> (i32, i32) {
    %c0_i32 = arith.constant 0 : i32
    %c0_i32_0 = arith.constant 0 : i32
    %c0_i32_1 = arith.constant 0 : i32
    return %c0_i32, %c0_i32_0 : i32, i32
  }
  func.func @transform_2(%arg0: i32) -> (i32, i32) {
    %c0_i32 = arith.constant 0 : i32
    %c0_i32_0 = arith.constant 0 : i32
    %c0_i32_1 = arith.constant 0 : i32
    return %c0_i32, %c0_i32_0 : i32, i32
  }
  func.func @transform_3(%arg0: i32) -> (i32, i32) {
    %c0_i32 = arith.constant 0 : i32
    %c0_i32_0 = arith.constant 0 : i32
    %c0_i32_1 = arith.constant 0 : i32
    return %c0_i32, %c0_i32_0 : i32, i32
  }
  func.func @transform_4(%arg0: i32) -> (i32, i32) {
    %c0_i32 = arith.constant 0 : i32
    %c0_i32_0 = arith.constant 0 : i32
    %c0_i32_1 = arith.constant 0 : i32
    return %c0_i32, %c0_i32_0 : i32, i32
  }
  func.func @transform_5(%arg0: i32) -> (i32, i32) {
    %c0_i32 = arith.constant 0 : i32
    %c0_i32_0 = arith.constant 0 : i32
    %c0_i32_1 = arith.constant 0 : i32
    return %c0_i32, %c0_i32_0 : i32, i32
  }
  func.func @transform_6(%arg0: i32) -> (i32, i32) {
    %c0_i32 = arith.constant 0 : i32
    %c0_i32_0 = arith.constant 0 : i32
    %c0_i32_1 = arith.constant 0 : i32
    return %c0_i32, %c0_i32_0 : i32, i32
  }
  func.func @transform_7(%arg0: i32) -> (i32, i32) {
    %c0_i32 = arith.constant 0 : i32
    %c0_i32_0 = arith.constant 0 : i32
    return %arg0, %c0_i32 : i32, i32
  }
}

module attributes {stable_mosaic.version = 11 : i64} {
  func.func @kernel(%arg0: i32, %arg1: memref<4x256xbf16, #tpu.memory_space<vmem>>, %arg2: memref<256x128xbf16, #tpu.memory_space<vmem>>, %arg3: memref<2x128xf32, #tpu.memory_space<vmem>>, %arg4: memref<128x128xbf16, #tpu.memory_space<vmem>>, %arg5: memref<4x128xbf16, #tpu.memory_space<vmem>>) attributes {dimension_semantics = [#tpu.dimension_semantics<parallel>], iteration_bounds = array<i64: 1>, scalar_prefetch = 0 : i64, scratch_operands = 0 : i64, tpu.core_type = #tpu.core_type<tc>, window_params = [{transform_indices = @transform_0, window_bounds = array<i64: 4, 256>}, {pipeline_mode = #tpu.pipeline_mode<synchronous>, transform_indices = @transform_1, window_bounds = array<i64: 256, 128>}, {pipeline_mode = #tpu.pipeline_mode<synchronous>, transform_indices = @transform_2, window_bounds = array<i64: 2, 128>}, {pipeline_mode = #tpu.pipeline_mode<synchronous>, transform_indices = @transform_3, window_bounds = array<i64: 128, 128>}, {transform_indices = @transform_4, window_bounds = array<i64: 4, 128>}]} {
    %c0 = arith.constant 0 : index
    %c0_0 = arith.constant 0 : index
    %0 = vector.load %arg1[%c0, %c0_0] : memref<4x256xbf16, #tpu.memory_space<vmem>>, vector<4x256xbf16>
    %c0_1 = arith.constant 0 : index
    %c0_2 = arith.constant 0 : index
    %1 = vector.load %arg2[%c0_1, %c0_2] : memref<256x128xbf16, #tpu.memory_space<vmem>>, vector<256x128xbf16>
    %cst = arith.constant dense<0.000000e+00> : vector<4x128xf32>
    %2 = tpu.matmul %0, %1, %cst {dimension_numbers = #tpu.dot_dimension_numbers<[1], [0], [0], [1], [0, 0, 1, 1], [], []>} : vector<4x256xbf16>, vector<256x128xbf16>, vector<4x128xf32> -> vector<4x128xf32>
    %c0_3 = arith.constant 0 : index
    %c0_4 = arith.constant 0 : index
    %3 = vector.load %arg3[%c0_3, %c0_4] : memref<2x128xf32, #tpu.memory_space<vmem>>, vector<2x128xf32>
    %c0_5 = arith.constant 0 : index
    %c0_6 = arith.constant 0 : index
    %4 = vector.load %arg4[%c0_5, %c0_6] : memref<128x128xbf16, #tpu.memory_space<vmem>>, vector<128x128xbf16>
    %5 = vector.extract_strided_slice %3 {offsets = [0, 0], sizes = [1, 128], strides = [1, 1]} : vector<2x128xf32> to vector<1x128xf32>
    %6 = vector.extract_strided_slice %3 {offsets = [1, 0], sizes = [1, 128], strides = [1, 1]} : vector<2x128xf32> to vector<1x128xf32>
    %7 = arith.truncf %2 : vector<4x128xf32> to vector<4x128xbf16>
    %cst_7 = arith.constant dense<0.000000e+00> : vector<4x128xf32>
    %8 = tpu.matmul %7, %4, %cst_7 {dimension_numbers = #tpu.dot_dimension_numbers<[1], [0], [0], [1], [0, 0, 1, 1], [], []>} : vector<4x128xbf16>, vector<128x128xbf16>, vector<4x128xf32> -> vector<4x128xf32>
    %9 = arith.subf %2, %8 : vector<4x128xf32>
    %10 = arith.mulf %9, %9 : vector<4x128xf32>
    %11 = arith.truncf %10 : vector<4x128xf32> to vector<4x128xbf16>
    %cst_8 = arith.constant dense<0.000000e+00> : vector<4x128xf32>
    %12 = tpu.matmul %11, %4, %cst_8 {dimension_numbers = #tpu.dot_dimension_numbers<[1], [0], [0], [1], [0, 0, 1, 1], [], []>} : vector<4x128xbf16>, vector<128x128xbf16>, vector<4x128xf32> -> vector<4x128xf32>
    %cst_9 = arith.constant 9.99999997E-7 : f32
    %13 = vector.broadcast %cst_9 : f32 to vector<4x128xf32>
    %14 = arith.addf %12, %13 : vector<4x128xf32>
    %15 = math.rsqrt %14 : vector<4x128xf32>
    %16 = arith.mulf %9, %15 : vector<4x128xf32>
    %17 = vector.broadcast %5 : vector<1x128xf32> to vector<4x128xf32>
    %18 = arith.mulf %16, %17 : vector<4x128xf32>
    %19 = vector.broadcast %6 : vector<1x128xf32> to vector<4x128xf32>
    %20 = arith.addf %18, %19 : vector<4x128xf32>
    %21 = arith.truncf %20 : vector<4x128xf32> to vector<4x128xbf16>
    %c0_10 = arith.constant 0 : index
    %c0_11 = arith.constant 0 : index
    %22 = vector.load %arg5[%c0_10, %c0_11] : memref<4x128xbf16, #tpu.memory_space<vmem>>, vector<4x128xbf16>
    tpu.vector_store %arg5[%c0_10, %c0_11], %21 {strides = array<i32>} : memref<4x128xbf16, #tpu.memory_space<vmem>>, vector<4x128xbf16>,
    return
  }
  func.func @transform_0(%arg0: i32) -> (i32, i32) {
    %c0_i32 = arith.constant 0 : i32
    %c0_i32_0 = arith.constant 0 : i32
    return %arg0, %c0_i32 : i32, i32
  }
  func.func @transform_1(%arg0: i32) -> (i32, i32) {
    %c0_i32 = arith.constant 0 : i32
    %c0_i32_0 = arith.constant 0 : i32
    %c0_i32_1 = arith.constant 0 : i32
    return %c0_i32, %c0_i32_0 : i32, i32
  }
  func.func @transform_2(%arg0: i32) -> (i32, i32) {
    %c0_i32 = arith.constant 0 : i32
    %c0_i32_0 = arith.constant 0 : i32
    %c0_i32_1 = arith.constant 0 : i32
    return %c0_i32, %c0_i32_0 : i32, i32
  }
  func.func @transform_3(%arg0: i32) -> (i32, i32) {
    %c0_i32 = arith.constant 0 : i32
    %c0_i32_0 = arith.constant 0 : i32
    %c0_i32_1 = arith.constant 0 : i32
    return %c0_i32, %c0_i32_0 : i32, i32
  }
  func.func @transform_4(%arg0: i32) -> (i32, i32) {
    %c0_i32 = arith.constant 0 : i32
    %c0_i32_0 = arith.constant 0 : i32
    return %arg0, %c0_i32 : i32, i32
  }
}

module attributes {stable_mosaic.version = 11 : i64} {
  func.func @kernel(%arg0: i32, %arg1: memref<16x128xbf16, #tpu.memory_space<vmem>>, %arg2: memref<128x128xbf16, #tpu.memory_space<vmem>>, %arg3: memref<2x128xf32, #tpu.memory_space<vmem>>, %arg4: memref<128x128xbf16, #tpu.memory_space<vmem>>, %arg5: memref<16x128xbf16, #tpu.memory_space<vmem>>, %arg6: memref<16x128xbf16, #tpu.memory_space<vmem>>) attributes {dimension_semantics = [#tpu.dimension_semantics<parallel>], iteration_bounds = array<i64: 1>, scalar_prefetch = 0 : i64, scratch_operands = 0 : i64, tpu.core_type = #tpu.core_type<tc>, window_params = [{transform_indices = @transform_0, window_bounds = array<i64: 16, 128>}, {pipeline_mode = #tpu.pipeline_mode<synchronous>, transform_indices = @transform_1, window_bounds = array<i64: 128, 128>}, {pipeline_mode = #tpu.pipeline_mode<synchronous>, transform_indices = @transform_2, window_bounds = array<i64: 2, 128>}, {pipeline_mode = #tpu.pipeline_mode<synchronous>, transform_indices = @transform_3, window_bounds = array<i64: 128, 128>}, {transform_indices = @transform_4, window_bounds = array<i64: 16, 128>}, {transform_indices = @transform_5, window_bounds = array<i64: 16, 128>}]} {
    %c0 = arith.constant 0 : index
    %c0_0 = arith.constant 0 : index
    %0 = vector.load %arg1[%c0, %c0_0] : memref<16x128xbf16, #tpu.memory_space<vmem>>, vector<16x128xbf16>
    %c0_1 = arith.constant 0 : index
    %c0_2 = arith.constant 0 : index
    %1 = vector.load %arg2[%c0_1, %c0_2] : memref<128x128xbf16, #tpu.memory_space<vmem>>, vector<128x128xbf16>
    %cst = arith.constant dense<0.000000e+00> : vector<16x128xf32>
    %2 = tpu.matmul %0, %1, %cst {dimension_numbers = #tpu.dot_dimension_numbers<[1], [0], [0], [1], [0, 0, 1, 1], [], []>} : vector<16x128xbf16>, vector<128x128xbf16>, vector<16x128xf32> -> vector<16x128xf32>
    %c0_3 = arith.constant 0 : index
    %c0_4 = arith.constant 0 : index
    %3 = vector.load %arg3[%c0_3, %c0_4] : memref<2x128xf32, #tpu.memory_space<vmem>>, vector<2x128xf32>
    %c0_5 = arith.constant 0 : index
    %c0_6 = arith.constant 0 : index
    %4 = vector.load %arg4[%c0_5, %c0_6] : memref<128x128xbf16, #tpu.memory_space<vmem>>, vector<128x128xbf16>
    %5 = vector.extract_strided_slice %3 {offsets = [0, 0], sizes = [1, 128], strides = [1, 1]} : vector<2x128xf32> to vector<1x128xf32>
    %6 = vector.extract_strided_slice %3 {offsets = [1, 0], sizes = [1, 128], strides = [1, 1]} : vector<2x128xf32> to vector<1x128xf32>
    %7 = arith.truncf %2 : vector<16x128xf32> to vector<16x128xbf16>
    %cst_7 = arith.constant dense<0.000000e+00> : vector<16x128xf32>
    %8 = tpu.matmul %7, %4, %cst_7 {dimension_numbers = #tpu.dot_dimension_numbers<[1], [0], [0], [1], [0, 0, 1, 1], [], []>} : vector<16x128xbf16>, vector<128x128xbf16>, vector<16x128xf32> -> vector<16x128xf32>
    %9 = arith.subf %2, %8 : vector<16x128xf32>
    %10 = arith.mulf %9, %9 : vector<16x128xf32>
    %11 = arith.truncf %10 : vector<16x128xf32> to vector<16x128xbf16>
    %cst_8 = arith.constant dense<0.000000e+00> : vector<16x128xf32>
    %12 = tpu.matmul %11, %4, %cst_8 {dimension_numbers = #tpu.dot_dimension_numbers<[1], [0], [0], [1], [0, 0, 1, 1], [], []>} : vector<16x128xbf16>, vector<128x128xbf16>, vector<16x128xf32> -> vector<16x128xf32>
    %cst_9 = arith.constant 9.99999997E-7 : f32
    %13 = vector.broadcast %cst_9 : f32 to vector<16x128xf32>
    %14 = arith.addf %12, %13 : vector<16x128xf32>
    %15 = math.rsqrt %14 : vector<16x128xf32>
    %16 = arith.mulf %9, %15 : vector<16x128xf32>
    %17 = vector.broadcast %5 : vector<1x128xf32> to vector<16x128xf32>
    %18 = arith.mulf %16, %17 : vector<16x128xf32>
    %19 = vector.broadcast %6 : vector<1x128xf32> to vector<16x128xf32>
    %20 = arith.addf %18, %19 : vector<16x128xf32>
    %c0_10 = arith.constant 0 : index
    %c0_11 = arith.constant 0 : index
    %21 = vector.load %arg5[%c0_10, %c0_11] : memref<16x128xbf16, #tpu.memory_space<vmem>>, vector<16x128xbf16>
    %22 = arith.extf %21 : vector<16x128xbf16> to vector<16x128xf32>
    %23 = arith.addf %20, %22 : vector<16x128xf32>
    %24 = arith.truncf %23 : vector<16x128xf32> to vector<16x128xbf16>
    %c0_12 = arith.constant 0 : index
    %c0_13 = arith.constant 0 : index
    %25 = vector.load %arg6[%c0_12, %c0_13] : memref<16x128xbf16, #tpu.memory_space<vmem>>, vector<16x128xbf16>
    tpu.vector_store %arg6[%c0_12, %c0_13], %24 {strides = array<i32>} : memref<16x128xbf16, #tpu.memory_space<vmem>>, vector<16x128xbf16>,
    return
  }
  func.func @transform_0(%arg0: i32) -> (i32, i32) {
    %c0_i32 = arith.constant 0 : i32
    %c0_i32_0 = arith.constant 0 : i32
    return %arg0, %c0_i32 : i32, i32
  }
  func.func @transform_1(%arg0: i32) -> (i32, i32) {
    %c0_i32 = arith.constant 0 : i32
    %c0_i32_0 = arith.constant 0 : i32
    %c0_i32_1 = arith.constant 0 : i32
    return %c0_i32, %c0_i32_0 : i32, i32
  }
  func.func @transform_2(%arg0: i32) -> (i32, i32) {
    %c0_i32 = arith.constant 0 : i32
    %c0_i32_0 = arith.constant 0 : i32
    %c0_i32_1 = arith.constant 0 : i32
    return %c0_i32, %c0_i32_0 : i32, i32
  }
  func.func @transform_3(%arg0: i32) -> (i32, i32) {
    %c0_i32 = arith.constant 0 : i32
    %c0_i32_0 = arith.constant 0 : i32
    %c0_i32_1 = arith.constant 0 : i32
    return %c0_i32, %c0_i32_0 : i32, i32
  }
  func.func @transform_4(%arg0: i32) -> (i32, i32) {
    %c0_i32 = arith.constant 0 : i32
    %c0_i32_0 = arith.constant 0 : i32
    return %arg0, %c0_i32 : i32, i32
  }
  func.func @transform_5(%arg0: i32) -> (i32, i32) {
    %c0_i32 = arith.constant 0 : i32
    %c0_i32_0 = arith.constant 0 : i32
    return %arg0, %c0_i32 : i32, i32
  }
}

module attributes {stable_mosaic.version = 11 : i64} {
  func.func @_neck_out_kernel(%arg0: i32, %arg1: memref<1x38x64xbf16, #tpu.memory_space<vmem>>, %arg2: memref<576x64xbf16, #tpu.memory_space<vmem>>, %arg3: memref<64x64xbf16, #tpu.memory_space<vmem>>, %arg4: memref<4x64xf32, #tpu.memory_space<vmem>>, %arg5: memref<1x24x64xf32, #tpu.memory_space<vmem>>) attributes {dimension_semantics = [#tpu.dimension_semantics<parallel>], iteration_bounds = array<i64: 2>, scalar_prefetch = 0 : i64, scratch_operands = 0 : i64, tpu.core_type = #tpu.core_type<tc>, window_params = [{transform_indices = @transform_0, window_bounds = array<i64: 1, 38, 64>}, {pipeline_mode = #tpu.pipeline_mode<synchronous>, transform_indices = @transform_1, window_bounds = array<i64: 576, 64>}, {pipeline_mode = #tpu.pipeline_mode<synchronous>, transform_indices = @transform_2, window_bounds = array<i64: 64, 64>}, {pipeline_mode = #tpu.pipeline_mode<synchronous>, transform_indices = @transform_3, window_bounds = array<i64: 4, 64>}, {transform_indices = @transform_4, window_bounds = array<i64: 1, 24, 64>}]} {
    %c0 = arith.constant 0 : index
    %c0_0 = arith.constant 0 : index
    %c0_1 = arith.constant 0 : index
    %0 = vector.load %arg1[%c0, %c0_0, %c0_1] : memref<1x38x64xbf16, #tpu.memory_space<vmem>>, vector<1x24x64xbf16>
    %1 = vector.shape_cast %0 : vector<1x24x64xbf16> to vector<24x64xbf16>
    %c0_2 = arith.constant 0 : index
    %c1 = arith.constant 1 : index
    %c0_3 = arith.constant 0 : index
    %2 = vector.load %arg1[%c0_2, %c1, %c0_3] : memref<1x38x64xbf16, #tpu.memory_space<vmem>>, vector<1x24x64xbf16>
    %3 = vector.shape_cast %2 : vector<1x24x64xbf16> to vector<24x64xbf16>
    %c0_4 = arith.constant 0 : index
    %c2 = arith.constant 2 : index
    %c0_5 = arith.constant 0 : index
    %4 = vector.load %arg1[%c0_4, %c2, %c0_5] : memref<1x38x64xbf16, #tpu.memory_space<vmem>>, vector<1x24x64xbf16>
    %5 = vector.shape_cast %4 : vector<1x24x64xbf16> to vector<24x64xbf16>
    %c0_6 = arith.constant 0 : index
    %c6 = arith.constant 6 : index
    %c0_7 = arith.constant 0 : index
    %6 = vector.load %arg1[%c0_6, %c6, %c0_7] : memref<1x38x64xbf16, #tpu.memory_space<vmem>>, vector<1x24x64xbf16>
    %7 = vector.shape_cast %6 : vector<1x24x64xbf16> to vector<24x64xbf16>
    %c0_8 = arith.constant 0 : index
    %c7 = arith.constant 7 : index
    %c0_9 = arith.constant 0 : index
    %8 = vector.load %arg1[%c0_8, %c7, %c0_9] : memref<1x38x64xbf16, #tpu.memory_space<vmem>>, vector<1x24x64xbf16>
    %9 = vector.shape_cast %8 : vector<1x24x64xbf16> to vector<24x64xbf16>
    %c0_10 = arith.constant 0 : index
    %c8 = arith.constant 8 : index
    %c0_11 = arith.constant 0 : index
    %10 = vector.load %arg1[%c0_10, %c8, %c0_11] : memref<1x38x64xbf16, #tpu.memory_space<vmem>>, vector<1x24x64xbf16>
    %11 = vector.shape_cast %10 : vector<1x24x64xbf16> to vector<24x64xbf16>
    %c0_12 = arith.constant 0 : index
    %c12 = arith.constant 12 : index
    %c0_13 = arith.constant 0 : index
    %12 = vector.load %arg1[%c0_12, %c12, %c0_13] : memref<1x38x64xbf16, #tpu.memory_space<vmem>>, vector<1x24x64xbf16>
    %13 = vector.shape_cast %12 : vector<1x24x64xbf16> to vector<24x64xbf16>
    %c0_14 = arith.constant 0 : index
    %c13 = arith.constant 13 : index
    %c0_15 = arith.constant 0 : index
    %14 = vector.load %arg1[%c0_14, %c13, %c0_15] : memref<1x38x64xbf16, #tpu.memory_space<vmem>>, vector<1x24x64xbf16>
    %15 = vector.shape_cast %14 : vector<1x24x64xbf16> to vector<24x64xbf16>
    %c0_16 = arith.constant 0 : index
    %c14 = arith.constant 14 : index
    %c0_17 = arith.constant 0 : index
    %16 = vector.load %arg1[%c0_16, %c14, %c0_17] : memref<1x38x64xbf16, #tpu.memory_space<vmem>>, vector<1x24x64xbf16>
    %17 = vector.shape_cast %16 : vector<1x24x64xbf16> to vector<24x64xbf16>
    %18 = tpu.concatenate %1, %3, %5, %7, %9, %11, %13, %15, %17 in 1 : vector<24x64xbf16>, vector<24x64xbf16>, vector<24x64xbf16>, vector<24x64xbf16>, vector<24x64xbf16>, vector<24x64xbf16>, vector<24x64xbf16>, vector<24x64xbf16>, vector<24x64xbf16> -> vector<24x576xbf16>
    %c0_18 = arith.constant 0 : index
    %c0_19 = arith.constant 0 : index
    %19 = vector.load %arg2[%c0_18, %c0_19] : memref<576x64xbf16, #tpu.memory_space<vmem>>, vector<576x64xbf16>
    %cst = arith.constant dense<0.000000e+00> : vector<24x64xf32>
    %20 = tpu.matmul %18, %19, %cst {dimension_numbers = #tpu.dot_dimension_numbers<[1], [0], [0], [1], [0, 0, 1, 1], [], []>} : vector<24x576xbf16>, vector<576x64xbf16>, vector<24x64xf32> -> vector<24x64xf32>
    %c0_20 = arith.constant 0 : index
    %c0_21 = arith.constant 0 : index
    %21 = vector.load %arg4[%c0_20, %c0_21] : memref<4x64xf32, #tpu.memory_space<vmem>>, vector<4x64xf32>
    %22 = vector.extract_strided_slice %21 {offsets = [0, 0], sizes = [1, 64], strides = [1, 1]} : vector<4x64xf32> to vector<1x64xf32>
    %23 = vector.extract_strided_slice %21 {offsets = [1, 0], sizes = [1, 64], strides = [1, 1]} : vector<4x64xf32> to vector<1x64xf32>
    %cst_22 = arith.constant dense<0.000000e+00> : vector<24xf32>
    %24 = vector.multi_reduction <add>, %20, %cst_22 [1] : vector<24x64xf32> to vector<24xf32>
    %25 = vector.shape_cast %24 : vector<24xf32> to vector<24x1xf32>
    %cst_23 = arith.constant 6.400000e+01 : f32
    %26 = vector.broadcast %cst_23 : f32 to vector<24x1xf32>
    %27 = arith.divf %25, %26 : vector<24x1xf32>
    %28 = vector.broadcast %27 : vector<24x1xf32> to vector<24x64xf32>
    %29 = arith.subf %20, %28 : vector<24x64xf32>
    %30 = arith.mulf %29, %29 : vector<24x64xf32>
    %cst_24 = arith.constant dense<0.000000e+00> : vector<24xf32>
    %31 = vector.multi_reduction <add>, %30, %cst_24 [1] : vector<24x64xf32> to vector<24xf32>
    %32 = vector.shape_cast %31 : vector<24xf32> to vector<24x1xf32>
    %cst_25 = arith.constant 6.400000e+01 : f32
    %33 = vector.broadcast %cst_25 : f32 to vector<24x1xf32>
    %34 = arith.divf %32, %33 : vector<24x1xf32>
    %cst_26 = arith.constant 9.99999997E-7 : f32
    %35 = vector.broadcast %cst_26 : f32 to vector<24x1xf32>
    %36 = arith.addf %34, %35 : vector<24x1xf32>
    %37 = math.rsqrt %36 : vector<24x1xf32>
    %38 = vector.broadcast %37 : vector<24x1xf32> to vector<24x64xf32>
    %39 = arith.mulf %29, %38 : vector<24x64xf32>
    %40 = vector.broadcast %22 : vector<1x64xf32> to vector<24x64xf32>
    %41 = arith.mulf %39, %40 : vector<24x64xf32>
    %42 = vector.broadcast %23 : vector<1x64xf32> to vector<24x64xf32>
    %43 = arith.addf %41, %42 : vector<24x64xf32>
    %44 = arith.truncf %43 : vector<24x64xf32> to vector<24x64xbf16>
    %c0_27 = arith.constant 0 : index
    %c0_28 = arith.constant 0 : index
    %45 = vector.load %arg3[%c0_27, %c0_28] : memref<64x64xbf16, #tpu.memory_space<vmem>>, vector<64x64xbf16>
    %cst_29 = arith.constant dense<0.000000e+00> : vector<24x64xf32>
    %46 = tpu.matmul %44, %45, %cst_29 {dimension_numbers = #tpu.dot_dimension_numbers<[1], [0], [0], [1], [0, 0, 1, 1], [], []>} : vector<24x64xbf16>, vector<64x64xbf16>, vector<24x64xf32> -> vector<24x64xf32>
    %47 = vector.extract_strided_slice %21 {offsets = [2, 0], sizes = [1, 64], strides = [1, 1]} : vector<4x64xf32> to vector<1x64xf32>
    %48 = vector.extract_strided_slice %21 {offsets = [3, 0], sizes = [1, 64], strides = [1, 1]} : vector<4x64xf32> to vector<1x64xf32>
    %cst_30 = arith.constant dense<0.000000e+00> : vector<24xf32>
    %49 = vector.multi_reduction <add>, %46, %cst_30 [1] : vector<24x64xf32> to vector<24xf32>
    %50 = vector.shape_cast %49 : vector<24xf32> to vector<24x1xf32>
    %cst_31 = arith.constant 6.400000e+01 : f32
    %51 = vector.broadcast %cst_31 : f32 to vector<24x1xf32>
    %52 = arith.divf %50, %51 : vector<24x1xf32>
    %53 = vector.broadcast %52 : vector<24x1xf32> to vector<24x64xf32>
    %54 = arith.subf %46, %53 : vector<24x64xf32>
    %55 = arith.mulf %54, %54 : vector<24x64xf32>
    %cst_32 = arith.constant dense<0.000000e+00> : vector<24xf32>
    %56 = vector.multi_reduction <add>, %55, %cst_32 [1] : vector<24x64xf32> to vector<24xf32>
    %57 = vector.shape_cast %56 : vector<24xf32> to vector<24x1xf32>
    %cst_33 = arith.constant 6.400000e+01 : f32
    %58 = vector.broadcast %cst_33 : f32 to vector<24x1xf32>
    %59 = arith.divf %57, %58 : vector<24x1xf32>
    %cst_34 = arith.constant 9.99999997E-7 : f32
    %60 = vector.broadcast %cst_34 : f32 to vector<24x1xf32>
    %61 = arith.addf %59, %60 : vector<24x1xf32>
    %62 = math.rsqrt %61 : vector<24x1xf32>
    %63 = vector.broadcast %62 : vector<24x1xf32> to vector<24x64xf32>
    %64 = arith.mulf %54, %63 : vector<24x64xf32>
    %65 = vector.broadcast %47 : vector<1x64xf32> to vector<24x64xf32>
    %66 = arith.mulf %64, %65 : vector<24x64xf32>
    %67 = vector.broadcast %48 : vector<1x64xf32> to vector<24x64xf32>
    %68 = arith.addf %66, %67 : vector<24x64xf32>
    %c0_35 = arith.constant 0 : index
    %c0_36 = arith.constant 0 : index
    %c0_37 = arith.constant 0 : index
    %69 = vector.load %arg5[%c0_35, %c0_36, %c0_37] : memref<1x24x64xf32, #tpu.memory_space<vmem>>, vector<1x24x64xf32>
    %70 = vector.shape_cast %69 : vector<1x24x64xf32> to vector<24x64xf32>
    %71 = vector.shape_cast %68 : vector<24x64xf32> to vector<1x24x64xf32>
    tpu.vector_store %arg5[%c0_35, %c0_36, %c0_37], %71 {strides = array<i32>} : memref<1x24x64xf32, #tpu.memory_space<vmem>>, vector<1x24x64xf32>,
    return
  }
  func.func @transform_0(%arg0: i32) -> (i32, i32, i32) {
    %c0_i32 = arith.constant 0 : i32
    %c0_i32_0 = arith.constant 0 : i32
    %c0_i32_1 = arith.constant 0 : i32
    return %arg0, %c0_i32, %c0_i32_0 : i32, i32, i32
  }
  func.func @transform_1(%arg0: i32) -> (i32, i32) {
    %c0_i32 = arith.constant 0 : i32
    %c0_i32_0 = arith.constant 0 : i32
    %c0_i32_1 = arith.constant 0 : i32
    return %c0_i32, %c0_i32_0 : i32, i32
  }
  func.func @transform_2(%arg0: i32) -> (i32, i32) {
    %c0_i32 = arith.constant 0 : i32
    %c0_i32_0 = arith.constant 0 : i32
    %c0_i32_1 = arith.constant 0 : i32
    return %c0_i32, %c0_i32_0 : i32, i32
  }
  func.func @transform_3(%arg0: i32) -> (i32, i32) {
    %c0_i32 = arith.constant 0 : i32
    %c0_i32_0 = arith.constant 0 : i32
    %c0_i32_1 = arith.constant 0 : i32
    return %c0_i32, %c0_i32_0 : i32, i32
  }
  func.func @transform_4(%arg0: i32) -> (i32, i32, i32) {
    %c0_i32 = arith.constant 0 : i32
    %c0_i32_0 = arith.constant 0 : i32
    %c0_i32_1 = arith.constant 0 : i32
    return %arg0, %c0_i32, %c0_i32_0 : i32, i32, i32
  }
}

</mosaic_0001>

<llo_original>
// kernel: light_image_encoder_forward.9
$region0: #{light_image_encoder_forward.9}
  #allocation0 [shape = 'u32[]', space=smem, size = 0x4, offset = 0x4, fixed_abs, tag = 'smem constant byte address 0x4 - core index']
  #allocation1 [shape = 'u32[144,128]{1,0:T(1,128)}', space=vmem, size = 0x12000, scoped, tag = 'internal scratch']
  %s0 = inlined_call_operand.vmem [shape: bf16[64,384], index: 0, kind: input, shape index: {}]
  %s1 = inlined_call_operand.vmem [shape: bf16[384,128], index: 1, kind: input, shape index: {}]
  %s2 = inlined_call_operand.vmem [shape: bf16[128,256], index: 2, kind: input, shape index: {}]
  %s3 = inlined_call_operand.vmem [shape: bf16[256,128], index: 3, kind: input, shape index: {}]
  %s4 = inlined_call_operand.vmem [shape: f32[6,128], index: 4, kind: input, shape index: {}]
  %s5 = inlined_call_operand.vmem [shape: f32[1,256], index: 5, kind: input, shape index: {}]
  %s6 = inlined_call_operand.vmem [shape: bf16[128,128], index: 6, kind: input, shape index: {}]
  %s7 = inlined_call_operand.vmem [shape: bf16[64,128], index: 7, kind: output, shape index: {}]
  %s8 = sld [smem:[#allocation0]]
  $region61: #{light_image_encoder_forward.9} parent=0
    _
  %s10 = ssub.s32 1, %s8
  %s11 = scalar_select 0, %s10, %s8
  loop: start=0, step=1, limit=6
  $region2: #{light_image_encoder_forward.9} parent=0 // loop_pre_header
    _
  $region3: #{light_image_encoder_forward.9} parent=0 // loop_header
    %s13 = sphi 0, %s17
    %p14 = scmp.ge.s32.totalorder %s13, 6
    %s23 = sphi 0, %s25
    %s26 = sphi 0, %s23
    %s27 = sphi 0, %s26
    %s43 = sphi 0, %s27
    %s47 = sphi 0, %s47
    %s49 = sphi 0, %s47
    %s50 = sphi 0, %s49
    %s64 = sphi 0, %s50
    %s68 = sphi 0, %s68
    %s70 = sphi 0, %s68
    %s71 = sphi 0, %s70
    %s85 = sphi 0, %s71
    %s89 = sphi 0, %s89
    %s91 = sphi 0, %s89
    %s92 = sphi 0, %s91
    %s106 = sphi 0, %s92
    %s110 = sphi 0, %s110
    %s112 = sphi 0, %s110
    %s113 = sphi 0, %s112
    %s127 = sphi 0, %s113
    %s131 = sphi 0, %s131
    %s133 = sphi 0, %s131
    %s134 = sphi 0, %s133
    %s148 = sphi 0, %s134
    %s152 = sphi 0, %s152
    %s154 = sphi 0, %s152
    %s155 = sphi 0, %s154
    %s169 = sphi 0, %s155
    %s175 = sphi 0, %s177
    %s178 = sphi 0, %s175
    %s179 = sphi 0, %s178
    %s195 = sphi 0, %s179
  $region4: #{light_image_encoder_forward.9} parent=0 // loop_header_branch
    %16 = sbr.rel (%p14) target = $region8
  $region5: #{light_image_encoder_forward.9} parent=0 // loop_body
    %s18 = ssub.s32 %s13, 1
    %s19 = ssub.s32 %s13, 2
    %s20 = sadd.s32 %s13, 1
    %s21 = ssub.s32 %s13, %s20
    %p22 = scmp.eq.s32.totalorder %s21, 0
    %s24 = sadd.s32 %s23, 1
    %s25 = scalar_select %p22, %s23, %s24
    %p28 = pneg %p22
    %p29 = scmp.eq.s32.totalorder %s13, 3
    %p30 = por %p28, %p29
    %p31 = scmp.ne.s32.totalorder %s23, %s26
    %p32 = scmp.eq.s32.totalorder %s13, 0
    %p33 = por %p31, %p32
    %p34 = scmp.ne.s32.totalorder %s23, %s26
    %p35 = scmp.eq.s32.totalorder %s18, 3
    %p36 = por %p34, %p35
    %p37 = scmp.ne.s32.totalorder %s26, %s27
    %p38 = scmp.eq.s32.totalorder %s18, 0
    %p39 = por %p37, %p38
    %p40 = scmp.ne.s32.totalorder %s26, %s27
    %p41 = scmp.eq.s32.totalorder %s19, 3
    %p42 = por %p40, %p41
    %p44 = scmp.ne.s32.totalorder %s27, %s43
    %p45 = scmp.eq.s32.totalorder %s19, 0
    %p46 = por %p44, %p45
    %s48 = sadd.s32 %s47, 1
    %p51 = scmp.eq.s32.totalorder %s13, 3
    %p52 = scmp.ne.s32.totalorder %s47, %s49
    %p53 = scmp.eq.s32.totalorder %s13, 0
    %p54 = por %p52, %p53
    %p55 = scmp.ne.s32.totalorder %s47, %s49
    %p56 = scmp.eq.s32.totalorder %s18, 3
    %p57 = por %p55, %p56
    %p58 = scmp.ne.s32.totalorder %s49, %s50
    %p59 = scmp.eq.s32.totalorder %s18, 0
    %p60 = por %p58, %p59
    %p61 = scmp.ne.s32.totalorder %s49, %s50
    %p62 = scmp.eq.s32.totalorder %s19, 3
    %p63 = por %p61, %p62
    %p65 = scmp.ne.s32.totalorder %s50, %s64
    %p66 = scmp.eq.s32.totalorder %s19, 0
    %p67 = por %p65, %p66
    %s69 = sadd.s32 %s68, 1
    %p72 = scmp.eq.s32.totalorder %s13, 3
    %p73 = scmp.ne.s32.totalorder %s68, %s70
    %p74 = scmp.eq.s32.totalorder %s13, 0
    %p75 = por %p73, %p74
    %p76 = scmp.ne.s32.totalorder %s68, %s70
    %p77 = scmp.eq.s32.totalorder %s18, 3
    %p78 = por %p76, %p77
    %p79 = scmp.ne.s32.totalorder %s70, %s71
    %p80 = scmp.eq.s32.totalorder %s18, 0
    %p81 = por %p79, %p80
    %p82 = scmp.ne.s32.totalorder %s70, %s71
    %p83 = scmp.eq.s32.totalorder %s19, 3
    %p84 = por %p82, %p83
    %p86 = scmp.ne.s32.totalorder %s71, %s85
    %p87 = scmp.eq.s32.totalorder %s19, 0
    %p88 = por %p86, %p87
    %s90 = sadd.s32 %s89, 1
    %p93 = scmp.eq.s32.totalorder %s13, 3
    %p94 = scmp.ne.s32.totalorder %s89, %s91
    %p95 = scmp.eq.s32.totalorder %s13, 0
    %p96 = por %p94, %p95
    %p97 = scmp.ne.s32.totalorder %s89, %s91
    %p98 = scmp.eq.s32.totalorder %s18, 3
    %p99 = por %p97, %p98
    %p100 = scmp.ne.s32.totalorder %s91, %s92
    %p101 = scmp.eq.s32.totalorder %s18, 0
    %p102 = por %p100, %p101
    %p103 = scmp.ne.s32.totalorder %s91, %s92
    %p104 = scmp.eq.s32.totalorder %s19, 3
    %p105 = por %p103, %p104
    %p107 = scmp.ne.s32.totalorder %s92, %s106
    %p108 = scmp.eq.s32.totalorder %s19, 0
    %p109 = por %p107, %p108
    %s111 = sadd.s32 %s110, 1
    %p114 = scmp.eq.s32.totalorder %s13, 3
    %p115 = scmp.ne.s32.totalorder %s110, %s112
    %p116 = scmp.eq.s32.totalorder %s13, 0
    %p117 = por %p115, %p116
    %p118 = scmp.ne.s32.totalorder %s110, %s112
    %p119 = scmp.eq.s32.totalorder %s18, 3
    %p120 = por %p118, %p119
    %p121 = scmp.ne.s32.totalorder %s112, %s113
    %p122 = scmp.eq.s32.totalorder %s18, 0
    %p123 = por %p121, %p122
    %p124 = scmp.ne.s32.totalorder %s112, %s113
    %p125 = scmp.eq.s32.totalorder %s19, 3
    %p126 = por %p124, %p125
    %p128 = scmp.ne.s32.totalorder %s113, %s127
    %p129 = scmp.eq.s32.totalorder %s19, 0
    %p130 = por %p128, %p129
    %s132 = sadd.s32 %s131, 1
    %p135 = scmp.eq.s32.totalorder %s13, 3
    %p136 = scmp.ne.s32.totalorder %s131, %s133
    %p137 = scmp.eq.s32.totalorder %s13, 0
    %p138 = por %p136, %p137
    %p139 = scmp.ne.s32.totalorder %s131, %s133
    %p140 = scmp.eq.s32.totalorder %s18, 3
    %p141 = por %p139, %p140
    %p142 = scmp.ne.s32.totalorder %s133, %s134
    %p143 = scmp.eq.s32.totalorder %s18, 0
    %p144 = por %p142, %p143
    %p145 = scmp.ne.s32.totalorder %s133, %s134
    %p146 = scmp.eq.s32.totalorder %s19, 3
    %p147 = por %p145, %p146
    %p149 = scmp.ne.s32.totalorder %s134, %s148
    %p150 = scmp.eq.s32.totalorder %s19, 0
    %p151 = por %p149, %p150
    %s153 = sadd.s32 %s152, 1
    %p156 = scmp.eq.s32.totalorder %s13, 3
    %p157 = scmp.ne.s32.totalorder %s152, %s154
    %p158 = scmp.eq.s32.totalorder %s13, 0
    %p159 = por %p157, %p158
    %p160 = scmp.ne.s32.totalorder %s152, %s154
    %p161 = scmp.eq.s32.totalorder %s18, 3
    %p162 = por %p160, %p161
    %p163 = scmp.ne.s32.totalorder %s154, %s155
    %p164 = scmp.eq.s32.totalorder %s18, 0
    %p165 = por %p163, %p164
    %p166 = scmp.ne.s32.totalorder %s154, %s155
    %p167 = scmp.eq.s32.totalorder %s19, 3
    %p168 = por %p166, %p167
    %p170 = scmp.ne.s32.totalorder %s155, %s169
    %p171 = scmp.eq.s32.totalorder %s19, 0
    %p172 = por %p170, %p171
    %s173 = ssub.s32 %s13, %s20
    %p174 = scmp.eq.s32.totalorder %s173, 0
    %s176 = sadd.s32 %s175, 1
    %s177 = scalar_select %p174, %s175, %s176
    %p180 = pneg %p174
    %p181 = scmp.eq.s32.totalorder %s13, 3
    %p182 = por %p180, %p181
    %p183 = scmp.ne.s32.totalorder %s175, %s178
    %p184 = scmp.eq.s32.totalorder %s13, 0
    %p185 = por %p183, %p184
    %p186 = scmp.ne.s32.totalorder %s175, %s178
    %p187 = scmp.eq.s32.totalorder %s18, 3
    %p188 = por %p186, %p187
    %p189 = scmp.ne.s32.totalorder %s178, %s179
    %p190 = scmp.eq.s32.totalorder %s18, 0
    %p191 = por %p189, %p190
    %p192 = scmp.ne.s32.totalorder %s178, %s179
    %p193 = scmp.eq.s32.totalorder %s19, 3
    %p194 = por %p192, %p193
    %p196 = scmp.ne.s32.totalorder %s179, %s195
    %p197 = scmp.eq.s32.totalorder %s19, 0
    %p198 = por %p196, %p197
    %p199 = scmp.le.s32.totalorder 1, %s13
    %p200 = scmp.lt.s32.totalorder %s13, 5
    %p201 = pnand %p199, %p200
    %p202 = pneg %p201
    // Predicated region
    $region9: #{light_image_encoder_forward.9} parent=5 // pred_check
      _
    $region10: #{light_image_encoder_forward.9} parent=5 // pred_check_branch
      %204 = sbr.rel (%p201) target = $region12
    $region11: #{light_image_encoder_forward.9} parent=5 // pred_region
      %s205 = ssub.s32 %s13, 1
      // Predicated region
      $region13: #{light_image_encoder_forward.9} parent=11 // pred_check
        %p206 = pneg %p60
      $region14: #{light_image_encoder_forward.9} parent=11 // pred_check_branch
        %208 = sbr.rel (%p206) target = $region16
      $region15: #{light_image_encoder_forward.9} parent=11 // pred_region
        _
      $region16: #{light_image_encoder_forward.9} parent=11 // pred_fallthru
        _
      // Predicated region
      $region17: #{light_image_encoder_forward.9} parent=11 // pred_check
        %p209 = pneg %p81
      $region18: #{light_image_encoder_forward.9} parent=11 // pred_check_branch
        %211 = sbr.rel (%p209) target = $region20
      $region19: #{light_image_encoder_forward.9} parent=11 // pred_region
        _
      $region20: #{light_image_encoder_forward.9} parent=11 // pred_fallthru
        _
      // Predicated region
      $region21: #{light_image_encoder_forward.9} parent=11 // pred_check
        %p212 = pneg %p102
      $region22: #{light_image_encoder_forward.9} parent=11 // pred_check_branch
        %214 = sbr.rel (%p212) target = $region24
      $region23: #{light_image_encoder_forward.9} parent=11 // pred_region
        _
      $region24: #{light_image_encoder_forward.9} parent=11 // pred_fallthru
        _
      // Predicated region
      $region25: #{light_image_encoder_forward.9} parent=11 // pred_check
        %p215 = pneg %p123
      $region26: #{light_image_encoder_forward.9} parent=11 // pred_check_branch
        %217 = sbr.rel (%p215) target = $region28
      $region27: #{light_image_encoder_forward.9} parent=11 // pred_region
        _
      $region28: #{light_image_encoder_forward.9} parent=11 // pred_fallthru
        _
      // Predicated region
      $region29: #{light_image_encoder_forward.9} parent=11 // pred_check
        %p218 = pneg %p144
      $region30: #{light_image_encoder_forward.9} parent=11 // pred_check_branch
        %220 = sbr.rel (%p218) target = $region32
      $region31: #{light_image_encoder_forward.9} parent=11 // pred_region
        _
      $region32: #{light_image_encoder_forward.9} parent=11 // pred_fallthru
        _
      // Predicated region
      $region33: #{light_image_encoder_forward.9} parent=11 // pred_check
        %p221 = pneg %p165
      $region34: #{light_image_encoder_forward.9} parent=11 // pred_check_branch
        %223 = sbr.rel (%p221) target = $region36
      $region35: #{light_image_encoder_forward.9} parent=11 // pred_region
        _
      $region36: #{light_image_encoder_forward.9} parent=11 // pred_fallthru
        _
    $region12: #{light_image_encoder_forward.9} parent=5 // pred_fallthru
      _
    %p224 = scmp.lt.s32.totalorder %s13, 4
    // Predicated region
    $region37: #{light_image_encoder_forward.9} parent=5 // pred_check
      %p225 = pneg %p224
    $region38: #{light_image_encoder_forward.9} parent=5 // pred_check_branch
      %227 = sbr.rel (%p225) target = $region40
    $region39: #{light_image_encoder_forward.9} parent=5 // pred_region
      // Predicated region
      $region41: #{light_image_encoder_forward.9} parent=39 // pred_check
        %p228 = pneg %p33
      $region42: #{light_image_encoder_forward.9} parent=39 // pred_check_branch
        %230 = sbr.rel (%p228) target = $region44
      $region43: #{light_image_encoder_forward.9} parent=39 // pred_region
        %s231 = smul.u32 2, %s13
        %p232 = scmp.lt.s32.totalorder %s231, 7
        %s233 = scalar_select %p232, %s231, 7
        %s234 = smul.addr %s233, 3
        %s235 = smul.addr %s234, 4
        %s236 = scalar_lea.vmem %s0, %s235
        %s237 = smul.u32 2, %s13
      $region44: #{light_image_encoder_forward.9} parent=39 // pred_fallthru
        _
    $region40: #{light_image_encoder_forward.9} parent=5 // pred_fallthru
      _
    %p238 = scmp.le.s32.totalorder 1, %s13
    %p239 = scmp.lt.s32.totalorder %s13, 5
    %p240 = pnand %p238, %p239
    %p241 = pneg %p240
    // Predicated region
    $region45: #{light_image_encoder_forward.9} parent=5 // pred_check
      _
    $region46: #{light_image_encoder_forward.9} parent=5 // pred_check_branch
      %243 = sbr.rel (%p240) target = $region48
    $region47: #{light_image_encoder_forward.9} parent=5 // pred_region
      %s244 = ssub.s32 %s13, 1
      %s245 = smul.u32 2, %s18
      %p246 = scmp.lt.s32.totalorder %s245, 7
      %s247 = scalar_select %p246, %s245, 7
      %s248 = smul.addr %s247, 3
      %s249 = smul.addr %s248, 4
      %s250 = scalar_lea.vmem %s0, %s249
      %p251 = pneg %p39
      %p252 = pneg %p36
      %p253 = pneg %p60
      %p254 = pneg %p57
      %p255 = pneg %p81
      %p256 = pneg %p78
      %p257 = pneg %p102
      %p258 = pneg %p99
      %p259 = pneg %p123
      %p260 = pneg %p120
      %p261 = pneg %p144
      %p262 = pneg %p141
      %p263 = pneg %p165
      %p264 = pneg %p162
      %p265 = pneg %p191
      %p266 = pneg %p188
      %s267 = smul.u32 2, %s18
      %p268 = scmp.lt.s32.totalorder %s267, 7
      %s269 = scalar_select %p268, %s267, 7
      %s270 = smul.addr %s269, 4
      %s271 = scalar_lea.vmem %s7, %s270
      %s272 = smul.u32 2, %s18
      %p273 = scmp.lt.s32.totalorder %s272, 7
      %s274 = scalar_select %p273, %s272, 7
      %s275 = smul.addr %s274, 3
      %s276 = smul.addr %s275, 4
      %s277 = scalar_lea.vmem %s0, %s276
      %s278 = smul.u32 2, %s18
      %s279 = smul.u32 2, %s18
      %p280 = scmp.lt.s32.totalorder %s279, 7
      %s281 = scalar_select %p280, %s279, 7
      %s282 = smul.addr %s281, 4
      %s283 = scalar_lea.vmem %s7, %s282
      %s284 = smul.u32 2, %s18
      %v286 = vld [vmem:[%s277] sm:$0xff]
      %v287 = vld [vmem:[%s277 + $0x8] sm:$0xf]
      %v288 = vld [vmem:[%s277 + $0xc] sm:$0xff]
      %v289 = vld [vmem:[%s277 + $0x14] sm:$0xf]
      %v290 = vld [vmem:[%s4] sm:$0x3f]
      %v291 = vld [vmem:[%s6] sm:$0xf]
      %v292 = vld [vmem:[%s6 + $0x4] sm:$0xf]
      %v293 = vld [vmem:[%s6 + $0x8] sm:$0xf]
      %v294 = vld [vmem:[%s6 + $0xc] sm:$0xf]
      %v295 = vld [vmem:[%s6 + $0x10] sm:$0xf]
      %v296 = vld [vmem:[%s6 + $0x14] sm:$0xf]
      %v297 = vld [vmem:[%s6 + $0x18] sm:$0xf]
      %v298 = vld [vmem:[%s6 + $0x1c] sm:$0xf]
      %v299 = vld [vmem:[%s6 + $0x20] sm:$0xf]
      %v300 = vld [vmem:[%s6 + $0x24] sm:$0xf]
      %v301 = vld [vmem:[%s6 + $0x28] sm:$0xf]
      %v302 = vld [vmem:[%s6 + $0x2c] sm:$0xf]
      %v303 = vld [vmem:[%s6 + $0x30] sm:$0xf]
      %v304 = vld [vmem:[%s6 + $0x34] sm:$0xf]
      %v305 = vld [vmem:[%s6 + $0x38] sm:$0xf]
      %v306 = vld [vmem:[%s6 + $0x3c] sm:$0xf]
      %v307 = vld [vmem:[%s1] sm:$0xf]
      %v308 = vld [vmem:[%s1 + $0x4] sm:$0xf]
      %v309 = vld [vmem:[%s1 + $0x8] sm:$0xf]
      %v310 = vld [vmem:[%s1 + $0xc] sm:$0xf]
      %v311 = vld [vmem:[%s1 + $0x10] sm:$0xf]
      %v312 = vld [vmem:[%s1 + $0x14] sm:$0xf]
      %v313 = vld [vmem:[%s1 + $0x18] sm:$0xf]
      %v314 = vld [vmem:[%s1 + $0x1c] sm:$0xf]
      %v315 = vld [vmem:[%s1 + $0x20] sm:$0xf]
      %v316 = vld [vmem:[%s1 + $0x24] sm:$0xf]
      %v317 = vld [vmem:[%s1 + $0x28] sm:$0xf]
      %v318 = vld [vmem:[%s1 + $0x2c] sm:$0xf]
      %v319 = vld [vmem:[%s1 + $0x30] sm:$0xf]
      %v320 = vld [vmem:[%s1 + $0x34] sm:$0xf]
      %v321 = vld [vmem:[%s1 + $0x38] sm:$0xf]
      %v322 = vld [vmem:[%s1 + $0x3c] sm:$0xf]
      %v323 = vld [vmem:[%s1 + $0x40] sm:$0xf]
      %v324 = vld [vmem:[%s1 + $0x44] sm:$0xf]
      %v325 = vld [vmem:[%s1 + $0x48] sm:$0xf]
      %v326 = vld [vmem:[%s1 + $0x4c] sm:$0xf]
      %v327 = vld [vmem:[%s1 + $0x50] sm:$0xf]
      %v328 = vld [vmem:[%s1 + $0x54] sm:$0xf]
      %v329 = vld [vmem:[%s1 + $0x58] sm:$0xf]
      %v330 = vld [vmem:[%s1 + $0x5c] sm:$0xf]
      %v331 = vld [vmem:[%s1 + $0x60] sm:$0xf]
      %v332 = vld [vmem:[%s1 + $0x64] sm:$0xf]
      %v333 = vld [vmem:[%s1 + $0x68] sm:$0xf]
      %v334 = vld [vmem:[%s1 + $0x6c] sm:$0xf]
      %v335 = vld [vmem:[%s1 + $0x70] sm:$0xf]
      %v336 = vld [vmem:[%s1 + $0x74] sm:$0xf]
      %v337 = vld [vmem:[%s1 + $0x78] sm:$0xf]
      %v338 = vld [vmem:[%s1 + $0x7c] sm:$0xf]
      %v339 = vld [vmem:[%s1 + $0x80] sm:$0xf]
      %v340 = vld [vmem:[%s1 + $0x84] sm:$0xf]
      %v341 = vld [vmem:[%s1 + $0x88] sm:$0xf]
      %v342 = vld [vmem:[%s1 + $0x8c] sm:$0xf]
      %v343 = vld [vmem:[%s1 + $0x90] sm:$0xf]
      %v344 = vld [vmem:[%s1 + $0x94] sm:$0xf]
      %v345 = vld [vmem:[%s1 + $0x98] sm:$0xf]
      %v346 = vld [vmem:[%s1 + $0x9c] sm:$0xf]
      %v347 = vld [vmem:[%s1 + $0xa0] sm:$0xf]
      %v348 = vld [vmem:[%s1 + $0xa4] sm:$0xf]
      %v349 = vld [vmem:[%s1 + $0xa8] sm:$0xf]
      %v350 = vld [vmem:[%s1 + $0xac] sm:$0xf]
      %v351 = vld [vmem:[%s1 + $0xb0] sm:$0xf]
      %v352 = vld [vmem:[%s1 + $0xb4] sm:$0xf]
      %v353 = vld [vmem:[%s1 + $0xb8] sm:$0xf]
      %v354 = vld [vmem:[%s1 + $0xbc] sm:$0xf]
      %v355 = vlaneseq
      %v356 = vshrl.u32 %v355, 7
      %v357 = vsub.s32 0, %v356
      %v358 = vrot.slane %v290, %v357
      %v363 = vunpack.c.l.b16 %v286
      %v364 = vunpack.c.h.b16 %v286
      %v365 = vunpack.c.l.b16 %v287
      %v366 = vunpack.c.l.b16 %v288
      %v367 = vunpack.c.h.b16 %v288
      %v368 = vunpack.c.l.b16 %v289
      %v369 = vpack.c.b16 %v366, %v363
      %v370 = vpack.c.b16 %v367, %v364
      %v371 = vpack.c.b16 %v368, %v365
      %v423 = vunpack.c.l.b16 %v307
      %v424 = vunpack.c.l.b16 %v308
      %v425 = vunpack.c.l.b16 %v309
      %v426 = vunpack.c.l.b16 %v310
      %v427 = vunpack.c.l.b16 %v311
      %v428 = vunpack.c.l.b16 %v312
      %v429 = vunpack.c.l.b16 %v313
      %v430 = vunpack.c.l.b16 %v314
      %v431 = vunpack.c.l.b16 %v315
      %v432 = vunpack.c.l.b16 %v316
      %v433 = vunpack.c.l.b16 %v317
      %v434 = vunpack.c.l.b16 %v318
      %v435 = vunpack.c.l.b16 %v319
      %v436 = vunpack.c.l.b16 %v320
      %v437 = vunpack.c.l.b16 %v321
      %v438 = vunpack.c.l.b16 %v322
      %v439 = vunpack.c.l.b16 %v323
      %v440 = vunpack.c.l.b16 %v324
      %v441 = vunpack.c.l.b16 %v325
      %v442 = vunpack.c.l.b16 %v326
      %v443 = vunpack.c.l.b16 %v327
      %v444 = vunpack.c.l.b16 %v328
      %v445 = vunpack.c.l.b16 %v329
      %v446 = vunpack.c.l.b16 %v330
      %v447 = vunpack.c.l.b16 %v331
      %v448 = vunpack.c.l.b16 %v332
      %v449 = vunpack.c.l.b16 %v333
      %v450 = vunpack.c.l.b16 %v334
      %v451 = vunpack.c.l.b16 %v335
      %v452 = vunpack.c.l.b16 %v336
      %v453 = vunpack.c.l.b16 %v337
      %v454 = vunpack.c.l.b16 %v338
      %v455 = vunpack.c.l.b16 %v339
      %v456 = vunpack.c.l.b16 %v340
      %v457 = vunpack.c.l.b16 %v341
      %v458 = vunpack.c.l.b16 %v342
      %v459 = vunpack.c.l.b16 %v343
      %v460 = vunpack.c.l.b16 %v344
      %v461 = vunpack.c.l.b16 %v345
      %v462 = vunpack.c.l.b16 %v346
      %v463 = vunpack.c.l.b16 %v347
      %v464 = vunpack.c.l.b16 %v348
      %v465 = vunpack.c.l.b16 %v349
      %v466 = vunpack.c.l.b16 %v350
      %v467 = vunpack.c.l.b16 %v351
      %v468 = vunpack.c.l.b16 %v352
      %v469 = vunpack.c.l.b16 %v353
      %v470 = vunpack.c.l.b16 %v354
      %v471 = vpack.c.b16 %v424, %v423
      %v472 = vpack.c.b16 %v426, %v425
      %v473 = vpack.c.b16 %v428, %v427
      %v474 = vpack.c.b16 %v430, %v429
      %v475 = vpack.c.b16 %v432, %v431
      %v476 = vpack.c.b16 %v434, %v433
      %v477 = vpack.c.b16 %v436, %v435
      %v478 = vpack.c.b16 %v438, %v437
      %v479 = vpack.c.b16 %v440, %v439
      %v480 = vpack.c.b16 %v442, %v441
      %v481 = vpack.c.b16 %v444, %v443
      %v482 = vpack.c.b16 %v446, %v445
      %v483 = vpack.c.b16 %v448, %v447
      %v484 = vpack.c.b16 %v450, %v449
      %v485 = vpack.c.b16 %v452, %v451
      %v486 = vpack.c.b16 %v454, %v453
      %v487 = vpack.c.b16 %v456, %v455
      %v488 = vpack.c.b16 %v458, %v457
      %v489 = vpack.c.b16 %v460, %v459
      %v490 = vpack.c.b16 %v462, %v461
      %v491 = vpack.c.b16 %v464, %v463
      %v492 = vpack.c.b16 %v466, %v465
      %v493 = vpack.c.b16 %v468, %v467
      %v494 = vpack.c.b16 %v470, %v469
      %519 = vmatprep.subr.bf16.mxu0 0
      %520 = vmatpush1.bf16.msra.mxu0 %v471
      %521 = vmatprep.subr.bf16.mxu0 0
      %522 = vmatpush1.bf16.msra.mxu0 %v472
      %523 = vmatprep.subr.bf16.mxu0 0
      %524 = vmatpush1.bf16.msra.mxu0 %v473
      %525 = vmatprep.subr.bf16.mxu0 0
      %526 = vmatpush1.bf16.msra.mxu0 %v474
      %527 = vmatprep.subr.bf16.mxu0 0
      %528 = vmatpush1.bf16.msra.mxu0 %v475
      %529 = vmatprep.subr.bf16.mxu0 0
      %530 = vmatpush1.bf16.msra.mxu0 %v476
      %531 = vmatprep.subr.bf16.mxu0 0
      %532 = vmatpush1.bf16.msra.mxu0 %v477
      %533 = vmatprep.subr.bf16.mxu0 0
      %534 = vmatpush1.bf16.msra.mxu0 %v478
      %535 = vmatprep.subr.bf16.mxu0 0
      %536 = vmatpush1.bf16.msra.mxu0 %v479
      %537 = vmatprep.subr.bf16.mxu0 0
      %538 = vmatpush1.bf16.msra.mxu0 %v480
      %539 = vmatprep.subr.bf16.mxu0 0
      %540 = vmatpush1.bf16.msra.mxu0 %v481
      %541 = vmatprep.subr.bf16.mxu0 0
      %542 = vmatpush1.bf16.msra.mxu0 %v482
      %543 = vmatprep.subr.bf16.mxu0 0
      %544 = vmatpush1.bf16.msra.mxu0 %v483
      %545 = vmatprep.subr.bf16.mxu0 0
      %546 = vmatpush1.bf16.msra.mxu0 %v484
      %547 = vmatprep.subr.bf16.mxu0 0
      %548 = vmatpush1.bf16.msra.mxu0 %v485
      %549 = vmatprep.subr.bf16.mxu0 0
      %550 = vmatpush1.bf16.msra.mxu0 %v486
      %551 = vmatprep.mubr.bf16.mxu0 %v370
      %552 = vmatmul.mubr.bf16.gmra.mrb[0].mxu0 %v369
      %v553 = vpop.f32.mrb[0].mxu0
      %v554 = vadd.f32 %v358, %v553
      %v555 = vpop.f32.mrb[0].mxu0
      %v556 = vpop.f32.mrb[0].mxu0
      %v557 = vadd.f32 %v358, %v556
      %v558 = vpop.f32.mrb[0].mxu0
      %559 = vdwg.mxu0
      %560 = vmatprep.subr.bf16.mxu0 0
      %561 = vmatpush1.bf16.msra.mxu0 %v487
      %562 = vmatprep.subr.bf16.mxu0 0
      %563 = vmatpush1.bf16.msra.mxu0 %v488
      %564 = vmatprep.subr.bf16.mxu0 0
      %565 = vmatpush1.bf16.msra.mxu0 %v489
      %566 = vmatprep.subr.bf16.mxu0 0
      %567 = vmatpush1.bf16.msra.mxu0 %v490
      %568 = vmatprep.subr.bf16.mxu0 0
      %569 = vmatpush1.bf16.msra.mxu0 %v491
      %570 = vmatprep.subr.bf16.mxu0 0
      %571 = vmatpush1.bf16.msra.mxu0 %v492
      %572 = vmatprep.subr.bf16.mxu0 0
      %573 = vmatpush1.bf16.msra.mxu0 %v493
      %574 = vmatprep.subr.bf16.mxu0 0
      %575 = vmatpush1.bf16.msra.mxu0 %v494
      %576 = vmatprep.subr.bf16.mxu0 0
      %577 = vmatpush1.bf16.msra.mxu0 0
      %578 = vmatprep.subr.bf16.mxu0 0
      %579 = vmatpush1.bf16.msra.mxu0 0
      %580 = vmatprep.subr.bf16.mxu0 0
      %581 = vmatpush1.bf16.msra.mxu0 0
      %582 = vmatprep.subr.bf16.mxu0 0
      %583 = vmatpush1.bf16.msra.mxu0 0
      %584 = vmatprep.subr.bf16.mxu0 0
      %585 = vmatpush1.bf16.msra.mxu0 0
      %586 = vmatprep.subr.bf16.mxu0 0
      %587 = vmatpush1.bf16.msra.mxu0 0
      %588 = vmatprep.subr.bf16.mxu0 0
      %589 = vmatpush1.bf16.msra.mxu0 0
      %590 = vmatprep.subr.bf16.mxu0 0
      %591 = vmatpush1.bf16.msra.mxu0 0
      %592 = vmatprep.mubr.bf16.mxu0 0
      %593 = vmatmul.mubr.bf16.gmra.mrb[0].mxu0 %v371
      %v594 = vpop.f32.mrb[0].mxu0
      %v595 = vadd.f32 %v554, %v594
      %v596 = vpop.f32.mrb[0].mxu0
      %v597 = vpop.f32.mrb[0].mxu0
      %v598 = vadd.f32 %v557, %v597
      %v599 = vpop.f32.mrb[0].mxu0
      %600 = vdwg.mxu0
      %v601 = vpack.c.bf16 %v598, %v595
      %v618 = vunpack.c.l.b16 %v291
      %v619 = vunpack.c.l.b16 %v292
      %v620 = vunpack.c.l.b16 %v293
      %v621 = vunpack.c.l.b16 %v294
      %v622 = vunpack.c.l.b16 %v295
      %v623 = vunpack.c.l.b16 %v296
      %v624 = vunpack.c.l.b16 %v297
      %v625 = vunpack.c.l.b16 %v298
      %v626 = vunpack.c.l.b16 %v299
      %v627 = vunpack.c.l.b16 %v300
      %v628 = vunpack.c.l.b16 %v301
      %v629 = vunpack.c.l.b16 %v302
      %v630 = vunpack.c.l.b16 %v303
      %v631 = vunpack.c.l.b16 %v304
      %v632 = vunpack.c.l.b16 %v305
      %v633 = vunpack.c.l.b16 %v306
      %v634 = vpack.c.b16 %v619, %v618
      %v635 = vpack.c.b16 %v621, %v620
      %v636 = vpack.c.b16 %v623, %v622
      %v637 = vpack.c.b16 %v625, %v624
      %v638 = vpack.c.b16 %v627, %v626
      %v639 = vpack.c.b16 %v629, %v628
      %v640 = vpack.c.b16 %v631, %v630
      %v641 = vpack.c.b16 %v633, %v632
      %650 = vmatprep.subr.bf16.mxu0 0
      %651 = vmatpush1.bf16.msra.mxu0 %v634
      %652 = vmatprep.subr.bf16.mxu0 0
      %653 = vmatpush1.bf16.msra.mxu0 %v635
      %654 = vmatprep.subr.bf16.mxu0 0
      %655 = vmatpush1.bf16.msra.mxu0 %v636
      %656 = vmatprep.subr.bf16.mxu0 0
      %657 = vmatpush1.bf16.msra.mxu0 %v637
      %658 = vmatprep.subr.bf16.mxu0 0
      %659 = vmatpush1.bf16.msra.mxu0 %v638
      %660 = vmatprep.subr.bf16.mxu0 0
      %661 = vmatpush1.bf16.msra.mxu0 %v639
      %662 = vmatprep.subr.bf16.mxu0 0
      %663 = vmatpush1.bf16.msra.mxu0 %v640
      %664 = vmatprep.subr.bf16.mxu0 0
      %665 = vmatpush1.bf16.msra.mxu0 %v641
      %666 = vmatprep.subr.bf16.mxu0 0
      %667 = vmatpush1.bf16.msra.mxu0 0
      %668 = vmatprep.subr.bf16.mxu0 0
      %669 = vmatpush1.bf16.msra.mxu0 0
      %670 = vmatprep.subr.bf16.mxu0 0
      %671 = vmatpush1.bf16.msra.mxu0 0
      %672 = vmatprep.subr.bf16.mxu0 0
      %673 = vmatpush1.bf16.msra.mxu0 0
      %674 = vmatprep.subr.bf16.mxu0 0
      %675 = vmatpush1.bf16.msra.mxu0 0
      %676 = vmatprep.subr.bf16.mxu0 0
      %677 = vmatpush1.bf16.msra.mxu0 0
      %678 = vmatprep.subr.bf16.mxu0 0
      %679 = vmatpush1.bf16.msra.mxu0 0
      %680 = vmatprep.subr.bf16.mxu0 0
      %681 = vmatpush1.bf16.msra.mxu0 0
      %682 = vmatprep.mubr.bf16.mxu0 0
      %683 = vmatmul.mubr.bf16.gmra.mrb[0].mxu0 %v601
      %v684 = vpop.f32.mrb[0].mxu0
      %v685 = vadd.f32 0.0, %v684
      %v686 = vpop.f32.mrb[0].mxu0
      %v687 = vpop.f32.mrb[0].mxu0
      %v688 = vadd.f32 0.0, %v687
      %v689 = vpop.f32.mrb[0].mxu0
      %690 = vdwg.mxu0
      %v691 = vsub.f32 %v595, %v685
      %v692 = vsub.f32 %v598, %v688
      %v693 = vmul.f32 %v691, %v691
      %v694 = vmul.f32 %v692, %v692
      %v695 = vpack.c.bf16 %v694, %v693
      %696 = vmatprep.subr.bf16.mxu0 0
      %697 = vmatpush1.bf16.msra.mxu0 %v634
      %698 = vmatprep.subr.bf16.mxu0 0
      %699 = vmatpush1.bf16.msra.mxu0 %v635
      %700 = vmatprep.subr.bf16.mxu0 0
      %701 = vmatpush1.bf16.msra.mxu0 %v636
      %702 = vmatprep.subr.bf16.mxu0 0
      %703 = vmatpush1.bf16.msra.mxu0 %v637
      %704 = vmatprep.subr.bf16.mxu0 0
      %705 = vmatpush1.bf16.msra.mxu0 %v638
      %706 = vmatprep.subr.bf16.mxu0 0
      %707 = vmatpush1.bf16.msra.mxu0 %v639
      %708 = vmatprep.subr.bf16.mxu0 0
      %709 = vmatpush1.bf16.msra.mxu0 %v640
      %710 = vmatprep.subr.bf16.mxu0 0
      %711 = vmatpush1.bf16.msra.mxu0 %v641
      %712 = vmatprep.subr.bf16.mxu0 0
      %713 = vmatpush1.bf16.msra.mxu0 0
      %714 = vmatprep.subr.bf16.mxu0 0
      %715 = vmatpush1.bf16.msra.mxu0 0
      %716 = vmatprep.subr.bf16.mxu0 0
      %717 = vmatpush1.bf16.msra.mxu0 0
      %718 = vmatprep.subr.bf16.mxu0 0
      %719 = vmatpush1.bf16.msra.mxu0 0
      %720 = vmatprep.subr.bf16.mxu0 0
      %721 = vmatpush1.bf16.msra.mxu0 0
      %722 = vmatprep.subr.bf16.mxu0 0
      %723 = vmatpush1.bf16.msra.mxu0 0
      %724 = vmatprep.subr.bf16.mxu0 0
      %725 = vmatpush1.bf16.msra.mxu0 0
      %726 = vmatprep.subr.bf16.mxu0 0
      %727 = vmatpush1.bf16.msra.mxu0 0
      %728 = vmatprep.mubr.bf16.mxu0 0
      %729 = vmatmul.mubr.bf16.gmra.mrb[0].mxu0 %v695
      %v730 = vpop.f32.mrb[0].mxu0
      %v731 = vadd.f32 1e-06, %v730
      %v732 = vpop.f32.mrb[0].mxu0
      %v733 = vpop.f32.mrb[0].mxu0
      %v734 = vadd.f32 1e-06, %v733
      %v735 = vpop.f32.mrb[0].mxu0
      %736 = vdwg.mxu0
      %v737 = vrsqrt.pop %v731
      %v738 = vrsqrt.pop %v734
      %v739 = vmul.f32 %v691, %v737
      %v740 = vmul.f32 %v692, %v738
      %v741 = vlaneseq
      %v742 = vshrl.u32 %v741, 7
      %v743 = vsub.s32 1, %v742
      %v744 = vrot.slane %v290, %v743
      %v745 = vmul.f32 %v739, %v744
      %v746 = vmul.f32 %v740, %v744
      %v747 = vlaneseq
      %v748 = vshrl.u32 %v747, 7
      %v749 = vsub.s32 2, %v748
      %v750 = vrot.slane %v290, %v749
      %v751 = vadd.f32 %v745, %v750
      %v752 = vadd.f32 %v746, %v750
      %v753 = vpack.c.bf16 %v752, %v751
      %754 = vmatprep.subr.bf16.mxu0 0
      %755 = vmatpush1.bf16.msra.mxu0 %v634
      %756 = vmatprep.subr.bf16.mxu0 0
      %757 = vmatpush1.bf16.msra.mxu0 %v635
      %758 = vmatprep.subr.bf16.mxu0 0
      %759 = vmatpush1.bf16.msra.mxu0 %v636
      %760 = vmatprep.subr.bf16.mxu0 0
      %761 = vmatpush1.bf16.msra.mxu0 %v637
      %762 = vmatprep.subr.bf16.mxu0 0
      %763 = vmatpush1.bf16.msra.mxu0 %v638
      %764 = vmatprep.subr.bf16.mxu0 0
      %765 = vmatpush1.bf16.msra.mxu0 %v639
      %766 = vmatprep.subr.bf16.mxu0 0
      %767 = vmatpush1.bf16.msra.mxu0 %v640
      %768 = vmatprep.subr.bf16.mxu0 0
      %769 = vmatpush1.bf16.msra.mxu0 %v641
      %770 = vmatprep.subr.bf16.mxu0 0
      %771 = vmatpush1.bf16.msra.mxu0 0
      %772 = vmatprep.subr.bf16.mxu0 0
      %773 = vmatpush1.bf16.msra.mxu0 0
      %774 = vmatprep.subr.bf16.mxu0 0
      %775 = vmatpush1.bf16.msra.mxu0 0
      %776 = vmatprep.subr.bf16.mxu0 0
      %777 = vmatpush1.bf16.msra.mxu0 0
      %778 = vmatprep.subr.bf16.mxu0 0
      %779 = vmatpush1.bf16.msra.mxu0 0
      %780 = vmatprep.subr.bf16.mxu0 0
      %781 = vmatpush1.bf16.msra.mxu0 0
      %782 = vmatprep.subr.bf16.mxu0 0
      %783 = vmatpush1.bf16.msra.mxu0 0
      %784 = vmatprep.subr.bf16.mxu0 0
      %785 = vmatpush1.bf16.msra.mxu0 0
      %786 = vmatprep.mubr.bf16.mxu0 0
      %787 = vmatmul.mubr.bf16.gmra.mrb[0].mxu0 %v753
      %v788 = vpop.f32.mrb[0].mxu0
      %v789 = vadd.f32 0.0, %v788
      %v790 = vpop.f32.mrb[0].mxu0
      %v791 = vpop.f32.mrb[0].mxu0
      %v792 = vadd.f32 0.0, %v791
      %v793 = vpop.f32.mrb[0].mxu0
      %794 = vdwg.mxu0
      %v795 = vsub.f32 %v751, %v789
      %v796 = vsub.f32 %v752, %v792
      %v797 = vmul.f32 %v795, %v795
      %v798 = vmul.f32 %v796, %v796
      %v799 = vpack.c.bf16 %v798, %v797
      %800 = vmatprep.subr.bf16.mxu0 0
      %801 = vmatpush1.bf16.msra.mxu0 %v634
      %802 = vmatprep.subr.bf16.mxu0 0
      %803 = vmatpush1.bf16.msra.mxu0 %v635
      %804 = vmatprep.subr.bf16.mxu0 0
      %805 = vmatpush1.bf16.msra.mxu0 %v636
      %806 = vmatprep.subr.bf16.mxu0 0
      %807 = vmatpush1.bf16.msra.mxu0 %v637
      %808 = vmatprep.subr.bf16.mxu0 0
      %809 = vmatpush1.bf16.msra.mxu0 %v638
      %810 = vmatprep.subr.bf16.mxu0 0
      %811 = vmatpush1.bf16.msra.mxu0 %v639
      %812 = vmatprep.subr.bf16.mxu0 0
      %813 = vmatpush1.bf16.msra.mxu0 %v640
      %814 = vmatprep.subr.bf16.mxu0 0
      %815 = vmatpush1.bf16.msra.mxu0 %v641
      %816 = vmatprep.subr.bf16.mxu0 0
      %817 = vmatpush1.bf16.msra.mxu0 0
      %818 = vmatprep.subr.bf16.mxu0 0
      %819 = vmatpush1.bf16.msra.mxu0 0
      %820 = vmatprep.subr.bf16.mxu0 0
      %821 = vmatpush1.bf16.msra.mxu0 0
      %822 = vmatprep.subr.bf16.mxu0 0
      %823 = vmatpush1.bf16.msra.mxu0 0
      %824 = vmatprep.subr.bf16.mxu0 0
      %825 = vmatpush1.bf16.msra.mxu0 0
      %826 = vmatprep.subr.bf16.mxu0 0
      %827 = vmatpush1.bf16.msra.mxu0 0
      %828 = vmatprep.subr.bf16.mxu0 0
      %829 = vmatpush1.bf16.msra.mxu0 0
      %830 = vmatprep.subr.bf16.mxu0 0
      %831 = vmatpush1.bf16.msra.mxu0 0
      %832 = vmatprep.mubr.bf16.mxu0 0
      %833 = vmatmul.mubr.bf16.gmra.mrb[0].mxu0 %v799
      %v834 = vpop.f32.mrb[0].mxu0
      %v835 = vadd.f32 1e-06, %v834
      %v836 = vpop.f32.mrb[0].mxu0
      %v837 = vpop.f32.mrb[0].mxu0
      %v838 = vadd.f32 1e-06, %v837
      %v839 = vpop.f32.mrb[0].mxu0
      %840 = vdwg.mxu0
      %v841 = vrsqrt.pop %v835
      %v842 = vrsqrt.pop %v838
      %v843 = vmul.f32 %v795, %v841
      %v844 = vmul.f32 %v796, %v842
      %v845 = vlaneseq
      %v846 = vshrl.u32 %v845, 7
      %v847 = vsub.s32 3, %v846
      %v848 = vrot.slane %v290, %v847
      %v849 = vmul.f32 %v843, %v848
      %v850 = vmul.f32 %v844, %v848
      %v851 = vlaneseq
      %v852 = vshrl.u32 %v851, 7
      %v853 = vsub.s32 4, %v852
      %v854 = vrot.slane %v290, %v853
      %v855 = vadd.f32 %v849, %v854
      %v856 = vadd.f32 %v850, %v854
      %v857 = vpack.c.bf16 %v856, %v855
      %v858 = vld [vmem:[%s2] sm:$0xff]
      %v859 = vld [vmem:[%s2 + $0x8] sm:$0xff]
      %v860 = vld [vmem:[%s2 + $0x10] sm:$0xff]
      %v861 = vld [vmem:[%s2 + $0x18] sm:$0xff]
      %v862 = vld [vmem:[%s2 + $0x20] sm:$0xff]
      %v863 = vld [vmem:[%s2 + $0x28] sm:$0xff]
      %v864 = vld [vmem:[%s2 + $0x30] sm:$0xff]
      %v865 = vld [vmem:[%s2 + $0x38] sm:$0xff]
      %v866 = vld [vmem:[%s2 + $0x40] sm:$0xff]
      %v867 = vld [vmem:[%s2 + $0x48] sm:$0xff]
      %v868 = vld [vmem:[%s2 + $0x50] sm:$0xff]
      %v869 = vld [vmem:[%s2 + $0x58] sm:$0xff]
      %v870 = vld [vmem:[%s2 + $0x60] sm:$0xff]
      %v871 = vld [vmem:[%s2 + $0x68] sm:$0xff]
      %v872 = vld [vmem:[%s2 + $0x70] sm:$0xff]
      %v873 = vld [vmem:[%s2 + $0x78] sm:$0xff]
      %v874 = vld [vmem:[%s5] sm:$0x3]
      %v876 = vlaneseq
      %v877 = vshrl.u32 %v876, 7
      %v878 = vsub.s32 0, %v877
      %v879 = vrot.slane %v874, %v878
      %v880 = vlaneseq
      %v881 = vshrl.u32 %v880, 7
      %v882 = vsub.s32 1, %v881
      %v883 = vrot.slane %v874, %v882
      %v902 = vunpack.c.l.b16 %v858
      %v903 = vunpack.c.h.b16 %v858
      %v904 = vunpack.c.l.b16 %v859
      %v905 = vunpack.c.h.b16 %v859
      %v906 = vunpack.c.l.b16 %v860
      %v907 = vunpack.c.h.b16 %v860
      %v908 = vunpack.c.l.b16 %v861
      %v909 = vunpack.c.h.b16 %v861
      %v910 = vunpack.c.l.b16 %v862
      %v911 = vunpack.c.h.b16 %v862
      %v912 = vunpack.c.l.b16 %v863
      %v913 = vunpack.c.h.b16 %v863
      %v914 = vunpack.c.l.b16 %v864
      %v915 = vunpack.c.h.b16 %v864
      %v916 = vunpack.c.l.b16 %v865
      %v917 = vunpack.c.h.b16 %v865
      %v918 = vunpack.c.l.b16 %v866
      %v919 = vunpack.c.h.b16 %v866
      %v920 = vunpack.c.l.b16 %v867
      %v921 = vunpack.c.h.b16 %v867
      %v922 = vunpack.c.l.b16 %v868
      %v923 = vunpack.c.h.b16 %v868
      %v924 = vunpack.c.l.b16 %v869
      %v925 = vunpack.c.h.b16 %v869
      %v926 = vunpack.c.l.b16 %v870
      %v927 = vunpack.c.h.b16 %v870
      %v928 = vunpack.c.l.b16 %v871
      %v929 = vunpack.c.h.b16 %v871
      %v930 = vunpack.c.l.b16 %v872
      %v931 = vunpack.c.h.b16 %v872
      %v932 = vunpack.c.l.b16 %v873
      %v933 = vunpack.c.h.b16 %v873
      %v934 = vpack.c.b16 %v904, %v902
      %v935 = vpack.c.b16 %v905, %v903
      %v936 = vpack.c.b16 %v908, %v906
      %v937 = vpack.c.b16 %v909, %v907
      %v938 = vpack.c.b16 %v912, %v910
      %v939 = vpack.c.b16 %v913, %v911
      %v940 = vpack.c.b16 %v916, %v914
      %v941 = vpack.c.b16 %v917, %v915
      %v942 = vpack.c.b16 %v920, %v918
      %v943 = vpack.c.b16 %v921, %v919
      %v944 = vpack.c.b16 %v924, %v922
      %v945 = vpack.c.b16 %v925, %v923
      %v946 = vpack.c.b16 %v928, %v926
      %v947 = vpack.c.b16 %v929, %v927
      %v948 = vpack.c.b16 %v932, %v930
      %v949 = vpack.c.b16 %v933, %v931
      %966 = vmatprep.subr.bf16.mxu0 %v935
      %967 = vmatpush1.bf16.msra.mxu0 %v934
      %968 = vmatprep.subr.bf16.mxu0 %v937
      %969 = vmatpush1.bf16.msra.mxu0 %v936
      %970 = vmatprep.subr.bf16.mxu0 %v939
      %971 = vmatpush1.bf16.msra.mxu0 %v938
      %972 = vmatprep.subr.bf16.mxu0 %v941
      %973 = vmatpush1.bf16.msra.mxu0 %v940
      %974 = vmatprep.subr.bf16.mxu0 %v943
      %975 = vmatpush1.bf16.msra.mxu0 %v942
      %976 = vmatprep.subr.bf16.mxu0 %v945
      %977 = vmatpush1.bf16.msra.mxu0 %v944
      %978 = vmatprep.subr.bf16.mxu0 %v947
      %979 = vmatpush1.bf16.msra.mxu0 %v946
      %980 = vmatprep.subr.bf16.mxu0 %v949
      %981 = vmatpush1.bf16.msra.mxu0 %v948
      %982 = vmatprep.subr.bf16.mxu0 0
      %983 = vmatpush1.bf16.msra.mxu0 0
      %984 = vmatprep.subr.bf16.mxu0 0
      %985 = vmatpush1.bf16.msra.mxu0 0
      %986 = vmatprep.subr.bf16.mxu0 0
      %987 = vmatpush1.bf16.msra.mxu0 0
      %988 = vmatprep.subr.bf16.mxu0 0
      %989 = vmatpush1.bf16.msra.mxu0 0
      %990 = vmatprep.subr.bf16.mxu0 0
      %991 = vmatpush1.bf16.msra.mxu0 0
      %992 = vmatprep.subr.bf16.mxu0 0
      %993 = vmatpush1.bf16.msra.mxu0 0
      %994 = vmatprep.subr.bf16.mxu0 0
      %995 = vmatpush1.bf16.msra.mxu0 0
      %996 = vmatprep.subr.bf16.mxu0 0
      %997 = vmatpush1.bf16.msra.mxu0 0
      %998 = vmatprep.mubr.bf16.mxu0 0
      %999 = vmatmul.mubr.bf16.gmra.mrb[0].mxu0 %v857
      %v1000 = vpop.f32.mrb[0].mxu0
      %v1001 = vadd.f32 %v879, %v1000
      %v1002 = vpop.f32.mrb[0].mxu0
      %v1003 = vadd.f32 %v883, %v1002
      %v1004 = vpop.f32.mrb[0].mxu0
      %v1005 = vadd.f32 %v879, %v1004
      %v1006 = vpop.f32.mrb[0].mxu0
      %v1007 = vadd.f32 %v883, %v1006
      %1008 = vdwg.mxu0
      %v1009 = vmul.f32 %v1001, %v1001
      %v1010 = vmul.f32 %v1003, %v1003
      %v1011 = vmul.f32 %v1005, %v1005
      %v1012 = vmul.f32 %v1007, %v1007
      %v1013 = vmul.f32 %v1001, %v1009
      %v1014 = vmul.f32 %v1003, %v1010
      %v1015 = vmul.f32 %v1005, %v1011
      %v1016 = vmul.f32 %v1007, %v1012
      %v1017 = vmul.f32 %v1013, 0.044715
      %v1018 = vmul.f32 %v1014, 0.044715
      %v1019 = vmul.f32 %v1015, 0.044715
      %v1020 = vmul.f32 %v1016, 0.044715
      %v1021 = vadd.f32 %v1001, %v1017
      %v1022 = vadd.f32 %v1003, %v1018
      %v1023 = vadd.f32 %v1005, %v1019
      %v1024 = vadd.f32 %v1007, %v1020
      %v1025 = vmul.f32 %v1021, 0.7978846
      %v1026 = vmul.f32 %v1022, 0.7978846
      %v1027 = vmul.f32 %v1023, 0.7978846
      %v1028 = vmul.f32 %v1024, 0.7978846
      %v1029 = vtanh.pop %v1025
      %v1030 = vtanh.pop %v1026
      %v1031 = vtanh.pop %v1027
      %v1032 = vtanh.pop %v1028
      %v1033 = vadd.f32 %v1029, 1.0
      %v1034 = vadd.f32 %v1030, 1.0
      %v1035 = vadd.f32 %v1031, 1.0
      %v1036 = vadd.f32 %v1032, 1.0
      %v1037 = vmul.f32 %v1033, 0.5
      %v1038 = vmul.f32 %v1034, 0.5
      %v1039 = vmul.f32 %v1035, 0.5
      %v1040 = vmul.f32 %v1036, 0.5
      %v1041 = vmul.f32 %v1001, %v1037
      %v1042 = vmul.f32 %v1003, %v1038
      %v1043 = vmul.f32 %v1005, %v1039
      %v1044 = vmul.f32 %v1007, %v1040
      %v1045 = vpack.c.bf16 %v1043, %v1041
      %v1046 = vpack.c.bf16 %v1044, %v1042
      %v1047 = vld [vmem:[%s3] sm:$0xf]
      %v1048 = vld [vmem:[%s3 + $0x4] sm:$0xf]
      %v1049 = vld [vmem:[%s3 + $0x8] sm:$0xf]
      %v1050 = vld [vmem:[%s3 + $0xc] sm:$0xf]
      %v1051 = vld [vmem:[%s3 + $0x10] sm:$0xf]
      %v1052 = vld [vmem:[%s3 + $0x14] sm:$0xf]
      %v1053 = vld [vmem:[%s3 + $0x18] sm:$0xf]
      %v1054 = vld [vmem:[%s3 + $0x1c] sm:$0xf]
      %v1055 = vld [vmem:[%s3 + $0x20] sm:$0xf]
      %v1056 = vld [vmem:[%s3 + $0x24] sm:$0xf]
      %v1057 = vld [vmem:[%s3 + $0x28] sm:$0xf]
      %v1058 = vld [vmem:[%s3 + $0x2c] sm:$0xf]
      %v1059 = vld [vmem:[%s3 + $0x30] sm:$0xf]
      %v1060 = vld [vmem:[%s3 + $0x34] sm:$0xf]
      %v1061 = vld [vmem:[%s3 + $0x38] sm:$0xf]
      %v1062 = vld [vmem:[%s3 + $0x3c] sm:$0xf]
      %v1063 = vld [vmem:[%s3 + $0x40] sm:$0xf]
      %v1064 = vld [vmem:[%s3 + $0x44] sm:$0xf]
      %v1065 = vld [vmem:[%s3 + $0x48] sm:$0xf]
      %v1066 = vld [vmem:[%s3 + $0x4c] sm:$0xf]
      %v1067 = vld [vmem:[%s3 + $0x50] sm:$0xf]
      %v1068 = vld [vmem:[%s3 + $0x54] sm:$0xf]
      %v1069 = vld [vmem:[%s3 + $0x58] sm:$0xf]
      %v1070 = vld [vmem:[%s3 + $0x5c] sm:$0xf]
      %v1071 = vld [vmem:[%s3 + $0x60] sm:$0xf]
      %v1072 = vld [vmem:[%s3 + $0x64] sm:$0xf]
      %v1073 = vld [vmem:[%s3 + $0x68] sm:$0xf]
      %v1074 = vld [vmem:[%s3 + $0x6c] sm:$0xf]
      %v1075 = vld [vmem:[%s3 + $0x70] sm:$0xf]
      %v1076 = vld [vmem:[%s3 + $0x74] sm:$0xf]
      %v1077 = vld [vmem:[%s3 + $0x78] sm:$0xf]
      %v1078 = vld [vmem:[%s3 + $0x7c] sm:$0xf]
      %v1079 = vlaneseq
      %v1080 = vshrl.u32 %v1079, 7
      %v1081 = vsub.s32 5, %v1080
      %v1082 = vrot.slane %v290, %v1081
      %v1115 = vunpack.c.l.b16 %v1047
      %v1116 = vunpack.c.l.b16 %v1048
      %v1117 = vunpack.c.l.b16 %v1049
      %v1118 = vunpack.c.l.b16 %v1050
      %v1119 = vunpack.c.l.b16 %v1051
      %v1120 = vunpack.c.l.b16 %v1052
      %v1121 = vunpack.c.l.b16 %v1053
      %v1122 = vunpack.c.l.b16 %v1054
      %v1123 = vunpack.c.l.b16 %v1055
      %v1124 = vunpack.c.l.b16 %v1056
      %v1125 = vunpack.c.l.b16 %v1057
      %v1126 = vunpack.c.l.b16 %v1058
      %v1127 = vunpack.c.l.b16 %v1059
      %v1128 = vunpack.c.l.b16 %v1060
      %v1129 = vunpack.c.l.b16 %v1061
      %v1130 = vunpack.c.l.b16 %v1062
      %v1131 = vunpack.c.l.b16 %v1063
      %v1132 = vunpack.c.l.b16 %v1064
      %v1133 = vunpack.c.l.b16 %v1065
      %v1134 = vunpack.c.l.b16 %v1066
      %v1135 = vunpack.c.l.b16 %v1067
      %v1136 = vunpack.c.l.b16 %v1068
      %v1137 = vunpack.c.l.b16 %v1069
      %v1138 = vunpack.c.l.b16 %v1070
      %v1139 = vunpack.c.l.b16 %v1071
      %v1140 = vunpack.c.l.b16 %v1072
      %v1141 = vunpack.c.l.b16 %v1073
      %v1142 = vunpack.c.l.b16 %v1074
      %v1143 = vunpack.c.l.b16 %v1075
      %v1144 = vunpack.c.l.b16 %v1076
      %v1145 = vunpack.c.l.b16 %v1077
      %v1146 = vunpack.c.l.b16 %v1078
      %v1147 = vpack.c.b16 %v1116, %v1115
      %v1148 = vpack.c.b16 %v1118, %v1117
      %v1149 = vpack.c.b16 %v1120, %v1119
      %v1150 = vpack.c.b16 %v1122, %v1121
      %v1151 = vpack.c.b16 %v1124, %v1123
      %v1152 = vpack.c.b16 %v1126, %v1125
      %v1153 = vpack.c.b16 %v1128, %v1127
      %v1154 = vpack.c.b16 %v1130, %v1129
      %v1155 = vpack.c.b16 %v1132, %v1131
      %v1156 = vpack.c.b16 %v1134, %v1133
      %v1157 = vpack.c.b16 %v1136, %v1135
      %v1158 = vpack.c.b16 %v1138, %v1137
      %v1159 = vpack.c.b16 %v1140, %v1139
      %v1160 = vpack.c.b16 %v1142, %v1141
      %v1161 = vpack.c.b16 %v1144, %v1143
      %v1162 = vpack.c.b16 %v1146, %v1145
      %1179 = vmatprep.subr.bf16.mxu0 0
      %1180 = vmatpush1.bf16.msra.mxu0 %v1147
      %1181 = vmatprep.subr.bf16.mxu0 0
      %1182 = vmatpush1.bf16.msra.mxu0 %v1148
      %1183 = vmatprep.subr.bf16.mxu0 0
      %1184 = vmatpush1.bf16.msra.mxu0 %v1149
      %1185 = vmatprep.subr.bf16.mxu0 0
      %1186 = vmatpush1.bf16.msra.mxu0 %v1150
      %1187 = vmatprep.subr.bf16.mxu0 0
      %1188 = vmatpush1.bf16.msra.mxu0 %v1151
      %1189 = vmatprep.subr.bf16.mxu0 0
      %1190 = vmatpush1.bf16.msra.mxu0 %v1152
      %1191 = vmatprep.subr.bf16.mxu0 0
      %1192 = vmatpush1.bf16.msra.mxu0 %v1153
      %1193 = vmatprep.subr.bf16.mxu0 0
      %1194 = vmatpush1.bf16.msra.mxu0 %v1154
      %1195 = vmatprep.subr.bf16.mxu0 0
      %1196 = vmatpush1.bf16.msra.mxu0 %v1155
      %1197 = vmatprep.subr.bf16.mxu0 0
      %1198 = vmatpush1.bf16.msra.mxu0 %v1156
      %1199 = vmatprep.subr.bf16.mxu0 0
      %1200 = vmatpush1.bf16.msra.mxu0 %v1157
      %1201 = vmatprep.subr.bf16.mxu0 0
      %1202 = vmatpush1.bf16.msra.mxu0 %v1158
      %1203 = vmatprep.subr.bf16.mxu0 0
      %1204 = vmatpush1.bf16.msra.mxu0 %v1159
      %1205 = vmatprep.subr.bf16.mxu0 0
      %1206 = vmatpush1.bf16.msra.mxu0 %v1160
      %1207 = vmatprep.subr.bf16.mxu0 0
      %1208 = vmatpush1.bf16.msra.mxu0 %v1161
      %1209 = vmatprep.subr.bf16.mxu0 0
      %1210 = vmatpush1.bf16.msra.mxu0 %v1162
      %1211 = vmatprep.mubr.bf16.mxu0 %v1046
      %1212 = vmatmul.mubr.bf16.gmra.mrb[0].mxu0 %v1045
      %v1213 = vpop.f32.mrb[0].mxu0
      %v1214 = vadd.f32 %v1082, %v1213
      %v1215 = vpop.f32.mrb[0].mxu0
      %v1216 = vpop.f32.mrb[0].mxu0
      %v1217 = vadd.f32 %v1082, %v1216
      %v1218 = vpop.f32.mrb[0].mxu0
      %1219 = vdwg.mxu0
      %v1220 = vadd.f32 %v1214, %v751
      %v1221 = vadd.f32 %v1217, %v752
      %v1222 = vpack.c.bf16 %v1221, %v1220
      %v1224 = vunpack.c.l.b16 %v1222
      %v1225 = vunpack.c.h.b16 %v1222
      %v1226 = vpack.c.b16 %v1224, %v1224
      %v1227 = vpack.c.b16 %v1225, %v1225
      %1230 = vst [vmem:[%s283] sm:$0xf] %v1226
      %1231 = vst [vmem:[%s283 + $0x4] sm:$0xf] %v1227
      %s1232 = smul.u32 2, %s18
      %p1233 = scmp.lt.s32.totalorder %s1232, 7
      %s1234 = scalar_select %p1233, %s1232, 7
      %s1235 = smul.addr %s1234, 4
      %s1236 = scalar_lea.vmem %s7, %s1235
      // Predicated region
      $region49: #{light_image_encoder_forward.9} parent=47 // pred_check
        %p1237 = pneg %p188
      $region50: #{light_image_encoder_forward.9} parent=47 // pred_check_branch
        %1239 = sbr.rel (%p1237) target = $region52
      $region51: #{light_image_encoder_forward.9} parent=47 // pred_region
        %s1240 = smul.u32 2, %s18
      $region52: #{light_image_encoder_forward.9} parent=47 // pred_fallthru
        _
    $region48: #{light_image_encoder_forward.9} parent=5 // pred_fallthru
      _
    %p1241 = scmp.le.s32.totalorder 2, %s13
    // Predicated region
    $region53: #{light_image_encoder_forward.9} parent=5 // pred_check
      %p1242 = pneg %p1241
    $region54: #{light_image_encoder_forward.9} parent=5 // pred_check_branch
      %1244 = sbr.rel (%p1242) target = $region56
    $region55: #{light_image_encoder_forward.9} parent=5 // pred_region
      %s1245 = ssub.s32 %s13, 2
      // Predicated region
      $region57: #{light_image_encoder_forward.9} parent=55 // pred_check
        %p1246 = pneg %p194
      $region58: #{light_image_encoder_forward.9} parent=55 // pred_check_branch
        %1248 = sbr.rel (%p1246) target = $region60
      $region59: #{light_image_encoder_forward.9} parent=55 // pred_region
        %s1249 = smul.u32 2, %s19
        %p1250 = scmp.lt.s32.totalorder %s1249, 7
        %s1251 = scalar_select %p1250, %s1249, 7
        %s1252 = smul.addr %s1251, 4
        %s1253 = scalar_lea.vmem %s7, %s1252
      $region60: #{light_image_encoder_forward.9} parent=55 // pred_fallthru
        _
    $region56: #{light_image_encoder_forward.9} parent=5 // pred_fallthru
      _
  $region6: #{light_image_encoder_forward.9} parent=0 // loop_footer
    %s17 = sadd.s32 1, %s13
  $region7: #{light_image_encoder_forward.9} parent=0 // loop_footer_branch
    %12 = sbr.rel target = $region3
  $region8: #{light_image_encoder_forward.9} parent=0 // loop_exit
    _

// kernel: light_image_encoder_forward.10
$region0: #{light_image_encoder_forward.10}
  #allocation0 [shape = 'u32[]', space=smem, size = 0x4, offset = 0x4, fixed_abs, tag = 'smem constant byte address 0x4 - core index']
  #allocation1 [shape = 'u32[144,128]{1,0:T(1,128)}', space=vmem, size = 0x12000, scoped, tag = 'internal scratch']
  %s0 = inlined_call_operand.vmem [shape: bf16[32,256], index: 0, kind: input, shape index: {}]
  %s1 = inlined_call_operand.vmem [shape: bf16[256,128], index: 1, kind: input, shape index: {}]
  %s2 = inlined_call_operand.vmem [shape: bf16[128,256], index: 2, kind: input, shape index: {}]
  %s3 = inlined_call_operand.vmem [shape: bf16[256,128], index: 3, kind: input, shape index: {}]
  %s4 = inlined_call_operand.vmem [shape: f32[6,128], index: 4, kind: input, shape index: {}]
  %s5 = inlined_call_operand.vmem [shape: f32[1,256], index: 5, kind: input, shape index: {}]
  %s6 = inlined_call_operand.vmem [shape: bf16[128,128], index: 6, kind: input, shape index: {}]
  %s7 = inlined_call_operand.vmem [shape: bf16[32,128], index: 7, kind: output, shape index: {}]
  %s8 = sld [smem:[#allocation0]]
  $region61: #{light_image_encoder_forward.10} parent=0
    _
  %s10 = ssub.s32 1, %s8
  %s11 = scalar_select 0, %s10, %s8
  loop: start=0, step=1, limit=4
  $region2: #{light_image_encoder_forward.10} parent=0 // loop_pre_header
    _
  $region3: #{light_image_encoder_forward.10} parent=0 // loop_header
    %s13 = sphi 0, %s17
    %p14 = scmp.ge.s32.totalorder %s13, 4
    %s23 = sphi 0, %s25
    %s26 = sphi 0, %s23
    %s27 = sphi 0, %s26
    %s43 = sphi 0, %s27
    %s47 = sphi 0, %s47
    %s49 = sphi 0, %s47
    %s50 = sphi 0, %s49
    %s64 = sphi 0, %s50
    %s68 = sphi 0, %s68
    %s70 = sphi 0, %s68
    %s71 = sphi 0, %s70
    %s85 = sphi 0, %s71
    %s89 = sphi 0, %s89
    %s91 = sphi 0, %s89
    %s92 = sphi 0, %s91
    %s106 = sphi 0, %s92
    %s110 = sphi 0, %s110
    %s112 = sphi 0, %s110
    %s113 = sphi 0, %s112
    %s127 = sphi 0, %s113
    %s131 = sphi 0, %s131
    %s133 = sphi 0, %s131
    %s134 = sphi 0, %s133
    %s148 = sphi 0, %s134
    %s152 = sphi 0, %s152
    %s154 = sphi 0, %s152
    %s155 = sphi 0, %s154
    %s169 = sphi 0, %s155
    %s175 = sphi 0, %s177
    %s178 = sphi 0, %s175
    %s179 = sphi 0, %s178
    %s195 = sphi 0, %s179
  $region4: #{light_image_encoder_forward.10} parent=0 // loop_header_branch
    %16 = sbr.rel (%p14) target = $region8
  $region5: #{light_image_encoder_forward.10} parent=0 // loop_body
    %s18 = ssub.s32 %s13, 1
    %s19 = ssub.s32 %s13, 2
    %s20 = sadd.s32 %s13, 1
    %s21 = ssub.s32 %s13, %s20
    %p22 = scmp.eq.s32.totalorder %s21, 0
    %s24 = sadd.s32 %s23, 1
    %s25 = scalar_select %p22, %s23, %s24
    %p28 = pneg %p22
    %p29 = scmp.eq.s32.totalorder %s13, 1
    %p30 = por %p28, %p29
    %p31 = scmp.ne.s32.totalorder %s23, %s26
    %p32 = scmp.eq.s32.totalorder %s13, 0
    %p33 = por %p31, %p32
    %p34 = scmp.ne.s32.totalorder %s23, %s26
    %p35 = scmp.eq.s32.totalorder %s18, 1
    %p36 = por %p34, %p35
    %p37 = scmp.ne.s32.totalorder %s26, %s27
    %p38 = scmp.eq.s32.totalorder %s18, 0
    %p39 = por %p37, %p38
    %p40 = scmp.ne.s32.totalorder %s26, %s27
    %p41 = scmp.eq.s32.totalorder %s19, 1
    %p42 = por %p40, %p41
    %p44 = scmp.ne.s32.totalorder %s27, %s43
    %p45 = scmp.eq.s32.totalorder %s19, 0
    %p46 = por %p44, %p45
    %s48 = sadd.s32 %s47, 1
    %p51 = scmp.eq.s32.totalorder %s13, 1
    %p52 = scmp.ne.s32.totalorder %s47, %s49
    %p53 = scmp.eq.s32.totalorder %s13, 0
    %p54 = por %p52, %p53
    %p55 = scmp.ne.s32.totalorder %s47, %s49
    %p56 = scmp.eq.s32.totalorder %s18, 1
    %p57 = por %p55, %p56
    %p58 = scmp.ne.s32.totalorder %s49, %s50
    %p59 = scmp.eq.s32.totalorder %s18, 0
    %p60 = por %p58, %p59
    %p61 = scmp.ne.s32.totalorder %s49, %s50
    %p62 = scmp.eq.s32.totalorder %s19, 1
    %p63 = por %p61, %p62
    %p65 = scmp.ne.s32.totalorder %s50, %s64
    %p66 = scmp.eq.s32.totalorder %s19, 0
    %p67 = por %p65, %p66
    %s69 = sadd.s32 %s68, 1
    %p72 = scmp.eq.s32.totalorder %s13, 1
    %p73 = scmp.ne.s32.totalorder %s68, %s70
    %p74 = scmp.eq.s32.totalorder %s13, 0
    %p75 = por %p73, %p74
    %p76 = scmp.ne.s32.totalorder %s68, %s70
    %p77 = scmp.eq.s32.totalorder %s18, 1
    %p78 = por %p76, %p77
    %p79 = scmp.ne.s32.totalorder %s70, %s71
    %p80 = scmp.eq.s32.totalorder %s18, 0
    %p81 = por %p79, %p80
    %p82 = scmp.ne.s32.totalorder %s70, %s71
    %p83 = scmp.eq.s32.totalorder %s19, 1
    %p84 = por %p82, %p83
    %p86 = scmp.ne.s32.totalorder %s71, %s85
    %p87 = scmp.eq.s32.totalorder %s19, 0
    %p88 = por %p86, %p87
    %s90 = sadd.s32 %s89, 1
    %p93 = scmp.eq.s32.totalorder %s13, 1
    %p94 = scmp.ne.s32.totalorder %s89, %s91
    %p95 = scmp.eq.s32.totalorder %s13, 0
    %p96 = por %p94, %p95
    %p97 = scmp.ne.s32.totalorder %s89, %s91
    %p98 = scmp.eq.s32.totalorder %s18, 1
    %p99 = por %p97, %p98
    %p100 = scmp.ne.s32.totalorder %s91, %s92
    %p101 = scmp.eq.s32.totalorder %s18, 0
    %p102 = por %p100, %p101
    %p103 = scmp.ne.s32.totalorder %s91, %s92
    %p104 = scmp.eq.s32.totalorder %s19, 1
    %p105 = por %p103, %p104
    %p107 = scmp.ne.s32.totalorder %s92, %s106
    %p108 = scmp.eq.s32.totalorder %s19, 0
    %p109 = por %p107, %p108
    %s111 = sadd.s32 %s110, 1
    %p114 = scmp.eq.s32.totalorder %s13, 1
    %p115 = scmp.ne.s32.totalorder %s110, %s112
    %p116 = scmp.eq.s32.totalorder %s13, 0
    %p117 = por %p115, %p116
    %p118 = scmp.ne.s32.totalorder %s110, %s112
    %p119 = scmp.eq.s32.totalorder %s18, 1
    %p120 = por %p118, %p119
    %p121 = scmp.ne.s32.totalorder %s112, %s113
    %p122 = scmp.eq.s32.totalorder %s18, 0
    %p123 = por %p121, %p122
    %p124 = scmp.ne.s32.totalorder %s112, %s113
    %p125 = scmp.eq.s32.totalorder %s19, 1
    %p126 = por %p124, %p125
    %p128 = scmp.ne.s32.totalorder %s113, %s127
    %p129 = scmp.eq.s32.totalorder %s19, 0
    %p130 = por %p128, %p129
    %s132 = sadd.s32 %s131, 1
    %p135 = scmp.eq.s32.totalorder %s13, 1
    %p136 = scmp.ne.s32.totalorder %s131, %s133
    %p137 = scmp.eq.s32.totalorder %s13, 0
    %p138 = por %p136, %p137
    %p139 = scmp.ne.s32.totalorder %s131, %s133
    %p140 = scmp.eq.s32.totalorder %s18, 1
    %p141 = por %p139, %p140
    %p142 = scmp.ne.s32.totalorder %s133, %s134
    %p143 = scmp.eq.s32.totalorder %s18, 0
    %p144 = por %p142, %p143
    %p145 = scmp.ne.s32.totalorder %s133, %s134
    %p146 = scmp.eq.s32.totalorder %s19, 1
    %p147 = por %p145, %p146
    %p149 = scmp.ne.s32.totalorder %s134, %s148
    %p150 = scmp.eq.s32.totalorder %s19, 0
    %p151 = por %p149, %p150
    %s153 = sadd.s32 %s152, 1
    %p156 = scmp.eq.s32.totalorder %s13, 1
    %p157 = scmp.ne.s32.totalorder %s152, %s154
    %p158 = scmp.eq.s32.totalorder %s13, 0
    %p159 = por %p157, %p158
    %p160 = scmp.ne.s32.totalorder %s152, %s154
    %p161 = scmp.eq.s32.totalorder %s18, 1
    %p162 = por %p160, %p161
    %p163 = scmp.ne.s32.totalorder %s154, %s155
    %p164 = scmp.eq.s32.totalorder %s18, 0
    %p165 = por %p163, %p164
    %p166 = scmp.ne.s32.totalorder %s154, %s155
    %p167 = scmp.eq.s32.totalorder %s19, 1
    %p168 = por %p166, %p167
    %p170 = scmp.ne.s32.totalorder %s155, %s169
    %p171 = scmp.eq.s32.totalorder %s19, 0
    %p172 = por %p170, %p171
    %s173 = ssub.s32 %s13, %s20
    %p174 = scmp.eq.s32.totalorder %s173, 0
    %s176 = sadd.s32 %s175, 1
    %s177 = scalar_select %p174, %s175, %s176
    %p180 = pneg %p174
    %p181 = scmp.eq.s32.totalorder %s13, 1
    %p182 = por %p180, %p181
    %p183 = scmp.ne.s32.totalorder %s175, %s178
    %p184 = scmp.eq.s32.totalorder %s13, 0
    %p185 = por %p183, %p184
    %p186 = scmp.ne.s32.totalorder %s175, %s178
    %p187 = scmp.eq.s32.totalorder %s18, 1
    %p188 = por %p186, %p187
    %p189 = scmp.ne.s32.totalorder %s178, %s179
    %p190 = scmp.eq.s32.totalorder %s18, 0
    %p191 = por %p189, %p190
    %p192 = scmp.ne.s32.totalorder %s178, %s179
    %p193 = scmp.eq.s32.totalorder %s19, 1
    %p194 = por %p192, %p193
    %p196 = scmp.ne.s32.totalorder %s179, %s195
    %p197 = scmp.eq.s32.totalorder %s19, 0
    %p198 = por %p196, %p197
    %p199 = scmp.le.s32.totalorder 1, %s13
    %p200 = scmp.lt.s32.totalorder %s13, 3
    %p201 = pnand %p199, %p200
    %p202 = pneg %p201
    // Predicated region
    $region9: #{light_image_encoder_forward.10} parent=5 // pred_check
      _
    $region10: #{light_image_encoder_forward.10} parent=5 // pred_check_branch
      %204 = sbr.rel (%p201) target = $region12
    $region11: #{light_image_encoder_forward.10} parent=5 // pred_region
      %s205 = ssub.s32 %s13, 1
      // Predicated region
      $region13: #{light_image_encoder_forward.10} parent=11 // pred_check
        %p206 = pneg %p60
      $region14: #{light_image_encoder_forward.10} parent=11 // pred_check_branch
        %208 = sbr.rel (%p206) target = $region16
      $region15: #{light_image_encoder_forward.10} parent=11 // pred_region
        _
      $region16: #{light_image_encoder_forward.10} parent=11 // pred_fallthru
        _
      // Predicated region
      $region17: #{light_image_encoder_forward.10} parent=11 // pred_check
        %p209 = pneg %p81
      $region18: #{light_image_encoder_forward.10} parent=11 // pred_check_branch
        %211 = sbr.rel (%p209) target = $region20
      $region19: #{light_image_encoder_forward.10} parent=11 // pred_region
        _
      $region20: #{light_image_encoder_forward.10} parent=11 // pred_fallthru
        _
      // Predicated region
      $region21: #{light_image_encoder_forward.10} parent=11 // pred_check
        %p212 = pneg %p102
      $region22: #{light_image_encoder_forward.10} parent=11 // pred_check_branch
        %214 = sbr.rel (%p212) target = $region24
      $region23: #{light_image_encoder_forward.10} parent=11 // pred_region
        _
      $region24: #{light_image_encoder_forward.10} parent=11 // pred_fallthru
        _
      // Predicated region
      $region25: #{light_image_encoder_forward.10} parent=11 // pred_check
        %p215 = pneg %p123
      $region26: #{light_image_encoder_forward.10} parent=11 // pred_check_branch
        %217 = sbr.rel (%p215) target = $region28
      $region27: #{light_image_encoder_forward.10} parent=11 // pred_region
        _
      $region28: #{light_image_encoder_forward.10} parent=11 // pred_fallthru
        _
      // Predicated region
      $region29: #{light_image_encoder_forward.10} parent=11 // pred_check
        %p218 = pneg %p144
      $region30: #{light_image_encoder_forward.10} parent=11 // pred_check_branch
        %220 = sbr.rel (%p218) target = $region32
      $region31: #{light_image_encoder_forward.10} parent=11 // pred_region
        _
      $region32: #{light_image_encoder_forward.10} parent=11 // pred_fallthru
        _
      // Predicated region
      $region33: #{light_image_encoder_forward.10} parent=11 // pred_check
        %p221 = pneg %p165
      $region34: #{light_image_encoder_forward.10} parent=11 // pred_check_branch
        %223 = sbr.rel (%p221) target = $region36
      $region35: #{light_image_encoder_forward.10} parent=11 // pred_region
        _
      $region36: #{light_image_encoder_forward.10} parent=11 // pred_fallthru
        _
    $region12: #{light_image_encoder_forward.10} parent=5 // pred_fallthru
      _
    %p224 = scmp.lt.s32.totalorder %s13, 2
    // Predicated region
    $region37: #{light_image_encoder_forward.10} parent=5 // pred_check
      %p225 = pneg %p224
    $region38: #{light_image_encoder_forward.10} parent=5 // pred_check_branch
      %227 = sbr.rel (%p225) target = $region40
    $region39: #{light_image_encoder_forward.10} parent=5 // pred_region
      // Predicated region
      $region41: #{light_image_encoder_forward.10} parent=39 // pred_check
        %p228 = pneg %p33
      $region42: #{light_image_encoder_forward.10} parent=39 // pred_check_branch
        %230 = sbr.rel (%p228) target = $region44
      $region43: #{light_image_encoder_forward.10} parent=39 // pred_region
        %s231 = smul.u32 2, %s13
        %p232 = scmp.lt.s32.totalorder %s231, 3
        %s233 = scalar_select %p232, %s231, 3
        %s234 = smul.addr %s233, 2
        %s235 = smul.addr %s234, 4
        %s236 = scalar_lea.vmem %s0, %s235
        %s237 = smul.u32 2, %s13
      $region44: #{light_image_encoder_forward.10} parent=39 // pred_fallthru
        _
    $region40: #{light_image_encoder_forward.10} parent=5 // pred_fallthru
      _
    %p238 = scmp.le.s32.totalorder 1, %s13
    %p239 = scmp.lt.s32.totalorder %s13, 3
    %p240 = pnand %p238, %p239
    %p241 = pneg %p240
    // Predicated region
    $region45: #{light_image_encoder_forward.10} parent=5 // pred_check
      _
    $region46: #{light_image_encoder_forward.10} parent=5 // pred_check_branch
      %243 = sbr.rel (%p240) target = $region48
    $region47: #{light_image_encoder_forward.10} parent=5 // pred_region
      %s244 = ssub.s32 %s13, 1
      %s245 = smul.u32 2, %s18
      %p246 = scmp.lt.s32.totalorder %s245, 3
      %s247 = scalar_select %p246, %s245, 3
      %s248 = smul.addr %s247, 2
      %s249 = smul.addr %s248, 4
      %s250 = scalar_lea.vmem %s0, %s249
      %p251 = pneg %p39
      %p252 = pneg %p36
      %p253 = pneg %p60
      %p254 = pneg %p57
      %p255 = pneg %p81
      %p256 = pneg %p78
      %p257 = pneg %p102
      %p258 = pneg %p99
      %p259 = pneg %p123
      %p260 = pneg %p120
      %p261 = pneg %p144
      %p262 = pneg %p141
      %p263 = pneg %p165
      %p264 = pneg %p162
      %p265 = pneg %p191
      %p266 = pneg %p188
      %s267 = smul.u32 2, %s18
      %p268 = scmp.lt.s32.totalorder %s267, 3
      %s269 = scalar_select %p268, %s267, 3
      %s270 = smul.addr %s269, 4
      %s271 = scalar_lea.vmem %s7, %s270
      %s272 = smul.u32 2, %s18
      %p273 = scmp.lt.s32.totalorder %s272, 3
      %s274 = scalar_select %p273, %s272, 3
      %s275 = smul.addr %s274, 2
      %s276 = smul.addr %s275, 4
      %s277 = scalar_lea.vmem %s0, %s276
      %s278 = smul.u32 2, %s18
      %s279 = smul.u32 2, %s18
      %p280 = scmp.lt.s32.totalorder %s279, 3
      %s281 = scalar_select %p280, %s279, 3
      %s282 = smul.addr %s281, 4
      %s283 = scalar_lea.vmem %s7, %s282
      %s284 = smul.u32 2, %s18
      %v286 = vld [vmem:[%s277] sm:$0xff]
      %v287 = vld [vmem:[%s277 + $0x8] sm:$0xff]
      %v288 = vld [vmem:[%s4] sm:$0x3f]
      %v289 = vld [vmem:[%s6] sm:$0xf]
      %v290 = vld [vmem:[%s6 + $0x4] sm:$0xf]
      %v291 = vld [vmem:[%s6 + $0x8] sm:$0xf]
      %v292 = vld [vmem:[%s6 + $0xc] sm:$0xf]
      %v293 = vld [vmem:[%s6 + $0x10] sm:$0xf]
      %v294 = vld [vmem:[%s6 + $0x14] sm:$0xf]
      %v295 = vld [vmem:[%s6 + $0x18] sm:$0xf]
      %v296 = vld [vmem:[%s6 + $0x1c] sm:$0xf]
      %v297 = vld [vmem:[%s6 + $0x20] sm:$0xf]
      %v298 = vld [vmem:[%s6 + $0x24] sm:$0xf]
      %v299 = vld [vmem:[%s6 + $0x28] sm:$0xf]
      %v300 = vld [vmem:[%s6 + $0x2c] sm:$0xf]
      %v301 = vld [vmem:[%s6 + $0x30] sm:$0xf]
      %v302 = vld [vmem:[%s6 + $0x34] sm:$0xf]
      %v303 = vld [vmem:[%s6 + $0x38] sm:$0xf]
      %v304 = vld [vmem:[%s6 + $0x3c] sm:$0xf]
      %v305 = vld [vmem:[%s1] sm:$0xf]
      %v306 = vld [vmem:[%s1 + $0x4] sm:$0xf]
      %v307 = vld [vmem:[%s1 + $0x8] sm:$0xf]
      %v308 = vld [vmem:[%s1 + $0xc] sm:$0xf]
      %v309 = vld [vmem:[%s1 + $0x10] sm:$0xf]
      %v310 = vld [vmem:[%s1 + $0x14] sm:$0xf]
      %v311 = vld [vmem:[%s1 + $0x18] sm:$0xf]
      %v312 = vld [vmem:[%s1 + $0x1c] sm:$0xf]
      %v313 = vld [vmem:[%s1 + $0x20] sm:$0xf]
      %v314 = vld [vmem:[%s1 + $0x24] sm:$0xf]
      %v315 = vld [vmem:[%s1 + $0x28] sm:$0xf]
      %v316 = vld [vmem:[%s1 + $0x2c] sm:$0xf]
      %v317 = vld [vmem:[%s1 + $0x30] sm:$0xf]
      %v318 = vld [vmem:[%s1 + $0x34] sm:$0xf]
      %v319 = vld [vmem:[%s1 + $0x38] sm:$0xf]
      %v320 = vld [vmem:[%s1 + $0x3c] sm:$0xf]
      %v321 = vld [vmem:[%s1 + $0x40] sm:$0xf]
      %v322 = vld [vmem:[%s1 + $0x44] sm:$0xf]
      %v323 = vld [vmem:[%s1 + $0x48] sm:$0xf]
      %v324 = vld [vmem:[%s1 + $0x4c] sm:$0xf]
      %v325 = vld [vmem:[%s1 + $0x50] sm:$0xf]
      %v326 = vld [vmem:[%s1 + $0x54] sm:$0xf]
      %v327 = vld [vmem:[%s1 + $0x58] sm:$0xf]
      %v328 = vld [vmem:[%s1 + $0x5c] sm:$0xf]
      %v329 = vld [vmem:[%s1 + $0x60] sm:$0xf]
      %v330 = vld [vmem:[%s1 + $0x64] sm:$0xf]
      %v331 = vld [vmem:[%s1 + $0x68] sm:$0xf]
      %v332 = vld [vmem:[%s1 + $0x6c] sm:$0xf]
      %v333 = vld [vmem:[%s1 + $0x70] sm:$0xf]
      %v334 = vld [vmem:[%s1 + $0x74] sm:$0xf]
      %v335 = vld [vmem:[%s1 + $0x78] sm:$0xf]
      %v336 = vld [vmem:[%s1 + $0x7c] sm:$0xf]
      %v337 = vlaneseq
      %v338 = vshrl.u32 %v337, 7
      %v339 = vsub.s32 0, %v338
      %v340 = vrot.slane %v288, %v339
      %v343 = vunpack.c.l.b16 %v286
      %v344 = vunpack.c.h.b16 %v286
      %v345 = vunpack.c.l.b16 %v287
      %v346 = vunpack.c.h.b16 %v287
      %v347 = vpack.c.b16 %v345, %v343
      %v348 = vpack.c.b16 %v346, %v344
      %v383 = vunpack.c.l.b16 %v305
      %v384 = vunpack.c.l.b16 %v306
      %v385 = vunpack.c.l.b16 %v307
      %v386 = vunpack.c.l.b16 %v308
      %v387 = vunpack.c.l.b16 %v309
      %v388 = vunpack.c.l.b16 %v310
      %v389 = vunpack.c.l.b16 %v311
      %v390 = vunpack.c.l.b16 %v312
      %v391 = vunpack.c.l.b16 %v313
      %v392 = vunpack.c.l.b16 %v314
      %v393 = vunpack.c.l.b16 %v315
      %v394 = vunpack.c.l.b16 %v316
      %v395 = vunpack.c.l.b16 %v317
      %v396 = vunpack.c.l.b16 %v318
      %v397 = vunpack.c.l.b16 %v319
      %v398 = vunpack.c.l.b16 %v320
      %v399 = vunpack.c.l.b16 %v321
      %v400 = vunpack.c.l.b16 %v322
      %v401 = vunpack.c.l.b16 %v323
      %v402 = vunpack.c.l.b16 %v324
      %v403 = vunpack.c.l.b16 %v325
      %v404 = vunpack.c.l.b16 %v326
      %v405 = vunpack.c.l.b16 %v327
      %v406 = vunpack.c.l.b16 %v328
      %v407 = vunpack.c.l.b16 %v329
      %v408 = vunpack.c.l.b16 %v330
      %v409 = vunpack.c.l.b16 %v331
      %v410 = vunpack.c.l.b16 %v332
      %v411 = vunpack.c.l.b16 %v333
      %v412 = vunpack.c.l.b16 %v334
      %v413 = vunpack.c.l.b16 %v335
      %v414 = vunpack.c.l.b16 %v336
      %v415 = vpack.c.b16 %v384, %v383
      %v416 = vpack.c.b16 %v386, %v385
      %v417 = vpack.c.b16 %v388, %v387
      %v418 = vpack.c.b16 %v390, %v389
      %v419 = vpack.c.b16 %v392, %v391
      %v420 = vpack.c.b16 %v394, %v393
      %v421 = vpack.c.b16 %v396, %v395
      %v422 = vpack.c.b16 %v398, %v397
      %v423 = vpack.c.b16 %v400, %v399
      %v424 = vpack.c.b16 %v402, %v401
      %v425 = vpack.c.b16 %v404, %v403
      %v426 = vpack.c.b16 %v406, %v405
      %v427 = vpack.c.b16 %v408, %v407
      %v428 = vpack.c.b16 %v410, %v409
      %v429 = vpack.c.b16 %v412, %v411
      %v430 = vpack.c.b16 %v414, %v413
      %447 = vmatprep.subr.bf16.mxu0 0
      %448 = vmatpush1.bf16.msra.mxu0 %v415
      %449 = vmatprep.subr.bf16.mxu0 0
      %450 = vmatpush1.bf16.msra.mxu0 %v416
      %451 = vmatprep.subr.bf16.mxu0 0
      %452 = vmatpush1.bf16.msra.mxu0 %v417
      %453 = vmatprep.subr.bf16.mxu0 0
      %454 = vmatpush1.bf16.msra.mxu0 %v418
      %455 = vmatprep.subr.bf16.mxu0 0
      %456 = vmatpush1.bf16.msra.mxu0 %v419
      %457 = vmatprep.subr.bf16.mxu0 0
      %458 = vmatpush1.bf16.msra.mxu0 %v420
      %459 = vmatprep.subr.bf16.mxu0 0
      %460 = vmatpush1.bf16.msra.mxu0 %v421
      %461 = vmatprep.subr.bf16.mxu0 0
      %462 = vmatpush1.bf16.msra.mxu0 %v422
      %463 = vmatprep.subr.bf16.mxu0 0
      %464 = vmatpush1.bf16.msra.mxu0 %v423
      %465 = vmatprep.subr.bf16.mxu0 0
      %466 = vmatpush1.bf16.msra.mxu0 %v424
      %467 = vmatprep.subr.bf16.mxu0 0
      %468 = vmatpush1.bf16.msra.mxu0 %v425
      %469 = vmatprep.subr.bf16.mxu0 0
      %470 = vmatpush1.bf16.msra.mxu0 %v426
      %471 = vmatprep.subr.bf16.mxu0 0
      %472 = vmatpush1.bf16.msra.mxu0 %v427
      %473 = vmatprep.subr.bf16.mxu0 0
      %474 = vmatpush1.bf16.msra.mxu0 %v428
      %475 = vmatprep.subr.bf16.mxu0 0
      %476 = vmatpush1.bf16.msra.mxu0 %v429
      %477 = vmatprep.subr.bf16.mxu0 0
      %478 = vmatpush1.bf16.msra.mxu0 %v430
      %479 = vmatprep.mubr.bf16.mxu0 %v348
      %480 = vmatmul.mubr.bf16.gmra.mrb[0].mxu0 %v347
      %v481 = vpop.f32.mrb[0].mxu0
      %v482 = vadd.f32 %v340, %v481
      %v483 = vpop.f32.mrb[0].mxu0
      %v484 = vpop.f32.mrb[0].mxu0
      %v485 = vadd.f32 %v340, %v484
      %v486 = vpop.f32.mrb[0].mxu0
      %487 = vdwg.mxu0
      %v488 = vpack.c.bf16 %v485, %v482
      %v505 = vunpack.c.l.b16 %v289
      %v506 = vunpack.c.l.b16 %v290
      %v507 = vunpack.c.l.b16 %v291
      %v508 = vunpack.c.l.b16 %v292
      %v509 = vunpack.c.l.b16 %v293
      %v510 = vunpack.c.l.b16 %v294
      %v511 = vunpack.c.l.b16 %v295
      %v512 = vunpack.c.l.b16 %v296
      %v513 = vunpack.c.l.b16 %v297
      %v514 = vunpack.c.l.b16 %v298
      %v515 = vunpack.c.l.b16 %v299
      %v516 = vunpack.c.l.b16 %v300
      %v517 = vunpack.c.l.b16 %v301
      %v518 = vunpack.c.l.b16 %v302
      %v519 = vunpack.c.l.b16 %v303
      %v520 = vunpack.c.l.b16 %v304
      %v521 = vpack.c.b16 %v506, %v505
      %v522 = vpack.c.b16 %v508, %v507
      %v523 = vpack.c.b16 %v510, %v509
      %v524 = vpack.c.b16 %v512, %v511
      %v525 = vpack.c.b16 %v514, %v513
      %v526 = vpack.c.b16 %v516, %v515
      %v527 = vpack.c.b16 %v518, %v517
      %v528 = vpack.c.b16 %v520, %v519
      %537 = vmatprep.subr.bf16.mxu0 0
      %538 = vmatpush1.bf16.msra.mxu0 %v521
      %539 = vmatprep.subr.bf16.mxu0 0
      %540 = vmatpush1.bf16.msra.mxu0 %v522
      %541 = vmatprep.subr.bf16.mxu0 0
      %542 = vmatpush1.bf16.msra.mxu0 %v523
      %543 = vmatprep.subr.bf16.mxu0 0
      %544 = vmatpush1.bf16.msra.mxu0 %v524
      %545 = vmatprep.subr.bf16.mxu0 0
      %546 = vmatpush1.bf16.msra.mxu0 %v525
      %547 = vmatprep.subr.bf16.mxu0 0
      %548 = vmatpush1.bf16.msra.mxu0 %v526
      %549 = vmatprep.subr.bf16.mxu0 0
      %550 = vmatpush1.bf16.msra.mxu0 %v527
      %551 = vmatprep.subr.bf16.mxu0 0
      %552 = vmatpush1.bf16.msra.mxu0 %v528
      %553 = vmatprep.subr.bf16.mxu0 0
      %554 = vmatpush1.bf16.msra.mxu0 0
      %555 = vmatprep.subr.bf16.mxu0 0
      %556 = vmatpush1.bf16.msra.mxu0 0
      %557 = vmatprep.subr.bf16.mxu0 0
      %558 = vmatpush1.bf16.msra.mxu0 0
      %559 = vmatprep.subr.bf16.mxu0 0
      %560 = vmatpush1.bf16.msra.mxu0 0
      %561 = vmatprep.subr.bf16.mxu0 0
      %562 = vmatpush1.bf16.msra.mxu0 0
      %563 = vmatprep.subr.bf16.mxu0 0
      %564 = vmatpush1.bf16.msra.mxu0 0
      %565 = vmatprep.subr.bf16.mxu0 0
      %566 = vmatpush1.bf16.msra.mxu0 0
      %567 = vmatprep.subr.bf16.mxu0 0
      %568 = vmatpush1.bf16.msra.mxu0 0
      %569 = vmatprep.mubr.bf16.mxu0 0
      %570 = vmatmul.mubr.bf16.gmra.mrb[0].mxu0 %v488
      %v571 = vpop.f32.mrb[0].mxu0
      %v572 = vadd.f32 0.0, %v571
      %v573 = vpop.f32.mrb[0].mxu0
      %v574 = vpop.f32.mrb[0].mxu0
      %v575 = vadd.f32 0.0, %v574
      %v576 = vpop.f32.mrb[0].mxu0
      %577 = vdwg.mxu0
      %v578 = vsub.f32 %v482, %v572
      %v579 = vsub.f32 %v485, %v575
      %v580 = vmul.f32 %v578, %v578
      %v581 = vmul.f32 %v579, %v579
      %v582 = vpack.c.bf16 %v581, %v580
      %583 = vmatprep.subr.bf16.mxu0 0
      %584 = vmatpush1.bf16.msra.mxu0 %v521
      %585 = vmatprep.subr.bf16.mxu0 0
      %586 = vmatpush1.bf16.msra.mxu0 %v522
      %587 = vmatprep.subr.bf16.mxu0 0
      %588 = vmatpush1.bf16.msra.mxu0 %v523
      %589 = vmatprep.subr.bf16.mxu0 0
      %590 = vmatpush1.bf16.msra.mxu0 %v524
      %591 = vmatprep.subr.bf16.mxu0 0
      %592 = vmatpush1.bf16.msra.mxu0 %v525
      %593 = vmatprep.subr.bf16.mxu0 0
      %594 = vmatpush1.bf16.msra.mxu0 %v526
      %595 = vmatprep.subr.bf16.mxu0 0
      %596 = vmatpush1.bf16.msra.mxu0 %v527
      %597 = vmatprep.subr.bf16.mxu0 0
      %598 = vmatpush1.bf16.msra.mxu0 %v528
      %599 = vmatprep.subr.bf16.mxu0 0
      %600 = vmatpush1.bf16.msra.mxu0 0
      %601 = vmatprep.subr.bf16.mxu0 0
      %602 = vmatpush1.bf16.msra.mxu0 0
      %603 = vmatprep.subr.bf16.mxu0 0
      %604 = vmatpush1.bf16.msra.mxu0 0
      %605 = vmatprep.subr.bf16.mxu0 0
      %606 = vmatpush1.bf16.msra.mxu0 0
      %607 = vmatprep.subr.bf16.mxu0 0
      %608 = vmatpush1.bf16.msra.mxu0 0
      %609 = vmatprep.subr.bf16.mxu0 0
      %610 = vmatpush1.bf16.msra.mxu0 0
      %611 = vmatprep.subr.bf16.mxu0 0
      %612 = vmatpush1.bf16.msra.mxu0 0
      %613 = vmatprep.subr.bf16.mxu0 0
      %614 = vmatpush1.bf16.msra.mxu0 0
      %615 = vmatprep.mubr.bf16.mxu0 0
      %616 = vmatmul.mubr.bf16.gmra.mrb[0].mxu0 %v582
      %v617 = vpop.f32.mrb[0].mxu0
      %v618 = vadd.f32 1e-06, %v617
      %v619 = vpop.f32.mrb[0].mxu0
      %v620 = vpop.f32.mrb[0].mxu0
      %v621 = vadd.f32 1e-06, %v620
      %v622 = vpop.f32.mrb[0].mxu0
      %623 = vdwg.mxu0
      %v624 = vrsqrt.pop %v618
      %v625 = vrsqrt.pop %v621
      %v626 = vmul.f32 %v578, %v624
      %v627 = vmul.f32 %v579, %v625
      %v628 = vlaneseq
      %v629 = vshrl.u32 %v628, 7
      %v630 = vsub.s32 1, %v629
      %v631 = vrot.slane %v288, %v630
      %v632 = vmul.f32 %v626, %v631
      %v633 = vmul.f32 %v627, %v631
      %v634 = vlaneseq
      %v635 = vshrl.u32 %v634, 7
      %v636 = vsub.s32 2, %v635
      %v637 = vrot.slane %v288, %v636
      %v638 = vadd.f32 %v632, %v637
      %v639 = vadd.f32 %v633, %v637
      %v640 = vpack.c.bf16 %v639, %v638
      %641 = vmatprep.subr.bf16.mxu0 0
      %642 = vmatpush1.bf16.msra.mxu0 %v521
      %643 = vmatprep.subr.bf16.mxu0 0
      %644 = vmatpush1.bf16.msra.mxu0 %v522
      %645 = vmatprep.subr.bf16.mxu0 0
      %646 = vmatpush1.bf16.msra.mxu0 %v523
      %647 = vmatprep.subr.bf16.mxu0 0
      %648 = vmatpush1.bf16.msra.mxu0 %v524
      %649 = vmatprep.subr.bf16.mxu0 0
      %650 = vmatpush1.bf16.msra.mxu0 %v525
      %651 = vmatprep.subr.bf16.mxu0 0
      %652 = vmatpush1.bf16.msra.mxu0 %v526
      %653 = vmatprep.subr.bf16.mxu0 0
      %654 = vmatpush1.bf16.msra.mxu0 %v527
      %655 = vmatprep.subr.bf16.mxu0 0
      %656 = vmatpush1.bf16.msra.mxu0 %v528
      %657 = vmatprep.subr.bf16.mxu0 0
      %658 = vmatpush1.bf16.msra.mxu0 0
      %659 = vmatprep.subr.bf16.mxu0 0
      %660 = vmatpush1.bf16.msra.mxu0 0
      %661 = vmatprep.subr.bf16.mxu0 0
      %662 = vmatpush1.bf16.msra.mxu0 0
      %663 = vmatprep.subr.bf16.mxu0 0
      %664 = vmatpush1.bf16.msra.mxu0 0
      %665 = vmatprep.subr.bf16.mxu0 0
      %666 = vmatpush1.bf16.msra.mxu0 0
      %667 = vmatprep.subr.bf16.mxu0 0
      %668 = vmatpush1.bf16.msra.mxu0 0
      %669 = vmatprep.subr.bf16.mxu0 0
      %670 = vmatpush1.bf16.msra.mxu0 0
      %671 = vmatprep.subr.bf16.mxu0 0
      %672 = vmatpush1.bf16.msra.mxu0 0
      %673 = vmatprep.mubr.bf16.mxu0 0
      %674 = vmatmul.mubr.bf16.gmra.mrb[0].mxu0 %v640
      %v675 = vpop.f32.mrb[0].mxu0
      %v676 = vadd.f32 0.0, %v675
      %v677 = vpop.f32.mrb[0].mxu0
      %v678 = vpop.f32.mrb[0].mxu0
      %v679 = vadd.f32 0.0, %v678
      %v680 = vpop.f32.mrb[0].mxu0
      %681 = vdwg.mxu0
      %v682 = vsub.f32 %v638, %v676
      %v683 = vsub.f32 %v639, %v679
      %v684 = vmul.f32 %v682, %v682
      %v685 = vmul.f32 %v683, %v683
      %v686 = vpack.c.bf16 %v685, %v684
      %687 = vmatprep.subr.bf16.mxu0 0
      %688 = vmatpush1.bf16.msra.mxu0 %v521
      %689 = vmatprep.subr.bf16.mxu0 0
      %690 = vmatpush1.bf16.msra.mxu0 %v522
      %691 = vmatprep.subr.bf16.mxu0 0
      %692 = vmatpush1.bf16.msra.mxu0 %v523
      %693 = vmatprep.subr.bf16.mxu0 0
      %694 = vmatpush1.bf16.msra.mxu0 %v524
      %695 = vmatprep.subr.bf16.mxu0 0
      %696 = vmatpush1.bf16.msra.mxu0 %v525
      %697 = vmatprep.subr.bf16.mxu0 0
      %698 = vmatpush1.bf16.msra.mxu0 %v526
      %699 = vmatprep.subr.bf16.mxu0 0
      %700 = vmatpush1.bf16.msra.mxu0 %v527
      %701 = vmatprep.subr.bf16.mxu0 0
      %702 = vmatpush1.bf16.msra.mxu0 %v528
      %703 = vmatprep.subr.bf16.mxu0 0
      %704 = vmatpush1.bf16.msra.mxu0 0
      %705 = vmatprep.subr.bf16.mxu0 0
      %706 = vmatpush1.bf16.msra.mxu0 0
      %707 = vmatprep.subr.bf16.mxu0 0
      %708 = vmatpush1.bf16.msra.mxu0 0
      %709 = vmatprep.subr.bf16.mxu0 0
      %710 = vmatpush1.bf16.msra.mxu0 0
      %711 = vmatprep.subr.bf16.mxu0 0
      %712 = vmatpush1.bf16.msra.mxu0 0
      %713 = vmatprep.subr.bf16.mxu0 0
      %714 = vmatpush1.bf16.msra.mxu0 0
      %715 = vmatprep.subr.bf16.mxu0 0
      %716 = vmatpush1.bf16.msra.mxu0 0
      %717 = vmatprep.subr.bf16.mxu0 0
      %718 = vmatpush1.bf16.msra.mxu0 0
      %719 = vmatprep.mubr.bf16.mxu0 0
      %720 = vmatmul.mubr.bf16.gmra.mrb[0].mxu0 %v686
      %v721 = vpop.f32.mrb[0].mxu0
      %v722 = vadd.f32 1e-06, %v721
      %v723 = vpop.f32.mrb[0].mxu0
      %v724 = vpop.f32.mrb[0].mxu0
      %v725 = vadd.f32 1e-06, %v724
      %v726 = vpop.f32.mrb[0].mxu0
      %727 = vdwg.mxu0
      %v728 = vrsqrt.pop %v722
      %v729 = vrsqrt.pop %v725
      %v730 = vmul.f32 %v682, %v728
      %v731 = vmul.f32 %v683, %v729
      %v732 = vlaneseq
      %v733 = vshrl.u32 %v732, 7
      %v734 = vsub.s32 3, %v733
      %v735 = vrot.slane %v288, %v734
      %v736 = vmul.f32 %v730, %v735
      %v737 = vmul.f32 %v731, %v735
      %v738 = vlaneseq
      %v739 = vshrl.u32 %v738, 7
      %v740 = vsub.s32 4, %v739
      %v741 = vrot.slane %v288, %v740
      %v742 = vadd.f32 %v736, %v741
      %v743 = vadd.f32 %v737, %v741
      %v744 = vpack.c.bf16 %v743, %v742
      %v745 = vld [vmem:[%s2] sm:$0xff]
      %v746 = vld [vmem:[%s2 + $0x8] sm:$0xff]
      %v747 = vld [vmem:[%s2 + $0x10] sm:$0xff]
      %v748 = vld [vmem:[%s2 + $0x18] sm:$0xff]
      %v749 = vld [vmem:[%s2 + $0x20] sm:$0xff]
      %v750 = vld [vmem:[%s2 + $0x28] sm:$0xff]
      %v751 = vld [vmem:[%s2 + $0x30] sm:$0xff]
      %v752 = vld [vmem:[%s2 + $0x38] sm:$0xff]
      %v753 = vld [vmem:[%s2 + $0x40] sm:$0xff]
      %v754 = vld [vmem:[%s2 + $0x48] sm:$0xff]
      %v755 = vld [vmem:[%s2 + $0x50] sm:$0xff]
      %v756 = vld [vmem:[%s2 + $0x58] sm:$0xff]
      %v757 = vld [vmem:[%s2 + $0x60] sm:$0xff]
      %v758 = vld [vmem:[%s2 + $0x68] sm:$0xff]
      %v759 = vld [vmem:[%s2 + $0x70] sm:$0xff]
      %v760 = vld [vmem:[%s2 + $0x78] sm:$0xff]
      %v761 = vld [vmem:[%s5] sm:$0x3]
      %v763 = vlaneseq
      %v764 = vshrl.u32 %v763, 7
      %v765 = vsub.s32 0, %v764
      %v766 = vrot.slane %v761, %v765
      %v767 = vlaneseq
      %v768 = vshrl.u32 %v767, 7
      %v769 = vsub.s32 1, %v768
      %v770 = vrot.slane %v761, %v769
      %v789 = vunpack.c.l.b16 %v745
      %v790 = vunpack.c.h.b16 %v745
      %v791 = vunpack.c.l.b16 %v746
      %v792 = vunpack.c.h.b16 %v746
      %v793 = vunpack.c.l.b16 %v747
      %v794 = vunpack.c.h.b16 %v747
      %v795 = vunpack.c.l.b16 %v748
      %v796 = vunpack.c.h.b16 %v748
      %v797 = vunpack.c.l.b16 %v749
      %v798 = vunpack.c.h.b16 %v749
      %v799 = vunpack.c.l.b16 %v750
      %v800 = vunpack.c.h.b16 %v750
      %v801 = vunpack.c.l.b16 %v751
      %v802 = vunpack.c.h.b16 %v751
      %v803 = vunpack.c.l.b16 %v752
      %v804 = vunpack.c.h.b16 %v752
      %v805 = vunpack.c.l.b16 %v753
      %v806 = vunpack.c.h.b16 %v753
      %v807 = vunpack.c.l.b16 %v754
      %v808 = vunpack.c.h.b16 %v754
      %v809 = vunpack.c.l.b16 %v755
      %v810 = vunpack.c.h.b16 %v755
      %v811 = vunpack.c.l.b16 %v756
      %v812 = vunpack.c.h.b16 %v756
      %v813 = vunpack.c.l.b16 %v757
      %v814 = vunpack.c.h.b16 %v757
      %v815 = vunpack.c.l.b16 %v758
      %v816 = vunpack.c.h.b16 %v758
      %v817 = vunpack.c.l.b16 %v759
      %v818 = vunpack.c.h.b16 %v759
      %v819 = vunpack.c.l.b16 %v760
      %v820 = vunpack.c.h.b16 %v760
      %v821 = vpack.c.b16 %v791, %v789
      %v822 = vpack.c.b16 %v792, %v790
      %v823 = vpack.c.b16 %v795, %v793
      %v824 = vpack.c.b16 %v796, %v794
      %v825 = vpack.c.b16 %v799, %v797
      %v826 = vpack.c.b16 %v800, %v798
      %v827 = vpack.c.b16 %v803, %v801
      %v828 = vpack.c.b16 %v804, %v802
      %v829 = vpack.c.b16 %v807, %v805
      %v830 = vpack.c.b16 %v808, %v806
      %v831 = vpack.c.b16 %v811, %v809
      %v832 = vpack.c.b16 %v812, %v810
      %v833 = vpack.c.b16 %v815, %v813
      %v834 = vpack.c.b16 %v816, %v814
      %v835 = vpack.c.b16 %v819, %v817
      %v836 = vpack.c.b16 %v820, %v818
      %853 = vmatprep.subr.bf16.mxu0 %v822
      %854 = vmatpush1.bf16.msra.mxu0 %v821
      %855 = vmatprep.subr.bf16.mxu0 %v824
      %856 = vmatpush1.bf16.msra.mxu0 %v823
      %857 = vmatprep.subr.bf16.mxu0 %v826
      %858 = vmatpush1.bf16.msra.mxu0 %v825
      %859 = vmatprep.subr.bf16.mxu0 %v828
      %860 = vmatpush1.bf16.msra.mxu0 %v827
      %861 = vmatprep.subr.bf16.mxu0 %v830
      %862 = vmatpush1.bf16.msra.mxu0 %v829
      %863 = vmatprep.subr.bf16.mxu0 %v832
      %864 = vmatpush1.bf16.msra.mxu0 %v831
      %865 = vmatprep.subr.bf16.mxu0 %v834
      %866 = vmatpush1.bf16.msra.mxu0 %v833
      %867 = vmatprep.subr.bf16.mxu0 %v836
      %868 = vmatpush1.bf16.msra.mxu0 %v835
      %869 = vmatprep.subr.bf16.mxu0 0
      %870 = vmatpush1.bf16.msra.mxu0 0
      %871 = vmatprep.subr.bf16.mxu0 0
      %872 = vmatpush1.bf16.msra.mxu0 0
      %873 = vmatprep.subr.bf16.mxu0 0
      %874 = vmatpush1.bf16.msra.mxu0 0
      %875 = vmatprep.subr.bf16.mxu0 0
      %876 = vmatpush1.bf16.msra.mxu0 0
      %877 = vmatprep.subr.bf16.mxu0 0
      %878 = vmatpush1.bf16.msra.mxu0 0
      %879 = vmatprep.subr.bf16.mxu0 0
      %880 = vmatpush1.bf16.msra.mxu0 0
      %881 = vmatprep.subr.bf16.mxu0 0
      %882 = vmatpush1.bf16.msra.mxu0 0
      %883 = vmatprep.subr.bf16.mxu0 0
      %884 = vmatpush1.bf16.msra.mxu0 0
      %885 = vmatprep.mubr.bf16.mxu0 0
      %886 = vmatmul.mubr.bf16.gmra.mrb[0].mxu0 %v744
      %v887 = vpop.f32.mrb[0].mxu0
      %v888 = vadd.f32 %v766, %v887
      %v889 = vpop.f32.mrb[0].mxu0
      %v890 = vadd.f32 %v770, %v889
      %v891 = vpop.f32.mrb[0].mxu0
      %v892 = vadd.f32 %v766, %v891
      %v893 = vpop.f32.mrb[0].mxu0
      %v894 = vadd.f32 %v770, %v893
      %895 = vdwg.mxu0
      %v896 = vmul.f32 %v888, %v888
      %v897 = vmul.f32 %v890, %v890
      %v898 = vmul.f32 %v892, %v892
      %v899 = vmul.f32 %v894, %v894
      %v900 = vmul.f32 %v888, %v896
      %v901 = vmul.f32 %v890, %v897
      %v902 = vmul.f32 %v892, %v898
      %v903 = vmul.f32 %v894, %v899
      %v904 = vmul.f32 %v900, 0.044715
      %v905 = vmul.f32 %v901, 0.044715
      %v906 = vmul.f32 %v902, 0.044715
      %v907 = vmul.f32 %v903, 0.044715
      %v908 = vadd.f32 %v888, %v904
      %v909 = vadd.f32 %v890, %v905
      %v910 = vadd.f32 %v892, %v906
      %v911 = vadd.f32 %v894, %v907
      %v912 = vmul.f32 %v908, 0.7978846
      %v913 = vmul.f32 %v909, 0.7978846
      %v914 = vmul.f32 %v910, 0.7978846
      %v915 = vmul.f32 %v911, 0.7978846
      %v916 = vtanh.pop %v912
      %v917 = vtanh.pop %v913
      %v918 = vtanh.pop %v914
      %v919 = vtanh.pop %v915
      %v920 = vadd.f32 %v916, 1.0
      %v921 = vadd.f32 %v917, 1.0
      %v922 = vadd.f32 %v918, 1.0
      %v923 = vadd.f32 %v919, 1.0
      %v924 = vmul.f32 %v920, 0.5
      %v925 = vmul.f32 %v921, 0.5
      %v926 = vmul.f32 %v922, 0.5
      %v927 = vmul.f32 %v923, 0.5
      %v928 = vmul.f32 %v888, %v924
      %v929 = vmul.f32 %v890, %v925
      %v930 = vmul.f32 %v892, %v926
      %v931 = vmul.f32 %v894, %v927
      %v932 = vpack.c.bf16 %v930, %v928
      %v933 = vpack.c.bf16 %v931, %v929
      %v934 = vld [vmem:[%s3] sm:$0xf]
      %v935 = vld [vmem:[%s3 + $0x4] sm:$0xf]
      %v936 = vld [vmem:[%s3 + $0x8] sm:$0xf]
      %v937 = vld [vmem:[%s3 + $0xc] sm:$0xf]
      %v938 = vld [vmem:[%s3 + $0x10] sm:$0xf]
      %v939 = vld [vmem:[%s3 + $0x14] sm:$0xf]
      %v940 = vld [vmem:[%s3 + $0x18] sm:$0xf]
      %v941 = vld [vmem:[%s3 + $0x1c] sm:$0xf]
      %v942 = vld [vmem:[%s3 + $0x20] sm:$0xf]
      %v943 = vld [vmem:[%s3 + $0x24] sm:$0xf]
      %v944 = vld [vmem:[%s3 + $0x28] sm:$0xf]
      %v945 = vld [vmem:[%s3 + $0x2c] sm:$0xf]
      %v946 = vld [vmem:[%s3 + $0x30] sm:$0xf]
      %v947 = vld [vmem:[%s3 + $0x34] sm:$0xf]
      %v948 = vld [vmem:[%s3 + $0x38] sm:$0xf]
      %v949 = vld [vmem:[%s3 + $0x3c] sm:$0xf]
      %v950 = vld [vmem:[%s3 + $0x40] sm:$0xf]
      %v951 = vld [vmem:[%s3 + $0x44] sm:$0xf]
      %v952 = vld [vmem:[%s3 + $0x48] sm:$0xf]
      %v953 = vld [vmem:[%s3 + $0x4c] sm:$0xf]
      %v954 = vld [vmem:[%s3 + $0x50] sm:$0xf]
      %v955 = vld [vmem:[%s3 + $0x54] sm:$0xf]
      %v956 = vld [vmem:[%s3 + $0x58] sm:$0xf]
      %v957 = vld [vmem:[%s3 + $0x5c] sm:$0xf]
      %v958 = vld [vmem:[%s3 + $0x60] sm:$0xf]
      %v959 = vld [vmem:[%s3 + $0x64] sm:$0xf]
      %v960 = vld [vmem:[%s3 + $0x68] sm:$0xf]
      %v961 = vld [vmem:[%s3 + $0x6c] sm:$0xf]
      %v962 = vld [vmem:[%s3 + $0x70] sm:$0xf]
      %v963 = vld [vmem:[%s3 + $0x74] sm:$0xf]
      %v964 = vld [vmem:[%s3 + $0x78] sm:$0xf]
      %v965 = vld [vmem:[%s3 + $0x7c] sm:$0xf]
      %v966 = vlaneseq
      %v967 = vshrl.u32 %v966, 7
      %v968 = vsub.s32 5, %v967
      %v969 = vrot.slane %v288, %v968
      %v1002 = vunpack.c.l.b16 %v934
      %v1003 = vunpack.c.l.b16 %v935
      %v1004 = vunpack.c.l.b16 %v936
      %v1005 = vunpack.c.l.b16 %v937
      %v1006 = vunpack.c.l.b16 %v938
      %v1007 = vunpack.c.l.b16 %v939
      %v1008 = vunpack.c.l.b16 %v940
      %v1009 = vunpack.c.l.b16 %v941
      %v1010 = vunpack.c.l.b16 %v942
      %v1011 = vunpack.c.l.b16 %v943
      %v1012 = vunpack.c.l.b16 %v944
      %v1013 = vunpack.c.l.b16 %v945
      %v1014 = vunpack.c.l.b16 %v946
      %v1015 = vunpack.c.l.b16 %v947
      %v1016 = vunpack.c.l.b16 %v948
      %v1017 = vunpack.c.l.b16 %v949
      %v1018 = vunpack.c.l.b16 %v950
      %v1019 = vunpack.c.l.b16 %v951
      %v1020 = vunpack.c.l.b16 %v952
      %v1021 = vunpack.c.l.b16 %v953
      %v1022 = vunpack.c.l.b16 %v954
      %v1023 = vunpack.c.l.b16 %v955
      %v1024 = vunpack.c.l.b16 %v956
      %v1025 = vunpack.c.l.b16 %v957
      %v1026 = vunpack.c.l.b16 %v958
      %v1027 = vunpack.c.l.b16 %v959
      %v1028 = vunpack.c.l.b16 %v960
      %v1029 = vunpack.c.l.b16 %v961
      %v1030 = vunpack.c.l.b16 %v962
      %v1031 = vunpack.c.l.b16 %v963
      %v1032 = vunpack.c.l.b16 %v964
      %v1033 = vunpack.c.l.b16 %v965
      %v1034 = vpack.c.b16 %v1003, %v1002
      %v1035 = vpack.c.b16 %v1005, %v1004
      %v1036 = vpack.c.b16 %v1007, %v1006
      %v1037 = vpack.c.b16 %v1009, %v1008
      %v1038 = vpack.c.b16 %v1011, %v1010
      %v1039 = vpack.c.b16 %v1013, %v1012
      %v1040 = vpack.c.b16 %v1015, %v1014
      %v1041 = vpack.c.b16 %v1017, %v1016
      %v1042 = vpack.c.b16 %v1019, %v1018
      %v1043 = vpack.c.b16 %v1021, %v1020
      %v1044 = vpack.c.b16 %v1023, %v1022
      %v1045 = vpack.c.b16 %v1025, %v1024
      %v1046 = vpack.c.b16 %v1027, %v1026
      %v1047 = vpack.c.b16 %v1029, %v1028
      %v1048 = vpack.c.b16 %v1031, %v1030
      %v1049 = vpack.c.b16 %v1033, %v1032
      %1066 = vmatprep.subr.bf16.mxu0 0
      %1067 = vmatpush1.bf16.msra.mxu0 %v1034
      %1068 = vmatprep.subr.bf16.mxu0 0
      %1069 = vmatpush1.bf16.msra.mxu0 %v1035
      %1070 = vmatprep.subr.bf16.mxu0 0
      %1071 = vmatpush1.bf16.msra.mxu0 %v1036
      %1072 = vmatprep.subr.bf16.mxu0 0
      %1073 = vmatpush1.bf16.msra.mxu0 %v1037
      %1074 = vmatprep.subr.bf16.mxu0 0
      %1075 = vmatpush1.bf16.msra.mxu0 %v1038
      %1076 = vmatprep.subr.bf16.mxu0 0
      %1077 = vmatpush1.bf16.msra.mxu0 %v1039
      %1078 = vmatprep.subr.bf16.mxu0 0
      %1079 = vmatpush1.bf16.msra.mxu0 %v1040
      %1080 = vmatprep.subr.bf16.mxu0 0
      %1081 = vmatpush1.bf16.msra.mxu0 %v1041
      %1082 = vmatprep.subr.bf16.mxu0 0
      %1083 = vmatpush1.bf16.msra.mxu0 %v1042
      %1084 = vmatprep.subr.bf16.mxu0 0
      %1085 = vmatpush1.bf16.msra.mxu0 %v1043
      %1086 = vmatprep.subr.bf16.mxu0 0
      %1087 = vmatpush1.bf16.msra.mxu0 %v1044
      %1088 = vmatprep.subr.bf16.mxu0 0
      %1089 = vmatpush1.bf16.msra.mxu0 %v1045
      %1090 = vmatprep.subr.bf16.mxu0 0
      %1091 = vmatpush1.bf16.msra.mxu0 %v1046
      %1092 = vmatprep.subr.bf16.mxu0 0
      %1093 = vmatpush1.bf16.msra.mxu0 %v1047
      %1094 = vmatprep.subr.bf16.mxu0 0
      %1095 = vmatpush1.bf16.msra.mxu0 %v1048
      %1096 = vmatprep.subr.bf16.mxu0 0
      %1097 = vmatpush1.bf16.msra.mxu0 %v1049
      %1098 = vmatprep.mubr.bf16.mxu0 %v933
      %1099 = vmatmul.mubr.bf16.gmra.mrb[0].mxu0 %v932
      %v1100 = vpop.f32.mrb[0].mxu0
      %v1101 = vadd.f32 %v969, %v1100
      %v1102 = vpop.f32.mrb[0].mxu0
      %v1103 = vpop.f32.mrb[0].mxu0
      %v1104 = vadd.f32 %v969, %v1103
      %v1105 = vpop.f32.mrb[0].mxu0
      %1106 = vdwg.mxu0
      %v1107 = vadd.f32 %v1101, %v638
      %v1108 = vadd.f32 %v1104, %v639
      %v1109 = vpack.c.bf16 %v1108, %v1107
      %v1111 = vunpack.c.l.b16 %v1109
      %v1112 = vunpack.c.h.b16 %v1109
      %v1113 = vpack.c.b16 %v1111, %v1111
      %v1114 = vpack.c.b16 %v1112, %v1112
      %1117 = vst [vmem:[%s283] sm:$0xf] %v1113
      %1118 = vst [vmem:[%s283 + $0x4] sm:$0xf] %v1114
      %s1119 = smul.u32 2, %s18
      %p1120 = scmp.lt.s32.totalorder %s1119, 3
      %s1121 = scalar_select %p1120, %s1119, 3
      %s1122 = smul.addr %s1121, 4
      %s1123 = scalar_lea.vmem %s7, %s1122
      // Predicated region
      $region49: #{light_image_encoder_forward.10} parent=47 // pred_check
        %p1124 = pneg %p188
      $region50: #{light_image_encoder_forward.10} parent=47 // pred_check_branch
        %1126 = sbr.rel (%p1124) target = $region52
      $region51: #{light_image_encoder_forward.10} parent=47 // pred_region
        %s1127 = smul.u32 2, %s18
      $region52: #{light_image_encoder_forward.10} parent=47 // pred_fallthru
        _
    $region48: #{light_image_encoder_forward.10} parent=5 // pred_fallthru
      _
    %p1128 = scmp.le.s32.totalorder 2, %s13
    // Predicated region
    $region53: #{light_image_encoder_forward.10} parent=5 // pred_check
      %p1129 = pneg %p1128
    $region54: #{light_image_encoder_forward.10} parent=5 // pred_check_branch
      %1131 = sbr.rel (%p1129) target = $region56
    $region55: #{light_image_encoder_forward.10} parent=5 // pred_region
      %s1132 = ssub.s32 %s13, 2
      // Predicated region
      $region57: #{light_image_encoder_forward.10} parent=55 // pred_check
        %p1133 = pneg %p194
      $region58: #{light_image_encoder_forward.10} parent=55 // pred_check_branch
        %1135 = sbr.rel (%p1133) target = $region60
      $region59: #{light_image_encoder_forward.10} parent=55 // pred_region
        %s1136 = smul.u32 2, %s19
        %p1137 = scmp.lt.s32.totalorder %s1136, 3
        %s1138 = scalar_select %p1137, %s1136, 3
        %s1139 = smul.addr %s1138, 4
        %s1140 = scalar_lea.vmem %s7, %s1139
      $region60: #{light_image_encoder_forward.10} parent=55 // pred_fallthru
        _
    $region56: #{light_image_encoder_forward.10} parent=5 // pred_fallthru
      _
  $region6: #{light_image_encoder_forward.10} parent=0 // loop_footer
    %s17 = sadd.s32 1, %s13
  $region7: #{light_image_encoder_forward.10} parent=0 // loop_footer_branch
    %12 = sbr.rel target = $region3
  $region8: #{light_image_encoder_forward.10} parent=0 // loop_exit
    _

// kernel: light_image_encoder_forward.14
$region0: #{light_image_encoder_forward.14}
  #allocation0 [shape = 'u32[]', space=smem, size = 0x4, offset = 0x4, fixed_abs, tag = 'smem constant byte address 0x4 - core index']
  #allocation1 [shape = 'u32[144,128]{1,0:T(1,128)}', space=vmem, size = 0x12000, scoped, tag = 'internal scratch']
  %s0 = inlined_call_operand.vmem [shape: bf16[64,64], index: 0, kind: input, shape index: {}]
  %s1 = inlined_call_operand.vmem [shape: bf16[64,128], index: 1, kind: input, shape index: {}]
  %s2 = inlined_call_operand.vmem [shape: f32[2,128], index: 2, kind: input, shape index: {}]
  %s3 = inlined_call_operand.vmem [shape: bf16[128,128], index: 3, kind: input, shape index: {}]
  %s4 = inlined_call_operand.vmem [shape: bf16[64,128], index: 4, kind: output, shape index: {}]
  %s5 = sld [smem:[#allocation0]]
  $region49: #{light_image_encoder_forward.14} parent=0
    _
  %s7 = ssub.s32 1, %s5
  %s8 = scalar_select 0, %s7, %s5
  loop: start=0, step=1, limit=6
  $region2: #{light_image_encoder_forward.14} parent=0 // loop_pre_header
    _
  $region3: #{light_image_encoder_forward.14} parent=0 // loop_header
    %s10 = sphi 0, %s14
    %p11 = scmp.ge.s32.totalorder %s10, 6
    %s20 = sphi 0, %s22
    %s23 = sphi 0, %s20
    %s24 = sphi 0, %s23
    %s40 = sphi 0, %s24
    %s44 = sphi 0, %s44
    %s46 = sphi 0, %s44
    %s47 = sphi 0, %s46
    %s61 = sphi 0, %s47
    %s65 = sphi 0, %s65
    %s67 = sphi 0, %s65
    %s68 = sphi 0, %s67
    %s82 = sphi 0, %s68
    %s86 = sphi 0, %s86
    %s88 = sphi 0, %s86
    %s89 = sphi 0, %s88
    %s103 = sphi 0, %s89
    %s109 = sphi 0, %s111
    %s112 = sphi 0, %s109
    %s113 = sphi 0, %s112
    %s129 = sphi 0, %s113
  $region4: #{light_image_encoder_forward.14} parent=0 // loop_header_branch
    %13 = sbr.rel (%p11) target = $region8
  $region5: #{light_image_encoder_forward.14} parent=0 // loop_body
    %s15 = ssub.s32 %s10, 1
    %s16 = ssub.s32 %s10, 2
    %s17 = sadd.s32 %s10, 1
    %s18 = ssub.s32 %s10, %s17
    %p19 = scmp.eq.s32.totalorder %s18, 0
    %s21 = sadd.s32 %s20, 1
    %s22 = scalar_select %p19, %s20, %s21
    %p25 = pneg %p19
    %p26 = scmp.eq.s32.totalorder %s10, 3
    %p27 = por %p25, %p26
    %p28 = scmp.ne.s32.totalorder %s20, %s23
    %p29 = scmp.eq.s32.totalorder %s10, 0
    %p30 = por %p28, %p29
    %p31 = scmp.ne.s32.totalorder %s20, %s23
    %p32 = scmp.eq.s32.totalorder %s15, 3
    %p33 = por %p31, %p32
    %p34 = scmp.ne.s32.totalorder %s23, %s24
    %p35 = scmp.eq.s32.totalorder %s15, 0
    %p36 = por %p34, %p35
    %p37 = scmp.ne.s32.totalorder %s23, %s24
    %p38 = scmp.eq.s32.totalorder %s16, 3
    %p39 = por %p37, %p38
    %p41 = scmp.ne.s32.totalorder %s24, %s40
    %p42 = scmp.eq.s32.totalorder %s16, 0
    %p43 = por %p41, %p42
    %s45 = sadd.s32 %s44, 1
    %p48 = scmp.eq.s32.totalorder %s10, 3
    %p49 = scmp.ne.s32.totalorder %s44, %s46
    %p50 = scmp.eq.s32.totalorder %s10, 0
    %p51 = por %p49, %p50
    %p52 = scmp.ne.s32.totalorder %s44, %s46
    %p53 = scmp.eq.s32.totalorder %s15, 3
    %p54 = por %p52, %p53
    %p55 = scmp.ne.s32.totalorder %s46, %s47
    %p56 = scmp.eq.s32.totalorder %s15, 0
    %p57 = por %p55, %p56
    %p58 = scmp.ne.s32.totalorder %s46, %s47
    %p59 = scmp.eq.s32.totalorder %s16, 3
    %p60 = por %p58, %p59
    %p62 = scmp.ne.s32.totalorder %s47, %s61
    %p63 = scmp.eq.s32.totalorder %s16, 0
    %p64 = por %p62, %p63
    %s66 = sadd.s32 %s65, 1
    %p69 = scmp.eq.s32.totalorder %s10, 3
    %p70 = scmp.ne.s32.totalorder %s65, %s67
    %p71 = scmp.eq.s32.totalorder %s10, 0
    %p72 = por %p70, %p71
    %p73 = scmp.ne.s32.totalorder %s65, %s67
    %p74 = scmp.eq.s32.totalorder %s15, 3
    %p75 = por %p73, %p74
    %p76 = scmp.ne.s32.totalorder %s67, %s68
    %p77 = scmp.eq.s32.totalorder %s15, 0
    %p78 = por %p76, %p77
    %p79 = scmp.ne.s32.totalorder %s67, %s68
    %p80 = scmp.eq.s32.totalorder %s16, 3
    %p81 = por %p79, %p80
    %p83 = scmp.ne.s32.totalorder %s68, %s82
    %p84 = scmp.eq.s32.totalorder %s16, 0
    %p85 = por %p83, %p84
    %s87 = sadd.s32 %s86, 1
    %p90 = scmp.eq.s32.totalorder %s10, 3
    %p91 = scmp.ne.s32.totalorder %s86, %s88
    %p92 = scmp.eq.s32.totalorder %s10, 0
    %p93 = por %p91, %p92
    %p94 = scmp.ne.s32.totalorder %s86, %s88
    %p95 = scmp.eq.s32.totalorder %s15, 3
    %p96 = por %p94, %p95
    %p97 = scmp.ne.s32.totalorder %s88, %s89
    %p98 = scmp.eq.s32.totalorder %s15, 0
    %p99 = por %p97, %p98
    %p100 = scmp.ne.s32.totalorder %s88, %s89
    %p101 = scmp.eq.s32.totalorder %s16, 3
    %p102 = por %p100, %p101
    %p104 = scmp.ne.s32.totalorder %s89, %s103
    %p105 = scmp.eq.s32.totalorder %s16, 0
    %p106 = por %p104, %p105
    %s107 = ssub.s32 %s10, %s17
    %p108 = scmp.eq.s32.totalorder %s107, 0
    %s110 = sadd.s32 %s109, 1
    %s111 = scalar_select %p108, %s109, %s110
    %p114 = pneg %p108
    %p115 = scmp.eq.s32.totalorder %s10, 3
    %p116 = por %p114, %p115
    %p117 = scmp.ne.s32.totalorder %s109, %s112
    %p118 = scmp.eq.s32.totalorder %s10, 0
    %p119 = por %p117, %p118
    %p120 = scmp.ne.s32.totalorder %s109, %s112
    %p121 = scmp.eq.s32.totalorder %s15, 3
    %p122 = por %p120, %p121
    %p123 = scmp.ne.s32.totalorder %s112, %s113
    %p124 = scmp.eq.s32.totalorder %s15, 0
    %p125 = por %p123, %p124
    %p126 = scmp.ne.s32.totalorder %s112, %s113
    %p127 = scmp.eq.s32.totalorder %s16, 3
    %p128 = por %p126, %p127
    %p130 = scmp.ne.s32.totalorder %s113, %s129
    %p131 = scmp.eq.s32.totalorder %s16, 0
    %p132 = por %p130, %p131
    %p133 = scmp.le.s32.totalorder 1, %s10
    %p134 = scmp.lt.s32.totalorder %s10, 5
    %p135 = pnand %p133, %p134
    %p136 = pneg %p135
    // Predicated region
    $region9: #{light_image_encoder_forward.14} parent=5 // pred_check
      _
    $region10: #{light_image_encoder_forward.14} parent=5 // pred_check_branch
      %138 = sbr.rel (%p135) target = $region12
    $region11: #{light_image_encoder_forward.14} parent=5 // pred_region
      %s139 = ssub.s32 %s10, 1
      // Predicated region
      $region13: #{light_image_encoder_forward.14} parent=11 // pred_check
        %p140 = pneg %p57
      $region14: #{light_image_encoder_forward.14} parent=11 // pred_check_branch
        %142 = sbr.rel (%p140) target = $region16
      $region15: #{light_image_encoder_forward.14} parent=11 // pred_region
        _
      $region16: #{light_image_encoder_forward.14} parent=11 // pred_fallthru
        _
      // Predicated region
      $region17: #{light_image_encoder_forward.14} parent=11 // pred_check
        %p143 = pneg %p78
      $region18: #{light_image_encoder_forward.14} parent=11 // pred_check_branch
        %145 = sbr.rel (%p143) target = $region20
      $region19: #{light_image_encoder_forward.14} parent=11 // pred_region
        _
      $region20: #{light_image_encoder_forward.14} parent=11 // pred_fallthru
        _
      // Predicated region
      $region21: #{light_image_encoder_forward.14} parent=11 // pred_check
        %p146 = pneg %p99
      $region22: #{light_image_encoder_forward.14} parent=11 // pred_check_branch
        %148 = sbr.rel (%p146) target = $region24
      $region23: #{light_image_encoder_forward.14} parent=11 // pred_region
        _
      $region24: #{light_image_encoder_forward.14} parent=11 // pred_fallthru
        _
    $region12: #{light_image_encoder_forward.14} parent=5 // pred_fallthru
      _
    %p149 = scmp.lt.s32.totalorder %s10, 4
    // Predicated region
    $region25: #{light_image_encoder_forward.14} parent=5 // pred_check
      %p150 = pneg %p149
    $region26: #{light_image_encoder_forward.14} parent=5 // pred_check_branch
      %152 = sbr.rel (%p150) target = $region28
    $region27: #{light_image_encoder_forward.14} parent=5 // pred_region
      // Predicated region
      $region29: #{light_image_encoder_forward.14} parent=27 // pred_check
        %p153 = pneg %p30
      $region30: #{light_image_encoder_forward.14} parent=27 // pred_check_branch
        %155 = sbr.rel (%p153) target = $region32
      $region31: #{light_image_encoder_forward.14} parent=27 // pred_region
        %s156 = smul.u32 2, %s10
        %p157 = scmp.lt.s32.totalorder %s156, 7
        %s158 = scalar_select %p157, %s156, 7
        %s159 = smul.addr %s158, 4
        %s160 = scalar_lea.vmem %s0, %s159
        %s161 = smul.u32 2, %s10
      $region32: #{light_image_encoder_forward.14} parent=27 // pred_fallthru
        _
    $region28: #{light_image_encoder_forward.14} parent=5 // pred_fallthru
      _
    %p162 = scmp.le.s32.totalorder 1, %s10
    %p163 = scmp.lt.s32.totalorder %s10, 5
    %p164 = pnand %p162, %p163
    %p165 = pneg %p164
    // Predicated region
    $region33: #{light_image_encoder_forward.14} parent=5 // pred_check
      _
    $region34: #{light_image_encoder_forward.14} parent=5 // pred_check_branch
      %167 = sbr.rel (%p164) target = $region36
    $region35: #{light_image_encoder_forward.14} parent=5 // pred_region
      %s168 = ssub.s32 %s10, 1
      %s169 = smul.u32 2, %s15
      %p170 = scmp.lt.s32.totalorder %s169, 7
      %s171 = scalar_select %p170, %s169, 7
      %s172 = smul.addr %s171, 4
      %s173 = scalar_lea.vmem %s0, %s172
      %p174 = pneg %p36
      %p175 = pneg %p33
      %p176 = pneg %p57
      %p177 = pneg %p54
      %p178 = pneg %p78
      %p179 = pneg %p75
      %p180 = pneg %p99
      %p181 = pneg %p96
      %p182 = pneg %p125
      %p183 = pneg %p122
      %s184 = smul.u32 2, %s15
      %p185 = scmp.lt.s32.totalorder %s184, 7
      %s186 = scalar_select %p185, %s184, 7
      %s187 = smul.addr %s186, 4
      %s188 = scalar_lea.vmem %s4, %s187
      %s189 = smul.u32 2, %s15
      %p190 = scmp.lt.s32.totalorder %s189, 7
      %s191 = scalar_select %p190, %s189, 7
      %s192 = smul.addr %s191, 4
      %s193 = scalar_lea.vmem %s0, %s192
      %s194 = smul.u32 2, %s15
      %s195 = smul.u32 2, %s15
      %p196 = scmp.lt.s32.totalorder %s195, 7
      %s197 = scalar_select %p196, %s195, 7
      %s198 = smul.addr %s197, 4
      %s199 = scalar_lea.vmem %s4, %s198
      %s200 = smul.u32 2, %s15
      %v202 = vld [vmem:[%s193] sm:$0xf]
      %v203 = vld [vmem:[%s193 + $0x4] sm:$0xf]
      %v204 = vld [vmem:[%s1] sm:$0xf]
      %v205 = vld [vmem:[%s1 + $0x4] sm:$0xf]
      %v206 = vld [vmem:[%s1 + $0x8] sm:$0xf]
      %v207 = vld [vmem:[%s1 + $0xc] sm:$0xf]
      %v208 = vld [vmem:[%s1 + $0x10] sm:$0xf]
      %v209 = vld [vmem:[%s1 + $0x14] sm:$0xf]
      %v210 = vld [vmem:[%s1 + $0x18] sm:$0xf]
      %v211 = vld [vmem:[%s1 + $0x1c] sm:$0xf]
      %v214 = vunpack.c.l.b16 %v202
      %v215 = vunpack.c.l.b16 %v203
      %v216 = vpack.c.b16 %v215, %v214
      %v225 = vunpack.c.l.b16 %v204
      %v226 = vunpack.c.l.b16 %v205
      %v227 = vunpack.c.l.b16 %v206
      %v228 = vunpack.c.l.b16 %v207
      %v229 = vunpack.c.l.b16 %v208
      %v230 = vunpack.c.l.b16 %v209
      %v231 = vunpack.c.l.b16 %v210
      %v232 = vunpack.c.l.b16 %v211
      %v233 = vpack.c.b16 %v226, %v225
      %v234 = vpack.c.b16 %v228, %v227
      %v235 = vpack.c.b16 %v230, %v229
      %v236 = vpack.c.b16 %v232, %v231
      %vm241 = vcmask 523264
      %v243 = vsel %vm241, %v216, 0
      %245 = vmatprep.subr.bf16.mxu0 0
      %246 = vmatpush1.bf16.msra.mxu0 %v233
      %247 = vmatprep.subr.bf16.mxu0 0
      %248 = vmatpush1.bf16.msra.mxu0 %v234
      %249 = vmatprep.subr.bf16.mxu0 0
      %250 = vmatpush1.bf16.msra.mxu0 %v235
      %251 = vmatprep.subr.bf16.mxu0 0
      %252 = vmatpush1.bf16.msra.mxu0 %v236
      %253 = vmatprep.subr.bf16.mxu0 0
      %254 = vmatpush1.bf16.msra.mxu0 0
      %255 = vmatprep.subr.bf16.mxu0 0
      %256 = vmatpush1.bf16.msra.mxu0 0
      %257 = vmatprep.subr.bf16.mxu0 0
      %258 = vmatpush1.bf16.msra.mxu0 0
      %259 = vmatprep.subr.bf16.mxu0 0
      %260 = vmatpush1.bf16.msra.mxu0 0
      %261 = vmatprep.subr.bf16.mxu0 0
      %262 = vmatpush1.bf16.msra.mxu0 0
      %263 = vmatprep.subr.bf16.mxu0 0
      %264 = vmatpush1.bf16.msra.mxu0 0
      %265 = vmatprep.subr.bf16.mxu0 0
      %266 = vmatpush1.bf16.msra.mxu0 0
      %267 = vmatprep.subr.bf16.mxu0 0
      %268 = vmatpush1.bf16.msra.mxu0 0
      %269 = vmatprep.subr.bf16.mxu0 0
      %270 = vmatpush1.bf16.msra.mxu0 0
      %271 = vmatprep.subr.bf16.mxu0 0
      %272 = vmatpush1.bf16.msra.mxu0 0
      %273 = vmatprep.subr.bf16.mxu0 0
      %274 = vmatpush1.bf16.msra.mxu0 0
      %275 = vmatprep.subr.bf16.mxu0 0
      %276 = vmatpush1.bf16.msra.mxu0 0
      %277 = vmatprep.mubr.bf16.mxu0 0
      %278 = vmatmul.mubr.bf16.gmra.mrb[0].mxu0 %v243
      %v279 = vpop.f32.mrb[0].mxu0
      %v280 = vadd.f32 0.0, %v279
      %v281 = vpop.f32.mrb[0].mxu0
      %v282 = vpop.f32.mrb[0].mxu0
      %v283 = vadd.f32 0.0, %v282
      %v284 = vpop.f32.mrb[0].mxu0
      %285 = vdwg.mxu0
      %v286 = vld [vmem:[%s2] sm:$0x3]
      %v287 = vld [vmem:[%s3] sm:$0xf]
      %v288 = vld [vmem:[%s3 + $0x4] sm:$0xf]
      %v289 = vld [vmem:[%s3 + $0x8] sm:$0xf]
      %v290 = vld [vmem:[%s3 + $0xc] sm:$0xf]
      %v291 = vld [vmem:[%s3 + $0x10] sm:$0xf]
      %v292 = vld [vmem:[%s3 + $0x14] sm:$0xf]
      %v293 = vld [vmem:[%s3 + $0x18] sm:$0xf]
      %v294 = vld [vmem:[%s3 + $0x1c] sm:$0xf]
      %v295 = vld [vmem:[%s3 + $0x20] sm:$0xf]
      %v296 = vld [vmem:[%s3 + $0x24] sm:$0xf]
      %v297 = vld [vmem:[%s3 + $0x28] sm:$0xf]
      %v298 = vld [vmem:[%s3 + $0x2c] sm:$0xf]
      %v299 = vld [vmem:[%s3 + $0x30] sm:$0xf]
      %v300 = vld [vmem:[%s3 + $0x34] sm:$0xf]
      %v301 = vld [vmem:[%s3 + $0x38] sm:$0xf]
      %v302 = vld [vmem:[%s3 + $0x3c] sm:$0xf]
      %v303 = vpack.c.bf16 %v283, %v280
      %v320 = vunpack.c.l.b16 %v287
      %v321 = vunpack.c.l.b16 %v288
      %v322 = vunpack.c.l.b16 %v289
      %v323 = vunpack.c.l.b16 %v290
      %v324 = vunpack.c.l.b16 %v291
      %v325 = vunpack.c.l.b16 %v292
      %v326 = vunpack.c.l.b16 %v293
      %v327 = vunpack.c.l.b16 %v294
      %v328 = vunpack.c.l.b16 %v295
      %v329 = vunpack.c.l.b16 %v296
      %v330 = vunpack.c.l.b16 %v297
      %v331 = vunpack.c.l.b16 %v298
      %v332 = vunpack.c.l.b16 %v299
      %v333 = vunpack.c.l.b16 %v300
      %v334 = vunpack.c.l.b16 %v301
      %v335 = vunpack.c.l.b16 %v302
      %v336 = vpack.c.b16 %v321, %v320
      %v337 = vpack.c.b16 %v323, %v322
      %v338 = vpack.c.b16 %v325, %v324
      %v339 = vpack.c.b16 %v327, %v326
      %v340 = vpack.c.b16 %v329, %v328
      %v341 = vpack.c.b16 %v331, %v330
      %v342 = vpack.c.b16 %v333, %v332
      %v343 = vpack.c.b16 %v335, %v334
      %352 = vmatprep.subr.bf16.mxu0 0
      %353 = vmatpush1.bf16.msra.mxu0 %v336
      %354 = vmatprep.subr.bf16.mxu0 0
      %355 = vmatpush1.bf16.msra.mxu0 %v337
      %356 = vmatprep.subr.bf16.mxu0 0
      %357 = vmatpush1.bf16.msra.mxu0 %v338
      %358 = vmatprep.subr.bf16.mxu0 0
      %359 = vmatpush1.bf16.msra.mxu0 %v339
      %360 = vmatprep.subr.bf16.mxu0 0
      %361 = vmatpush1.bf16.msra.mxu0 %v340
      %362 = vmatprep.subr.bf16.mxu0 0
      %363 = vmatpush1.bf16.msra.mxu0 %v341
      %364 = vmatprep.subr.bf16.mxu0 0
      %365 = vmatpush1.bf16.msra.mxu0 %v342
      %366 = vmatprep.subr.bf16.mxu0 0
      %367 = vmatpush1.bf16.msra.mxu0 %v343
      %368 = vmatprep.subr.bf16.mxu0 0
      %369 = vmatpush1.bf16.msra.mxu0 0
      %370 = vmatprep.subr.bf16.mxu0 0
      %371 = vmatpush1.bf16.msra.mxu0 0
      %372 = vmatprep.subr.bf16.mxu0 0
      %373 = vmatpush1.bf16.msra.mxu0 0
      %374 = vmatprep.subr.bf16.mxu0 0
      %375 = vmatpush1.bf16.msra.mxu0 0
      %376 = vmatprep.subr.bf16.mxu0 0
      %377 = vmatpush1.bf16.msra.mxu0 0
      %378 = vmatprep.subr.bf16.mxu0 0
      %379 = vmatpush1.bf16.msra.mxu0 0
      %380 = vmatprep.subr.bf16.mxu0 0
      %381 = vmatpush1.bf16.msra.mxu0 0
      %382 = vmatprep.subr.bf16.mxu0 0
      %383 = vmatpush1.bf16.msra.mxu0 0
      %384 = vmatprep.mubr.bf16.mxu0 0
      %385 = vmatmul.mubr.bf16.gmra.mrb[0].mxu0 %v303
      %v386 = vpop.f32.mrb[0].mxu0
      %v387 = vadd.f32 0.0, %v386
      %v388 = vpop.f32.mrb[0].mxu0
      %v389 = vpop.f32.mrb[0].mxu0
      %v390 = vadd.f32 0.0, %v389
      %v391 = vpop.f32.mrb[0].mxu0
      %392 = vdwg.mxu0
      %v393 = vsub.f32 %v280, %v387
      %v394 = vsub.f32 %v283, %v390
      %v395 = vmul.f32 %v393, %v393
      %v396 = vmul.f32 %v394, %v394
      %v397 = vpack.c.bf16 %v396, %v395
      %398 = vmatprep.subr.bf16.mxu0 0
      %399 = vmatpush1.bf16.msra.mxu0 %v336
      %400 = vmatprep.subr.bf16.mxu0 0
      %401 = vmatpush1.bf16.msra.mxu0 %v337
      %402 = vmatprep.subr.bf16.mxu0 0
      %403 = vmatpush1.bf16.msra.mxu0 %v338
      %404 = vmatprep.subr.bf16.mxu0 0
      %405 = vmatpush1.bf16.msra.mxu0 %v339
      %406 = vmatprep.subr.bf16.mxu0 0
      %407 = vmatpush1.bf16.msra.mxu0 %v340
      %408 = vmatprep.subr.bf16.mxu0 0
      %409 = vmatpush1.bf16.msra.mxu0 %v341
      %410 = vmatprep.subr.bf16.mxu0 0
      %411 = vmatpush1.bf16.msra.mxu0 %v342
      %412 = vmatprep.subr.bf16.mxu0 0
      %413 = vmatpush1.bf16.msra.mxu0 %v343
      %414 = vmatprep.subr.bf16.mxu0 0
      %415 = vmatpush1.bf16.msra.mxu0 0
      %416 = vmatprep.subr.bf16.mxu0 0
      %417 = vmatpush1.bf16.msra.mxu0 0
      %418 = vmatprep.subr.bf16.mxu0 0
      %419 = vmatpush1.bf16.msra.mxu0 0
      %420 = vmatprep.subr.bf16.mxu0 0
      %421 = vmatpush1.bf16.msra.mxu0 0
      %422 = vmatprep.subr.bf16.mxu0 0
      %423 = vmatpush1.bf16.msra.mxu0 0
      %424 = vmatprep.subr.bf16.mxu0 0
      %425 = vmatpush1.bf16.msra.mxu0 0
      %426 = vmatprep.subr.bf16.mxu0 0
      %427 = vmatpush1.bf16.msra.mxu0 0
      %428 = vmatprep.subr.bf16.mxu0 0
      %429 = vmatpush1.bf16.msra.mxu0 0
      %430 = vmatprep.mubr.bf16.mxu0 0
      %431 = vmatmul.mubr.bf16.gmra.mrb[0].mxu0 %v397
      %v432 = vpop.f32.mrb[0].mxu0
      %v433 = vadd.f32 1e-06, %v432
      %v434 = vpop.f32.mrb[0].mxu0
      %v435 = vpop.f32.mrb[0].mxu0
      %v436 = vadd.f32 1e-06, %v435
      %v437 = vpop.f32.mrb[0].mxu0
      %438 = vdwg.mxu0
      %v439 = vrsqrt.pop %v433
      %v440 = vrsqrt.pop %v436
      %v441 = vmul.f32 %v393, %v439
      %v442 = vmul.f32 %v394, %v440
      %v443 = vlaneseq
      %v444 = vshrl.u32 %v443, 7
      %v445 = vsub.s32 0, %v444
      %v446 = vrot.slane %v286, %v445
      %v447 = vmul.f32 %v441, %v446
      %v448 = vmul.f32 %v442, %v446
      %v449 = vlaneseq
      %v450 = vshrl.u32 %v449, 7
      %v451 = vsub.s32 1, %v450
      %v452 = vrot.slane %v286, %v451
      %v453 = vadd.f32 %v447, %v452
      %v454 = vadd.f32 %v448, %v452
      %v455 = vpack.c.bf16 %v454, %v453
      %v457 = vunpack.c.l.b16 %v455
      %v458 = vunpack.c.h.b16 %v455
      %v459 = vpack.c.b16 %v457, %v457
      %v460 = vpack.c.b16 %v458, %v458
      %463 = vst [vmem:[%s199] sm:$0xf] %v459
      %464 = vst [vmem:[%s199 + $0x4] sm:$0xf] %v460
      %s465 = smul.u32 2, %s15
      %p466 = scmp.lt.s32.totalorder %s465, 7
      %s467 = scalar_select %p466, %s465, 7
      %s468 = smul.addr %s467, 4
      %s469 = scalar_lea.vmem %s4, %s468
      // Predicated region
      $region37: #{light_image_encoder_forward.14} parent=35 // pred_check
        %p470 = pneg %p122
      $region38: #{light_image_encoder_forward.14} parent=35 // pred_check_branch
        %472 = sbr.rel (%p470) target = $region40
      $region39: #{light_image_encoder_forward.14} parent=35 // pred_region
        %s473 = smul.u32 2, %s15
      $region40: #{light_image_encoder_forward.14} parent=35 // pred_fallthru
        _
    $region36: #{light_image_encoder_forward.14} parent=5 // pred_fallthru
      _
    %p474 = scmp.le.s32.totalorder 2, %s10
    // Predicated region
    $region41: #{light_image_encoder_forward.14} parent=5 // pred_check
      %p475 = pneg %p474
    $region42: #{light_image_encoder_forward.14} parent=5 // pred_check_branch
      %477 = sbr.rel (%p475) target = $region44
    $region43: #{light_image_encoder_forward.14} parent=5 // pred_region
      %s478 = ssub.s32 %s10, 2
      // Predicated region
      $region45: #{light_image_encoder_forward.14} parent=43 // pred_check
        %p479 = pneg %p128
      $region46: #{light_image_encoder_forward.14} parent=43 // pred_check_branch
        %481 = sbr.rel (%p479) target = $region48
      $region47: #{light_image_encoder_forward.14} parent=43 // pred_region
        %s482 = smul.u32 2, %s16
        %p483 = scmp.lt.s32.totalorder %s482, 7
        %s484 = scalar_select %p483, %s482, 7
        %s485 = smul.addr %s484, 4
        %s486 = scalar_lea.vmem %s4, %s485
      $region48: #{light_image_encoder_forward.14} parent=43 // pred_fallthru
        _
    $region44: #{light_image_encoder_forward.14} parent=5 // pred_fallthru
      _
  $region6: #{light_image_encoder_forward.14} parent=0 // loop_footer
    %s14 = sadd.s32 1, %s10
  $region7: #{light_image_encoder_forward.14} parent=0 // loop_footer_branch
    %9 = sbr.rel target = $region3
  $region8: #{light_image_encoder_forward.14} parent=0 // loop_exit
    _

// kernel: light_image_encoder_forward.13
$region0: #{light_image_encoder_forward.13}
  #allocation0 [shape = 'u32[]', space=smem, size = 0x4, offset = 0x4, fixed_abs, tag = 'smem constant byte address 0x4 - core index']
  #allocation1 [shape = 'u32[144,128]{1,0:T(1,128)}', space=vmem, size = 0x12000, scoped, tag = 'internal scratch']
  %s0 = inlined_call_operand.vmem [shape: bf16[256,32], index: 0, kind: input, shape index: {}]
  %s1 = inlined_call_operand.vmem [shape: bf16[32,128], index: 1, kind: input, shape index: {}]
  %s2 = inlined_call_operand.vmem [shape: f32[2,128], index: 2, kind: input, shape index: {}]
  %s3 = inlined_call_operand.vmem [shape: bf16[128,128], index: 3, kind: input, shape index: {}]
  %s4 = inlined_call_operand.vmem [shape: bf16[256,128], index: 4, kind: output, shape index: {}]
  %s5 = sld [smem:[#allocation0]]
  $region49: #{light_image_encoder_forward.13} parent=0
    _
  %s7 = ssub.s32 1, %s5
  %s8 = scalar_select 0, %s7, %s5
  loop: start=0, step=1, limit=6
  $region2: #{light_image_encoder_forward.13} parent=0 // loop_pre_header
    _
  $region3: #{light_image_encoder_forward.13} parent=0 // loop_header
    %s10 = sphi 0, %s14
    %p11 = scmp.ge.s32.totalorder %s10, 6
    %s20 = sphi 0, %s22
    %s23 = sphi 0, %s20
    %s24 = sphi 0, %s23
    %s40 = sphi 0, %s24
    %s44 = sphi 0, %s44
    %s46 = sphi 0, %s44
    %s47 = sphi 0, %s46
    %s61 = sphi 0, %s47
    %s65 = sphi 0, %s65
    %s67 = sphi 0, %s65
    %s68 = sphi 0, %s67
    %s82 = sphi 0, %s68
    %s86 = sphi 0, %s86
    %s88 = sphi 0, %s86
    %s89 = sphi 0, %s88
    %s103 = sphi 0, %s89
    %s109 = sphi 0, %s111
    %s112 = sphi 0, %s109
    %s113 = sphi 0, %s112
    %s129 = sphi 0, %s113
  $region4: #{light_image_encoder_forward.13} parent=0 // loop_header_branch
    %13 = sbr.rel (%p11) target = $region8
  $region5: #{light_image_encoder_forward.13} parent=0 // loop_body
    %s15 = ssub.s32 %s10, 1
    %s16 = ssub.s32 %s10, 2
    %s17 = sadd.s32 %s10, 1
    %s18 = ssub.s32 %s10, %s17
    %p19 = scmp.eq.s32.totalorder %s18, 0
    %s21 = sadd.s32 %s20, 1
    %s22 = scalar_select %p19, %s20, %s21
    %p25 = pneg %p19
    %p26 = scmp.eq.s32.totalorder %s10, 3
    %p27 = por %p25, %p26
    %p28 = scmp.ne.s32.totalorder %s20, %s23
    %p29 = scmp.eq.s32.totalorder %s10, 0
    %p30 = por %p28, %p29
    %p31 = scmp.ne.s32.totalorder %s20, %s23
    %p32 = scmp.eq.s32.totalorder %s15, 3
    %p33 = por %p31, %p32
    %p34 = scmp.ne.s32.totalorder %s23, %s24
    %p35 = scmp.eq.s32.totalorder %s15, 0
    %p36 = por %p34, %p35
    %p37 = scmp.ne.s32.totalorder %s23, %s24
    %p38 = scmp.eq.s32.totalorder %s16, 3
    %p39 = por %p37, %p38
    %p41 = scmp.ne.s32.totalorder %s24, %s40
    %p42 = scmp.eq.s32.totalorder %s16, 0
    %p43 = por %p41, %p42
    %s45 = sadd.s32 %s44, 1
    %p48 = scmp.eq.s32.totalorder %s10, 3
    %p49 = scmp.ne.s32.totalorder %s44, %s46
    %p50 = scmp.eq.s32.totalorder %s10, 0
    %p51 = por %p49, %p50
    %p52 = scmp.ne.s32.totalorder %s44, %s46
    %p53 = scmp.eq.s32.totalorder %s15, 3
    %p54 = por %p52, %p53
    %p55 = scmp.ne.s32.totalorder %s46, %s47
    %p56 = scmp.eq.s32.totalorder %s15, 0
    %p57 = por %p55, %p56
    %p58 = scmp.ne.s32.totalorder %s46, %s47
    %p59 = scmp.eq.s32.totalorder %s16, 3
    %p60 = por %p58, %p59
    %p62 = scmp.ne.s32.totalorder %s47, %s61
    %p63 = scmp.eq.s32.totalorder %s16, 0
    %p64 = por %p62, %p63
    %s66 = sadd.s32 %s65, 1
    %p69 = scmp.eq.s32.totalorder %s10, 3
    %p70 = scmp.ne.s32.totalorder %s65, %s67
    %p71 = scmp.eq.s32.totalorder %s10, 0
    %p72 = por %p70, %p71
    %p73 = scmp.ne.s32.totalorder %s65, %s67
    %p74 = scmp.eq.s32.totalorder %s15, 3
    %p75 = por %p73, %p74
    %p76 = scmp.ne.s32.totalorder %s67, %s68
    %p77 = scmp.eq.s32.totalorder %s15, 0
    %p78 = por %p76, %p77
    %p79 = scmp.ne.s32.totalorder %s67, %s68
    %p80 = scmp.eq.s32.totalorder %s16, 3
    %p81 = por %p79, %p80
    %p83 = scmp.ne.s32.totalorder %s68, %s82
    %p84 = scmp.eq.s32.totalorder %s16, 0
    %p85 = por %p83, %p84
    %s87 = sadd.s32 %s86, 1
    %p90 = scmp.eq.s32.totalorder %s10, 3
    %p91 = scmp.ne.s32.totalorder %s86, %s88
    %p92 = scmp.eq.s32.totalorder %s10, 0
    %p93 = por %p91, %p92
    %p94 = scmp.ne.s32.totalorder %s86, %s88
    %p95 = scmp.eq.s32.totalorder %s15, 3
    %p96 = por %p94, %p95
    %p97 = scmp.ne.s32.totalorder %s88, %s89
    %p98 = scmp.eq.s32.totalorder %s15, 0
    %p99 = por %p97, %p98
    %p100 = scmp.ne.s32.totalorder %s88, %s89
    %p101 = scmp.eq.s32.totalorder %s16, 3
    %p102 = por %p100, %p101
    %p104 = scmp.ne.s32.totalorder %s89, %s103
    %p105 = scmp.eq.s32.totalorder %s16, 0
    %p106 = por %p104, %p105
    %s107 = ssub.s32 %s10, %s17
    %p108 = scmp.eq.s32.totalorder %s107, 0
    %s110 = sadd.s32 %s109, 1
    %s111 = scalar_select %p108, %s109, %s110
    %p114 = pneg %p108
    %p115 = scmp.eq.s32.totalorder %s10, 3
    %p116 = por %p114, %p115
    %p117 = scmp.ne.s32.totalorder %s109, %s112
    %p118 = scmp.eq.s32.totalorder %s10, 0
    %p119 = por %p117, %p118
    %p120 = scmp.ne.s32.totalorder %s109, %s112
    %p121 = scmp.eq.s32.totalorder %s15, 3
    %p122 = por %p120, %p121
    %p123 = scmp.ne.s32.totalorder %s112, %s113
    %p124 = scmp.eq.s32.totalorder %s15, 0
    %p125 = por %p123, %p124
    %p126 = scmp.ne.s32.totalorder %s112, %s113
    %p127 = scmp.eq.s32.totalorder %s16, 3
    %p128 = por %p126, %p127
    %p130 = scmp.ne.s32.totalorder %s113, %s129
    %p131 = scmp.eq.s32.totalorder %s16, 0
    %p132 = por %p130, %p131
    %p133 = scmp.le.s32.totalorder 1, %s10
    %p134 = scmp.lt.s32.totalorder %s10, 5
    %p135 = pnand %p133, %p134
    %p136 = pneg %p135
    // Predicated region
    $region9: #{light_image_encoder_forward.13} parent=5 // pred_check
      _
    $region10: #{light_image_encoder_forward.13} parent=5 // pred_check_branch
      %138 = sbr.rel (%p135) target = $region12
    $region11: #{light_image_encoder_forward.13} parent=5 // pred_region
      %s139 = ssub.s32 %s10, 1
      // Predicated region
      $region13: #{light_image_encoder_forward.13} parent=11 // pred_check
        %p140 = pneg %p57
      $region14: #{light_image_encoder_forward.13} parent=11 // pred_check_branch
        %142 = sbr.rel (%p140) target = $region16
      $region15: #{light_image_encoder_forward.13} parent=11 // pred_region
        _
      $region16: #{light_image_encoder_forward.13} parent=11 // pred_fallthru
        _
      // Predicated region
      $region17: #{light_image_encoder_forward.13} parent=11 // pred_check
        %p143 = pneg %p78
      $region18: #{light_image_encoder_forward.13} parent=11 // pred_check_branch
        %145 = sbr.rel (%p143) target = $region20
      $region19: #{light_image_encoder_forward.13} parent=11 // pred_region
        _
      $region20: #{light_image_encoder_forward.13} parent=11 // pred_fallthru
        _
      // Predicated region
      $region21: #{light_image_encoder_forward.13} parent=11 // pred_check
        %p146 = pneg %p99
      $region22: #{light_image_encoder_forward.13} parent=11 // pred_check_branch
        %148 = sbr.rel (%p146) target = $region24
      $region23: #{light_image_encoder_forward.13} parent=11 // pred_region
        _
      $region24: #{light_image_encoder_forward.13} parent=11 // pred_fallthru
        _
    $region12: #{light_image_encoder_forward.13} parent=5 // pred_fallthru
      _
    %p149 = scmp.lt.s32.totalorder %s10, 4
    // Predicated region
    $region25: #{light_image_encoder_forward.13} parent=5 // pred_check
      %p150 = pneg %p149
    $region26: #{light_image_encoder_forward.13} parent=5 // pred_check_branch
      %152 = sbr.rel (%p150) target = $region28
    $region27: #{light_image_encoder_forward.13} parent=5 // pred_region
      // Predicated region
      $region29: #{light_image_encoder_forward.13} parent=27 // pred_check
        %p153 = pneg %p30
      $region30: #{light_image_encoder_forward.13} parent=27 // pred_check_branch
        %155 = sbr.rel (%p153) target = $region32
      $region31: #{light_image_encoder_forward.13} parent=27 // pred_region
        %s156 = smul.u32 8, %s10
        %p157 = scmp.lt.s32.totalorder %s156, 31
        %s158 = scalar_select %p157, %s156, 31
        %s159 = smul.addr %s158, 4
        %s160 = scalar_lea.vmem %s0, %s159
        %s161 = smul.u32 8, %s10
      $region32: #{light_image_encoder_forward.13} parent=27 // pred_fallthru
        _
    $region28: #{light_image_encoder_forward.13} parent=5 // pred_fallthru
      _
    %p162 = scmp.le.s32.totalorder 1, %s10
    %p163 = scmp.lt.s32.totalorder %s10, 5
    %p164 = pnand %p162, %p163
    %p165 = pneg %p164
    // Predicated region
    $region33: #{light_image_encoder_forward.13} parent=5 // pred_check
      _
    $region34: #{light_image_encoder_forward.13} parent=5 // pred_check_branch
      %167 = sbr.rel (%p164) target = $region36
    $region35: #{light_image_encoder_forward.13} parent=5 // pred_region
      %s168 = ssub.s32 %s10, 1
      %s169 = smul.u32 8, %s15
      %p170 = scmp.lt.s32.totalorder %s169, 31
      %s171 = scalar_select %p170, %s169, 31
      %s172 = smul.addr %s171, 4
      %s173 = scalar_lea.vmem %s0, %s172
      %p174 = pneg %p36
      %p175 = pneg %p33
      %p176 = pneg %p57
      %p177 = pneg %p54
      %p178 = pneg %p78
      %p179 = pneg %p75
      %p180 = pneg %p99
      %p181 = pneg %p96
      %p182 = pneg %p125
      %p183 = pneg %p122
      %s184 = smul.u32 8, %s15
      %p185 = scmp.lt.s32.totalorder %s184, 31
      %s186 = scalar_select %p185, %s184, 31
      %s187 = smul.addr %s186, 4
      %s188 = scalar_lea.vmem %s4, %s187
      %s189 = smul.u32 8, %s15
      %p190 = scmp.lt.s32.totalorder %s189, 31
      %s191 = scalar_select %p190, %s189, 31
      %s192 = smul.addr %s191, 4
      %s193 = scalar_lea.vmem %s0, %s192
      %s194 = smul.u32 8, %s15
      %s195 = smul.u32 8, %s15
      %p196 = scmp.lt.s32.totalorder %s195, 31
      %s197 = scalar_select %p196, %s195, 31
      %s198 = smul.addr %s197, 4
      %s199 = scalar_lea.vmem %s4, %s198
      %s200 = smul.u32 8, %s15
      %v202 = vld [vmem:[%s193] sm:$0xf]
      %v203 = vld [vmem:[%s193 + $0x4] sm:$0xf]
      %v204 = vld [vmem:[%s193 + $0x8] sm:$0xf]
      %v205 = vld [vmem:[%s193 + $0xc] sm:$0xf]
      %v206 = vld [vmem:[%s193 + $0x10] sm:$0xf]
      %v207 = vld [vmem:[%s193 + $0x14] sm:$0xf]
      %v208 = vld [vmem:[%s193 + $0x18] sm:$0xf]
      %v209 = vld [vmem:[%s193 + $0x1c] sm:$0xf]
      %v210 = vld [vmem:[%s1] sm:$0xf]
      %v211 = vld [vmem:[%s1 + $0x4] sm:$0xf]
      %v212 = vld [vmem:[%s1 + $0x8] sm:$0xf]
      %v213 = vld [vmem:[%s1 + $0xc] sm:$0xf]
      %v222 = vunpack.c.l.b16 %v202
      %v223 = vunpack.c.l.b16 %v203
      %v224 = vunpack.c.l.b16 %v204
      %v225 = vunpack.c.l.b16 %v205
      %v226 = vunpack.c.l.b16 %v206
      %v227 = vunpack.c.l.b16 %v207
      %v228 = vunpack.c.l.b16 %v208
      %v229 = vunpack.c.l.b16 %v209
      %v230 = vpack.c.b16 %v223, %v222
      %v231 = vpack.c.b16 %v225, %v224
      %v232 = vpack.c.b16 %v227, %v226
      %v233 = vpack.c.b16 %v229, %v228
      %v238 = vunpack.c.l.b16 %v210
      %v239 = vunpack.c.l.b16 %v211
      %v240 = vunpack.c.l.b16 %v212
      %v241 = vunpack.c.l.b16 %v213
      %v242 = vpack.c.b16 %v239, %v238
      %v243 = vpack.c.b16 %v241, %v240
      %vm246 = vcmask 261120
      %v248 = vsel %vm246, %v230, 0
      %v251 = vsel %vm246, %v231, 0
      %v254 = vsel %vm246, %v232, 0
      %v257 = vsel %vm246, %v233, 0
      %259 = vmatprep.subr.bf16.mxu0 0
      %260 = vmatpush1.bf16.msra.mxu0 %v242
      %261 = vmatprep.subr.bf16.mxu0 0
      %262 = vmatpush1.bf16.msra.mxu0 %v243
      %263 = vmatprep.subr.bf16.mxu0 0
      %264 = vmatpush1.bf16.msra.mxu0 0
      %265 = vmatprep.subr.bf16.mxu0 0
      %266 = vmatpush1.bf16.msra.mxu0 0
      %267 = vmatprep.subr.bf16.mxu0 0
      %268 = vmatpush1.bf16.msra.mxu0 0
      %269 = vmatprep.subr.bf16.mxu0 0
      %270 = vmatpush1.bf16.msra.mxu0 0
      %271 = vmatprep.subr.bf16.mxu0 0
      %272 = vmatpush1.bf16.msra.mxu0 0
      %273 = vmatprep.subr.bf16.mxu0 0
      %274 = vmatpush1.bf16.msra.mxu0 0
      %275 = vmatprep.subr.bf16.mxu0 0
      %276 = vmatpush1.bf16.msra.mxu0 0
      %277 = vmatprep.subr.bf16.mxu0 0
      %278 = vmatpush1.bf16.msra.mxu0 0
      %279 = vmatprep.subr.bf16.mxu0 0
      %280 = vmatpush1.bf16.msra.mxu0 0
      %281 = vmatprep.subr.bf16.mxu0 0
      %282 = vmatpush1.bf16.msra.mxu0 0
      %283 = vmatprep.subr.bf16.mxu0 0
      %284 = vmatpush1.bf16.msra.mxu0 0
      %285 = vmatprep.subr.bf16.mxu0 0
      %286 = vmatpush1.bf16.msra.mxu0 0
      %287 = vmatprep.subr.bf16.mxu0 0
      %288 = vmatpush1.bf16.msra.mxu0 0
      %289 = vmatprep.subr.bf16.mxu0 0
      %290 = vmatpush1.bf16.msra.mxu0 0
      %291 = vmatprep.mubr.bf16.mxu0 0
      %292 = vmatmul.mubr.bf16.gmra.mrb[0].mxu0 %v248
      %v293 = vpop.f32.mrb[0].mxu0
      %v294 = vadd.f32 0.0, %v293
      %v295 = vpop.f32.mrb[0].mxu0
      %v296 = vpop.f32.mrb[0].mxu0
      %v297 = vadd.f32 0.0, %v296
      %v298 = vpop.f32.mrb[0].mxu0
      %299 = vmatprep.mubr.bf16.mxu0 0
      %300 = vmatmul.mubr.bf16.gmra.mrb[0].mxu0 %v251
      %v301 = vpop.f32.mrb[0].mxu0
      %v302 = vadd.f32 0.0, %v301
      %v303 = vpop.f32.mrb[0].mxu0
      %v304 = vpop.f32.mrb[0].mxu0
      %v305 = vadd.f32 0.0, %v304
      %v306 = vpop.f32.mrb[0].mxu0
      %307 = vmatprep.mubr.bf16.mxu0 0
      %308 = vmatmul.mubr.bf16.gmra.mrb[0].mxu0 %v254
      %v309 = vpop.f32.mrb[0].mxu0
      %v310 = vadd.f32 0.0, %v309
      %v311 = vpop.f32.mrb[0].mxu0
      %v312 = vpop.f32.mrb[0].mxu0
      %v313 = vadd.f32 0.0, %v312
      %v314 = vpop.f32.mrb[0].mxu0
      %315 = vmatprep.mubr.bf16.mxu0 0
      %316 = vmatmul.mubr.bf16.gmra.mrb[0].mxu0 %v257
      %v317 = vpop.f32.mrb[0].mxu0
      %v318 = vadd.f32 0.0, %v317
      %v319 = vpop.f32.mrb[0].mxu0
      %v320 = vpop.f32.mrb[0].mxu0
      %v321 = vadd.f32 0.0, %v320
      %v322 = vpop.f32.mrb[0].mxu0
      %323 = vdwg.mxu0
      %v324 = vld [vmem:[%s2] sm:$0x3]
      %v325 = vld [vmem:[%s3] sm:$0xf]
      %v326 = vld [vmem:[%s3 + $0x4] sm:$0xf]
      %v327 = vld [vmem:[%s3 + $0x8] sm:$0xf]
      %v328 = vld [vmem:[%s3 + $0xc] sm:$0xf]
      %v329 = vld [vmem:[%s3 + $0x10] sm:$0xf]
      %v330 = vld [vmem:[%s3 + $0x14] sm:$0xf]
      %v331 = vld [vmem:[%s3 + $0x18] sm:$0xf]
      %v332 = vld [vmem:[%s3 + $0x1c] sm:$0xf]
      %v333 = vld [vmem:[%s3 + $0x20] sm:$0xf]
      %v334 = vld [vmem:[%s3 + $0x24] sm:$0xf]
      %v335 = vld [vmem:[%s3 + $0x28] sm:$0xf]
      %v336 = vld [vmem:[%s3 + $0x2c] sm:$0xf]
      %v337 = vld [vmem:[%s3 + $0x30] sm:$0xf]
      %v338 = vld [vmem:[%s3 + $0x34] sm:$0xf]
      %v339 = vld [vmem:[%s3 + $0x38] sm:$0xf]
      %v340 = vld [vmem:[%s3 + $0x3c] sm:$0xf]
      %v341 = vpack.c.bf16 %v297, %v294
      %v342 = vpack.c.bf16 %v305, %v302
      %v343 = vpack.c.bf16 %v313, %v310
      %v344 = vpack.c.bf16 %v321, %v318
      %v361 = vunpack.c.l.b16 %v325
      %v362 = vunpack.c.l.b16 %v326
      %v363 = vunpack.c.l.b16 %v327
      %v364 = vunpack.c.l.b16 %v328
      %v365 = vunpack.c.l.b16 %v329
      %v366 = vunpack.c.l.b16 %v330
      %v367 = vunpack.c.l.b16 %v331
      %v368 = vunpack.c.l.b16 %v332
      %v369 = vunpack.c.l.b16 %v333
      %v370 = vunpack.c.l.b16 %v334
      %v371 = vunpack.c.l.b16 %v335
      %v372 = vunpack.c.l.b16 %v336
      %v373 = vunpack.c.l.b16 %v337
      %v374 = vunpack.c.l.b16 %v338
      %v375 = vunpack.c.l.b16 %v339
      %v376 = vunpack.c.l.b16 %v340
      %v377 = vpack.c.b16 %v362, %v361
      %v378 = vpack.c.b16 %v364, %v363
      %v379 = vpack.c.b16 %v366, %v365
      %v380 = vpack.c.b16 %v368, %v367
      %v381 = vpack.c.b16 %v370, %v369
      %v382 = vpack.c.b16 %v372, %v371
      %v383 = vpack.c.b16 %v374, %v373
      %v384 = vpack.c.b16 %v376, %v375
      %393 = vmatprep.subr.bf16.mxu0 0
      %394 = vmatpush1.bf16.msra.mxu0 %v377
      %395 = vmatprep.subr.bf16.mxu0 0
      %396 = vmatpush1.bf16.msra.mxu0 %v378
      %397 = vmatprep.subr.bf16.mxu0 0
      %398 = vmatpush1.bf16.msra.mxu0 %v379
      %399 = vmatprep.subr.bf16.mxu0 0
      %400 = vmatpush1.bf16.msra.mxu0 %v380
      %401 = vmatprep.subr.bf16.mxu0 0
      %402 = vmatpush1.bf16.msra.mxu0 %v381
      %403 = vmatprep.subr.bf16.mxu0 0
      %404 = vmatpush1.bf16.msra.mxu0 %v382
      %405 = vmatprep.subr.bf16.mxu0 0
      %406 = vmatpush1.bf16.msra.mxu0 %v383
      %407 = vmatprep.subr.bf16.mxu0 0
      %408 = vmatpush1.bf16.msra.mxu0 %v384
      %409 = vmatprep.subr.bf16.mxu0 0
      %410 = vmatpush1.bf16.msra.mxu0 0
      %411 = vmatprep.subr.bf16.mxu0 0
      %412 = vmatpush1.bf16.msra.mxu0 0
      %413 = vmatprep.subr.bf16.mxu0 0
      %414 = vmatpush1.bf16.msra.mxu0 0
      %415 = vmatprep.subr.bf16.mxu0 0
      %416 = vmatpush1.bf16.msra.mxu0 0
      %417 = vmatprep.subr.bf16.mxu0 0
      %418 = vmatpush1.bf16.msra.mxu0 0
      %419 = vmatprep.subr.bf16.mxu0 0
      %420 = vmatpush1.bf16.msra.mxu0 0
      %421 = vmatprep.subr.bf16.mxu0 0
      %422 = vmatpush1.bf16.msra.mxu0 0
      %423 = vmatprep.subr.bf16.mxu0 0
      %424 = vmatpush1.bf16.msra.mxu0 0
      %425 = vmatprep.mubr.bf16.mxu0 0
      %426 = vmatmul.mubr.bf16.gmra.mrb[0].mxu0 %v341
      %v427 = vpop.f32.mrb[0].mxu0
      %v428 = vadd.f32 0.0, %v427
      %v429 = vpop.f32.mrb[0].mxu0
      %v430 = vpop.f32.mrb[0].mxu0
      %v431 = vadd.f32 0.0, %v430
      %v432 = vpop.f32.mrb[0].mxu0
      %433 = vmatprep.mubr.bf16.mxu0 0
      %434 = vmatmul.mubr.bf16.gmra.mrb[0].mxu0 %v342
      %v435 = vpop.f32.mrb[0].mxu0
      %v436 = vadd.f32 0.0, %v435
      %v437 = vpop.f32.mrb[0].mxu0
      %v438 = vpop.f32.mrb[0].mxu0
      %v439 = vadd.f32 0.0, %v438
      %v440 = vpop.f32.mrb[0].mxu0
      %441 = vmatprep.mubr.bf16.mxu0 0
      %442 = vmatmul.mubr.bf16.gmra.mrb[0].mxu0 %v343
      %v443 = vpop.f32.mrb[0].mxu0
      %v444 = vadd.f32 0.0, %v443
      %v445 = vpop.f32.mrb[0].mxu0
      %v446 = vpop.f32.mrb[0].mxu0
      %v447 = vadd.f32 0.0, %v446
      %v448 = vpop.f32.mrb[0].mxu0
      %449 = vmatprep.mubr.bf16.mxu0 0
      %450 = vmatmul.mubr.bf16.gmra.mrb[0].mxu0 %v344
      %v451 = vpop.f32.mrb[0].mxu0
      %v452 = vadd.f32 0.0, %v451
      %v453 = vpop.f32.mrb[0].mxu0
      %v454 = vpop.f32.mrb[0].mxu0
      %v455 = vadd.f32 0.0, %v454
      %v456 = vpop.f32.mrb[0].mxu0
      %457 = vdwg.mxu0
      %v458 = vsub.f32 %v294, %v428
      %v459 = vsub.f32 %v297, %v431
      %v460 = vsub.f32 %v302, %v436
      %v461 = vsub.f32 %v305, %v439
      %v462 = vsub.f32 %v310, %v444
      %v463 = vsub.f32 %v313, %v447
      %v464 = vsub.f32 %v318, %v452
      %v465 = vsub.f32 %v321, %v455
      %v466 = vmul.f32 %v458, %v458
      %v467 = vmul.f32 %v459, %v459
      %v468 = vmul.f32 %v460, %v460
      %v469 = vmul.f32 %v461, %v461
      %v470 = vmul.f32 %v462, %v462
      %v471 = vmul.f32 %v463, %v463
      %v472 = vmul.f32 %v464, %v464
      %v473 = vmul.f32 %v465, %v465
      %v474 = vpack.c.bf16 %v467, %v466
      %v475 = vpack.c.bf16 %v469, %v468
      %v476 = vpack.c.bf16 %v471, %v470
      %v477 = vpack.c.bf16 %v473, %v472
      %478 = vmatprep.subr.bf16.mxu0 0
      %479 = vmatpush1.bf16.msra.mxu0 %v377
      %480 = vmatprep.subr.bf16.mxu0 0
      %481 = vmatpush1.bf16.msra.mxu0 %v378
      %482 = vmatprep.subr.bf16.mxu0 0
      %483 = vmatpush1.bf16.msra.mxu0 %v379
      %484 = vmatprep.subr.bf16.mxu0 0
      %485 = vmatpush1.bf16.msra.mxu0 %v380
      %486 = vmatprep.subr.bf16.mxu0 0
      %487 = vmatpush1.bf16.msra.mxu0 %v381
      %488 = vmatprep.subr.bf16.mxu0 0
      %489 = vmatpush1.bf16.msra.mxu0 %v382
      %490 = vmatprep.subr.bf16.mxu0 0
      %491 = vmatpush1.bf16.msra.mxu0 %v383
      %492 = vmatprep.subr.bf16.mxu0 0
      %493 = vmatpush1.bf16.msra.mxu0 %v384
      %494 = vmatprep.subr.bf16.mxu0 0
      %495 = vmatpush1.bf16.msra.mxu0 0
      %496 = vmatprep.subr.bf16.mxu0 0
      %497 = vmatpush1.bf16.msra.mxu0 0
      %498 = vmatprep.subr.bf16.mxu0 0
      %499 = vmatpush1.bf16.msra.mxu0 0
      %500 = vmatprep.subr.bf16.mxu0 0
      %501 = vmatpush1.bf16.msra.mxu0 0
      %502 = vmatprep.subr.bf16.mxu0 0
      %503 = vmatpush1.bf16.msra.mxu0 0
      %504 = vmatprep.subr.bf16.mxu0 0
      %505 = vmatpush1.bf16.msra.mxu0 0
      %506 = vmatprep.subr.bf16.mxu0 0
      %507 = vmatpush1.bf16.msra.mxu0 0
      %508 = vmatprep.subr.bf16.mxu0 0
      %509 = vmatpush1.bf16.msra.mxu0 0
      %510 = vmatprep.mubr.bf16.mxu0 0
      %511 = vmatmul.mubr.bf16.gmra.mrb[0].mxu0 %v474
      %v512 = vpop.f32.mrb[0].mxu0
      %v513 = vadd.f32 1e-06, %v512
      %v514 = vpop.f32.mrb[0].mxu0
      %v515 = vpop.f32.mrb[0].mxu0
      %v516 = vadd.f32 1e-06, %v515
      %v517 = vpop.f32.mrb[0].mxu0
      %518 = vmatprep.mubr.bf16.mxu0 0
      %519 = vmatmul.mubr.bf16.gmra.mrb[0].mxu0 %v475
      %v520 = vpop.f32.mrb[0].mxu0
      %v521 = vadd.f32 1e-06, %v520
      %v522 = vpop.f32.mrb[0].mxu0
      %v523 = vpop.f32.mrb[0].mxu0
      %v524 = vadd.f32 1e-06, %v523
      %v525 = vpop.f32.mrb[0].mxu0
      %526 = vmatprep.mubr.bf16.mxu0 0
      %527 = vmatmul.mubr.bf16.gmra.mrb[0].mxu0 %v476
      %v528 = vpop.f32.mrb[0].mxu0
      %v529 = vadd.f32 1e-06, %v528
      %v530 = vpop.f32.mrb[0].mxu0
      %v531 = vpop.f32.mrb[0].mxu0
      %v532 = vadd.f32 1e-06, %v531
      %v533 = vpop.f32.mrb[0].mxu0
      %534 = vmatprep.mubr.bf16.mxu0 0
      %535 = vmatmul.mubr.bf16.gmra.mrb[0].mxu0 %v477
      %v536 = vpop.f32.mrb[0].mxu0
      %v537 = vadd.f32 1e-06, %v536
      %v538 = vpop.f32.mrb[0].mxu0
      %v539 = vpop.f32.mrb[0].mxu0
      %v540 = vadd.f32 1e-06, %v539
      %v541 = vpop.f32.mrb[0].mxu0
      %542 = vdwg.mxu0
      %v543 = vrsqrt.pop %v513
      %v544 = vrsqrt.pop %v516
      %v545 = vrsqrt.pop %v521
      %v546 = vrsqrt.pop %v524
      %v547 = vrsqrt.pop %v529
      %v548 = vrsqrt.pop %v532
      %v549 = vrsqrt.pop %v537
      %v550 = vrsqrt.pop %v540
      %v551 = vmul.f32 %v458, %v543
      %v552 = vmul.f32 %v459, %v544
      %v553 = vmul.f32 %v460, %v545
      %v554 = vmul.f32 %v461, %v546
      %v555 = vmul.f32 %v462, %v547
      %v556 = vmul.f32 %v463, %v548
      %v557 = vmul.f32 %v464, %v549
      %v558 = vmul.f32 %v465, %v550
      %v559 = vlaneseq
      %v560 = vshrl.u32 %v559, 7
      %v561 = vsub.s32 0, %v560
      %v562 = vrot.slane %v324, %v561
      %v563 = vmul.f32 %v551, %v562
      %v564 = vmul.f32 %v552, %v562
      %v565 = vmul.f32 %v553, %v562
      %v566 = vmul.f32 %v554, %v562
      %v567 = vmul.f32 %v555, %v562
      %v568 = vmul.f32 %v556, %v562
      %v569 = vmul.f32 %v557, %v562
      %v570 = vmul.f32 %v558, %v562
      %v571 = vlaneseq
      %v572 = vshrl.u32 %v571, 7
      %v573 = vsub.s32 1, %v572
      %v574 = vrot.slane %v324, %v573
      %v575 = vadd.f32 %v563, %v574
      %v576 = vadd.f32 %v564, %v574
      %v577 = vadd.f32 %v565, %v574
      %v578 = vadd.f32 %v566, %v574
      %v579 = vadd.f32 %v567, %v574
      %v580 = vadd.f32 %v568, %v574
      %v581 = vadd.f32 %v569, %v574
      %v582 = vadd.f32 %v570, %v574
      %v583 = vpack.c.bf16 %v576, %v575
      %v584 = vpack.c.bf16 %v578, %v577
      %v585 = vpack.c.bf16 %v580, %v579
      %v586 = vpack.c.bf16 %v582, %v581
      %v591 = vunpack.c.l.b16 %v583
      %v592 = vunpack.c.h.b16 %v583
      %v593 = vunpack.c.l.b16 %v584
      %v594 = vunpack.c.h.b16 %v584
      %v595 = vunpack.c.l.b16 %v585
      %v596 = vunpack.c.h.b16 %v585
      %v597 = vunpack.c.l.b16 %v586
      %v598 = vunpack.c.h.b16 %v586
      %v599 = vpack.c.b16 %v591, %v591
      %v600 = vpack.c.b16 %v592, %v592
      %v601 = vpack.c.b16 %v593, %v593
      %v602 = vpack.c.b16 %v594, %v594
      %v603 = vpack.c.b16 %v595, %v595
      %v604 = vpack.c.b16 %v596, %v596
      %v605 = vpack.c.b16 %v597, %v597
      %v606 = vpack.c.b16 %v598, %v598
      %615 = vst [vmem:[%s199] sm:$0xf] %v599
      %616 = vst [vmem:[%s199 + $0x4] sm:$0xf] %v600
      %617 = vst [vmem:[%s199 + $0x8] sm:$0xf] %v601
      %618 = vst [vmem:[%s199 + $0xc] sm:$0xf] %v602
      %619 = vst [vmem:[%s199 + $0x10] sm:$0xf] %v603
      %620 = vst [vmem:[%s199 + $0x14] sm:$0xf] %v604
      %621 = vst [vmem:[%s199 + $0x18] sm:$0xf] %v605
      %622 = vst [vmem:[%s199 + $0x1c] sm:$0xf] %v606
      %s623 = smul.u32 8, %s15
      %p624 = scmp.lt.s32.totalorder %s623, 31
      %s625 = scalar_select %p624, %s623, 31
      %s626 = smul.addr %s625, 4
      %s627 = scalar_lea.vmem %s4, %s626
      // Predicated region
      $region37: #{light_image_encoder_forward.13} parent=35 // pred_check
        %p628 = pneg %p122
      $region38: #{light_image_encoder_forward.13} parent=35 // pred_check_branch
        %630 = sbr.rel (%p628) target = $region40
      $region39: #{light_image_encoder_forward.13} parent=35 // pred_region
        %s631 = smul.u32 8, %s15
      $region40: #{light_image_encoder_forward.13} parent=35 // pred_fallthru
        _
    $region36: #{light_image_encoder_forward.13} parent=5 // pred_fallthru
      _
    %p632 = scmp.le.s32.totalorder 2, %s10
    // Predicated region
    $region41: #{light_image_encoder_forward.13} parent=5 // pred_check
      %p633 = pneg %p632
    $region42: #{light_image_encoder_forward.13} parent=5 // pred_check_branch
      %635 = sbr.rel (%p633) target = $region44
    $region43: #{light_image_encoder_forward.13} parent=5 // pred_region
      %s636 = ssub.s32 %s10, 2
      // Predicated region
      $region45: #{light_image_encoder_forward.13} parent=43 // pred_check
        %p637 = pneg %p128
      $region46: #{light_image_encoder_forward.13} parent=43 // pred_check_branch
        %639 = sbr.rel (%p637) target = $region48
      $region47: #{light_image_encoder_forward.13} parent=43 // pred_region
        %s640 = smul.u32 8, %s16
        %p641 = scmp.lt.s32.totalorder %s640, 31
        %s642 = scalar_select %p641, %s640, 31
        %s643 = smul.addr %s642, 4
        %s644 = scalar_lea.vmem %s4, %s643
      $region48: #{light_image_encoder_forward.13} parent=43 // pred_fallthru
        _
    $region44: #{light_image_encoder_forward.13} parent=5 // pred_fallthru
      _
  $region6: #{light_image_encoder_forward.13} parent=0 // loop_footer
    %s14 = sadd.s32 1, %s10
  $region7: #{light_image_encoder_forward.13} parent=0 // loop_footer_branch
    %9 = sbr.rel target = $region3
  $region8: #{light_image_encoder_forward.13} parent=0 // loop_exit
    _

// kernel: light_image_encoder_forward.11
$region0: #{light_image_encoder_forward.11}
  #allocation0 [shape = 'u32[]', space=smem, size = 0x4, offset = 0x4, fixed_abs, tag = 'smem constant byte address 0x4 - core index']
  #allocation1 [shape = 'u32[144,128]{1,0:T(1,128)}', space=vmem, size = 0x12000, scoped, tag = 'internal scratch']
  %s0 = inlined_call_operand.vmem [shape: bf16[16,256], index: 0, kind: input, shape index: {}]
  %s1 = inlined_call_operand.vmem [shape: bf16[256,128], index: 1, kind: input, shape index: {}]
  %s2 = inlined_call_operand.vmem [shape: bf16[128,256], index: 2, kind: input, shape index: {}]
  %s3 = inlined_call_operand.vmem [shape: bf16[256,128], index: 3, kind: input, shape index: {}]
  %s4 = inlined_call_operand.vmem [shape: f32[6,128], index: 4, kind: input, shape index: {}]
  %s5 = inlined_call_operand.vmem [shape: f32[1,256], index: 5, kind: input, shape index: {}]
  %s6 = inlined_call_operand.vmem [shape: bf16[128,128], index: 6, kind: input, shape index: {}]
  %s7 = inlined_call_operand.vmem [shape: bf16[16,128], index: 7, kind: output, shape index: {}]
  %s8 = sld [smem:[#allocation0]]
  $region38: #{light_image_encoder_forward.11} parent=0
    _
  %s10 = ssub.s32 1, %s8
  %s11 = scalar_select 0, %s10, %s8
  // Predicated region
  $region2: #{light_image_encoder_forward.11} parent=0 // pred_check
    _
  $region3: #{light_image_encoder_forward.11} parent=0 // pred_check_branch
    %13 = sbr.rel (0) target = $region5
  $region4: #{light_image_encoder_forward.11} parent=0 // pred_region
    _
  $region5: #{light_image_encoder_forward.11} parent=0 // pred_fallthru
    _
  // Predicated region
  $region6: #{light_image_encoder_forward.11} parent=0 // pred_check
    _
  $region7: #{light_image_encoder_forward.11} parent=0 // pred_check_branch
    %15 = sbr.rel (0) target = $region9
  $region8: #{light_image_encoder_forward.11} parent=0 // pred_region
    _
  $region9: #{light_image_encoder_forward.11} parent=0 // pred_fallthru
    _
  // Predicated region
  $region10: #{light_image_encoder_forward.11} parent=0 // pred_check
    _
  $region11: #{light_image_encoder_forward.11} parent=0 // pred_check_branch
    %17 = sbr.rel (0) target = $region13
  $region12: #{light_image_encoder_forward.11} parent=0 // pred_region
    _
  $region13: #{light_image_encoder_forward.11} parent=0 // pred_fallthru
    _
  // Predicated region
  $region14: #{light_image_encoder_forward.11} parent=0 // pred_check
    _
  $region15: #{light_image_encoder_forward.11} parent=0 // pred_check_branch
    %19 = sbr.rel (0) target = $region17
  $region16: #{light_image_encoder_forward.11} parent=0 // pred_region
    _
  $region17: #{light_image_encoder_forward.11} parent=0 // pred_fallthru
    _
  // Predicated region
  $region18: #{light_image_encoder_forward.11} parent=0 // pred_check
    _
  $region19: #{light_image_encoder_forward.11} parent=0 // pred_check_branch
    %21 = sbr.rel (0) target = $region21
  $region20: #{light_image_encoder_forward.11} parent=0 // pred_region
    _
  $region21: #{light_image_encoder_forward.11} parent=0 // pred_fallthru
    _
  // Predicated region
  $region22: #{light_image_encoder_forward.11} parent=0 // pred_check
    _
  $region23: #{light_image_encoder_forward.11} parent=0 // pred_check_branch
    %23 = sbr.rel (0) target = $region25
  $region24: #{light_image_encoder_forward.11} parent=0 // pred_region
    _
  $region25: #{light_image_encoder_forward.11} parent=0 // pred_fallthru
    _
  // Predicated region
  $region26: #{light_image_encoder_forward.11} parent=0 // pred_check
    _
  $region27: #{light_image_encoder_forward.11} parent=0 // pred_check_branch
    %25 = sbr.rel (0) target = $region29
  $region28: #{light_image_encoder_forward.11} parent=0 // pred_region
    _
  $region29: #{light_image_encoder_forward.11} parent=0 // pred_fallthru
    _
  %v27 = vld [vmem:[%s0] sm:$0xff]
  %v28 = vld [vmem:[%s0 + $0x8] sm:$0xff]
  %v29 = vld [vmem:[%s4] sm:$0x3f]
  %v30 = vld [vmem:[%s6] sm:$0xf]
  %v31 = vld [vmem:[%s6 + $0x4] sm:$0xf]
  %v32 = vld [vmem:[%s6 + $0x8] sm:$0xf]
  %v33 = vld [vmem:[%s6 + $0xc] sm:$0xf]
  %v34 = vld [vmem:[%s6 + $0x10] sm:$0xf]
  %v35 = vld [vmem:[%s6 + $0x14] sm:$0xf]
  %v36 = vld [vmem:[%s6 + $0x18] sm:$0xf]
  %v37 = vld [vmem:[%s6 + $0x1c] sm:$0xf]
  %v38 = vld [vmem:[%s6 + $0x20] sm:$0xf]
  %v39 = vld [vmem:[%s6 + $0x24] sm:$0xf]
  %v40 = vld [vmem:[%s6 + $0x28] sm:$0xf]
  %v41 = vld [vmem:[%s6 + $0x2c] sm:$0xf]
  %v42 = vld [vmem:[%s6 + $0x30] sm:$0xf]
  %v43 = vld [vmem:[%s6 + $0x34] sm:$0xf]
  %v44 = vld [vmem:[%s6 + $0x38] sm:$0xf]
  %v45 = vld [vmem:[%s6 + $0x3c] sm:$0xf]
  %v46 = vld [vmem:[%s1] sm:$0xf]
  %v47 = vld [vmem:[%s1 + $0x4] sm:$0xf]
  %v48 = vld [vmem:[%s1 + $0x8] sm:$0xf]
  %v49 = vld [vmem:[%s1 + $0xc] sm:$0xf]
  %v50 = vld [vmem:[%s1 + $0x10] sm:$0xf]
  %v51 = vld [vmem:[%s1 + $0x14] sm:$0xf]
  %v52 = vld [vmem:[%s1 + $0x18] sm:$0xf]
  %v53 = vld [vmem:[%s1 + $0x1c] sm:$0xf]
  %v54 = vld [vmem:[%s1 + $0x20] sm:$0xf]
  %v55 = vld [vmem:[%s1 + $0x24] sm:$0xf]
  %v56 = vld [vmem:[%s1 + $0x28] sm:$0xf]
  %v57 = vld [vmem:[%s1 + $0x2c] sm:$0xf]
  %v58 = vld [vmem:[%s1 + $0x30] sm:$0xf]
  %v59 = vld [vmem:[%s1 + $0x34] sm:$0xf]
  %v60 = vld [vmem:[%s1 + $0x38] sm:$0xf]
  %v61 = vld [vmem:[%s1 + $0x3c] sm:$0xf]
  %v62 = vld [vmem:[%s1 + $0x40] sm:$0xf]
  %v63 = vld [vmem:[%s1 + $0x44] sm:$0xf]
  %v64 = vld [vmem:[%s1 + $0x48] sm:$0xf]
  %v65 = vld [vmem:[%s1 + $0x4c] sm:$0xf]
  %v66 = vld [vmem:[%s1 + $0x50] sm:$0xf]
  %v67 = vld [vmem:[%s1 + $0x54] sm:$0xf]
  %v68 = vld [vmem:[%s1 + $0x58] sm:$0xf]
  %v69 = vld [vmem:[%s1 + $0x5c] sm:$0xf]
  %v70 = vld [vmem:[%s1 + $0x60] sm:$0xf]
  %v71 = vld [vmem:[%s1 + $0x64] sm:$0xf]
  %v72 = vld [vmem:[%s1 + $0x68] sm:$0xf]
  %v73 = vld [vmem:[%s1 + $0x6c] sm:$0xf]
  %v74 = vld [vmem:[%s1 + $0x70] sm:$0xf]
  %v75 = vld [vmem:[%s1 + $0x74] sm:$0xf]
  %v76 = vld [vmem:[%s1 + $0x78] sm:$0xf]
  %v77 = vld [vmem:[%s1 + $0x7c] sm:$0xf]
  %v78 = vlaneseq
  %v79 = vshrl.u32 %v78, 7
  %v80 = vsub.s32 0, %v79
  %v81 = vrot.slane %v29, %v80
  %v84 = vunpack.c.l.b16 %v27
  %v85 = vunpack.c.h.b16 %v27
  %v86 = vunpack.c.l.b16 %v28
  %v87 = vunpack.c.h.b16 %v28
  %v88 = vpack.c.b16 %v86, %v84
  %v89 = vpack.c.b16 %v87, %v85
  %v124 = vunpack.c.l.b16 %v46
  %v125 = vunpack.c.l.b16 %v47
  %v126 = vunpack.c.l.b16 %v48
  %v127 = vunpack.c.l.b16 %v49
  %v128 = vunpack.c.l.b16 %v50
  %v129 = vunpack.c.l.b16 %v51
  %v130 = vunpack.c.l.b16 %v52
  %v131 = vunpack.c.l.b16 %v53
  %v132 = vunpack.c.l.b16 %v54
  %v133 = vunpack.c.l.b16 %v55
  %v134 = vunpack.c.l.b16 %v56
  %v135 = vunpack.c.l.b16 %v57
  %v136 = vunpack.c.l.b16 %v58
  %v137 = vunpack.c.l.b16 %v59
  %v138 = vunpack.c.l.b16 %v60
  %v139 = vunpack.c.l.b16 %v61
  %v140 = vunpack.c.l.b16 %v62
  %v141 = vunpack.c.l.b16 %v63
  %v142 = vunpack.c.l.b16 %v64
  %v143 = vunpack.c.l.b16 %v65
  %v144 = vunpack.c.l.b16 %v66
  %v145 = vunpack.c.l.b16 %v67
  %v146 = vunpack.c.l.b16 %v68
  %v147 = vunpack.c.l.b16 %v69
  %v148 = vunpack.c.l.b16 %v70
  %v149 = vunpack.c.l.b16 %v71
  %v150 = vunpack.c.l.b16 %v72
  %v151 = vunpack.c.l.b16 %v73
  %v152 = vunpack.c.l.b16 %v74
  %v153 = vunpack.c.l.b16 %v75
  %v154 = vunpack.c.l.b16 %v76
  %v155 = vunpack.c.l.b16 %v77
  %v156 = vpack.c.b16 %v125, %v124
  %v157 = vpack.c.b16 %v127, %v126
  %v158 = vpack.c.b16 %v129, %v128
  %v159 = vpack.c.b16 %v131, %v130
  %v160 = vpack.c.b16 %v133, %v132
  %v161 = vpack.c.b16 %v135, %v134
  %v162 = vpack.c.b16 %v137, %v136
  %v163 = vpack.c.b16 %v139, %v138
  %v164 = vpack.c.b16 %v141, %v140
  %v165 = vpack.c.b16 %v143, %v142
  %v166 = vpack.c.b16 %v145, %v144
  %v167 = vpack.c.b16 %v147, %v146
  %v168 = vpack.c.b16 %v149, %v148
  %v169 = vpack.c.b16 %v151, %v150
  %v170 = vpack.c.b16 %v153, %v152
  %v171 = vpack.c.b16 %v155, %v154
  %188 = vmatprep.subr.bf16.mxu0 0
  %189 = vmatpush1.bf16.msra.mxu0 %v156
  %190 = vmatprep.subr.bf16.mxu0 0
  %191 = vmatpush1.bf16.msra.mxu0 %v157
  %192 = vmatprep.subr.bf16.mxu0 0
  %193 = vmatpush1.bf16.msra.mxu0 %v158
  %194 = vmatprep.subr.bf16.mxu0 0
  %195 = vmatpush1.bf16.msra.mxu0 %v159
  %196 = vmatprep.subr.bf16.mxu0 0
  %197 = vmatpush1.bf16.msra.mxu0 %v160
  %198 = vmatprep.subr.bf16.mxu0 0
  %199 = vmatpush1.bf16.msra.mxu0 %v161
  %200 = vmatprep.subr.bf16.mxu0 0
  %201 = vmatpush1.bf16.msra.mxu0 %v162
  %202 = vmatprep.subr.bf16.mxu0 0
  %203 = vmatpush1.bf16.msra.mxu0 %v163
  %204 = vmatprep.subr.bf16.mxu0 0
  %205 = vmatpush1.bf16.msra.mxu0 %v164
  %206 = vmatprep.subr.bf16.mxu0 0
  %207 = vmatpush1.bf16.msra.mxu0 %v165
  %208 = vmatprep.subr.bf16.mxu0 0
  %209 = vmatpush1.bf16.msra.mxu0 %v166
  %210 = vmatprep.subr.bf16.mxu0 0
  %211 = vmatpush1.bf16.msra.mxu0 %v167
  %212 = vmatprep.subr.bf16.mxu0 0
  %213 = vmatpush1.bf16.msra.mxu0 %v168
  %214 = vmatprep.subr.bf16.mxu0 0
  %215 = vmatpush1.bf16.msra.mxu0 %v169
  %216 = vmatprep.subr.bf16.mxu0 0
  %217 = vmatpush1.bf16.msra.mxu0 %v170
  %218 = vmatprep.subr.bf16.mxu0 0
  %219 = vmatpush1.bf16.msra.mxu0 %v171
  %220 = vmatprep.mubr.bf16.mxu0 %v89
  %221 = vmatmul.mubr.bf16.gmra.mrb[0].mxu0 %v88
  %v222 = vpop.f32.mrb[0].mxu0
  %v223 = vadd.f32 %v81, %v222
  %v224 = vpop.f32.mrb[0].mxu0
  %v225 = vpop.f32.mrb[0].mxu0
  %v226 = vadd.f32 %v81, %v225
  %v227 = vpop.f32.mrb[0].mxu0
  %228 = vdwg.mxu0
  %v229 = vpack.c.bf16 %v226, %v223
  %v246 = vunpack.c.l.b16 %v30
  %v247 = vunpack.c.l.b16 %v31
  %v248 = vunpack.c.l.b16 %v32
  %v249 = vunpack.c.l.b16 %v33
  %v250 = vunpack.c.l.b16 %v34
  %v251 = vunpack.c.l.b16 %v35
  %v252 = vunpack.c.l.b16 %v36
  %v253 = vunpack.c.l.b16 %v37
  %v254 = vunpack.c.l.b16 %v38
  %v255 = vunpack.c.l.b16 %v39
  %v256 = vunpack.c.l.b16 %v40
  %v257 = vunpack.c.l.b16 %v41
  %v258 = vunpack.c.l.b16 %v42
  %v259 = vunpack.c.l.b16 %v43
  %v260 = vunpack.c.l.b16 %v44
  %v261 = vunpack.c.l.b16 %v45
  %v262 = vpack.c.b16 %v247, %v246
  %v263 = vpack.c.b16 %v249, %v248
  %v264 = vpack.c.b16 %v251, %v250
  %v265 = vpack.c.b16 %v253, %v252
  %v266 = vpack.c.b16 %v255, %v254
  %v267 = vpack.c.b16 %v257, %v256
  %v268 = vpack.c.b16 %v259, %v258
  %v269 = vpack.c.b16 %v261, %v260
  %278 = vmatprep.subr.bf16.mxu0 0
  %279 = vmatpush1.bf16.msra.mxu0 %v262
  %280 = vmatprep.subr.bf16.mxu0 0
  %281 = vmatpush1.bf16.msra.mxu0 %v263
  %282 = vmatprep.subr.bf16.mxu0 0
  %283 = vmatpush1.bf16.msra.mxu0 %v264
  %284 = vmatprep.subr.bf16.mxu0 0
  %285 = vmatpush1.bf16.msra.mxu0 %v265
  %286 = vmatprep.subr.bf16.mxu0 0
  %287 = vmatpush1.bf16.msra.mxu0 %v266
  %288 = vmatprep.subr.bf16.mxu0 0
  %289 = vmatpush1.bf16.msra.mxu0 %v267
  %290 = vmatprep.subr.bf16.mxu0 0
  %291 = vmatpush1.bf16.msra.mxu0 %v268
  %292 = vmatprep.subr.bf16.mxu0 0
  %293 = vmatpush1.bf16.msra.mxu0 %v269
  %294 = vmatprep.subr.bf16.mxu0 0
  %295 = vmatpush1.bf16.msra.mxu0 0
  %296 = vmatprep.subr.bf16.mxu0 0
  %297 = vmatpush1.bf16.msra.mxu0 0
  %298 = vmatprep.subr.bf16.mxu0 0
  %299 = vmatpush1.bf16.msra.mxu0 0
  %300 = vmatprep.subr.bf16.mxu0 0
  %301 = vmatpush1.bf16.msra.mxu0 0
  %302 = vmatprep.subr.bf16.mxu0 0
  %303 = vmatpush1.bf16.msra.mxu0 0
  %304 = vmatprep.subr.bf16.mxu0 0
  %305 = vmatpush1.bf16.msra.mxu0 0
  %306 = vmatprep.subr.bf16.mxu0 0
  %307 = vmatpush1.bf16.msra.mxu0 0
  %308 = vmatprep.subr.bf16.mxu0 0
  %309 = vmatpush1.bf16.msra.mxu0 0
  %310 = vmatprep.mubr.bf16.mxu0 0
  %311 = vmatmul.mubr.bf16.gmra.mrb[0].mxu0 %v229
  %v312 = vpop.f32.mrb[0].mxu0
  %v313 = vadd.f32 0.0, %v312
  %v314 = vpop.f32.mrb[0].mxu0
  %v315 = vpop.f32.mrb[0].mxu0
  %v316 = vadd.f32 0.0, %v315
  %v317 = vpop.f32.mrb[0].mxu0
  %318 = vdwg.mxu0
  %v319 = vsub.f32 %v223, %v313
  %v320 = vsub.f32 %v226, %v316
  %v321 = vmul.f32 %v319, %v319
  %v322 = vmul.f32 %v320, %v320
  %v323 = vpack.c.bf16 %v322, %v321
  %324 = vmatprep.subr.bf16.mxu0 0
  %325 = vmatpush1.bf16.msra.mxu0 %v262
  %326 = vmatprep.subr.bf16.mxu0 0
  %327 = vmatpush1.bf16.msra.mxu0 %v263
  %328 = vmatprep.subr.bf16.mxu0 0
  %329 = vmatpush1.bf16.msra.mxu0 %v264
  %330 = vmatprep.subr.bf16.mxu0 0
  %331 = vmatpush1.bf16.msra.mxu0 %v265
  %332 = vmatprep.subr.bf16.mxu0 0
  %333 = vmatpush1.bf16.msra.mxu0 %v266
  %334 = vmatprep.subr.bf16.mxu0 0
  %335 = vmatpush1.bf16.msra.mxu0 %v267
  %336 = vmatprep.subr.bf16.mxu0 0
  %337 = vmatpush1.bf16.msra.mxu0 %v268
  %338 = vmatprep.subr.bf16.mxu0 0
  %339 = vmatpush1.bf16.msra.mxu0 %v269
  %340 = vmatprep.subr.bf16.mxu0 0
  %341 = vmatpush1.bf16.msra.mxu0 0
  %342 = vmatprep.subr.bf16.mxu0 0
  %343 = vmatpush1.bf16.msra.mxu0 0
  %344 = vmatprep.subr.bf16.mxu0 0
  %345 = vmatpush1.bf16.msra.mxu0 0
  %346 = vmatprep.subr.bf16.mxu0 0
  %347 = vmatpush1.bf16.msra.mxu0 0
  %348 = vmatprep.subr.bf16.mxu0 0
  %349 = vmatpush1.bf16.msra.mxu0 0
  %350 = vmatprep.subr.bf16.mxu0 0
  %351 = vmatpush1.bf16.msra.mxu0 0
  %352 = vmatprep.subr.bf16.mxu0 0
  %353 = vmatpush1.bf16.msra.mxu0 0
  %354 = vmatprep.subr.bf16.mxu0 0
  %355 = vmatpush1.bf16.msra.mxu0 0
  %356 = vmatprep.mubr.bf16.mxu0 0
  %357 = vmatmul.mubr.bf16.gmra.mrb[0].mxu0 %v323
  %v358 = vpop.f32.mrb[0].mxu0
  %v359 = vadd.f32 1e-06, %v358
  %v360 = vpop.f32.mrb[0].mxu0
  %v361 = vpop.f32.mrb[0].mxu0
  %v362 = vadd.f32 1e-06, %v361
  %v363 = vpop.f32.mrb[0].mxu0
  %364 = vdwg.mxu0
  %v365 = vrsqrt.pop %v359
  %v366 = vrsqrt.pop %v362
  %v367 = vmul.f32 %v319, %v365
  %v368 = vmul.f32 %v320, %v366
  %v369 = vlaneseq
  %v370 = vshrl.u32 %v369, 7
  %v371 = vsub.s32 1, %v370
  %v372 = vrot.slane %v29, %v371
  %v373 = vmul.f32 %v367, %v372
  %v374 = vmul.f32 %v368, %v372
  %v375 = vlaneseq
  %v376 = vshrl.u32 %v375, 7
  %v377 = vsub.s32 2, %v376
  %v378 = vrot.slane %v29, %v377
  %v379 = vadd.f32 %v373, %v378
  %v380 = vadd.f32 %v374, %v378
  %v381 = vpack.c.bf16 %v380, %v379
  %382 = vmatprep.subr.bf16.mxu0 0
  %383 = vmatpush1.bf16.msra.mxu0 %v262
  %384 = vmatprep.subr.bf16.mxu0 0
  %385 = vmatpush1.bf16.msra.mxu0 %v263
  %386 = vmatprep.subr.bf16.mxu0 0
  %387 = vmatpush1.bf16.msra.mxu0 %v264
  %388 = vmatprep.subr.bf16.mxu0 0
  %389 = vmatpush1.bf16.msra.mxu0 %v265
  %390 = vmatprep.subr.bf16.mxu0 0
  %391 = vmatpush1.bf16.msra.mxu0 %v266
  %392 = vmatprep.subr.bf16.mxu0 0
  %393 = vmatpush1.bf16.msra.mxu0 %v267
  %394 = vmatprep.subr.bf16.mxu0 0
  %395 = vmatpush1.bf16.msra.mxu0 %v268
  %396 = vmatprep.subr.bf16.mxu0 0
  %397 = vmatpush1.bf16.msra.mxu0 %v269
  %398 = vmatprep.subr.bf16.mxu0 0
  %399 = vmatpush1.bf16.msra.mxu0 0
  %400 = vmatprep.subr.bf16.mxu0 0
  %401 = vmatpush1.bf16.msra.mxu0 0
  %402 = vmatprep.subr.bf16.mxu0 0
  %403 = vmatpush1.bf16.msra.mxu0 0
  %404 = vmatprep.subr.bf16.mxu0 0
  %405 = vmatpush1.bf16.msra.mxu0 0
  %406 = vmatprep.subr.bf16.mxu0 0
  %407 = vmatpush1.bf16.msra.mxu0 0
  %408 = vmatprep.subr.bf16.mxu0 0
  %409 = vmatpush1.bf16.msra.mxu0 0
  %410 = vmatprep.subr.bf16.mxu0 0
  %411 = vmatpush1.bf16.msra.mxu0 0
  %412 = vmatprep.subr.bf16.mxu0 0
  %413 = vmatpush1.bf16.msra.mxu0 0
  %414 = vmatprep.mubr.bf16.mxu0 0
  %415 = vmatmul.mubr.bf16.gmra.mrb[0].mxu0 %v381
  %v416 = vpop.f32.mrb[0].mxu0
  %v417 = vadd.f32 0.0, %v416
  %v418 = vpop.f32.mrb[0].mxu0
  %v419 = vpop.f32.mrb[0].mxu0
  %v420 = vadd.f32 0.0, %v419
  %v421 = vpop.f32.mrb[0].mxu0
  %422 = vdwg.mxu0
  %v423 = vsub.f32 %v379, %v417
  %v424 = vsub.f32 %v380, %v420
  %v425 = vmul.f32 %v423, %v423
  %v426 = vmul.f32 %v424, %v424
  %v427 = vpack.c.bf16 %v426, %v425
  %428 = vmatprep.subr.bf16.mxu0 0
  %429 = vmatpush1.bf16.msra.mxu0 %v262
  %430 = vmatprep.subr.bf16.mxu0 0
  %431 = vmatpush1.bf16.msra.mxu0 %v263
  %432 = vmatprep.subr.bf16.mxu0 0
  %433 = vmatpush1.bf16.msra.mxu0 %v264
  %434 = vmatprep.subr.bf16.mxu0 0
  %435 = vmatpush1.bf16.msra.mxu0 %v265
  %436 = vmatprep.subr.bf16.mxu0 0
  %437 = vmatpush1.bf16.msra.mxu0 %v266
  %438 = vmatprep.subr.bf16.mxu0 0
  %439 = vmatpush1.bf16.msra.mxu0 %v267
  %440 = vmatprep.subr.bf16.mxu0 0
  %441 = vmatpush1.bf16.msra.mxu0 %v268
  %442 = vmatprep.subr.bf16.mxu0 0
  %443 = vmatpush1.bf16.msra.mxu0 %v269
  %444 = vmatprep.subr.bf16.mxu0 0
  %445 = vmatpush1.bf16.msra.mxu0 0
  %446 = vmatprep.subr.bf16.mxu0 0
  %447 = vmatpush1.bf16.msra.mxu0 0
  %448 = vmatprep.subr.bf16.mxu0 0
  %449 = vmatpush1.bf16.msra.mxu0 0
  %450 = vmatprep.subr.bf16.mxu0 0
  %451 = vmatpush1.bf16.msra.mxu0 0
  %452 = vmatprep.subr.bf16.mxu0 0
  %453 = vmatpush1.bf16.msra.mxu0 0
  %454 = vmatprep.subr.bf16.mxu0 0
  %455 = vmatpush1.bf16.msra.mxu0 0
  %456 = vmatprep.subr.bf16.mxu0 0
  %457 = vmatpush1.bf16.msra.mxu0 0
  %458 = vmatprep.subr.bf16.mxu0 0
  %459 = vmatpush1.bf16.msra.mxu0 0
  %460 = vmatprep.mubr.bf16.mxu0 0
  %461 = vmatmul.mubr.bf16.gmra.mrb[0].mxu0 %v427
  %v462 = vpop.f32.mrb[0].mxu0
  %v463 = vadd.f32 1e-06, %v462
  %v464 = vpop.f32.mrb[0].mxu0
  %v465 = vpop.f32.mrb[0].mxu0
  %v466 = vadd.f32 1e-06, %v465
  %v467 = vpop.f32.mrb[0].mxu0
  %468 = vdwg.mxu0
  %v469 = vrsqrt.pop %v463
  %v470 = vrsqrt.pop %v466
  %v471 = vmul.f32 %v423, %v469
  %v472 = vmul.f32 %v424, %v470
  %v473 = vlaneseq
  %v474 = vshrl.u32 %v473, 7
  %v475 = vsub.s32 3, %v474
  %v476 = vrot.slane %v29, %v475
  %v477 = vmul.f32 %v471, %v476
  %v478 = vmul.f32 %v472, %v476
  %v479 = vlaneseq
  %v480 = vshrl.u32 %v479, 7
  %v481 = vsub.s32 4, %v480
  %v482 = vrot.slane %v29, %v481
  %v483 = vadd.f32 %v477, %v482
  %v484 = vadd.f32 %v478, %v482
  %v485 = vpack.c.bf16 %v484, %v483
  %v486 = vld [vmem:[%s2] sm:$0xff]
  %v487 = vld [vmem:[%s2 + $0x8] sm:$0xff]
  %v488 = vld [vmem:[%s2 + $0x10] sm:$0xff]
  %v489 = vld [vmem:[%s2 + $0x18] sm:$0xff]
  %v490 = vld [vmem:[%s2 + $0x20] sm:$0xff]
  %v491 = vld [vmem:[%s2 + $0x28] sm:$0xff]
  %v492 = vld [vmem:[%s2 + $0x30] sm:$0xff]
  %v493 = vld [vmem:[%s2 + $0x38] sm:$0xff]
  %v494 = vld [vmem:[%s2 + $0x40] sm:$0xff]
  %v495 = vld [vmem:[%s2 + $0x48] sm:$0xff]
  %v496 = vld [vmem:[%s2 + $0x50] sm:$0xff]
  %v497 = vld [vmem:[%s2 + $0x58] sm:$0xff]
  %v498 = vld [vmem:[%s2 + $0x60] sm:$0xff]
  %v499 = vld [vmem:[%s2 + $0x68] sm:$0xff]
  %v500 = vld [vmem:[%s2 + $0x70] sm:$0xff]
  %v501 = vld [vmem:[%s2 + $0x78] sm:$0xff]
  %v502 = vld [vmem:[%s5] sm:$0x3]
  %v504 = vlaneseq
  %v505 = vshrl.u32 %v504, 7
  %v506 = vsub.s32 0, %v505
  %v507 = vrot.slane %v502, %v506
  %v508 = vlaneseq
  %v509 = vshrl.u32 %v508, 7
  %v510 = vsub.s32 1, %v509
  %v511 = vrot.slane %v502, %v510
  %v530 = vunpack.c.l.b16 %v486
  %v531 = vunpack.c.h.b16 %v486
  %v532 = vunpack.c.l.b16 %v487
  %v533 = vunpack.c.h.b16 %v487
  %v534 = vunpack.c.l.b16 %v488
  %v535 = vunpack.c.h.b16 %v488
  %v536 = vunpack.c.l.b16 %v489
  %v537 = vunpack.c.h.b16 %v489
  %v538 = vunpack.c.l.b16 %v490
  %v539 = vunpack.c.h.b16 %v490
  %v540 = vunpack.c.l.b16 %v491
  %v541 = vunpack.c.h.b16 %v491
  %v542 = vunpack.c.l.b16 %v492
  %v543 = vunpack.c.h.b16 %v492
  %v544 = vunpack.c.l.b16 %v493
  %v545 = vunpack.c.h.b16 %v493
  %v546 = vunpack.c.l.b16 %v494
  %v547 = vunpack.c.h.b16 %v494
  %v548 = vunpack.c.l.b16 %v495
  %v549 = vunpack.c.h.b16 %v495
  %v550 = vunpack.c.l.b16 %v496
  %v551 = vunpack.c.h.b16 %v496
  %v552 = vunpack.c.l.b16 %v497
  %v553 = vunpack.c.h.b16 %v497
  %v554 = vunpack.c.l.b16 %v498
  %v555 = vunpack.c.h.b16 %v498
  %v556 = vunpack.c.l.b16 %v499
  %v557 = vunpack.c.h.b16 %v499
  %v558 = vunpack.c.l.b16 %v500
  %v559 = vunpack.c.h.b16 %v500
  %v560 = vunpack.c.l.b16 %v501
  %v561 = vunpack.c.h.b16 %v501
  %v562 = vpack.c.b16 %v532, %v530
  %v563 = vpack.c.b16 %v533, %v531
  %v564 = vpack.c.b16 %v536, %v534
  %v565 = vpack.c.b16 %v537, %v535
  %v566 = vpack.c.b16 %v540, %v538
  %v567 = vpack.c.b16 %v541, %v539
  %v568 = vpack.c.b16 %v544, %v542
  %v569 = vpack.c.b16 %v545, %v543
  %v570 = vpack.c.b16 %v548, %v546
  %v571 = vpack.c.b16 %v549, %v547
  %v572 = vpack.c.b16 %v552, %v550
  %v573 = vpack.c.b16 %v553, %v551
  %v574 = vpack.c.b16 %v556, %v554
  %v575 = vpack.c.b16 %v557, %v555
  %v576 = vpack.c.b16 %v560, %v558
  %v577 = vpack.c.b16 %v561, %v559
  %594 = vmatprep.subr.bf16.mxu0 %v563
  %595 = vmatpush1.bf16.msra.mxu0 %v562
  %596 = vmatprep.subr.bf16.mxu0 %v565
  %597 = vmatpush1.bf16.msra.mxu0 %v564
  %598 = vmatprep.subr.bf16.mxu0 %v567
  %599 = vmatpush1.bf16.msra.mxu0 %v566
  %600 = vmatprep.subr.bf16.mxu0 %v569
  %601 = vmatpush1.bf16.msra.mxu0 %v568
  %602 = vmatprep.subr.bf16.mxu0 %v571
  %603 = vmatpush1.bf16.msra.mxu0 %v570
  %604 = vmatprep.subr.bf16.mxu0 %v573
  %605 = vmatpush1.bf16.msra.mxu0 %v572
  %606 = vmatprep.subr.bf16.mxu0 %v575
  %607 = vmatpush1.bf16.msra.mxu0 %v574
  %608 = vmatprep.subr.bf16.mxu0 %v577
  %609 = vmatpush1.bf16.msra.mxu0 %v576
  %610 = vmatprep.subr.bf16.mxu0 0
  %611 = vmatpush1.bf16.msra.mxu0 0
  %612 = vmatprep.subr.bf16.mxu0 0
  %613 = vmatpush1.bf16.msra.mxu0 0
  %614 = vmatprep.subr.bf16.mxu0 0
  %615 = vmatpush1.bf16.msra.mxu0 0
  %616 = vmatprep.subr.bf16.mxu0 0
  %617 = vmatpush1.bf16.msra.mxu0 0
  %618 = vmatprep.subr.bf16.mxu0 0
  %619 = vmatpush1.bf16.msra.mxu0 0
  %620 = vmatprep.subr.bf16.mxu0 0
  %621 = vmatpush1.bf16.msra.mxu0 0
  %622 = vmatprep.subr.bf16.mxu0 0
  %623 = vmatpush1.bf16.msra.mxu0 0
  %624 = vmatprep.subr.bf16.mxu0 0
  %625 = vmatpush1.bf16.msra.mxu0 0
  %626 = vmatprep.mubr.bf16.mxu0 0
  %627 = vmatmul.mubr.bf16.gmra.mrb[0].mxu0 %v485
  %v628 = vpop.f32.mrb[0].mxu0
  %v629 = vadd.f32 %v507, %v628
  %v630 = vpop.f32.mrb[0].mxu0
  %v631 = vadd.f32 %v511, %v630
  %v632 = vpop.f32.mrb[0].mxu0
  %v633 = vadd.f32 %v507, %v632
  %v634 = vpop.f32.mrb[0].mxu0
  %v635 = vadd.f32 %v511, %v634
  %636 = vdwg.mxu0
  %v637 = vmul.f32 %v629, %v629
  %v638 = vmul.f32 %v631, %v631
  %v639 = vmul.f32 %v633, %v633
  %v640 = vmul.f32 %v635, %v635
  %v641 = vmul.f32 %v629, %v637
  %v642 = vmul.f32 %v631, %v638
  %v643 = vmul.f32 %v633, %v639
  %v644 = vmul.f32 %v635, %v640
  %v645 = vmul.f32 %v641, 0.044715
  %v646 = vmul.f32 %v642, 0.044715
  %v647 = vmul.f32 %v643, 0.044715
  %v648 = vmul.f32 %v644, 0.044715
  %v649 = vadd.f32 %v629, %v645
  %v650 = vadd.f32 %v631, %v646
  %v651 = vadd.f32 %v633, %v647
  %v652 = vadd.f32 %v635, %v648
  %v653 = vmul.f32 %v649, 0.7978846
  %v654 = vmul.f32 %v650, 0.7978846
  %v655 = vmul.f32 %v651, 0.7978846
  %v656 = vmul.f32 %v652, 0.7978846
  %v657 = vtanh.pop %v653
  %v658 = vtanh.pop %v654
  %v659 = vtanh.pop %v655
  %v660 = vtanh.pop %v656
  %v661 = vadd.f32 %v657, 1.0
  %v662 = vadd.f32 %v658, 1.0
  %v663 = vadd.f32 %v659, 1.0
  %v664 = vadd.f32 %v660, 1.0
  %v665 = vmul.f32 %v661, 0.5
  %v666 = vmul.f32 %v662, 0.5
  %v667 = vmul.f32 %v663, 0.5
  %v668 = vmul.f32 %v664, 0.5
  %v669 = vmul.f32 %v629, %v665
  %v670 = vmul.f32 %v631, %v666
  %v671 = vmul.f32 %v633, %v667
  %v672 = vmul.f32 %v635, %v668
  %v673 = vpack.c.bf16 %v671, %v669
  %v674 = vpack.c.bf16 %v672, %v670
  %v675 = vld [vmem:[%s3] sm:$0xf]
  %v676 = vld [vmem:[%s3 + $0x4] sm:$0xf]
  %v677 = vld [vmem:[%s3 + $0x8] sm:$0xf]
  %v678 = vld [vmem:[%s3 + $0xc] sm:$0xf]
  %v679 = vld [vmem:[%s3 + $0x10] sm:$0xf]
  %v680 = vld [vmem:[%s3 + $0x14] sm:$0xf]
  %v681 = vld [vmem:[%s3 + $0x18] sm:$0xf]
  %v682 = vld [vmem:[%s3 + $0x1c] sm:$0xf]
  %v683 = vld [vmem:[%s3 + $0x20] sm:$0xf]
  %v684 = vld [vmem:[%s3 + $0x24] sm:$0xf]
  %v685 = vld [vmem:[%s3 + $0x28] sm:$0xf]
  %v686 = vld [vmem:[%s3 + $0x2c] sm:$0xf]
  %v687 = vld [vmem:[%s3 + $0x30] sm:$0xf]
  %v688 = vld [vmem:[%s3 + $0x34] sm:$0xf]
  %v689 = vld [vmem:[%s3 + $0x38] sm:$0xf]
  %v690 = vld [vmem:[%s3 + $0x3c] sm:$0xf]
  %v691 = vld [vmem:[%s3 + $0x40] sm:$0xf]
  %v692 = vld [vmem:[%s3 + $0x44] sm:$0xf]
  %v693 = vld [vmem:[%s3 + $0x48] sm:$0xf]
  %v694 = vld [vmem:[%s3 + $0x4c] sm:$0xf]
  %v695 = vld [vmem:[%s3 + $0x50] sm:$0xf]
  %v696 = vld [vmem:[%s3 + $0x54] sm:$0xf]
  %v697 = vld [vmem:[%s3 + $0x58] sm:$0xf]
  %v698 = vld [vmem:[%s3 + $0x5c] sm:$0xf]
  %v699 = vld [vmem:[%s3 + $0x60] sm:$0xf]
  %v700 = vld [vmem:[%s3 + $0x64] sm:$0xf]
  %v701 = vld [vmem:[%s3 + $0x68] sm:$0xf]
  %v702 = vld [vmem:[%s3 + $0x6c] sm:$0xf]
  %v703 = vld [vmem:[%s3 + $0x70] sm:$0xf]
  %v704 = vld [vmem:[%s3 + $0x74] sm:$0xf]
  %v705 = vld [vmem:[%s3 + $0x78] sm:$0xf]
  %v706 = vld [vmem:[%s3 + $0x7c] sm:$0xf]
  %v707 = vlaneseq
  %v708 = vshrl.u32 %v707, 7
  %v709 = vsub.s32 5, %v708
  %v710 = vrot.slane %v29, %v709
  %v743 = vunpack.c.l.b16 %v675
  %v744 = vunpack.c.l.b16 %v676
  %v745 = vunpack.c.l.b16 %v677
  %v746 = vunpack.c.l.b16 %v678
  %v747 = vunpack.c.l.b16 %v679
  %v748 = vunpack.c.l.b16 %v680
  %v749 = vunpack.c.l.b16 %v681
  %v750 = vunpack.c.l.b16 %v682
  %v751 = vunpack.c.l.b16 %v683
  %v752 = vunpack.c.l.b16 %v684
  %v753 = vunpack.c.l.b16 %v685
  %v754 = vunpack.c.l.b16 %v686
  %v755 = vunpack.c.l.b16 %v687
  %v756 = vunpack.c.l.b16 %v688
  %v757 = vunpack.c.l.b16 %v689
  %v758 = vunpack.c.l.b16 %v690
  %v759 = vunpack.c.l.b16 %v691
  %v760 = vunpack.c.l.b16 %v692
  %v761 = vunpack.c.l.b16 %v693
  %v762 = vunpack.c.l.b16 %v694
  %v763 = vunpack.c.l.b16 %v695
  %v764 = vunpack.c.l.b16 %v696
  %v765 = vunpack.c.l.b16 %v697
  %v766 = vunpack.c.l.b16 %v698
  %v767 = vunpack.c.l.b16 %v699
  %v768 = vunpack.c.l.b16 %v700
  %v769 = vunpack.c.l.b16 %v701
  %v770 = vunpack.c.l.b16 %v702
  %v771 = vunpack.c.l.b16 %v703
  %v772 = vunpack.c.l.b16 %v704
  %v773 = vunpack.c.l.b16 %v705
  %v774 = vunpack.c.l.b16 %v706
  %v775 = vpack.c.b16 %v744, %v743
  %v776 = vpack.c.b16 %v746, %v745
  %v777 = vpack.c.b16 %v748, %v747
  %v778 = vpack.c.b16 %v750, %v749
  %v779 = vpack.c.b16 %v752, %v751
  %v780 = vpack.c.b16 %v754, %v753
  %v781 = vpack.c.b16 %v756, %v755
  %v782 = vpack.c.b16 %v758, %v757
  %v783 = vpack.c.b16 %v760, %v759
  %v784 = vpack.c.b16 %v762, %v761
  %v785 = vpack.c.b16 %v764, %v763
  %v786 = vpack.c.b16 %v766, %v765
  %v787 = vpack.c.b16 %v768, %v767
  %v788 = vpack.c.b16 %v770, %v769
  %v789 = vpack.c.b16 %v772, %v771
  %v790 = vpack.c.b16 %v774, %v773
  %807 = vmatprep.subr.bf16.mxu0 0
  %808 = vmatpush1.bf16.msra.mxu0 %v775
  %809 = vmatprep.subr.bf16.mxu0 0
  %810 = vmatpush1.bf16.msra.mxu0 %v776
  %811 = vmatprep.subr.bf16.mxu0 0
  %812 = vmatpush1.bf16.msra.mxu0 %v777
  %813 = vmatprep.subr.bf16.mxu0 0
  %814 = vmatpush1.bf16.msra.mxu0 %v778
  %815 = vmatprep.subr.bf16.mxu0 0
  %816 = vmatpush1.bf16.msra.mxu0 %v779
  %817 = vmatprep.subr.bf16.mxu0 0
  %818 = vmatpush1.bf16.msra.mxu0 %v780
  %819 = vmatprep.subr.bf16.mxu0 0
  %820 = vmatpush1.bf16.msra.mxu0 %v781
  %821 = vmatprep.subr.bf16.mxu0 0
  %822 = vmatpush1.bf16.msra.mxu0 %v782
  %823 = vmatprep.subr.bf16.mxu0 0
  %824 = vmatpush1.bf16.msra.mxu0 %v783
  %825 = vmatprep.subr.bf16.mxu0 0
  %826 = vmatpush1.bf16.msra.mxu0 %v784
  %827 = vmatprep.subr.bf16.mxu0 0
  %828 = vmatpush1.bf16.msra.mxu0 %v785
  %829 = vmatprep.subr.bf16.mxu0 0
  %830 = vmatpush1.bf16.msra.mxu0 %v786
  %831 = vmatprep.subr.bf16.mxu0 0
  %832 = vmatpush1.bf16.msra.mxu0 %v787
  %833 = vmatprep.subr.bf16.mxu0 0
  %834 = vmatpush1.bf16.msra.mxu0 %v788
  %835 = vmatprep.subr.bf16.mxu0 0
  %836 = vmatpush1.bf16.msra.mxu0 %v789
  %837 = vmatprep.subr.bf16.mxu0 0
  %838 = vmatpush1.bf16.msra.mxu0 %v790
  %839 = vmatprep.mubr.bf16.mxu0 %v674
  %840 = vmatmul.mubr.bf16.gmra.mrb[0].mxu0 %v673
  %v841 = vpop.f32.mrb[0].mxu0
  %v842 = vadd.f32 %v710, %v841
  %v843 = vpop.f32.mrb[0].mxu0
  %v844 = vpop.f32.mrb[0].mxu0
  %v845 = vadd.f32 %v710, %v844
  %v846 = vpop.f32.mrb[0].mxu0
  %847 = vdwg.mxu0
  %v848 = vadd.f32 %v842, %v379
  %v849 = vadd.f32 %v845, %v380
  %v850 = vpack.c.bf16 %v849, %v848
  %v852 = vunpack.c.l.b16 %v850
  %v853 = vunpack.c.h.b16 %v850
  %v854 = vpack.c.b16 %v852, %v852
  %v855 = vpack.c.b16 %v853, %v853
  %858 = vst [vmem:[%s7] sm:$0xf] %v854
  %859 = vst [vmem:[%s7 + $0x4] sm:$0xf] %v855
  // Predicated region
  $region30: #{light_image_encoder_forward.11} parent=0 // pred_check
    _
  $region31: #{light_image_encoder_forward.11} parent=0 // pred_check_branch
    %861 = sbr.rel (0) target = $region33
  $region32: #{light_image_encoder_forward.11} parent=0 // pred_region
    _
  $region33: #{light_image_encoder_forward.11} parent=0 // pred_fallthru
    _
  // Predicated region
  $region34: #{light_image_encoder_forward.11} parent=0 // pred_check
    _
  $region35: #{light_image_encoder_forward.11} parent=0 // pred_check_branch
    %863 = sbr.rel (0) target = $region37
  $region36: #{light_image_encoder_forward.11} parent=0 // pred_region
    _
  $region37: #{light_image_encoder_forward.11} parent=0 // pred_fallthru
    _

// kernel: light_image_encoder_forward.15
$region0: #{light_image_encoder_forward.15}
  #allocation0 [shape = 'u32[]', space=smem, size = 0x4, offset = 0x4, fixed_abs, tag = 'smem constant byte address 0x4 - core index']
  #allocation1 [shape = 'u32[144,128]{1,0:T(1,128)}', space=vmem, size = 0x12000, scoped, tag = 'internal scratch']
  %s0 = inlined_call_operand.vmem [shape: bf16[4,256], index: 0, kind: input, shape index: {}]
  %s1 = inlined_call_operand.vmem [shape: bf16[256,128], index: 1, kind: input, shape index: {}]
  %s2 = inlined_call_operand.vmem [shape: f32[2,128], index: 2, kind: input, shape index: {}]
  %s3 = inlined_call_operand.vmem [shape: bf16[128,128], index: 3, kind: input, shape index: {}]
  %s4 = inlined_call_operand.vmem [shape: bf16[4,128], index: 4, kind: output, shape index: {}]
  %s5 = sld [smem:[#allocation0]]
  $region26: #{light_image_encoder_forward.15} parent=0
    _
  %s7 = ssub.s32 1, %s5
  %s8 = scalar_select 0, %s7, %s5
  // Predicated region
  $region2: #{light_image_encoder_forward.15} parent=0 // pred_check
    _
  $region3: #{light_image_encoder_forward.15} parent=0 // pred_check_branch
    %10 = sbr.rel (0) target = $region5
  $region4: #{light_image_encoder_forward.15} parent=0 // pred_region
    _
  $region5: #{light_image_encoder_forward.15} parent=0 // pred_fallthru
    _
  // Predicated region
  $region6: #{light_image_encoder_forward.15} parent=0 // pred_check
    _
  $region7: #{light_image_encoder_forward.15} parent=0 // pred_check_branch
    %12 = sbr.rel (0) target = $region9
  $region8: #{light_image_encoder_forward.15} parent=0 // pred_region
    _
  $region9: #{light_image_encoder_forward.15} parent=0 // pred_fallthru
    _
  // Predicated region
  $region10: #{light_image_encoder_forward.15} parent=0 // pred_check
    _
  $region11: #{light_image_encoder_forward.15} parent=0 // pred_check_branch
    %14 = sbr.rel (0) target = $region13
  $region12: #{light_image_encoder_forward.15} parent=0 // pred_region
    _
  $region13: #{light_image_encoder_forward.15} parent=0 // pred_fallthru
    _
  // Predicated region
  $region14: #{light_image_encoder_forward.15} parent=0 // pred_check
    _
  $region15: #{light_image_encoder_forward.15} parent=0 // pred_check_branch
    %16 = sbr.rel (0) target = $region17
  $region16: #{light_image_encoder_forward.15} parent=0 // pred_region
    _
  $region17: #{light_image_encoder_forward.15} parent=0 // pred_fallthru
    _
  %v18 = vld [vmem:[%s0] sm:$0xf]
  %v19 = vld [vmem:[%s1] sm:$0xf]
  %v20 = vld [vmem:[%s1 + $0x4] sm:$0xf]
  %v21 = vld [vmem:[%s1 + $0x8] sm:$0xf]
  %v22 = vld [vmem:[%s1 + $0xc] sm:$0xf]
  %v23 = vld [vmem:[%s1 + $0x10] sm:$0xf]
  %v24 = vld [vmem:[%s1 + $0x14] sm:$0xf]
  %v25 = vld [vmem:[%s1 + $0x18] sm:$0xf]
  %v26 = vld [vmem:[%s1 + $0x1c] sm:$0xf]
  %v27 = vld [vmem:[%s1 + $0x20] sm:$0xf]
  %v28 = vld [vmem:[%s1 + $0x24] sm:$0xf]
  %v29 = vld [vmem:[%s1 + $0x28] sm:$0xf]
  %v30 = vld [vmem:[%s1 + $0x2c] sm:$0xf]
  %v31 = vld [vmem:[%s1 + $0x30] sm:$0xf]
  %v32 = vld [vmem:[%s1 + $0x34] sm:$0xf]
  %v33 = vld [vmem:[%s1 + $0x38] sm:$0xf]
  %v34 = vld [vmem:[%s1 + $0x3c] sm:$0xf]
  %v35 = vld [vmem:[%s1 + $0x40] sm:$0xf]
  %v36 = vld [vmem:[%s1 + $0x44] sm:$0xf]
  %v37 = vld [vmem:[%s1 + $0x48] sm:$0xf]
  %v38 = vld [vmem:[%s1 + $0x4c] sm:$0xf]
  %v39 = vld [vmem:[%s1 + $0x50] sm:$0xf]
  %v40 = vld [vmem:[%s1 + $0x54] sm:$0xf]
  %v41 = vld [vmem:[%s1 + $0x58] sm:$0xf]
  %v42 = vld [vmem:[%s1 + $0x5c] sm:$0xf]
  %v43 = vld [vmem:[%s1 + $0x60] sm:$0xf]
  %v44 = vld [vmem:[%s1 + $0x64] sm:$0xf]
  %v45 = vld [vmem:[%s1 + $0x68] sm:$0xf]
  %v46 = vld [vmem:[%s1 + $0x6c] sm:$0xf]
  %v47 = vld [vmem:[%s1 + $0x70] sm:$0xf]
  %v48 = vld [vmem:[%s1 + $0x74] sm:$0xf]
  %v49 = vld [vmem:[%s1 + $0x78] sm:$0xf]
  %v50 = vld [vmem:[%s1 + $0x7c] sm:$0xf]
  %v53 = vunpack.c.l.s4 1983009808
  %v54 = vunpack.c.0.s8 %v53
  %v55 = vlaneseq
  %v56 = vshrl.u32 %v55, 7
  %v57 = vsub.s32 %v54, %v56
  %v58 = vrot.slane %v18, %v57
  %v59 = vcombine.high %v58, %v58
  %v94 = vunpack.c.l.b16 %v19
  %v95 = vunpack.c.l.b16 %v20
  %v96 = vunpack.c.l.b16 %v21
  %v97 = vunpack.c.l.b16 %v22
  %v98 = vunpack.c.l.b16 %v23
  %v99 = vunpack.c.l.b16 %v24
  %v100 = vunpack.c.l.b16 %v25
  %v101 = vunpack.c.l.b16 %v26
  %v102 = vunpack.c.l.b16 %v27
  %v103 = vunpack.c.l.b16 %v28
  %v104 = vunpack.c.l.b16 %v29
  %v105 = vunpack.c.l.b16 %v30
  %v106 = vunpack.c.l.b16 %v31
  %v107 = vunpack.c.l.b16 %v32
  %v108 = vunpack.c.l.b16 %v33
  %v109 = vunpack.c.l.b16 %v34
  %v110 = vunpack.c.l.b16 %v35
  %v111 = vunpack.c.l.b16 %v36
  %v112 = vunpack.c.l.b16 %v37
  %v113 = vunpack.c.l.b16 %v38
  %v114 = vunpack.c.l.b16 %v39
  %v115 = vunpack.c.l.b16 %v40
  %v116 = vunpack.c.l.b16 %v41
  %v117 = vunpack.c.l.b16 %v42
  %v118 = vunpack.c.l.b16 %v43
  %v119 = vunpack.c.l.b16 %v44
  %v120 = vunpack.c.l.b16 %v45
  %v121 = vunpack.c.l.b16 %v46
  %v122 = vunpack.c.l.b16 %v47
  %v123 = vunpack.c.l.b16 %v48
  %v124 = vunpack.c.l.b16 %v49
  %v125 = vunpack.c.l.b16 %v50
  %v126 = vpack.c.b16 %v95, %v94
  %v127 = vpack.c.b16 %v97, %v96
  %v128 = vpack.c.b16 %v99, %v98
  %v129 = vpack.c.b16 %v101, %v100
  %v130 = vpack.c.b16 %v103, %v102
  %v131 = vpack.c.b16 %v105, %v104
  %v132 = vpack.c.b16 %v107, %v106
  %v133 = vpack.c.b16 %v109, %v108
  %v134 = vpack.c.b16 %v111, %v110
  %v135 = vpack.c.b16 %v113, %v112
  %v136 = vpack.c.b16 %v115, %v114
  %v137 = vpack.c.b16 %v117, %v116
  %v138 = vpack.c.b16 %v119, %v118
  %v139 = vpack.c.b16 %v121, %v120
  %v140 = vpack.c.b16 %v123, %v122
  %v141 = vpack.c.b16 %v125, %v124
  %158 = vmatprep.subr.bf16.mxu0 0
  %159 = vmatpush1.bf16.msra.mxu0 %v126
  %160 = vmatprep.subr.bf16.mxu0 0
  %161 = vmatpush1.bf16.msra.mxu0 %v127
  %162 = vmatprep.subr.bf16.mxu0 0
  %163 = vmatpush1.bf16.msra.mxu0 %v128
  %164 = vmatprep.subr.bf16.mxu0 0
  %165 = vmatpush1.bf16.msra.mxu0 %v129
  %166 = vmatprep.subr.bf16.mxu0 0
  %167 = vmatpush1.bf16.msra.mxu0 %v130
  %168 = vmatprep.subr.bf16.mxu0 0
  %169 = vmatpush1.bf16.msra.mxu0 %v131
  %170 = vmatprep.subr.bf16.mxu0 0
  %171 = vmatpush1.bf16.msra.mxu0 %v132
  %172 = vmatprep.subr.bf16.mxu0 0
  %173 = vmatpush1.bf16.msra.mxu0 %v133
  %174 = vmatprep.subr.bf16.mxu0 0
  %175 = vmatpush1.bf16.msra.mxu0 %v134
  %176 = vmatprep.subr.bf16.mxu0 0
  %177 = vmatpush1.bf16.msra.mxu0 %v135
  %178 = vmatprep.subr.bf16.mxu0 0
  %179 = vmatpush1.bf16.msra.mxu0 %v136
  %180 = vmatprep.subr.bf16.mxu0 0
  %181 = vmatpush1.bf16.msra.mxu0 %v137
  %182 = vmatprep.subr.bf16.mxu0 0
  %183 = vmatpush1.bf16.msra.mxu0 %v138
  %184 = vmatprep.subr.bf16.mxu0 0
  %185 = vmatpush1.bf16.msra.mxu0 %v139
  %186 = vmatprep.subr.bf16.mxu0 0
  %187 = vmatpush1.bf16.msra.mxu0 %v140
  %188 = vmatprep.subr.bf16.mxu0 0
  %189 = vmatpush1.bf16.msra.mxu0 %v141
  %190 = vmatprep.mubr.bf16.mxu0 %v59
  %191 = vmatmul.mubr.bf16.gmra.mrb[0].mxu0 %v58
  %v192 = vpop.f32.mrb[0].mxu0
  %v193 = vadd.f32 0.0, %v192
  %v194 = vpop.f32.mrb[0].mxu0
  %v195 = vpop.f32.mrb[0].mxu0
  %v196 = vpop.f32.mrb[0].mxu0
  %197 = vdwg.mxu0
  %v198 = vld [vmem:[%s2] sm:$0x3]
  %v199 = vld [vmem:[%s3] sm:$0xf]
  %v200 = vld [vmem:[%s3 + $0x4] sm:$0xf]
  %v201 = vld [vmem:[%s3 + $0x8] sm:$0xf]
  %v202 = vld [vmem:[%s3 + $0xc] sm:$0xf]
  %v203 = vld [vmem:[%s3 + $0x10] sm:$0xf]
  %v204 = vld [vmem:[%s3 + $0x14] sm:$0xf]
  %v205 = vld [vmem:[%s3 + $0x18] sm:$0xf]
  %v206 = vld [vmem:[%s3 + $0x1c] sm:$0xf]
  %v207 = vld [vmem:[%s3 + $0x20] sm:$0xf]
  %v208 = vld [vmem:[%s3 + $0x24] sm:$0xf]
  %v209 = vld [vmem:[%s3 + $0x28] sm:$0xf]
  %v210 = vld [vmem:[%s3 + $0x2c] sm:$0xf]
  %v211 = vld [vmem:[%s3 + $0x30] sm:$0xf]
  %v212 = vld [vmem:[%s3 + $0x34] sm:$0xf]
  %v213 = vld [vmem:[%s3 + $0x38] sm:$0xf]
  %v214 = vld [vmem:[%s3 + $0x3c] sm:$0xf]
  %v215 = vpack.c.bf16 %v193, %v193
  %v232 = vunpack.c.l.b16 %v199
  %v233 = vunpack.c.l.b16 %v200
  %v234 = vunpack.c.l.b16 %v201
  %v235 = vunpack.c.l.b16 %v202
  %v236 = vunpack.c.l.b16 %v203
  %v237 = vunpack.c.l.b16 %v204
  %v238 = vunpack.c.l.b16 %v205
  %v239 = vunpack.c.l.b16 %v206
  %v240 = vunpack.c.l.b16 %v207
  %v241 = vunpack.c.l.b16 %v208
  %v242 = vunpack.c.l.b16 %v209
  %v243 = vunpack.c.l.b16 %v210
  %v244 = vunpack.c.l.b16 %v211
  %v245 = vunpack.c.l.b16 %v212
  %v246 = vunpack.c.l.b16 %v213
  %v247 = vunpack.c.l.b16 %v214
  %v248 = vpack.c.b16 %v233, %v232
  %v249 = vpack.c.b16 %v235, %v234
  %v250 = vpack.c.b16 %v237, %v236
  %v251 = vpack.c.b16 %v239, %v238
  %v252 = vpack.c.b16 %v241, %v240
  %v253 = vpack.c.b16 %v243, %v242
  %v254 = vpack.c.b16 %v245, %v244
  %v255 = vpack.c.b16 %v247, %v246
  %264 = vmatprep.subr.bf16.mxu0 0
  %265 = vmatpush1.bf16.msra.mxu0 %v248
  %266 = vmatprep.subr.bf16.mxu0 0
  %267 = vmatpush1.bf16.msra.mxu0 %v249
  %268 = vmatprep.subr.bf16.mxu0 0
  %269 = vmatpush1.bf16.msra.mxu0 %v250
  %270 = vmatprep.subr.bf16.mxu0 0
  %271 = vmatpush1.bf16.msra.mxu0 %v251
  %272 = vmatprep.subr.bf16.mxu0 0
  %273 = vmatpush1.bf16.msra.mxu0 %v252
  %274 = vmatprep.subr.bf16.mxu0 0
  %275 = vmatpush1.bf16.msra.mxu0 %v253
  %276 = vmatprep.subr.bf16.mxu0 0
  %277 = vmatpush1.bf16.msra.mxu0 %v254
  %278 = vmatprep.subr.bf16.mxu0 0
  %279 = vmatpush1.bf16.msra.mxu0 %v255
  %280 = vmatprep.subr.bf16.mxu0 0
  %281 = vmatpush1.bf16.msra.mxu0 0
  %282 = vmatprep.subr.bf16.mxu0 0
  %283 = vmatpush1.bf16.msra.mxu0 0
  %284 = vmatprep.subr.bf16.mxu0 0
  %285 = vmatpush1.bf16.msra.mxu0 0
  %286 = vmatprep.subr.bf16.mxu0 0
  %287 = vmatpush1.bf16.msra.mxu0 0
  %288 = vmatprep.subr.bf16.mxu0 0
  %289 = vmatpush1.bf16.msra.mxu0 0
  %290 = vmatprep.subr.bf16.mxu0 0
  %291 = vmatpush1.bf16.msra.mxu0 0
  %292 = vmatprep.subr.bf16.mxu0 0
  %293 = vmatpush1.bf16.msra.mxu0 0
  %294 = vmatprep.subr.bf16.mxu0 0
  %295 = vmatpush1.bf16.msra.mxu0 0
  %296 = vmatprep.mubr.bf16.mxu0 0
  %297 = vmatmul.mubr.bf16.gmra.mrb[0].mxu0 %v215
  %v298 = vpop.f32.mrb[0].mxu0
  %v299 = vadd.f32 0.0, %v298
  %v300 = vpop.f32.mrb[0].mxu0
  %v301 = vpop.f32.mrb[0].mxu0
  %v302 = vpop.f32.mrb[0].mxu0
  %303 = vdwg.mxu0
  %v304 = vsub.f32 %v193, %v299
  %v305 = vmul.f32 %v304, %v304
  %v306 = vpack.c.bf16 %v305, %v305
  %307 = vmatprep.subr.bf16.mxu0 0
  %308 = vmatpush1.bf16.msra.mxu0 %v248
  %309 = vmatprep.subr.bf16.mxu0 0
  %310 = vmatpush1.bf16.msra.mxu0 %v249
  %311 = vmatprep.subr.bf16.mxu0 0
  %312 = vmatpush1.bf16.msra.mxu0 %v250
  %313 = vmatprep.subr.bf16.mxu0 0
  %314 = vmatpush1.bf16.msra.mxu0 %v251
  %315 = vmatprep.subr.bf16.mxu0 0
  %316 = vmatpush1.bf16.msra.mxu0 %v252
  %317 = vmatprep.subr.bf16.mxu0 0
  %318 = vmatpush1.bf16.msra.mxu0 %v253
  %319 = vmatprep.subr.bf16.mxu0 0
  %320 = vmatpush1.bf16.msra.mxu0 %v254
  %321 = vmatprep.subr.bf16.mxu0 0
  %322 = vmatpush1.bf16.msra.mxu0 %v255
  %323 = vmatprep.subr.bf16.mxu0 0
  %324 = vmatpush1.bf16.msra.mxu0 0
  %325 = vmatprep.subr.bf16.mxu0 0
  %326 = vmatpush1.bf16.msra.mxu0 0
  %327 = vmatprep.subr.bf16.mxu0 0
  %328 = vmatpush1.bf16.msra.mxu0 0
  %329 = vmatprep.subr.bf16.mxu0 0
  %330 = vmatpush1.bf16.msra.mxu0 0
  %331 = vmatprep.subr.bf16.mxu0 0
  %332 = vmatpush1.bf16.msra.mxu0 0
  %333 = vmatprep.subr.bf16.mxu0 0
  %334 = vmatpush1.bf16.msra.mxu0 0
  %335 = vmatprep.subr.bf16.mxu0 0
  %336 = vmatpush1.bf16.msra.mxu0 0
  %337 = vmatprep.subr.bf16.mxu0 0
  %338 = vmatpush1.bf16.msra.mxu0 0
  %339 = vmatprep.mubr.bf16.mxu0 0
  %340 = vmatmul.mubr.bf16.gmra.mrb[0].mxu0 %v306
  %v341 = vpop.f32.mrb[0].mxu0
  %v342 = vadd.f32 1e-06, %v341
  %v343 = vpop.f32.mrb[0].mxu0
  %v344 = vpop.f32.mrb[0].mxu0
  %v345 = vpop.f32.mrb[0].mxu0
  %346 = vdwg.mxu0
  %v347 = vrsqrt.pop %v342
  %v348 = vmul.f32 %v304, %v347
  %v349 = vlaneseq
  %v350 = vshrl.u32 %v349, 7
  %v351 = vsub.s32 0, %v350
  %v352 = vrot.slane %v198, %v351
  %v353 = vmul.f32 %v348, %v352
  %v354 = vlaneseq
  %v355 = vshrl.u32 %v354, 7
  %v356 = vsub.s32 1, %v355
  %v357 = vrot.slane %v198, %v356
  %v358 = vadd.f32 %v353, %v357
  %v359 = vpack.c.bf16 %v358, %v358
  %360 = vst [vmem:[%s4] sm:$0x3] %v359
  // Predicated region
  $region18: #{light_image_encoder_forward.15} parent=0 // pred_check
    _
  $region19: #{light_image_encoder_forward.15} parent=0 // pred_check_branch
    %362 = sbr.rel (0) target = $region21
  $region20: #{light_image_encoder_forward.15} parent=0 // pred_region
    _
  $region21: #{light_image_encoder_forward.15} parent=0 // pred_fallthru
    _
  // Predicated region
  $region22: #{light_image_encoder_forward.15} parent=0 // pred_check
    _
  $region23: #{light_image_encoder_forward.15} parent=0 // pred_check_branch
    %364 = sbr.rel (0) target = $region25
  $region24: #{light_image_encoder_forward.15} parent=0 // pred_region
    _
  $region25: #{light_image_encoder_forward.15} parent=0 // pred_fallthru
    _

// kernel: light_image_encoder_forward.12
$region0: #{light_image_encoder_forward.12}
  #allocation0 [shape = 'u32[]', space=smem, size = 0x4, offset = 0x4, fixed_abs, tag = 'smem constant byte address 0x4 - core index']
  #allocation1 [shape = 'u32[144,128]{1,0:T(1,128)}', space=vmem, size = 0x12000, scoped, tag = 'internal scratch']
  %s0 = inlined_call_operand.vmem [shape: bf16[8,256], index: 0, kind: input, shape index: {}]
  %s1 = inlined_call_operand.vmem [shape: bf16[256,128], index: 1, kind: input, shape index: {}]
  %s2 = inlined_call_operand.vmem [shape: bf16[128,256], index: 2, kind: input, shape index: {}]
  %s3 = inlined_call_operand.vmem [shape: bf16[256,128], index: 3, kind: input, shape index: {}]
  %s4 = inlined_call_operand.vmem [shape: f32[6,128], index: 4, kind: input, shape index: {}]
  %s5 = inlined_call_operand.vmem [shape: f32[1,256], index: 5, kind: input, shape index: {}]
  %s6 = inlined_call_operand.vmem [shape: bf16[128,128], index: 6, kind: input, shape index: {}]
  %s7 = inlined_call_operand.vmem [shape: bf16[8,128], index: 7, kind: output, shape index: {}]
  %s8 = sld [smem:[#allocation0]]
  $region38: #{light_image_encoder_forward.12} parent=0
    _
  %s10 = ssub.s32 1, %s8
  %s11 = scalar_select 0, %s10, %s8
  // Predicated region
  $region2: #{light_image_encoder_forward.12} parent=0 // pred_check
    _
  $region3: #{light_image_encoder_forward.12} parent=0 // pred_check_branch
    %13 = sbr.rel (0) target = $region5
  $region4: #{light_image_encoder_forward.12} parent=0 // pred_region
    _
  $region5: #{light_image_encoder_forward.12} parent=0 // pred_fallthru
    _
  // Predicated region
  $region6: #{light_image_encoder_forward.12} parent=0 // pred_check
    _
  $region7: #{light_image_encoder_forward.12} parent=0 // pred_check_branch
    %15 = sbr.rel (0) target = $region9
  $region8: #{light_image_encoder_forward.12} parent=0 // pred_region
    _
  $region9: #{light_image_encoder_forward.12} parent=0 // pred_fallthru
    _
  // Predicated region
  $region10: #{light_image_encoder_forward.12} parent=0 // pred_check
    _
  $region11: #{light_image_encoder_forward.12} parent=0 // pred_check_branch
    %17 = sbr.rel (0) target = $region13
  $region12: #{light_image_encoder_forward.12} parent=0 // pred_region
    _
  $region13: #{light_image_encoder_forward.12} parent=0 // pred_fallthru
    _
  // Predicated region
  $region14: #{light_image_encoder_forward.12} parent=0 // pred_check
    _
  $region15: #{light_image_encoder_forward.12} parent=0 // pred_check_branch
    %19 = sbr.rel (0) target = $region17
  $region16: #{light_image_encoder_forward.12} parent=0 // pred_region
    _
  $region17: #{light_image_encoder_forward.12} parent=0 // pred_fallthru
    _
  // Predicated region
  $region18: #{light_image_encoder_forward.12} parent=0 // pred_check
    _
  $region19: #{light_image_encoder_forward.12} parent=0 // pred_check_branch
    %21 = sbr.rel (0) target = $region21
  $region20: #{light_image_encoder_forward.12} parent=0 // pred_region
    _
  $region21: #{light_image_encoder_forward.12} parent=0 // pred_fallthru
    _
  // Predicated region
  $region22: #{light_image_encoder_forward.12} parent=0 // pred_check
    _
  $region23: #{light_image_encoder_forward.12} parent=0 // pred_check_branch
    %23 = sbr.rel (0) target = $region25
  $region24: #{light_image_encoder_forward.12} parent=0 // pred_region
    _
  $region25: #{light_image_encoder_forward.12} parent=0 // pred_fallthru
    _
  // Predicated region
  $region26: #{light_image_encoder_forward.12} parent=0 // pred_check
    _
  $region27: #{light_image_encoder_forward.12} parent=0 // pred_check_branch
    %25 = sbr.rel (0) target = $region29
  $region28: #{light_image_encoder_forward.12} parent=0 // pred_region
    _
  $region29: #{light_image_encoder_forward.12} parent=0 // pred_fallthru
    _
  %v27 = vld [vmem:[%s0] sm:$0xff]
  %v28 = vld [vmem:[%s4] sm:$0x3f]
  %v29 = vld [vmem:[%s6] sm:$0xf]
  %v30 = vld [vmem:[%s6 + $0x4] sm:$0xf]
  %v31 = vld [vmem:[%s6 + $0x8] sm:$0xf]
  %v32 = vld [vmem:[%s6 + $0xc] sm:$0xf]
  %v33 = vld [vmem:[%s6 + $0x10] sm:$0xf]
  %v34 = vld [vmem:[%s6 + $0x14] sm:$0xf]
  %v35 = vld [vmem:[%s6 + $0x18] sm:$0xf]
  %v36 = vld [vmem:[%s6 + $0x1c] sm:$0xf]
  %v37 = vld [vmem:[%s6 + $0x20] sm:$0xf]
  %v38 = vld [vmem:[%s6 + $0x24] sm:$0xf]
  %v39 = vld [vmem:[%s6 + $0x28] sm:$0xf]
  %v40 = vld [vmem:[%s6 + $0x2c] sm:$0xf]
  %v41 = vld [vmem:[%s6 + $0x30] sm:$0xf]
  %v42 = vld [vmem:[%s6 + $0x34] sm:$0xf]
  %v43 = vld [vmem:[%s6 + $0x38] sm:$0xf]
  %v44 = vld [vmem:[%s6 + $0x3c] sm:$0xf]
  %v45 = vld [vmem:[%s1] sm:$0xf]
  %v46 = vld [vmem:[%s1 + $0x4] sm:$0xf]
  %v47 = vld [vmem:[%s1 + $0x8] sm:$0xf]
  %v48 = vld [vmem:[%s1 + $0xc] sm:$0xf]
  %v49 = vld [vmem:[%s1 + $0x10] sm:$0xf]
  %v50 = vld [vmem:[%s1 + $0x14] sm:$0xf]
  %v51 = vld [vmem:[%s1 + $0x18] sm:$0xf]
  %v52 = vld [vmem:[%s1 + $0x1c] sm:$0xf]
  %v53 = vld [vmem:[%s1 + $0x20] sm:$0xf]
  %v54 = vld [vmem:[%s1 + $0x24] sm:$0xf]
  %v55 = vld [vmem:[%s1 + $0x28] sm:$0xf]
  %v56 = vld [vmem:[%s1 + $0x2c] sm:$0xf]
  %v57 = vld [vmem:[%s1 + $0x30] sm:$0xf]
  %v58 = vld [vmem:[%s1 + $0x34] sm:$0xf]
  %v59 = vld [vmem:[%s1 + $0x38] sm:$0xf]
  %v60 = vld [vmem:[%s1 + $0x3c] sm:$0xf]
  %v61 = vld [vmem:[%s1 + $0x40] sm:$0xf]
  %v62 = vld [vmem:[%s1 + $0x44] sm:$0xf]
  %v63 = vld [vmem:[%s1 + $0x48] sm:$0xf]
  %v64 = vld [vmem:[%s1 + $0x4c] sm:$0xf]
  %v65 = vld [vmem:[%s1 + $0x50] sm:$0xf]
  %v66 = vld [vmem:[%s1 + $0x54] sm:$0xf]
  %v67 = vld [vmem:[%s1 + $0x58] sm:$0xf]
  %v68 = vld [vmem:[%s1 + $0x5c] sm:$0xf]
  %v69 = vld [vmem:[%s1 + $0x60] sm:$0xf]
  %v70 = vld [vmem:[%s1 + $0x64] sm:$0xf]
  %v71 = vld [vmem:[%s1 + $0x68] sm:$0xf]
  %v72 = vld [vmem:[%s1 + $0x6c] sm:$0xf]
  %v73 = vld [vmem:[%s1 + $0x70] sm:$0xf]
  %v74 = vld [vmem:[%s1 + $0x74] sm:$0xf]
  %v75 = vld [vmem:[%s1 + $0x78] sm:$0xf]
  %v76 = vld [vmem:[%s1 + $0x7c] sm:$0xf]
  %v77 = vlaneseq
  %v78 = vshrl.u32 %v77, 7
  %v79 = vsub.s32 0, %v78
  %v80 = vrot.slane %v28, %v79
  %v82 = vunpack.c.l.b16 %v27
  %v83 = vunpack.c.h.b16 %v27
  %v84 = vpack.c.b16 %v82, %v82
  %v85 = vpack.c.b16 %v83, %v83
  %v120 = vunpack.c.l.b16 %v45
  %v121 = vunpack.c.l.b16 %v46
  %v122 = vunpack.c.l.b16 %v47
  %v123 = vunpack.c.l.b16 %v48
  %v124 = vunpack.c.l.b16 %v49
  %v125 = vunpack.c.l.b16 %v50
  %v126 = vunpack.c.l.b16 %v51
  %v127 = vunpack.c.l.b16 %v52
  %v128 = vunpack.c.l.b16 %v53
  %v129 = vunpack.c.l.b16 %v54
  %v130 = vunpack.c.l.b16 %v55
  %v131 = vunpack.c.l.b16 %v56
  %v132 = vunpack.c.l.b16 %v57
  %v133 = vunpack.c.l.b16 %v58
  %v134 = vunpack.c.l.b16 %v59
  %v135 = vunpack.c.l.b16 %v60
  %v136 = vunpack.c.l.b16 %v61
  %v137 = vunpack.c.l.b16 %v62
  %v138 = vunpack.c.l.b16 %v63
  %v139 = vunpack.c.l.b16 %v64
  %v140 = vunpack.c.l.b16 %v65
  %v141 = vunpack.c.l.b16 %v66
  %v142 = vunpack.c.l.b16 %v67
  %v143 = vunpack.c.l.b16 %v68
  %v144 = vunpack.c.l.b16 %v69
  %v145 = vunpack.c.l.b16 %v70
  %v146 = vunpack.c.l.b16 %v71
  %v147 = vunpack.c.l.b16 %v72
  %v148 = vunpack.c.l.b16 %v73
  %v149 = vunpack.c.l.b16 %v74
  %v150 = vunpack.c.l.b16 %v75
  %v151 = vunpack.c.l.b16 %v76
  %v152 = vpack.c.b16 %v121, %v120
  %v153 = vpack.c.b16 %v123, %v122
  %v154 = vpack.c.b16 %v125, %v124
  %v155 = vpack.c.b16 %v127, %v126
  %v156 = vpack.c.b16 %v129, %v128
  %v157 = vpack.c.b16 %v131, %v130
  %v158 = vpack.c.b16 %v133, %v132
  %v159 = vpack.c.b16 %v135, %v134
  %v160 = vpack.c.b16 %v137, %v136
  %v161 = vpack.c.b16 %v139, %v138
  %v162 = vpack.c.b16 %v141, %v140
  %v163 = vpack.c.b16 %v143, %v142
  %v164 = vpack.c.b16 %v145, %v144
  %v165 = vpack.c.b16 %v147, %v146
  %v166 = vpack.c.b16 %v149, %v148
  %v167 = vpack.c.b16 %v151, %v150
  %184 = vmatprep.subr.bf16.mxu0 0
  %185 = vmatpush1.bf16.msra.mxu0 %v152
  %186 = vmatprep.subr.bf16.mxu0 0
  %187 = vmatpush1.bf16.msra.mxu0 %v153
  %188 = vmatprep.subr.bf16.mxu0 0
  %189 = vmatpush1.bf16.msra.mxu0 %v154
  %190 = vmatprep.subr.bf16.mxu0 0
  %191 = vmatpush1.bf16.msra.mxu0 %v155
  %192 = vmatprep.subr.bf16.mxu0 0
  %193 = vmatpush1.bf16.msra.mxu0 %v156
  %194 = vmatprep.subr.bf16.mxu0 0
  %195 = vmatpush1.bf16.msra.mxu0 %v157
  %196 = vmatprep.subr.bf16.mxu0 0
  %197 = vmatpush1.bf16.msra.mxu0 %v158
  %198 = vmatprep.subr.bf16.mxu0 0
  %199 = vmatpush1.bf16.msra.mxu0 %v159
  %200 = vmatprep.subr.bf16.mxu0 0
  %201 = vmatpush1.bf16.msra.mxu0 %v160
  %202 = vmatprep.subr.bf16.mxu0 0
  %203 = vmatpush1.bf16.msra.mxu0 %v161
  %204 = vmatprep.subr.bf16.mxu0 0
  %205 = vmatpush1.bf16.msra.mxu0 %v162
  %206 = vmatprep.subr.bf16.mxu0 0
  %207 = vmatpush1.bf16.msra.mxu0 %v163
  %208 = vmatprep.subr.bf16.mxu0 0
  %209 = vmatpush1.bf16.msra.mxu0 %v164
  %210 = vmatprep.subr.bf16.mxu0 0
  %211 = vmatpush1.bf16.msra.mxu0 %v165
  %212 = vmatprep.subr.bf16.mxu0 0
  %213 = vmatpush1.bf16.msra.mxu0 %v166
  %214 = vmatprep.subr.bf16.mxu0 0
  %215 = vmatpush1.bf16.msra.mxu0 %v167
  %216 = vmatprep.mubr.bf16.mxu0 %v85
  %217 = vmatmul.mubr.bf16.gmra.mrb[0].mxu0 %v84
  %v218 = vpop.f32.mrb[0].mxu0
  %v219 = vadd.f32 %v80, %v218
  %v220 = vpop.f32.mrb[0].mxu0
  %v221 = vpop.f32.mrb[0].mxu0
  %v222 = vpop.f32.mrb[0].mxu0
  %223 = vdwg.mxu0
  %v224 = vpack.c.bf16 %v219, %v219
  %v241 = vunpack.c.l.b16 %v29
  %v242 = vunpack.c.l.b16 %v30
  %v243 = vunpack.c.l.b16 %v31
  %v244 = vunpack.c.l.b16 %v32
  %v245 = vunpack.c.l.b16 %v33
  %v246 = vunpack.c.l.b16 %v34
  %v247 = vunpack.c.l.b16 %v35
  %v248 = vunpack.c.l.b16 %v36
  %v249 = vunpack.c.l.b16 %v37
  %v250 = vunpack.c.l.b16 %v38
  %v251 = vunpack.c.l.b16 %v39
  %v252 = vunpack.c.l.b16 %v40
  %v253 = vunpack.c.l.b16 %v41
  %v254 = vunpack.c.l.b16 %v42
  %v255 = vunpack.c.l.b16 %v43
  %v256 = vunpack.c.l.b16 %v44
  %v257 = vpack.c.b16 %v242, %v241
  %v258 = vpack.c.b16 %v244, %v243
  %v259 = vpack.c.b16 %v246, %v245
  %v260 = vpack.c.b16 %v248, %v247
  %v261 = vpack.c.b16 %v250, %v249
  %v262 = vpack.c.b16 %v252, %v251
  %v263 = vpack.c.b16 %v254, %v253
  %v264 = vpack.c.b16 %v256, %v255
  %273 = vmatprep.subr.bf16.mxu0 0
  %274 = vmatpush1.bf16.msra.mxu0 %v257
  %275 = vmatprep.subr.bf16.mxu0 0
  %276 = vmatpush1.bf16.msra.mxu0 %v258
  %277 = vmatprep.subr.bf16.mxu0 0
  %278 = vmatpush1.bf16.msra.mxu0 %v259
  %279 = vmatprep.subr.bf16.mxu0 0
  %280 = vmatpush1.bf16.msra.mxu0 %v260
  %281 = vmatprep.subr.bf16.mxu0 0
  %282 = vmatpush1.bf16.msra.mxu0 %v261
  %283 = vmatprep.subr.bf16.mxu0 0
  %284 = vmatpush1.bf16.msra.mxu0 %v262
  %285 = vmatprep.subr.bf16.mxu0 0
  %286 = vmatpush1.bf16.msra.mxu0 %v263
  %287 = vmatprep.subr.bf16.mxu0 0
  %288 = vmatpush1.bf16.msra.mxu0 %v264
  %289 = vmatprep.subr.bf16.mxu0 0
  %290 = vmatpush1.bf16.msra.mxu0 0
  %291 = vmatprep.subr.bf16.mxu0 0
  %292 = vmatpush1.bf16.msra.mxu0 0
  %293 = vmatprep.subr.bf16.mxu0 0
  %294 = vmatpush1.bf16.msra.mxu0 0
  %295 = vmatprep.subr.bf16.mxu0 0
  %296 = vmatpush1.bf16.msra.mxu0 0
  %297 = vmatprep.subr.bf16.mxu0 0
  %298 = vmatpush1.bf16.msra.mxu0 0
  %299 = vmatprep.subr.bf16.mxu0 0
  %300 = vmatpush1.bf16.msra.mxu0 0
  %301 = vmatprep.subr.bf16.mxu0 0
  %302 = vmatpush1.bf16.msra.mxu0 0
  %303 = vmatprep.subr.bf16.mxu0 0
  %304 = vmatpush1.bf16.msra.mxu0 0
  %305 = vmatprep.mubr.bf16.mxu0 0
  %306 = vmatmul.mubr.bf16.gmra.mrb[0].mxu0 %v224
  %v307 = vpop.f32.mrb[0].mxu0
  %v308 = vadd.f32 0.0, %v307
  %v309 = vpop.f32.mrb[0].mxu0
  %v310 = vpop.f32.mrb[0].mxu0
  %v311 = vpop.f32.mrb[0].mxu0
  %312 = vdwg.mxu0
  %v313 = vsub.f32 %v219, %v308
  %v314 = vmul.f32 %v313, %v313
  %v315 = vpack.c.bf16 %v314, %v314
  %316 = vmatprep.subr.bf16.mxu0 0
  %317 = vmatpush1.bf16.msra.mxu0 %v257
  %318 = vmatprep.subr.bf16.mxu0 0
  %319 = vmatpush1.bf16.msra.mxu0 %v258
  %320 = vmatprep.subr.bf16.mxu0 0
  %321 = vmatpush1.bf16.msra.mxu0 %v259
  %322 = vmatprep.subr.bf16.mxu0 0
  %323 = vmatpush1.bf16.msra.mxu0 %v260
  %324 = vmatprep.subr.bf16.mxu0 0
  %325 = vmatpush1.bf16.msra.mxu0 %v261
  %326 = vmatprep.subr.bf16.mxu0 0
  %327 = vmatpush1.bf16.msra.mxu0 %v262
  %328 = vmatprep.subr.bf16.mxu0 0
  %329 = vmatpush1.bf16.msra.mxu0 %v263
  %330 = vmatprep.subr.bf16.mxu0 0
  %331 = vmatpush1.bf16.msra.mxu0 %v264
  %332 = vmatprep.subr.bf16.mxu0 0
  %333 = vmatpush1.bf16.msra.mxu0 0
  %334 = vmatprep.subr.bf16.mxu0 0
  %335 = vmatpush1.bf16.msra.mxu0 0
  %336 = vmatprep.subr.bf16.mxu0 0
  %337 = vmatpush1.bf16.msra.mxu0 0
  %338 = vmatprep.subr.bf16.mxu0 0
  %339 = vmatpush1.bf16.msra.mxu0 0
  %340 = vmatprep.subr.bf16.mxu0 0
  %341 = vmatpush1.bf16.msra.mxu0 0
  %342 = vmatprep.subr.bf16.mxu0 0
  %343 = vmatpush1.bf16.msra.mxu0 0
  %344 = vmatprep.subr.bf16.mxu0 0
  %345 = vmatpush1.bf16.msra.mxu0 0
  %346 = vmatprep.subr.bf16.mxu0 0
  %347 = vmatpush1.bf16.msra.mxu0 0
  %348 = vmatprep.mubr.bf16.mxu0 0
  %349 = vmatmul.mubr.bf16.gmra.mrb[0].mxu0 %v315
  %v350 = vpop.f32.mrb[0].mxu0
  %v351 = vadd.f32 1e-06, %v350
  %v352 = vpop.f32.mrb[0].mxu0
  %v353 = vpop.f32.mrb[0].mxu0
  %v354 = vpop.f32.mrb[0].mxu0
  %355 = vdwg.mxu0
  %v356 = vrsqrt.pop %v351
  %v357 = vmul.f32 %v313, %v356
  %v358 = vlaneseq
  %v359 = vshrl.u32 %v358, 7
  %v360 = vsub.s32 1, %v359
  %v361 = vrot.slane %v28, %v360
  %v362 = vmul.f32 %v357, %v361
  %v363 = vlaneseq
  %v364 = vshrl.u32 %v363, 7
  %v365 = vsub.s32 2, %v364
  %v366 = vrot.slane %v28, %v365
  %v367 = vadd.f32 %v362, %v366
  %v368 = vpack.c.bf16 %v367, %v367
  %369 = vmatprep.subr.bf16.mxu0 0
  %370 = vmatpush1.bf16.msra.mxu0 %v257
  %371 = vmatprep.subr.bf16.mxu0 0
  %372 = vmatpush1.bf16.msra.mxu0 %v258
  %373 = vmatprep.subr.bf16.mxu0 0
  %374 = vmatpush1.bf16.msra.mxu0 %v259
  %375 = vmatprep.subr.bf16.mxu0 0
  %376 = vmatpush1.bf16.msra.mxu0 %v260
  %377 = vmatprep.subr.bf16.mxu0 0
  %378 = vmatpush1.bf16.msra.mxu0 %v261
  %379 = vmatprep.subr.bf16.mxu0 0
  %380 = vmatpush1.bf16.msra.mxu0 %v262
  %381 = vmatprep.subr.bf16.mxu0 0
  %382 = vmatpush1.bf16.msra.mxu0 %v263
  %383 = vmatprep.subr.bf16.mxu0 0
  %384 = vmatpush1.bf16.msra.mxu0 %v264
  %385 = vmatprep.subr.bf16.mxu0 0
  %386 = vmatpush1.bf16.msra.mxu0 0
  %387 = vmatprep.subr.bf16.mxu0 0
  %388 = vmatpush1.bf16.msra.mxu0 0
  %389 = vmatprep.subr.bf16.mxu0 0
  %390 = vmatpush1.bf16.msra.mxu0 0
  %391 = vmatprep.subr.bf16.mxu0 0
  %392 = vmatpush1.bf16.msra.mxu0 0
  %393 = vmatprep.subr.bf16.mxu0 0
  %394 = vmatpush1.bf16.msra.mxu0 0
  %395 = vmatprep.subr.bf16.mxu0 0
  %396 = vmatpush1.bf16.msra.mxu0 0
  %397 = vmatprep.subr.bf16.mxu0 0
  %398 = vmatpush1.bf16.msra.mxu0 0
  %399 = vmatprep.subr.bf16.mxu0 0
  %400 = vmatpush1.bf16.msra.mxu0 0
  %401 = vmatprep.mubr.bf16.mxu0 0
  %402 = vmatmul.mubr.bf16.gmra.mrb[0].mxu0 %v368
  %v403 = vpop.f32.mrb[0].mxu0
  %v404 = vadd.f32 0.0, %v403
  %v405 = vpop.f32.mrb[0].mxu0
  %v406 = vpop.f32.mrb[0].mxu0
  %v407 = vpop.f32.mrb[0].mxu0
  %408 = vdwg.mxu0
  %v409 = vsub.f32 %v367, %v404
  %v410 = vmul.f32 %v409, %v409
  %v411 = vpack.c.bf16 %v410, %v410
  %412 = vmatprep.subr.bf16.mxu0 0
  %413 = vmatpush1.bf16.msra.mxu0 %v257
  %414 = vmatprep.subr.bf16.mxu0 0
  %415 = vmatpush1.bf16.msra.mxu0 %v258
  %416 = vmatprep.subr.bf16.mxu0 0
  %417 = vmatpush1.bf16.msra.mxu0 %v259
  %418 = vmatprep.subr.bf16.mxu0 0
  %419 = vmatpush1.bf16.msra.mxu0 %v260
  %420 = vmatprep.subr.bf16.mxu0 0
  %421 = vmatpush1.bf16.msra.mxu0 %v261
  %422 = vmatprep.subr.bf16.mxu0 0
  %423 = vmatpush1.bf16.msra.mxu0 %v262
  %424 = vmatprep.subr.bf16.mxu0 0
  %425 = vmatpush1.bf16.msra.mxu0 %v263
  %426 = vmatprep.subr.bf16.mxu0 0
  %427 = vmatpush1.bf16.msra.mxu0 %v264
  %428 = vmatprep.subr.bf16.mxu0 0
  %429 = vmatpush1.bf16.msra.mxu0 0
  %430 = vmatprep.subr.bf16.mxu0 0
  %431 = vmatpush1.bf16.msra.mxu0 0
  %432 = vmatprep.subr.bf16.mxu0 0
  %433 = vmatpush1.bf16.msra.mxu0 0
  %434 = vmatprep.subr.bf16.mxu0 0
  %435 = vmatpush1.bf16.msra.mxu0 0
  %436 = vmatprep.subr.bf16.mxu0 0
  %437 = vmatpush1.bf16.msra.mxu0 0
  %438 = vmatprep.subr.bf16.mxu0 0
  %439 = vmatpush1.bf16.msra.mxu0 0
  %440 = vmatprep.subr.bf16.mxu0 0
  %441 = vmatpush1.bf16.msra.mxu0 0
  %442 = vmatprep.subr.bf16.mxu0 0
  %443 = vmatpush1.bf16.msra.mxu0 0
  %444 = vmatprep.mubr.bf16.mxu0 0
  %445 = vmatmul.mubr.bf16.gmra.mrb[0].mxu0 %v411
  %v446 = vpop.f32.mrb[0].mxu0
  %v447 = vadd.f32 1e-06, %v446
  %v448 = vpop.f32.mrb[0].mxu0
  %v449 = vpop.f32.mrb[0].mxu0
  %v450 = vpop.f32.mrb[0].mxu0
  %451 = vdwg.mxu0
  %v452 = vrsqrt.pop %v447
  %v453 = vmul.f32 %v409, %v452
  %v454 = vlaneseq
  %v455 = vshrl.u32 %v454, 7
  %v456 = vsub.s32 3, %v455
  %v457 = vrot.slane %v28, %v456
  %v458 = vmul.f32 %v453, %v457
  %v459 = vlaneseq
  %v460 = vshrl.u32 %v459, 7
  %v461 = vsub.s32 4, %v460
  %v462 = vrot.slane %v28, %v461
  %v463 = vadd.f32 %v458, %v462
  %v464 = vpack.c.bf16 %v463, %v463
  %v465 = vld [vmem:[%s2] sm:$0xff]
  %v466 = vld [vmem:[%s2 + $0x8] sm:$0xff]
  %v467 = vld [vmem:[%s2 + $0x10] sm:$0xff]
  %v468 = vld [vmem:[%s2 + $0x18] sm:$0xff]
  %v469 = vld [vmem:[%s2 + $0x20] sm:$0xff]
  %v470 = vld [vmem:[%s2 + $0x28] sm:$0xff]
  %v471 = vld [vmem:[%s2 + $0x30] sm:$0xff]
  %v472 = vld [vmem:[%s2 + $0x38] sm:$0xff]
  %v473 = vld [vmem:[%s2 + $0x40] sm:$0xff]
  %v474 = vld [vmem:[%s2 + $0x48] sm:$0xff]
  %v475 = vld [vmem:[%s2 + $0x50] sm:$0xff]
  %v476 = vld [vmem:[%s2 + $0x58] sm:$0xff]
  %v477 = vld [vmem:[%s2 + $0x60] sm:$0xff]
  %v478 = vld [vmem:[%s2 + $0x68] sm:$0xff]
  %v479 = vld [vmem:[%s2 + $0x70] sm:$0xff]
  %v480 = vld [vmem:[%s2 + $0x78] sm:$0xff]
  %v481 = vld [vmem:[%s5] sm:$0x3]
  %v483 = vlaneseq
  %v484 = vshrl.u32 %v483, 7
  %v485 = vsub.s32 0, %v484
  %v486 = vrot.slane %v481, %v485
  %v487 = vlaneseq
  %v488 = vshrl.u32 %v487, 7
  %v489 = vsub.s32 1, %v488
  %v490 = vrot.slane %v481, %v489
  %v509 = vunpack.c.l.b16 %v465
  %v510 = vunpack.c.h.b16 %v465
  %v511 = vunpack.c.l.b16 %v466
  %v512 = vunpack.c.h.b16 %v466
  %v513 = vunpack.c.l.b16 %v467
  %v514 = vunpack.c.h.b16 %v467
  %v515 = vunpack.c.l.b16 %v468
  %v516 = vunpack.c.h.b16 %v468
  %v517 = vunpack.c.l.b16 %v469
  %v518 = vunpack.c.h.b16 %v469
  %v519 = vunpack.c.l.b16 %v470
  %v520 = vunpack.c.h.b16 %v470
  %v521 = vunpack.c.l.b16 %v471
  %v522 = vunpack.c.h.b16 %v471
  %v523 = vunpack.c.l.b16 %v472
  %v524 = vunpack.c.h.b16 %v472
  %v525 = vunpack.c.l.b16 %v473
  %v526 = vunpack.c.h.b16 %v473
  %v527 = vunpack.c.l.b16 %v474
  %v528 = vunpack.c.h.b16 %v474
  %v529 = vunpack.c.l.b16 %v475
  %v530 = vunpack.c.h.b16 %v475
  %v531 = vunpack.c.l.b16 %v476
  %v532 = vunpack.c.h.b16 %v476
  %v533 = vunpack.c.l.b16 %v477
  %v534 = vunpack.c.h.b16 %v477
  %v535 = vunpack.c.l.b16 %v478
  %v536 = vunpack.c.h.b16 %v478
  %v537 = vunpack.c.l.b16 %v479
  %v538 = vunpack.c.h.b16 %v479
  %v539 = vunpack.c.l.b16 %v480
  %v540 = vunpack.c.h.b16 %v480
  %v541 = vpack.c.b16 %v511, %v509
  %v542 = vpack.c.b16 %v512, %v510
  %v543 = vpack.c.b16 %v515, %v513
  %v544 = vpack.c.b16 %v516, %v514
  %v545 = vpack.c.b16 %v519, %v517
  %v546 = vpack.c.b16 %v520, %v518
  %v547 = vpack.c.b16 %v523, %v521
  %v548 = vpack.c.b16 %v524, %v522
  %v549 = vpack.c.b16 %v527, %v525
  %v550 = vpack.c.b16 %v528, %v526
  %v551 = vpack.c.b16 %v531, %v529
  %v552 = vpack.c.b16 %v532, %v530
  %v553 = vpack.c.b16 %v535, %v533
  %v554 = vpack.c.b16 %v536, %v534
  %v555 = vpack.c.b16 %v539, %v537
  %v556 = vpack.c.b16 %v540, %v538
  %573 = vmatprep.subr.bf16.mxu0 %v542
  %574 = vmatpush1.bf16.msra.mxu0 %v541
  %575 = vmatprep.subr.bf16.mxu0 %v544
  %576 = vmatpush1.bf16.msra.mxu0 %v543
  %577 = vmatprep.subr.bf16.mxu0 %v546
  %578 = vmatpush1.bf16.msra.mxu0 %v545
  %579 = vmatprep.subr.bf16.mxu0 %v548
  %580 = vmatpush1.bf16.msra.mxu0 %v547
  %581 = vmatprep.subr.bf16.mxu0 %v550
  %582 = vmatpush1.bf16.msra.mxu0 %v549
  %583 = vmatprep.subr.bf16.mxu0 %v552
  %584 = vmatpush1.bf16.msra.mxu0 %v551
  %585 = vmatprep.subr.bf16.mxu0 %v554
  %586 = vmatpush1.bf16.msra.mxu0 %v553
  %587 = vmatprep.subr.bf16.mxu0 %v556
  %588 = vmatpush1.bf16.msra.mxu0 %v555
  %589 = vmatprep.subr.bf16.mxu0 0
  %590 = vmatpush1.bf16.msra.mxu0 0
  %591 = vmatprep.subr.bf16.mxu0 0
  %592 = vmatpush1.bf16.msra.mxu0 0
  %593 = vmatprep.subr.bf16.mxu0 0
  %594 = vmatpush1.bf16.msra.mxu0 0
  %595 = vmatprep.subr.bf16.mxu0 0
  %596 = vmatpush1.bf16.msra.mxu0 0
  %597 = vmatprep.subr.bf16.mxu0 0
  %598 = vmatpush1.bf16.msra.mxu0 0
  %599 = vmatprep.subr.bf16.mxu0 0
  %600 = vmatpush1.bf16.msra.mxu0 0
  %601 = vmatprep.subr.bf16.mxu0 0
  %602 = vmatpush1.bf16.msra.mxu0 0
  %603 = vmatprep.subr.bf16.mxu0 0
  %604 = vmatpush1.bf16.msra.mxu0 0
  %605 = vmatprep.mubr.bf16.mxu0 0
  %606 = vmatmul.mubr.bf16.gmra.mrb[0].mxu0 %v464
  %v607 = vpop.f32.mrb[0].mxu0
  %v608 = vadd.f32 %v486, %v607
  %v609 = vpop.f32.mrb[0].mxu0
  %v610 = vadd.f32 %v490, %v609
  %v611 = vpop.f32.mrb[0].mxu0
  %v612 = vpop.f32.mrb[0].mxu0
  %613 = vdwg.mxu0
  %v614 = vmul.f32 %v608, %v608
  %v615 = vmul.f32 %v610, %v610
  %v616 = vmul.f32 %v608, %v614
  %v617 = vmul.f32 %v610, %v615
  %v618 = vmul.f32 %v616, 0.044715
  %v619 = vmul.f32 %v617, 0.044715
  %v620 = vadd.f32 %v608, %v618
  %v621 = vadd.f32 %v610, %v619
  %v622 = vmul.f32 %v620, 0.7978846
  %v623 = vmul.f32 %v621, 0.7978846
  %v624 = vtanh.pop %v622
  %v625 = vtanh.pop %v623
  %v626 = vadd.f32 %v624, 1.0
  %v627 = vadd.f32 %v625, 1.0
  %v628 = vmul.f32 %v626, 0.5
  %v629 = vmul.f32 %v627, 0.5
  %v630 = vmul.f32 %v608, %v628
  %v631 = vmul.f32 %v610, %v629
  %v632 = vpack.c.bf16 %v630, %v630
  %v633 = vpack.c.bf16 %v631, %v631
  %v634 = vld [vmem:[%s3] sm:$0xf]
  %v635 = vld [vmem:[%s3 + $0x4] sm:$0xf]
  %v636 = vld [vmem:[%s3 + $0x8] sm:$0xf]
  %v637 = vld [vmem:[%s3 + $0xc] sm:$0xf]
  %v638 = vld [vmem:[%s3 + $0x10] sm:$0xf]
  %v639 = vld [vmem:[%s3 + $0x14] sm:$0xf]
  %v640 = vld [vmem:[%s3 + $0x18] sm:$0xf]
  %v641 = vld [vmem:[%s3 + $0x1c] sm:$0xf]
  %v642 = vld [vmem:[%s3 + $0x20] sm:$0xf]
  %v643 = vld [vmem:[%s3 + $0x24] sm:$0xf]
  %v644 = vld [vmem:[%s3 + $0x28] sm:$0xf]
  %v645 = vld [vmem:[%s3 + $0x2c] sm:$0xf]
  %v646 = vld [vmem:[%s3 + $0x30] sm:$0xf]
  %v647 = vld [vmem:[%s3 + $0x34] sm:$0xf]
  %v648 = vld [vmem:[%s3 + $0x38] sm:$0xf]
  %v649 = vld [vmem:[%s3 + $0x3c] sm:$0xf]
  %v650 = vld [vmem:[%s3 + $0x40] sm:$0xf]
  %v651 = vld [vmem:[%s3 + $0x44] sm:$0xf]
  %v652 = vld [vmem:[%s3 + $0x48] sm:$0xf]
  %v653 = vld [vmem:[%s3 + $0x4c] sm:$0xf]
  %v654 = vld [vmem:[%s3 + $0x50] sm:$0xf]
  %v655 = vld [vmem:[%s3 + $0x54] sm:$0xf]
  %v656 = vld [vmem:[%s3 + $0x58] sm:$0xf]
  %v657 = vld [vmem:[%s3 + $0x5c] sm:$0xf]
  %v658 = vld [vmem:[%s3 + $0x60] sm:$0xf]
  %v659 = vld [vmem:[%s3 + $0x64] sm:$0xf]
  %v660 = vld [vmem:[%s3 + $0x68] sm:$0xf]
  %v661 = vld [vmem:[%s3 + $0x6c] sm:$0xf]
  %v662 = vld [vmem:[%s3 + $0x70] sm:$0xf]
  %v663 = vld [vmem:[%s3 + $0x74] sm:$0xf]
  %v664 = vld [vmem:[%s3 + $0x78] sm:$0xf]
  %v665 = vld [vmem:[%s3 + $0x7c] sm:$0xf]
  %v666 = vlaneseq
  %v667 = vshrl.u32 %v666, 7
  %v668 = vsub.s32 5, %v667
  %v669 = vrot.slane %v28, %v668
  %v702 = vunpack.c.l.b16 %v634
  %v703 = vunpack.c.l.b16 %v635
  %v704 = vunpack.c.l.b16 %v636
  %v705 = vunpack.c.l.b16 %v637
  %v706 = vunpack.c.l.b16 %v638
  %v707 = vunpack.c.l.b16 %v639
  %v708 = vunpack.c.l.b16 %v640
  %v709 = vunpack.c.l.b16 %v641
  %v710 = vunpack.c.l.b16 %v642
  %v711 = vunpack.c.l.b16 %v643
  %v712 = vunpack.c.l.b16 %v644
  %v713 = vunpack.c.l.b16 %v645
  %v714 = vunpack.c.l.b16 %v646
  %v715 = vunpack.c.l.b16 %v647
  %v716 = vunpack.c.l.b16 %v648
  %v717 = vunpack.c.l.b16 %v649
  %v718 = vunpack.c.l.b16 %v650
  %v719 = vunpack.c.l.b16 %v651
  %v720 = vunpack.c.l.b16 %v652
  %v721 = vunpack.c.l.b16 %v653
  %v722 = vunpack.c.l.b16 %v654
  %v723 = vunpack.c.l.b16 %v655
  %v724 = vunpack.c.l.b16 %v656
  %v725 = vunpack.c.l.b16 %v657
  %v726 = vunpack.c.l.b16 %v658
  %v727 = vunpack.c.l.b16 %v659
  %v728 = vunpack.c.l.b16 %v660
  %v729 = vunpack.c.l.b16 %v661
  %v730 = vunpack.c.l.b16 %v662
  %v731 = vunpack.c.l.b16 %v663
  %v732 = vunpack.c.l.b16 %v664
  %v733 = vunpack.c.l.b16 %v665
  %v734 = vpack.c.b16 %v703, %v702
  %v735 = vpack.c.b16 %v705, %v704
  %v736 = vpack.c.b16 %v707, %v706
  %v737 = vpack.c.b16 %v709, %v708
  %v738 = vpack.c.b16 %v711, %v710
  %v739 = vpack.c.b16 %v713, %v712
  %v740 = vpack.c.b16 %v715, %v714
  %v741 = vpack.c.b16 %v717, %v716
  %v742 = vpack.c.b16 %v719, %v718
  %v743 = vpack.c.b16 %v721, %v720
  %v744 = vpack.c.b16 %v723, %v722
  %v745 = vpack.c.b16 %v725, %v724
  %v746 = vpack.c.b16 %v727, %v726
  %v747 = vpack.c.b16 %v729, %v728
  %v748 = vpack.c.b16 %v731, %v730
  %v749 = vpack.c.b16 %v733, %v732
  %766 = vmatprep.subr.bf16.mxu0 0
  %767 = vmatpush1.bf16.msra.mxu0 %v734
  %768 = vmatprep.subr.bf16.mxu0 0
  %769 = vmatpush1.bf16.msra.mxu0 %v735
  %770 = vmatprep.subr.bf16.mxu0 0
  %771 = vmatpush1.bf16.msra.mxu0 %v736
  %772 = vmatprep.subr.bf16.mxu0 0
  %773 = vmatpush1.bf16.msra.mxu0 %v737
  %774 = vmatprep.subr.bf16.mxu0 0
  %775 = vmatpush1.bf16.msra.mxu0 %v738
  %776 = vmatprep.subr.bf16.mxu0 0
  %777 = vmatpush1.bf16.msra.mxu0 %v739
  %778 = vmatprep.subr.bf16.mxu0 0
  %779 = vmatpush1.bf16.msra.mxu0 %v740
  %780 = vmatprep.subr.bf16.mxu0 0
  %781 = vmatpush1.bf16.msra.mxu0 %v741
  %782 = vmatprep.subr.bf16.mxu0 0
  %783 = vmatpush1.bf16.msra.mxu0 %v742
  %784 = vmatprep.subr.bf16.mxu0 0
  %785 = vmatpush1.bf16.msra.mxu0 %v743
  %786 = vmatprep.subr.bf16.mxu0 0
  %787 = vmatpush1.bf16.msra.mxu0 %v744
  %788 = vmatprep.subr.bf16.mxu0 0
  %789 = vmatpush1.bf16.msra.mxu0 %v745
  %790 = vmatprep.subr.bf16.mxu0 0
  %791 = vmatpush1.bf16.msra.mxu0 %v746
  %792 = vmatprep.subr.bf16.mxu0 0
  %793 = vmatpush1.bf16.msra.mxu0 %v747
  %794 = vmatprep.subr.bf16.mxu0 0
  %795 = vmatpush1.bf16.msra.mxu0 %v748
  %796 = vmatprep.subr.bf16.mxu0 0
  %797 = vmatpush1.bf16.msra.mxu0 %v749
  %798 = vmatprep.mubr.bf16.mxu0 %v633
  %799 = vmatmul.mubr.bf16.gmra.mrb[0].mxu0 %v632
  %v800 = vpop.f32.mrb[0].mxu0
  %v801 = vadd.f32 %v669, %v800
  %v802 = vpop.f32.mrb[0].mxu0
  %v803 = vpop.f32.mrb[0].mxu0
  %v804 = vpop.f32.mrb[0].mxu0
  %805 = vdwg.mxu0
  %v806 = vadd.f32 %v801, %v367
  %v807 = vpack.c.bf16 %v806, %v806
  %808 = vst [vmem:[%s7] sm:$0xf] %v807
  // Predicated region
  $region30: #{light_image_encoder_forward.12} parent=0 // pred_check
    _
  $region31: #{light_image_encoder_forward.12} parent=0 // pred_check_branch
    %810 = sbr.rel (0) target = $region33
  $region32: #{light_image_encoder_forward.12} parent=0 // pred_region
    _
  $region33: #{light_image_encoder_forward.12} parent=0 // pred_fallthru
    _
  // Predicated region
  $region34: #{light_image_encoder_forward.12} parent=0 // pred_check
    _
  $region35: #{light_image_encoder_forward.12} parent=0 // pred_check_branch
    %812 = sbr.rel (0) target = $region37
  $region36: #{light_image_encoder_forward.12} parent=0 // pred_region
    _
  $region37: #{light_image_encoder_forward.12} parent=0 // pred_fallthru
    _

// kernel: light_image_encoder_forward.16
$region0: #{light_image_encoder_forward.16}
  #allocation0 [shape = 'u32[]', space=smem, size = 0x4, offset = 0x4, fixed_abs, tag = 'smem constant byte address 0x4 - core index']
  #allocation1 [shape = 'u32[144,128]{1,0:T(1,128)}', space=vmem, size = 0x12000, scoped, tag = 'internal scratch']
  %s0 = inlined_call_operand.vmem [shape: bf16[16,128], index: 0, kind: input, shape index: {}]
  %s1 = inlined_call_operand.vmem [shape: bf16[128,128], index: 1, kind: input, shape index: {}]
  %s2 = inlined_call_operand.vmem [shape: f32[2,128], index: 2, kind: input, shape index: {}]
  %s3 = inlined_call_operand.vmem [shape: bf16[128,128], index: 3, kind: input, shape index: {}]
  %s4 = inlined_call_operand.vmem [shape: bf16[16,128], index: 4, kind: input, shape index: {}]
  %s5 = inlined_call_operand.vmem [shape: bf16[16,128], index: 5, kind: output, shape index: {}]
  %s6 = sld [smem:[#allocation0]]
  $region30: #{light_image_encoder_forward.16} parent=0
    _
  %s8 = ssub.s32 1, %s6
  %s9 = scalar_select 0, %s8, %s6
  // Predicated region
  $region2: #{light_image_encoder_forward.16} parent=0 // pred_check
    _
  $region3: #{light_image_encoder_forward.16} parent=0 // pred_check_branch
    %11 = sbr.rel (0) target = $region5
  $region4: #{light_image_encoder_forward.16} parent=0 // pred_region
    _
  $region5: #{light_image_encoder_forward.16} parent=0 // pred_fallthru
    _
  // Predicated region
  $region6: #{light_image_encoder_forward.16} parent=0 // pred_check
    _
  $region7: #{light_image_encoder_forward.16} parent=0 // pred_check_branch
    %13 = sbr.rel (0) target = $region9
  $region8: #{light_image_encoder_forward.16} parent=0 // pred_region
    _
  $region9: #{light_image_encoder_forward.16} parent=0 // pred_fallthru
    _
  // Predicated region
  $region10: #{light_image_encoder_forward.16} parent=0 // pred_check
    _
  $region11: #{light_image_encoder_forward.16} parent=0 // pred_check_branch
    %15 = sbr.rel (0) target = $region13
  $region12: #{light_image_encoder_forward.16} parent=0 // pred_region
    _
  $region13: #{light_image_encoder_forward.16} parent=0 // pred_fallthru
    _
  // Predicated region
  $region14: #{light_image_encoder_forward.16} parent=0 // pred_check
    _
  $region15: #{light_image_encoder_forward.16} parent=0 // pred_check_branch
    %17 = sbr.rel (0) target = $region17
  $region16: #{light_image_encoder_forward.16} parent=0 // pred_region
    _
  $region17: #{light_image_encoder_forward.16} parent=0 // pred_fallthru
    _
  // Predicated region
  $region18: #{light_image_encoder_forward.16} parent=0 // pred_check
    _
  $region19: #{light_image_encoder_forward.16} parent=0 // pred_check_branch
    %19 = sbr.rel (0) target = $region21
  $region20: #{light_image_encoder_forward.16} parent=0 // pred_region
    _
  $region21: #{light_image_encoder_forward.16} parent=0 // pred_fallthru
    _
  %v21 = vld [vmem:[%s0] sm:$0xf]
  %v22 = vld [vmem:[%s0 + $0x4] sm:$0xf]
  %v23 = vld [vmem:[%s1] sm:$0xf]
  %v24 = vld [vmem:[%s1 + $0x4] sm:$0xf]
  %v25 = vld [vmem:[%s1 + $0x8] sm:$0xf]
  %v26 = vld [vmem:[%s1 + $0xc] sm:$0xf]
  %v27 = vld [vmem:[%s1 + $0x10] sm:$0xf]
  %v28 = vld [vmem:[%s1 + $0x14] sm:$0xf]
  %v29 = vld [vmem:[%s1 + $0x18] sm:$0xf]
  %v30 = vld [vmem:[%s1 + $0x1c] sm:$0xf]
  %v31 = vld [vmem:[%s1 + $0x20] sm:$0xf]
  %v32 = vld [vmem:[%s1 + $0x24] sm:$0xf]
  %v33 = vld [vmem:[%s1 + $0x28] sm:$0xf]
  %v34 = vld [vmem:[%s1 + $0x2c] sm:$0xf]
  %v35 = vld [vmem:[%s1 + $0x30] sm:$0xf]
  %v36 = vld [vmem:[%s1 + $0x34] sm:$0xf]
  %v37 = vld [vmem:[%s1 + $0x38] sm:$0xf]
  %v38 = vld [vmem:[%s1 + $0x3c] sm:$0xf]
  %v41 = vunpack.c.l.b16 %v21
  %v42 = vunpack.c.l.b16 %v22
  %v43 = vpack.c.b16 %v42, %v41
  %v61 = vunpack.c.l.b16 %v23
  %v62 = vunpack.c.l.b16 %v24
  %v63 = vunpack.c.l.b16 %v25
  %v64 = vunpack.c.l.b16 %v26
  %v65 = vunpack.c.l.b16 %v27
  %v66 = vunpack.c.l.b16 %v28
  %v67 = vunpack.c.l.b16 %v29
  %v68 = vunpack.c.l.b16 %v30
  %v69 = vunpack.c.l.b16 %v31
  %v70 = vunpack.c.l.b16 %v32
  %v71 = vunpack.c.l.b16 %v33
  %v72 = vunpack.c.l.b16 %v34
  %v73 = vunpack.c.l.b16 %v35
  %v74 = vunpack.c.l.b16 %v36
  %v75 = vunpack.c.l.b16 %v37
  %v76 = vunpack.c.l.b16 %v38
  %v77 = vpack.c.b16 %v62, %v61
  %v78 = vpack.c.b16 %v64, %v63
  %v79 = vpack.c.b16 %v66, %v65
  %v80 = vpack.c.b16 %v68, %v67
  %v81 = vpack.c.b16 %v70, %v69
  %v82 = vpack.c.b16 %v72, %v71
  %v83 = vpack.c.b16 %v74, %v73
  %v84 = vpack.c.b16 %v76, %v75
  %93 = vmatprep.subr.bf16.mxu0 0
  %94 = vmatpush1.bf16.msra.mxu0 %v77
  %95 = vmatprep.subr.bf16.mxu0 0
  %96 = vmatpush1.bf16.msra.mxu0 %v78
  %97 = vmatprep.subr.bf16.mxu0 0
  %98 = vmatpush1.bf16.msra.mxu0 %v79
  %99 = vmatprep.subr.bf16.mxu0 0
  %100 = vmatpush1.bf16.msra.mxu0 %v80
  %101 = vmatprep.subr.bf16.mxu0 0
  %102 = vmatpush1.bf16.msra.mxu0 %v81
  %103 = vmatprep.subr.bf16.mxu0 0
  %104 = vmatpush1.bf16.msra.mxu0 %v82
  %105 = vmatprep.subr.bf16.mxu0 0
  %106 = vmatpush1.bf16.msra.mxu0 %v83
  %107 = vmatprep.subr.bf16.mxu0 0
  %108 = vmatpush1.bf16.msra.mxu0 %v84
  %109 = vmatprep.subr.bf16.mxu0 0
  %110 = vmatpush1.bf16.msra.mxu0 0
  %111 = vmatprep.subr.bf16.mxu0 0
  %112 = vmatpush1.bf16.msra.mxu0 0
  %113 = vmatprep.subr.bf16.mxu0 0
  %114 = vmatpush1.bf16.msra.mxu0 0
  %115 = vmatprep.subr.bf16.mxu0 0
  %116 = vmatpush1.bf16.msra.mxu0 0
  %117 = vmatprep.subr.bf16.mxu0 0
  %118 = vmatpush1.bf16.msra.mxu0 0
  %119 = vmatprep.subr.bf16.mxu0 0
  %120 = vmatpush1.bf16.msra.mxu0 0
  %121 = vmatprep.subr.bf16.mxu0 0
  %122 = vmatpush1.bf16.msra.mxu0 0
  %123 = vmatprep.subr.bf16.mxu0 0
  %124 = vmatpush1.bf16.msra.mxu0 0
  %125 = vmatprep.mubr.bf16.mxu0 0
  %126 = vmatmul.mubr.bf16.gmra.mrb[0].mxu0 %v43
  %v127 = vpop.f32.mrb[0].mxu0
  %v128 = vadd.f32 0.0, %v127
  %v129 = vpop.f32.mrb[0].mxu0
  %v130 = vpop.f32.mrb[0].mxu0
  %v131 = vadd.f32 0.0, %v130
  %v132 = vpop.f32.mrb[0].mxu0
  %133 = vdwg.mxu0
  %v134 = vld [vmem:[%s2] sm:$0x3]
  %v135 = vld [vmem:[%s3] sm:$0xf]
  %v136 = vld [vmem:[%s3 + $0x4] sm:$0xf]
  %v137 = vld [vmem:[%s3 + $0x8] sm:$0xf]
  %v138 = vld [vmem:[%s3 + $0xc] sm:$0xf]
  %v139 = vld [vmem:[%s3 + $0x10] sm:$0xf]
  %v140 = vld [vmem:[%s3 + $0x14] sm:$0xf]
  %v141 = vld [vmem:[%s3 + $0x18] sm:$0xf]
  %v142 = vld [vmem:[%s3 + $0x1c] sm:$0xf]
  %v143 = vld [vmem:[%s3 + $0x20] sm:$0xf]
  %v144 = vld [vmem:[%s3 + $0x24] sm:$0xf]
  %v145 = vld [vmem:[%s3 + $0x28] sm:$0xf]
  %v146 = vld [vmem:[%s3 + $0x2c] sm:$0xf]
  %v147 = vld [vmem:[%s3 + $0x30] sm:$0xf]
  %v148 = vld [vmem:[%s3 + $0x34] sm:$0xf]
  %v149 = vld [vmem:[%s3 + $0x38] sm:$0xf]
  %v150 = vld [vmem:[%s3 + $0x3c] sm:$0xf]
  %v151 = vpack.c.bf16 %v131, %v128
  %v168 = vunpack.c.l.b16 %v135
  %v169 = vunpack.c.l.b16 %v136
  %v170 = vunpack.c.l.b16 %v137
  %v171 = vunpack.c.l.b16 %v138
  %v172 = vunpack.c.l.b16 %v139
  %v173 = vunpack.c.l.b16 %v140
  %v174 = vunpack.c.l.b16 %v141
  %v175 = vunpack.c.l.b16 %v142
  %v176 = vunpack.c.l.b16 %v143
  %v177 = vunpack.c.l.b16 %v144
  %v178 = vunpack.c.l.b16 %v145
  %v179 = vunpack.c.l.b16 %v146
  %v180 = vunpack.c.l.b16 %v147
  %v181 = vunpack.c.l.b16 %v148
  %v182 = vunpack.c.l.b16 %v149
  %v183 = vunpack.c.l.b16 %v150
  %v184 = vpack.c.b16 %v169, %v168
  %v185 = vpack.c.b16 %v171, %v170
  %v186 = vpack.c.b16 %v173, %v172
  %v187 = vpack.c.b16 %v175, %v174
  %v188 = vpack.c.b16 %v177, %v176
  %v189 = vpack.c.b16 %v179, %v178
  %v190 = vpack.c.b16 %v181, %v180
  %v191 = vpack.c.b16 %v183, %v182
  %200 = vmatprep.subr.bf16.mxu0 0
  %201 = vmatpush1.bf16.msra.mxu0 %v184
  %202 = vmatprep.subr.bf16.mxu0 0
  %203 = vmatpush1.bf16.msra.mxu0 %v185
  %204 = vmatprep.subr.bf16.mxu0 0
  %205 = vmatpush1.bf16.msra.mxu0 %v186
  %206 = vmatprep.subr.bf16.mxu0 0
  %207 = vmatpush1.bf16.msra.mxu0 %v187
  %208 = vmatprep.subr.bf16.mxu0 0
  %209 = vmatpush1.bf16.msra.mxu0 %v188
  %210 = vmatprep.subr.bf16.mxu0 0
  %211 = vmatpush1.bf16.msra.mxu0 %v189
  %212 = vmatprep.subr.bf16.mxu0 0
  %213 = vmatpush1.bf16.msra.mxu0 %v190
  %214 = vmatprep.subr.bf16.mxu0 0
  %215 = vmatpush1.bf16.msra.mxu0 %v191
  %216 = vmatprep.subr.bf16.mxu0 0
  %217 = vmatpush1.bf16.msra.mxu0 0
  %218 = vmatprep.subr.bf16.mxu0 0
  %219 = vmatpush1.bf16.msra.mxu0 0
  %220 = vmatprep.subr.bf16.mxu0 0
  %221 = vmatpush1.bf16.msra.mxu0 0
  %222 = vmatprep.subr.bf16.mxu0 0
  %223 = vmatpush1.bf16.msra.mxu0 0
  %224 = vmatprep.subr.bf16.mxu0 0
  %225 = vmatpush1.bf16.msra.mxu0 0
  %226 = vmatprep.subr.bf16.mxu0 0
  %227 = vmatpush1.bf16.msra.mxu0 0
  %228 = vmatprep.subr.bf16.mxu0 0
  %229 = vmatpush1.bf16.msra.mxu0 0
  %230 = vmatprep.subr.bf16.mxu0 0
  %231 = vmatpush1.bf16.msra.mxu0 0
  %232 = vmatprep.mubr.bf16.mxu0 0
  %233 = vmatmul.mubr.bf16.gmra.mrb[0].mxu0 %v151
  %v234 = vpop.f32.mrb[0].mxu0
  %v235 = vadd.f32 0.0, %v234
  %v236 = vpop.f32.mrb[0].mxu0
  %v237 = vpop.f32.mrb[0].mxu0
  %v238 = vadd.f32 0.0, %v237
  %v239 = vpop.f32.mrb[0].mxu0
  %240 = vdwg.mxu0
  %v241 = vsub.f32 %v128, %v235
  %v242 = vsub.f32 %v131, %v238
  %v243 = vmul.f32 %v241, %v241
  %v244 = vmul.f32 %v242, %v242
  %v245 = vpack.c.bf16 %v244, %v243
  %246 = vmatprep.subr.bf16.mxu0 0
  %247 = vmatpush1.bf16.msra.mxu0 %v184
  %248 = vmatprep.subr.bf16.mxu0 0
  %249 = vmatpush1.bf16.msra.mxu0 %v185
  %250 = vmatprep.subr.bf16.mxu0 0
  %251 = vmatpush1.bf16.msra.mxu0 %v186
  %252 = vmatprep.subr.bf16.mxu0 0
  %253 = vmatpush1.bf16.msra.mxu0 %v187
  %254 = vmatprep.subr.bf16.mxu0 0
  %255 = vmatpush1.bf16.msra.mxu0 %v188
  %256 = vmatprep.subr.bf16.mxu0 0
  %257 = vmatpush1.bf16.msra.mxu0 %v189
  %258 = vmatprep.subr.bf16.mxu0 0
  %259 = vmatpush1.bf16.msra.mxu0 %v190
  %260 = vmatprep.subr.bf16.mxu0 0
  %261 = vmatpush1.bf16.msra.mxu0 %v191
  %262 = vmatprep.subr.bf16.mxu0 0
  %263 = vmatpush1.bf16.msra.mxu0 0
  %264 = vmatprep.subr.bf16.mxu0 0
  %265 = vmatpush1.bf16.msra.mxu0 0
  %266 = vmatprep.subr.bf16.mxu0 0
  %267 = vmatpush1.bf16.msra.mxu0 0
  %268 = vmatprep.subr.bf16.mxu0 0
  %269 = vmatpush1.bf16.msra.mxu0 0
  %270 = vmatprep.subr.bf16.mxu0 0
  %271 = vmatpush1.bf16.msra.mxu0 0
  %272 = vmatprep.subr.bf16.mxu0 0
  %273 = vmatpush1.bf16.msra.mxu0 0
  %274 = vmatprep.subr.bf16.mxu0 0
  %275 = vmatpush1.bf16.msra.mxu0 0
  %276 = vmatprep.subr.bf16.mxu0 0
  %277 = vmatpush1.bf16.msra.mxu0 0
  %278 = vmatprep.mubr.bf16.mxu0 0
  %279 = vmatmul.mubr.bf16.gmra.mrb[0].mxu0 %v245
  %v280 = vpop.f32.mrb[0].mxu0
  %v281 = vadd.f32 1e-06, %v280
  %v282 = vpop.f32.mrb[0].mxu0
  %v283 = vpop.f32.mrb[0].mxu0
  %v284 = vadd.f32 1e-06, %v283
  %v285 = vpop.f32.mrb[0].mxu0
  %286 = vdwg.mxu0
  %v287 = vrsqrt.pop %v281
  %v288 = vrsqrt.pop %v284
  %v289 = vmul.f32 %v241, %v287
  %v290 = vmul.f32 %v242, %v288
  %v291 = vlaneseq
  %v292 = vshrl.u32 %v291, 7
  %v293 = vsub.s32 0, %v292
  %v294 = vrot.slane %v134, %v293
  %v295 = vmul.f32 %v289, %v294
  %v296 = vmul.f32 %v290, %v294
  %v297 = vlaneseq
  %v298 = vshrl.u32 %v297, 7
  %v299 = vsub.s32 1, %v298
  %v300 = vrot.slane %v134, %v299
  %v301 = vadd.f32 %v295, %v300
  %v302 = vadd.f32 %v296, %v300
  %v303 = vld [vmem:[%s4] sm:$0xf]
  %v304 = vld [vmem:[%s4 + $0x4] sm:$0xf]
  %v305 = vunpack.c.l.bf16 %v303
  %v306 = vunpack.c.l.bf16 %v304
  %v307 = vadd.f32 %v301, %v305
  %v308 = vadd.f32 %v302, %v306
  %v309 = vpack.c.bf16 %v308, %v307
  %v311 = vunpack.c.l.b16 %v309
  %v312 = vunpack.c.h.b16 %v309
  %v313 = vpack.c.b16 %v311, %v311
  %v314 = vpack.c.b16 %v312, %v312
  %317 = vst [vmem:[%s5] sm:$0xf] %v313
  %318 = vst [vmem:[%s5 + $0x4] sm:$0xf] %v314
  // Predicated region
  $region22: #{light_image_encoder_forward.16} parent=0 // pred_check
    _
  $region23: #{light_image_encoder_forward.16} parent=0 // pred_check_branch
    %320 = sbr.rel (0) target = $region25
  $region24: #{light_image_encoder_forward.16} parent=0 // pred_region
    _
  $region25: #{light_image_encoder_forward.16} parent=0 // pred_fallthru
    _
  // Predicated region
  $region26: #{light_image_encoder_forward.16} parent=0 // pred_check
    _
  $region27: #{light_image_encoder_forward.16} parent=0 // pred_check_branch
    %322 = sbr.rel (0) target = $region29
  $region28: #{light_image_encoder_forward.16} parent=0 // pred_region
    _
  $region29: #{light_image_encoder_forward.16} parent=0 // pred_fallthru
    _

// kernel: light_image_encoder_forward.17
$region0: #{light_image_encoder_forward.17}
  #allocation0 [shape = 'u32[]', space=smem, size = 0x4, offset = 0x4, fixed_abs, tag = 'smem constant byte address 0x4 - core index']
  #allocation1 [shape = 'u32[144,128]{1,0:T(1,128)}', space=vmem, size = 0x12000, scoped, tag = 'internal scratch']
  %s0 = inlined_call_operand.vmem [shape: bf16[2,38,64], index: 0, kind: input, shape index: {}]
  %s1 = inlined_call_operand.vmem [shape: bf16[576,64], index: 1, kind: input, shape index: {}]
  %s2 = inlined_call_operand.vmem [shape: bf16[64,64], index: 2, kind: input, shape index: {}]
  %s3 = inlined_call_operand.vmem [shape: f32[4,64], index: 3, kind: input, shape index: {}]
  %s4 = inlined_call_operand.vmem [shape: f32[2,24,64], index: 4, kind: output, shape index: {}]
  %s5 = sld [smem:[#allocation0]]
  $region49: #{light_image_encoder_forward.17} parent=0
    _
  %s7 = ssub.s32 1, %s5
  %s8 = scalar_select 0, %s7, %s5
  loop: start=0, step=1, limit=4
  $region2: #{light_image_encoder_forward.17} parent=0 // loop_pre_header
    _
  $region3: #{light_image_encoder_forward.17} parent=0 // loop_header
    %s10 = sphi 0, %s14
    %p11 = scmp.ge.s32.totalorder %s10, 4
    %s20 = sphi 0, %s22
    %s23 = sphi 0, %s20
    %s24 = sphi 0, %s23
    %s40 = sphi 0, %s24
    %s44 = sphi 0, %s44
    %s46 = sphi 0, %s44
    %s47 = sphi 0, %s46
    %s61 = sphi 0, %s47
    %s65 = sphi 0, %s65
    %s67 = sphi 0, %s65
    %s68 = sphi 0, %s67
    %s82 = sphi 0, %s68
    %s86 = sphi 0, %s86
    %s88 = sphi 0, %s86
    %s89 = sphi 0, %s88
    %s103 = sphi 0, %s89
    %s109 = sphi 0, %s111
    %s112 = sphi 0, %s109
    %s113 = sphi 0, %s112
    %s129 = sphi 0, %s113
  $region4: #{light_image_encoder_forward.17} parent=0 // loop_header_branch
    %13 = sbr.rel (%p11) target = $region8
  $region5: #{light_image_encoder_forward.17} parent=0 // loop_body
    %s15 = ssub.s32 %s10, 1
    %s16 = ssub.s32 %s10, 2
    %s17 = sadd.s32 %s10, 1
    %s18 = ssub.s32 %s10, %s17
    %p19 = scmp.eq.s32.totalorder %s18, 0
    %s21 = sadd.s32 %s20, 1
    %s22 = scalar_select %p19, %s20, %s21
    %p25 = pneg %p19
    %p26 = scmp.eq.s32.totalorder %s10, 1
    %p27 = por %p25, %p26
    %p28 = scmp.ne.s32.totalorder %s20, %s23
    %p29 = scmp.eq.s32.totalorder %s10, 0
    %p30 = por %p28, %p29
    %p31 = scmp.ne.s32.totalorder %s20, %s23
    %p32 = scmp.eq.s32.totalorder %s15, 1
    %p33 = por %p31, %p32
    %p34 = scmp.ne.s32.totalorder %s23, %s24
    %p35 = scmp.eq.s32.totalorder %s15, 0
    %p36 = por %p34, %p35
    %p37 = scmp.ne.s32.totalorder %s23, %s24
    %p38 = scmp.eq.s32.totalorder %s16, 1
    %p39 = por %p37, %p38
    %p41 = scmp.ne.s32.totalorder %s24, %s40
    %p42 = scmp.eq.s32.totalorder %s16, 0
    %p43 = por %p41, %p42
    %s45 = sadd.s32 %s44, 1
    %p48 = scmp.eq.s32.totalorder %s10, 1
    %p49 = scmp.ne.s32.totalorder %s44, %s46
    %p50 = scmp.eq.s32.totalorder %s10, 0
    %p51 = por %p49, %p50
    %p52 = scmp.ne.s32.totalorder %s44, %s46
    %p53 = scmp.eq.s32.totalorder %s15, 1
    %p54 = por %p52, %p53
    %p55 = scmp.ne.s32.totalorder %s46, %s47
    %p56 = scmp.eq.s32.totalorder %s15, 0
    %p57 = por %p55, %p56
    %p58 = scmp.ne.s32.totalorder %s46, %s47
    %p59 = scmp.eq.s32.totalorder %s16, 1
    %p60 = por %p58, %p59
    %p62 = scmp.ne.s32.totalorder %s47, %s61
    %p63 = scmp.eq.s32.totalorder %s16, 0
    %p64 = por %p62, %p63
    %s66 = sadd.s32 %s65, 1
    %p69 = scmp.eq.s32.totalorder %s10, 1
    %p70 = scmp.ne.s32.totalorder %s65, %s67
    %p71 = scmp.eq.s32.totalorder %s10, 0
    %p72 = por %p70, %p71
    %p73 = scmp.ne.s32.totalorder %s65, %s67
    %p74 = scmp.eq.s32.totalorder %s15, 1
    %p75 = por %p73, %p74
    %p76 = scmp.ne.s32.totalorder %s67, %s68
    %p77 = scmp.eq.s32.totalorder %s15, 0
    %p78 = por %p76, %p77
    %p79 = scmp.ne.s32.totalorder %s67, %s68
    %p80 = scmp.eq.s32.totalorder %s16, 1
    %p81 = por %p79, %p80
    %p83 = scmp.ne.s32.totalorder %s68, %s82
    %p84 = scmp.eq.s32.totalorder %s16, 0
    %p85 = por %p83, %p84
    %s87 = sadd.s32 %s86, 1
    %p90 = scmp.eq.s32.totalorder %s10, 1
    %p91 = scmp.ne.s32.totalorder %s86, %s88
    %p92 = scmp.eq.s32.totalorder %s10, 0
    %p93 = por %p91, %p92
    %p94 = scmp.ne.s32.totalorder %s86, %s88
    %p95 = scmp.eq.s32.totalorder %s15, 1
    %p96 = por %p94, %p95
    %p97 = scmp.ne.s32.totalorder %s88, %s89
    %p98 = scmp.eq.s32.totalorder %s15, 0
    %p99 = por %p97, %p98
    %p100 = scmp.ne.s32.totalorder %s88, %s89
    %p101 = scmp.eq.s32.totalorder %s16, 1
    %p102 = por %p100, %p101
    %p104 = scmp.ne.s32.totalorder %s89, %s103
    %p105 = scmp.eq.s32.totalorder %s16, 0
    %p106 = por %p104, %p105
    %s107 = ssub.s32 %s10, %s17
    %p108 = scmp.eq.s32.totalorder %s107, 0
    %s110 = sadd.s32 %s109, 1
    %s111 = scalar_select %p108, %s109, %s110
    %p114 = pneg %p108
    %p115 = scmp.eq.s32.totalorder %s10, 1
    %p116 = por %p114, %p115
    %p117 = scmp.ne.s32.totalorder %s109, %s112
    %p118 = scmp.eq.s32.totalorder %s10, 0
    %p119 = por %p117, %p118
    %p120 = scmp.ne.s32.totalorder %s109, %s112
    %p121 = scmp.eq.s32.totalorder %s15, 1
    %p122 = por %p120, %p121
    %p123 = scmp.ne.s32.totalorder %s112, %s113
    %p124 = scmp.eq.s32.totalorder %s15, 0
    %p125 = por %p123, %p124
    %p126 = scmp.ne.s32.totalorder %s112, %s113
    %p127 = scmp.eq.s32.totalorder %s16, 1
    %p128 = por %p126, %p127
    %p130 = scmp.ne.s32.totalorder %s113, %s129
    %p131 = scmp.eq.s32.totalorder %s16, 0
    %p132 = por %p130, %p131
    %p133 = scmp.le.s32.totalorder 1, %s10
    %p134 = scmp.lt.s32.totalorder %s10, 3
    %p135 = pnand %p133, %p134
    %p136 = pneg %p135
    // Predicated region
    $region9: #{light_image_encoder_forward.17} parent=5 // pred_check
      _
    $region10: #{light_image_encoder_forward.17} parent=5 // pred_check_branch
      %138 = sbr.rel (%p135) target = $region12
    $region11: #{light_image_encoder_forward.17} parent=5 // pred_region
      %s139 = ssub.s32 %s10, 1
      // Predicated region
      $region13: #{light_image_encoder_forward.17} parent=11 // pred_check
        %p140 = pneg %p57
      $region14: #{light_image_encoder_forward.17} parent=11 // pred_check_branch
        %142 = sbr.rel (%p140) target = $region16
      $region15: #{light_image_encoder_forward.17} parent=11 // pred_region
        _
      $region16: #{light_image_encoder_forward.17} parent=11 // pred_fallthru
        _
      // Predicated region
      $region17: #{light_image_encoder_forward.17} parent=11 // pred_check
        %p143 = pneg %p78
      $region18: #{light_image_encoder_forward.17} parent=11 // pred_check_branch
        %145 = sbr.rel (%p143) target = $region20
      $region19: #{light_image_encoder_forward.17} parent=11 // pred_region
        _
      $region20: #{light_image_encoder_forward.17} parent=11 // pred_fallthru
        _
      // Predicated region
      $region21: #{light_image_encoder_forward.17} parent=11 // pred_check
        %p146 = pneg %p99
      $region22: #{light_image_encoder_forward.17} parent=11 // pred_check_branch
        %148 = sbr.rel (%p146) target = $region24
      $region23: #{light_image_encoder_forward.17} parent=11 // pred_region
        _
      $region24: #{light_image_encoder_forward.17} parent=11 // pred_fallthru
        _
    $region12: #{light_image_encoder_forward.17} parent=5 // pred_fallthru
      _
    %p149 = scmp.lt.s32.totalorder %s10, 2
    // Predicated region
    $region25: #{light_image_encoder_forward.17} parent=5 // pred_check
      %p150 = pneg %p149
    $region26: #{light_image_encoder_forward.17} parent=5 // pred_check_branch
      %152 = sbr.rel (%p150) target = $region28
    $region27: #{light_image_encoder_forward.17} parent=5 // pred_region
      // Predicated region
      $region29: #{light_image_encoder_forward.17} parent=27 // pred_check
        %p153 = pneg %p30
      $region30: #{light_image_encoder_forward.17} parent=27 // pred_check_branch
        %155 = sbr.rel (%p153) target = $region32
      $region31: #{light_image_encoder_forward.17} parent=27 // pred_region
        %p156 = scmp.lt.s32.totalorder %s10, 1
        %s157 = scalar_select %p156, %s10, 1
        %s158 = smul.addr %s157, 5
        %s159 = smul.addr %s158, 4
        %s160 = scalar_lea.vmem %s0, %s159
      $region32: #{light_image_encoder_forward.17} parent=27 // pred_fallthru
        _
    $region28: #{light_image_encoder_forward.17} parent=5 // pred_fallthru
      _
    %p161 = scmp.le.s32.totalorder 1, %s10
    %p162 = scmp.lt.s32.totalorder %s10, 3
    %p163 = pnand %p161, %p162
    %p164 = pneg %p163
    // Predicated region
    $region33: #{light_image_encoder_forward.17} parent=5 // pred_check
      _
    $region34: #{light_image_encoder_forward.17} parent=5 // pred_check_branch
      %166 = sbr.rel (%p163) target = $region36
    $region35: #{light_image_encoder_forward.17} parent=5 // pred_region
      %s167 = ssub.s32 %s10, 1
      %p168 = scmp.lt.s32.totalorder %s15, 1
      %s169 = scalar_select %p168, %s15, 1
      %s170 = smul.addr %s169, 5
      %s171 = smul.addr %s170, 4
      %s172 = scalar_lea.vmem %s0, %s171
      %p173 = pneg %p36
      %p174 = pneg %p33
      %p175 = pneg %p57
      %p176 = pneg %p54
      %p177 = pneg %p78
      %p178 = pneg %p75
      %p179 = pneg %p99
      %p180 = pneg %p96
      %p181 = pneg %p125
      %p182 = pneg %p122
      %p183 = scmp.lt.s32.totalorder %s15, 1
      %s184 = scalar_select %p183, %s15, 1
      %s185 = smul.addr %s184, 3
      %s186 = smul.addr %s185, 8
      %s187 = scalar_lea.vmem %s4, %s186
      %p188 = scmp.lt.s32.totalorder %s15, 1
      %s189 = scalar_select %p188, %s15, 1
      %s190 = smul.addr %s189, 5
      %s191 = smul.addr %s190, 4
      %s192 = scalar_lea.vmem %s0, %s191
      %p193 = scmp.lt.s32.totalorder %s15, 1
      %s194 = scalar_select %p193, %s15, 1
      %s195 = smul.addr %s194, 3
      %s196 = smul.addr %s195, 8
      %s197 = scalar_lea.vmem %s4, %s196
      %v199 = vld [vmem:[%s192] sm:$0xf]
      %v200 = vld [vmem:[%s192 + $0x4] sm:$0xf]
      %v201 = vld [vmem:[%s192 + $0x8] sm:$0xf]
      %v202 = vld [vmem:[%s192 + $0xc] sm:$0x1]
      %v203 = vld [vmem:[%s192] sm:$0xe]
      %v204 = vld [vmem:[%s192] sm:$0x8]
      %v205 = vld [vmem:[%s192 + $0xc] sm:$0x7]
      %v206 = vld [vmem:[%s192 + $0xc] sm:$0xf]
      %v207 = vld [vmem:[%s192 + $0x4] sm:$0xc]
      %v208 = vld [vmem:[%s192 + $0x10] sm:$0x3]
      %v209 = vld [vmem:[%s192 + $0x10] sm:$0x7]
      %v210 = vld [vmem:[%s192 + $0x4] sm:$0x8]
      %v214 = vunpack.c.l.b16 %v199
      %v215 = vunpack.c.l.b16 %v200
      %v216 = vunpack.c.l.b16 %v201
      %v217 = vpack.c.b16 %v215, %v214
      %v218 = vpack.c.b16 %v216, %v216
      %v220 = vunpack.c.l.b16 %v202
      %v221 = vpack.c.b16 %v220, %v216
      %vm222 = vsmask.f32 7424
      %v224 = vshrl.u32 %v217, 16
      %v226 = vshll.u32 %v217, 16
      %v228 = vrot.slane %v226, 1
      %v229 = vor.u32 %v224, %v228
      %v231 = vshll.u32 %v221, 16
      %v233 = vrot.slane %v231, 1
      %v234 = vsel %vm222, %v229, %v233
      %v235 = vshrl.u32 %v221, 16
      %v237 = vor.u32 %v235, %v233
      %238 = vrot.lane.b32.xlu0 %v234, 64
      %v239 = vpop.permute.xlu0 %238
      %240 = vrot.lane.b32.xlu0 %v237, 64
      %v241 = vpop.permute.xlu0 %240
      %v243 = vunpack.c.l.b16 %v203
      %v244 = vpack.c.b16 %v215, %v243
      %vm245 = vcmask 1046528
      %v246 = vrot.slane %v244, 1
      %v247 = vrot.slane %v221, 1
      %v248 = vsel %vm245, %v246, %v247
      %v251 = vunpack.c.l.b16 %v204
      %v252 = vunpack.c.l.b16 %v205
      %v253 = vpack.c.b16 %v215, %v251
      %v254 = vpack.c.b16 %v252, %v216
      %vm255 = vcmask 1044480
      %v256 = vrot.slane %v253, 3
      %v257 = vrot.slane %v254, 3
      %v258 = vsel %vm255, %v256, %v257
      %259 = vrot.lane.b32.xlu0 %v258, 64
      %v260 = vpop.permute.xlu0 %259
      %261 = vrot.lane.b32.xlu0 %v257, 64
      %v262 = vpop.permute.xlu0 %261
      %v264 = vunpack.c.l.b16 %v206
      %v265 = vpack.c.b16 %v264, %v216
      %vm266 = vsmask.f32 4352
      %v268 = vshrl.u32 %v253, 16
      %v270 = vrot.slane %v268, 3
      %v271 = vshll.u32 %v253, 16
      %v273 = vrot.slane %v271, 4
      %v274 = vor.u32 %v270, %v273
      %v276 = vshrl.u32 %v265, 16
      %v278 = vrot.slane %v276, 3
      %v279 = vshll.u32 %v265, 16
      %v281 = vrot.slane %v279, 4
      %v282 = vor.u32 %v278, %v281
      %v283 = vsel %vm266, %v274, %v282
      %v284 = vpack.c.b16 %v216, %v215
      %v285 = vpack.c.b16 %v264, %v264
      %286 = vrot.lane.b32.xlu0 %v284, 64
      %v287 = vpop.permute.xlu0 %286
      %288 = vrot.lane.b32.xlu0 %v285, 64
      %v289 = vpop.permute.xlu0 %288
      %v292 = vunpack.c.l.b16 %v207
      %v293 = vunpack.c.l.b16 %v208
      %v294 = vpack.c.b16 %v216, %v292
      %v295 = vpack.c.b16 %v293, %v264
      %vm296 = vcmask 1045504
      %v297 = vrot.slane %v294, 2
      %v298 = vrot.slane %v295, 2
      %v299 = vsel %vm296, %v297, %v298
      %v301 = vunpack.c.l.b16 %v209
      %v302 = vpack.c.b16 %v301, %v264
      %vm303 = vsmask.f32 5376
      %v305 = vshrl.u32 %v294, 16
      %v307 = vrot.slane %v305, 2
      %v308 = vshll.u32 %v294, 16
      %v310 = vrot.slane %v308, 3
      %v311 = vor.u32 %v307, %v310
      %v313 = vshrl.u32 %v302, 16
      %v315 = vrot.slane %v313, 2
      %v316 = vshll.u32 %v302, 16
      %v318 = vrot.slane %v316, 3
      %v319 = vor.u32 %v315, %v318
      %v320 = vsel %vm303, %v311, %v319
      %321 = vrot.lane.b32.xlu0 %v320, 64
      %v322 = vpop.permute.xlu0 %321
      %323 = vrot.lane.b32.xlu0 %v319, 64
      %v324 = vpop.permute.xlu0 %323
      %v326 = vunpack.c.l.b16 %v210
      %v327 = vpack.c.b16 %v216, %v326
      %v328 = vrot.slane %v327, 3
      %v329 = vrot.slane %v302, 3
      %v330 = vsel %vm255, %v328, %v329
      %vm331 = vcmask 523264
      %v333 = vsel %vm331, %v217, %v239
      %v337 = vsel %vm331, %v218, %v241
      %v341 = vsel %vm331, %v248, %v260
      %v345 = vsel %vm331, %v247, %v262
      %v349 = vsel %vm331, %v283, %v287
      %v353 = vsel %vm331, %v282, %v289
      %v357 = vsel %vm331, %v299, %v322
      %v361 = vsel %vm331, %v298, %v324
      %v363 = vld [vmem:[%s1] sm:$0xf]
      %v364 = vld [vmem:[%s1 + $0x4] sm:$0xf]
      %v365 = vld [vmem:[%s1 + $0x8] sm:$0xf]
      %v366 = vld [vmem:[%s1 + $0xc] sm:$0xf]
      %v367 = vld [vmem:[%s1 + $0x10] sm:$0xf]
      %v368 = vld [vmem:[%s1 + $0x14] sm:$0xf]
      %v369 = vld [vmem:[%s1 + $0x18] sm:$0xf]
      %v370 = vld [vmem:[%s1 + $0x1c] sm:$0xf]
      %v371 = vld [vmem:[%s1 + $0x20] sm:$0xf]
      %v372 = vld [vmem:[%s1 + $0x24] sm:$0xf]
      %v373 = vld [vmem:[%s1 + $0x28] sm:$0xf]
      %v374 = vld [vmem:[%s1 + $0x2c] sm:$0xf]
      %v375 = vld [vmem:[%s1 + $0x30] sm:$0xf]
      %v376 = vld [vmem:[%s1 + $0x34] sm:$0xf]
      %v377 = vld [vmem:[%s1 + $0x38] sm:$0xf]
      %v378 = vld [vmem:[%s1 + $0x3c] sm:$0xf]
      %v379 = vld [vmem:[%s1 + $0x40] sm:$0xf]
      %v380 = vld [vmem:[%s1 + $0x44] sm:$0xf]
      %v381 = vld [vmem:[%s1 + $0x48] sm:$0xf]
      %v382 = vld [vmem:[%s1 + $0x4c] sm:$0xf]
      %v383 = vld [vmem:[%s1 + $0x50] sm:$0xf]
      %v384 = vld [vmem:[%s1 + $0x54] sm:$0xf]
      %v385 = vld [vmem:[%s1 + $0x58] sm:$0xf]
      %v386 = vld [vmem:[%s1 + $0x5c] sm:$0xf]
      %v387 = vld [vmem:[%s1 + $0x60] sm:$0xf]
      %v388 = vld [vmem:[%s1 + $0x64] sm:$0xf]
      %v389 = vld [vmem:[%s1 + $0x68] sm:$0xf]
      %v390 = vld [vmem:[%s1 + $0x6c] sm:$0xf]
      %v391 = vld [vmem:[%s1 + $0x70] sm:$0xf]
      %v392 = vld [vmem:[%s1 + $0x74] sm:$0xf]
      %v393 = vld [vmem:[%s1 + $0x78] sm:$0xf]
      %v394 = vld [vmem:[%s1 + $0x7c] sm:$0xf]
      %v395 = vld [vmem:[%s1 + $0x80] sm:$0xf]
      %v396 = vld [vmem:[%s1 + $0x84] sm:$0xf]
      %v397 = vld [vmem:[%s1 + $0x88] sm:$0xf]
      %v398 = vld [vmem:[%s1 + $0x8c] sm:$0xf]
      %v399 = vld [vmem:[%s1 + $0x90] sm:$0xf]
      %v400 = vld [vmem:[%s1 + $0x94] sm:$0xf]
      %v401 = vld [vmem:[%s1 + $0x98] sm:$0xf]
      %v402 = vld [vmem:[%s1 + $0x9c] sm:$0xf]
      %v403 = vld [vmem:[%s1 + $0xa0] sm:$0xf]
      %v404 = vld [vmem:[%s1 + $0xa4] sm:$0xf]
      %v405 = vld [vmem:[%s1 + $0xa8] sm:$0xf]
      %v406 = vld [vmem:[%s1 + $0xac] sm:$0xf]
      %v407 = vld [vmem:[%s1 + $0xb0] sm:$0xf]
      %v408 = vld [vmem:[%s1 + $0xb4] sm:$0xf]
      %v409 = vld [vmem:[%s1 + $0xb8] sm:$0xf]
      %v410 = vld [vmem:[%s1 + $0xbc] sm:$0xf]
      %v411 = vld [vmem:[%s1 + $0xc0] sm:$0xf]
      %v412 = vld [vmem:[%s1 + $0xc4] sm:$0xf]
      %v413 = vld [vmem:[%s1 + $0xc8] sm:$0xf]
      %v414 = vld [vmem:[%s1 + $0xcc] sm:$0xf]
      %v415 = vld [vmem:[%s1 + $0xd0] sm:$0xf]
      %v416 = vld [vmem:[%s1 + $0xd4] sm:$0xf]
      %v417 = vld [vmem:[%s1 + $0xd8] sm:$0xf]
      %v418 = vld [vmem:[%s1 + $0xdc] sm:$0xf]
      %v419 = vld [vmem:[%s1 + $0xe0] sm:$0xf]
      %v420 = vld [vmem:[%s1 + $0xe4] sm:$0xf]
      %v421 = vld [vmem:[%s1 + $0xe8] sm:$0xf]
      %v422 = vld [vmem:[%s1 + $0xec] sm:$0xf]
      %v423 = vld [vmem:[%s1 + $0xf0] sm:$0xf]
      %v424 = vld [vmem:[%s1 + $0xf4] sm:$0xf]
      %v425 = vld [vmem:[%s1 + $0xf8] sm:$0xf]
      %v426 = vld [vmem:[%s1 + $0xfc] sm:$0xf]
      %v427 = vld [vmem:[%s1 + $0x100] sm:$0xf]
      %v428 = vld [vmem:[%s1 + $0x104] sm:$0xf]
      %v429 = vld [vmem:[%s1 + $0x108] sm:$0xf]
      %v430 = vld [vmem:[%s1 + $0x10c] sm:$0xf]
      %v431 = vld [vmem:[%s1 + $0x110] sm:$0xf]
      %v432 = vld [vmem:[%s1 + $0x114] sm:$0xf]
      %v433 = vld [vmem:[%s1 + $0x118] sm:$0xf]
      %v434 = vld [vmem:[%s1 + $0x11c] sm:$0xf]
      %v507 = vunpack.c.l.b16 %v363
      %v508 = vunpack.c.l.b16 %v364
      %v509 = vunpack.c.l.b16 %v365
      %v510 = vunpack.c.l.b16 %v366
      %v511 = vunpack.c.l.b16 %v367
      %v512 = vunpack.c.l.b16 %v368
      %v513 = vunpack.c.l.b16 %v369
      %v514 = vunpack.c.l.b16 %v370
      %v515 = vunpack.c.l.b16 %v371
      %v516 = vunpack.c.l.b16 %v372
      %v517 = vunpack.c.l.b16 %v373
      %v518 = vunpack.c.l.b16 %v374
      %v519 = vunpack.c.l.b16 %v375
      %v520 = vunpack.c.l.b16 %v376
      %v521 = vunpack.c.l.b16 %v377
      %v522 = vunpack.c.l.b16 %v378
      %v523 = vunpack.c.l.b16 %v379
      %v524 = vunpack.c.l.b16 %v380
      %v525 = vunpack.c.l.b16 %v381
      %v526 = vunpack.c.l.b16 %v382
      %v527 = vunpack.c.l.b16 %v383
      %v528 = vunpack.c.l.b16 %v384
      %v529 = vunpack.c.l.b16 %v385
      %v530 = vunpack.c.l.b16 %v386
      %v531 = vunpack.c.l.b16 %v387
      %v532 = vunpack.c.l.b16 %v388
      %v533 = vunpack.c.l.b16 %v389
      %v534 = vunpack.c.l.b16 %v390
      %v535 = vunpack.c.l.b16 %v391
      %v536 = vunpack.c.l.b16 %v392
      %v537 = vunpack.c.l.b16 %v393
      %v538 = vunpack.c.l.b16 %v394
      %v539 = vunpack.c.l.b16 %v395
      %v540 = vunpack.c.l.b16 %v396
      %v541 = vunpack.c.l.b16 %v397
      %v542 = vunpack.c.l.b16 %v398
      %v543 = vunpack.c.l.b16 %v399
      %v544 = vunpack.c.l.b16 %v400
      %v545 = vunpack.c.l.b16 %v401
      %v546 = vunpack.c.l.b16 %v402
      %v547 = vunpack.c.l.b16 %v403
      %v548 = vunpack.c.l.b16 %v404
      %v549 = vunpack.c.l.b16 %v405
      %v550 = vunpack.c.l.b16 %v406
      %v551 = vunpack.c.l.b16 %v407
      %v552 = vunpack.c.l.b16 %v408
      %v553 = vunpack.c.l.b16 %v409
      %v554 = vunpack.c.l.b16 %v410
      %v555 = vunpack.c.l.b16 %v411
      %v556 = vunpack.c.l.b16 %v412
      %v557 = vunpack.c.l.b16 %v413
      %v558 = vunpack.c.l.b16 %v414
      %v559 = vunpack.c.l.b16 %v415
      %v560 = vunpack.c.l.b16 %v416
      %v561 = vunpack.c.l.b16 %v417
      %v562 = vunpack.c.l.b16 %v418
      %v563 = vunpack.c.l.b16 %v419
      %v564 = vunpack.c.l.b16 %v420
      %v565 = vunpack.c.l.b16 %v421
      %v566 = vunpack.c.l.b16 %v422
      %v567 = vunpack.c.l.b16 %v423
      %v568 = vunpack.c.l.b16 %v424
      %v569 = vunpack.c.l.b16 %v425
      %v570 = vunpack.c.l.b16 %v426
      %v571 = vunpack.c.l.b16 %v427
      %v572 = vunpack.c.l.b16 %v428
      %v573 = vunpack.c.l.b16 %v429
      %v574 = vunpack.c.l.b16 %v430
      %v575 = vunpack.c.l.b16 %v431
      %v576 = vunpack.c.l.b16 %v432
      %v577 = vunpack.c.l.b16 %v433
      %v578 = vunpack.c.l.b16 %v434
      %v579 = vpack.c.b16 %v508, %v507
      %v580 = vpack.c.b16 %v510, %v509
      %v581 = vpack.c.b16 %v512, %v511
      %v582 = vpack.c.b16 %v514, %v513
      %v583 = vpack.c.b16 %v516, %v515
      %v584 = vpack.c.b16 %v518, %v517
      %v585 = vpack.c.b16 %v520, %v519
      %v586 = vpack.c.b16 %v522, %v521
      %v587 = vpack.c.b16 %v524, %v523
      %v588 = vpack.c.b16 %v526, %v525
      %v589 = vpack.c.b16 %v528, %v527
      %v590 = vpack.c.b16 %v530, %v529
      %v591 = vpack.c.b16 %v532, %v531
      %v592 = vpack.c.b16 %v534, %v533
      %v593 = vpack.c.b16 %v536, %v535
      %v594 = vpack.c.b16 %v538, %v537
      %v595 = vpack.c.b16 %v540, %v539
      %v596 = vpack.c.b16 %v542, %v541
      %v597 = vpack.c.b16 %v544, %v543
      %v598 = vpack.c.b16 %v546, %v545
      %v599 = vpack.c.b16 %v548, %v547
      %v600 = vpack.c.b16 %v550, %v549
      %v601 = vpack.c.b16 %v552, %v551
      %v602 = vpack.c.b16 %v554, %v553
      %v603 = vpack.c.b16 %v556, %v555
      %v604 = vpack.c.b16 %v558, %v557
      %v605 = vpack.c.b16 %v560, %v559
      %v606 = vpack.c.b16 %v562, %v561
      %v607 = vpack.c.b16 %v564, %v563
      %v608 = vpack.c.b16 %v566, %v565
      %v609 = vpack.c.b16 %v568, %v567
      %v610 = vpack.c.b16 %v570, %v569
      %v611 = vpack.c.b16 %v572, %v571
      %v612 = vpack.c.b16 %v574, %v573
      %v613 = vpack.c.b16 %v576, %v575
      %v614 = vpack.c.b16 %v578, %v577
      %v652 = vsel %vm331, %v330, 0
      %v655 = vsel %vm331, %v329, 0
      %657 = vmatprep.subr.bf16.mxu0 0
      %658 = vmatpush1.bf16.msra.mxu0 %v579
      %659 = vmatprep.subr.bf16.mxu0 0
      %660 = vmatpush1.bf16.msra.mxu0 %v580
      %661 = vmatprep.subr.bf16.mxu0 0
      %662 = vmatpush1.bf16.msra.mxu0 %v581
      %663 = vmatprep.subr.bf16.mxu0 0
      %664 = vmatpush1.bf16.msra.mxu0 %v582
      %665 = vmatprep.subr.bf16.mxu0 0
      %666 = vmatpush1.bf16.msra.mxu0 %v583
      %667 = vmatprep.subr.bf16.mxu0 0
      %668 = vmatpush1.bf16.msra.mxu0 %v584
      %669 = vmatprep.subr.bf16.mxu0 0
      %670 = vmatpush1.bf16.msra.mxu0 %v585
      %671 = vmatprep.subr.bf16.mxu0 0
      %672 = vmatpush1.bf16.msra.mxu0 %v586
      %673 = vmatprep.subr.bf16.mxu0 0
      %674 = vmatpush1.bf16.msra.mxu0 %v587
      %675 = vmatprep.subr.bf16.mxu0 0
      %676 = vmatpush1.bf16.msra.mxu0 %v588
      %677 = vmatprep.subr.bf16.mxu0 0
      %678 = vmatpush1.bf16.msra.mxu0 %v589
      %679 = vmatprep.subr.bf16.mxu0 0
      %680 = vmatpush1.bf16.msra.mxu0 %v590
      %681 = vmatprep.subr.bf16.mxu0 0
      %682 = vmatpush1.bf16.msra.mxu0 %v591
      %683 = vmatprep.subr.bf16.mxu0 0
      %684 = vmatpush1.bf16.msra.mxu0 %v592
      %685 = vmatprep.subr.bf16.mxu0 0
      %686 = vmatpush1.bf16.msra.mxu0 %v593
      %687 = vmatprep.subr.bf16.mxu0 0
      %688 = vmatpush1.bf16.msra.mxu0 %v594
      %689 = vmatprep.mubr.bf16.mxu0 %v341
      %690 = vmatmul.mubr.bf16.gmra.mrb[0].mxu0 %v333
      %v691 = vpop.f32.mrb[0].mxu0
      %v692 = vadd.f32 0.0, %v691
      %v693 = vpop.f32.mrb[0].mxu0
      %v694 = vpop.f32.mrb[0].mxu0
      %v695 = vadd.f32 0.0, %v694
      %v696 = vpop.f32.mrb[0].mxu0
      %697 = vmatprep.mubr.bf16.mxu0 %v345
      %698 = vmatmul.mubr.bf16.gmra.mrb[0].mxu0 %v337
      %v699 = vpop.f32.mrb[0].mxu0
      %v700 = vadd.f32 0.0, %v699
      %v701 = vpop.f32.mrb[0].mxu0
      %v702 = vpop.f32.mrb[0].mxu0
      %v703 = vpop.f32.mrb[0].mxu0
      %704 = vdwg.mxu0
      %705 = vmatprep.subr.bf16.mxu0 0
      %706 = vmatpush1.bf16.msra.mxu0 %v595
      %707 = vmatprep.subr.bf16.mxu0 0
      %708 = vmatpush1.bf16.msra.mxu0 %v596
      %709 = vmatprep.subr.bf16.mxu0 0
      %710 = vmatpush1.bf16.msra.mxu0 %v597
      %711 = vmatprep.subr.bf16.mxu0 0
      %712 = vmatpush1.bf16.msra.mxu0 %v598
      %713 = vmatprep.subr.bf16.mxu0 0
      %714 = vmatpush1.bf16.msra.mxu0 %v599
      %715 = vmatprep.subr.bf16.mxu0 0
      %716 = vmatpush1.bf16.msra.mxu0 %v600
      %717 = vmatprep.subr.bf16.mxu0 0
      %718 = vmatpush1.bf16.msra.mxu0 %v601
      %719 = vmatprep.subr.bf16.mxu0 0
      %720 = vmatpush1.bf16.msra.mxu0 %v602
      %721 = vmatprep.subr.bf16.mxu0 0
      %722 = vmatpush1.bf16.msra.mxu0 %v603
      %723 = vmatprep.subr.bf16.mxu0 0
      %724 = vmatpush1.bf16.msra.mxu0 %v604
      %725 = vmatprep.subr.bf16.mxu0 0
      %726 = vmatpush1.bf16.msra.mxu0 %v605
      %727 = vmatprep.subr.bf16.mxu0 0
      %728 = vmatpush1.bf16.msra.mxu0 %v606
      %729 = vmatprep.subr.bf16.mxu0 0
      %730 = vmatpush1.bf16.msra.mxu0 %v607
      %731 = vmatprep.subr.bf16.mxu0 0
      %732 = vmatpush1.bf16.msra.mxu0 %v608
      %733 = vmatprep.subr.bf16.mxu0 0
      %734 = vmatpush1.bf16.msra.mxu0 %v609
      %735 = vmatprep.subr.bf16.mxu0 0
      %736 = vmatpush1.bf16.msra.mxu0 %v610
      %737 = vmatprep.mubr.bf16.mxu0 %v357
      %738 = vmatmul.mubr.bf16.gmra.mrb[0].mxu0 %v349
      %v739 = vpop.f32.mrb[0].mxu0
      %v740 = vadd.f32 %v692, %v739
      %v741 = vpop.f32.mrb[0].mxu0
      %v742 = vpop.f32.mrb[0].mxu0
      %v743 = vadd.f32 %v695, %v742
      %v744 = vpop.f32.mrb[0].mxu0
      %745 = vmatprep.mubr.bf16.mxu0 %v361
      %746 = vmatmul.mubr.bf16.gmra.mrb[0].mxu0 %v353
      %v747 = vpop.f32.mrb[0].mxu0
      %v748 = vadd.f32 %v700, %v747
      %v749 = vpop.f32.mrb[0].mxu0
      %v750 = vpop.f32.mrb[0].mxu0
      %v751 = vpop.f32.mrb[0].mxu0
      %752 = vdwg.mxu0
      %753 = vmatprep.subr.bf16.mxu0 0
      %754 = vmatpush1.bf16.msra.mxu0 %v611
      %755 = vmatprep.subr.bf16.mxu0 0
      %756 = vmatpush1.bf16.msra.mxu0 %v612
      %757 = vmatprep.subr.bf16.mxu0 0
      %758 = vmatpush1.bf16.msra.mxu0 %v613
      %759 = vmatprep.subr.bf16.mxu0 0
      %760 = vmatpush1.bf16.msra.mxu0 %v614
      %761 = vmatprep.subr.bf16.mxu0 0
      %762 = vmatpush1.bf16.msra.mxu0 0
      %763 = vmatprep.subr.bf16.mxu0 0
      %764 = vmatpush1.bf16.msra.mxu0 0
      %765 = vmatprep.subr.bf16.mxu0 0
      %766 = vmatpush1.bf16.msra.mxu0 0
      %767 = vmatprep.subr.bf16.mxu0 0
      %768 = vmatpush1.bf16.msra.mxu0 0
      %769 = vmatprep.subr.bf16.mxu0 0
      %770 = vmatpush1.bf16.msra.mxu0 0
      %771 = vmatprep.subr.bf16.mxu0 0
      %772 = vmatpush1.bf16.msra.mxu0 0
      %773 = vmatprep.subr.bf16.mxu0 0
      %774 = vmatpush1.bf16.msra.mxu0 0
      %775 = vmatprep.subr.bf16.mxu0 0
      %776 = vmatpush1.bf16.msra.mxu0 0
      %777 = vmatprep.subr.bf16.mxu0 0
      %778 = vmatpush1.bf16.msra.mxu0 0
      %779 = vmatprep.subr.bf16.mxu0 0
      %780 = vmatpush1.bf16.msra.mxu0 0
      %781 = vmatprep.subr.bf16.mxu0 0
      %782 = vmatpush1.bf16.msra.mxu0 0
      %783 = vmatprep.subr.bf16.mxu0 0
      %784 = vmatpush1.bf16.msra.mxu0 0
      %785 = vmatprep.mubr.bf16.mxu0 0
      %786 = vmatmul.mubr.bf16.gmra.mrb[0].mxu0 %v652
      %v787 = vpop.f32.mrb[0].mxu0
      %v788 = vadd.f32 %v740, %v787
      %v789 = vpop.f32.mrb[0].mxu0
      %v790 = vpop.f32.mrb[0].mxu0
      %v791 = vadd.f32 %v743, %v790
      %v792 = vpop.f32.mrb[0].mxu0
      %793 = vmatprep.mubr.bf16.mxu0 0
      %794 = vmatmul.mubr.bf16.gmra.mrb[0].mxu0 %v655
      %v795 = vpop.f32.mrb[0].mxu0
      %v796 = vadd.f32 %v748, %v795
      %v797 = vpop.f32.mrb[0].mxu0
      %v798 = vpop.f32.mrb[0].mxu0
      %v799 = vpop.f32.mrb[0].mxu0
      %800 = vdwg.mxu0
      %v801 = vld [vmem:[%s3] sm:$0xf]
      %v802 = vsel %vm331, %v788, 0.0
      %803 = vadd.xlane.f32.xlu0 %v802
      %v804 = vpop.xlane.xlu0 %803
      %v805 = vsel %vm331, %v791, 0.0
      %806 = vadd.xlane.f32.xlu0 %v805
      %v807 = vpop.xlane.xlu0 %806
      %v808 = vsel %vm331, %v796, 0.0
      %809 = vadd.xlane.f32.xlu0 %v808
      %v810 = vpop.xlane.xlu0 %809
      %v811 = vrcp.pop 64.0
      %v812 = vmul.f32 %v804, %v811
      %v813 = vmul.f32 %v807, %v811
      %v814 = vmul.f32 %v810, %v811
      %v815 = vsub.f32 %v788, %v812
      %v816 = vsub.f32 %v791, %v813
      %v817 = vsub.f32 %v796, %v814
      %v818 = vmul.f32 %v815, %v815
      %v819 = vmul.f32 %v816, %v816
      %v820 = vmul.f32 %v817, %v817
      %v821 = vsel %vm331, %v818, 0.0
      %822 = vadd.xlane.f32.xlu0 %v821
      %v823 = vpop.xlane.xlu0 %822
      %v824 = vsel %vm331, %v819, 0.0
      %825 = vadd.xlane.f32.xlu0 %v824
      %v826 = vpop.xlane.xlu0 %825
      %v827 = vsel %vm331, %v820, 0.0
      %828 = vadd.xlane.f32.xlu0 %v827
      %v829 = vpop.xlane.xlu0 %828
      %v830 = vmul.f32 %v823, %v811
      %v831 = vmul.f32 %v826, %v811
      %v832 = vmul.f32 %v829, %v811
      %v833 = vadd.f32 %v830, 1e-06
      %v834 = vadd.f32 %v831, 1e-06
      %v835 = vadd.f32 %v832, 1e-06
      %v836 = vrsqrt.pop %v833
      %v837 = vrsqrt.pop %v834
      %v838 = vrsqrt.pop %v835
      %v839 = vmul.f32 %v815, %v836
      %v840 = vmul.f32 %v816, %v837
      %v841 = vmul.f32 %v817, %v838
      %v842 = vlaneseq
      %v843 = vshrl.u32 %v842, 7
      %v844 = vsub.s32 0, %v843
      %v845 = vrot.slane %v801, %v844
      %v846 = vmul.f32 %v839, %v845
      %v847 = vmul.f32 %v840, %v845
      %v848 = vmul.f32 %v841, %v845
      %v849 = vlaneseq
      %v850 = vshrl.u32 %v849, 7
      %v851 = vsub.s32 1, %v850
      %v852 = vrot.slane %v801, %v851
      %v853 = vadd.f32 %v846, %v852
      %v854 = vadd.f32 %v847, %v852
      %v855 = vadd.f32 %v848, %v852
      %v856 = vpack.c.bf16 %v854, %v853
      %v857 = vpack.c.bf16 %v855, %v855
      %v858 = vld [vmem:[%s2] sm:$0xf]
      %v859 = vld [vmem:[%s2 + $0x4] sm:$0xf]
      %v860 = vld [vmem:[%s2 + $0x8] sm:$0xf]
      %v861 = vld [vmem:[%s2 + $0xc] sm:$0xf]
      %v862 = vld [vmem:[%s2 + $0x10] sm:$0xf]
      %v863 = vld [vmem:[%s2 + $0x14] sm:$0xf]
      %v864 = vld [vmem:[%s2 + $0x18] sm:$0xf]
      %v865 = vld [vmem:[%s2 + $0x1c] sm:$0xf]
      %v874 = vunpack.c.l.b16 %v858
      %v875 = vunpack.c.l.b16 %v859
      %v876 = vunpack.c.l.b16 %v860
      %v877 = vunpack.c.l.b16 %v861
      %v878 = vunpack.c.l.b16 %v862
      %v879 = vunpack.c.l.b16 %v863
      %v880 = vunpack.c.l.b16 %v864
      %v881 = vunpack.c.l.b16 %v865
      %v882 = vpack.c.b16 %v875, %v874
      %v883 = vpack.c.b16 %v877, %v876
      %v884 = vpack.c.b16 %v879, %v878
      %v885 = vpack.c.b16 %v881, %v880
      %v891 = vsel %vm331, %v856, 0
      %v894 = vsel %vm331, %v857, 0
      %896 = vmatprep.subr.bf16.mxu0 0
      %897 = vmatpush1.bf16.msra.mxu0 %v882
      %898 = vmatprep.subr.bf16.mxu0 0
      %899 = vmatpush1.bf16.msra.mxu0 %v883
      %900 = vmatprep.subr.bf16.mxu0 0
      %901 = vmatpush1.bf16.msra.mxu0 %v884
      %902 = vmatprep.subr.bf16.mxu0 0
      %903 = vmatpush1.bf16.msra.mxu0 %v885
      %904 = vmatprep.subr.bf16.mxu0 0
      %905 = vmatpush1.bf16.msra.mxu0 0
      %906 = vmatprep.subr.bf16.mxu0 0
      %907 = vmatpush1.bf16.msra.mxu0 0
      %908 = vmatprep.subr.bf16.mxu0 0
      %909 = vmatpush1.bf16.msra.mxu0 0
      %910 = vmatprep.subr.bf16.mxu0 0
      %911 = vmatpush1.bf16.msra.mxu0 0
      %912 = vmatprep.subr.bf16.mxu0 0
      %913 = vmatpush1.bf16.msra.mxu0 0
      %914 = vmatprep.subr.bf16.mxu0 0
      %915 = vmatpush1.bf16.msra.mxu0 0
      %916 = vmatprep.subr.bf16.mxu0 0
      %917 = vmatpush1.bf16.msra.mxu0 0
      %918 = vmatprep.subr.bf16.mxu0 0
      %919 = vmatpush1.bf16.msra.mxu0 0
      %920 = vmatprep.subr.bf16.mxu0 0
      %921 = vmatpush1.bf16.msra.mxu0 0
      %922 = vmatprep.subr.bf16.mxu0 0
      %923 = vmatpush1.bf16.msra.mxu0 0
      %924 = vmatprep.subr.bf16.mxu0 0
      %925 = vmatpush1.bf16.msra.mxu0 0
      %926 = vmatprep.subr.bf16.mxu0 0
      %927 = vmatpush1.bf16.msra.mxu0 0
      %928 = vmatprep.mubr.bf16.mxu0 0
      %929 = vmatmul.mubr.bf16.gmra.mrb[0].mxu0 %v891
      %v930 = vpop.f32.mrb[0].mxu0
      %v931 = vadd.f32 0.0, %v930
      %v932 = vpop.f32.mrb[0].mxu0
      %v933 = vpop.f32.mrb[0].mxu0
      %v934 = vadd.f32 0.0, %v933
      %v935 = vpop.f32.mrb[0].mxu0
      %936 = vmatprep.mubr.bf16.mxu0 0
      %937 = vmatmul.mubr.bf16.gmra.mrb[0].mxu0 %v894
      %v938 = vpop.f32.mrb[0].mxu0
      %v939 = vadd.f32 0.0, %v938
      %v940 = vpop.f32.mrb[0].mxu0
      %v941 = vpop.f32.mrb[0].mxu0
      %v942 = vpop.f32.mrb[0].mxu0
      %943 = vdwg.mxu0
      %v944 = vsel %vm331, %v931, 0.0
      %945 = vadd.xlane.f32.xlu0 %v944
      %v946 = vpop.xlane.xlu0 %945
      %v947 = vsel %vm331, %v934, 0.0
      %948 = vadd.xlane.f32.xlu0 %v947
      %v949 = vpop.xlane.xlu0 %948
      %v950 = vsel %vm331, %v939, 0.0
      %951 = vadd.xlane.f32.xlu0 %v950
      %v952 = vpop.xlane.xlu0 %951
      %v953 = vmul.f32 %v946, %v811
      %v954 = vmul.f32 %v949, %v811
      %v955 = vmul.f32 %v952, %v811
      %v956 = vsub.f32 %v931, %v953
      %v957 = vsub.f32 %v934, %v954
      %v958 = vsub.f32 %v939, %v955
      %v959 = vmul.f32 %v956, %v956
      %v960 = vmul.f32 %v957, %v957
      %v961 = vmul.f32 %v958, %v958
      %v962 = vsel %vm331, %v959, 0.0
      %963 = vadd.xlane.f32.xlu0 %v962
      %v964 = vpop.xlane.xlu0 %963
      %v965 = vsel %vm331, %v960, 0.0
      %966 = vadd.xlane.f32.xlu0 %v965
      %v967 = vpop.xlane.xlu0 %966
      %v968 = vsel %vm331, %v961, 0.0
      %969 = vadd.xlane.f32.xlu0 %v968
      %v970 = vpop.xlane.xlu0 %969
      %v971 = vmul.f32 %v964, %v811
      %v972 = vmul.f32 %v967, %v811
      %v973 = vmul.f32 %v970, %v811
      %v974 = vadd.f32 %v971, 1e-06
      %v975 = vadd.f32 %v972, 1e-06
      %v976 = vadd.f32 %v973, 1e-06
      %v977 = vrsqrt.pop %v974
      %v978 = vrsqrt.pop %v975
      %v979 = vrsqrt.pop %v976
      %v980 = vmul.f32 %v956, %v977
      %v981 = vmul.f32 %v957, %v978
      %v982 = vmul.f32 %v958, %v979
      %v983 = vlaneseq
      %v984 = vshrl.u32 %v983, 7
      %v985 = vsub.s32 2, %v984
      %v986 = vrot.slane %v801, %v985
      %v987 = vmul.f32 %v980, %v986
      %v988 = vmul.f32 %v981, %v986
      %v989 = vmul.f32 %v982, %v986
      %v990 = vlaneseq
      %v991 = vshrl.u32 %v990, 7
      %v992 = vsub.s32 3, %v991
      %v993 = vrot.slane %v801, %v992
      %v994 = vadd.f32 %v987, %v993
      %v995 = vadd.f32 %v988, %v993
      %v996 = vadd.f32 %v989, %v993
      %997 = vst.msk [vmem:[%s197] sm:$0xff] %vm331, %v994
      %998 = vst.msk [vmem:[%s197 + $0x8] sm:$0xff] %vm331, %v995
      %999 = vst.msk [vmem:[%s197 + $0x10] sm:$0xff] %vm331, %v996
      %p1000 = scmp.lt.s32.totalorder %s15, 1
      %s1001 = scalar_select %p1000, %s15, 1
      %s1002 = smul.addr %s1001, 3
      %s1003 = smul.addr %s1002, 8
      %s1004 = scalar_lea.vmem %s4, %s1003
      // Predicated region
      $region37: #{light_image_encoder_forward.17} parent=35 // pred_check
        %p1005 = pneg %p122
      $region38: #{light_image_encoder_forward.17} parent=35 // pred_check_branch
        %1007 = sbr.rel (%p1005) target = $region40
      $region39: #{light_image_encoder_forward.17} parent=35 // pred_region
        _
      $region40: #{light_image_encoder_forward.17} parent=35 // pred_fallthru
        _
    $region36: #{light_image_encoder_forward.17} parent=5 // pred_fallthru
      _
    %p1008 = scmp.le.s32.totalorder 2, %s10
    // Predicated region
    $region41: #{light_image_encoder_forward.17} parent=5 // pred_check
      %p1009 = pneg %p1008
    $region42: #{light_image_encoder_forward.17} parent=5 // pred_check_branch
      %1011 = sbr.rel (%p1009) target = $region44
    $region43: #{light_image_encoder_forward.17} parent=5 // pred_region
      %s1012 = ssub.s32 %s10, 2
      // Predicated region
      $region45: #{light_image_encoder_forward.17} parent=43 // pred_check
        %p1013 = pneg %p128
      $region46: #{light_image_encoder_forward.17} parent=43 // pred_check_branch
        %1015 = sbr.rel (%p1013) target = $region48
      $region47: #{light_image_encoder_forward.17} parent=43 // pred_region
        %p1016 = scmp.lt.s32.totalorder %s16, 1
        %s1017 = scalar_select %p1016, %s16, 1
        %s1018 = smul.addr %s1017, 3
        %s1019 = smul.addr %s1018, 8
        %s1020 = scalar_lea.vmem %s4, %s1019
      $region48: #{light_image_encoder_forward.17} parent=43 // pred_fallthru
        _
    $region44: #{light_image_encoder_forward.17} parent=5 // pred_fallthru
      _
  $region6: #{light_image_encoder_forward.17} parent=0 // loop_footer
    %s14 = sadd.s32 1, %s10
  $region7: #{light_image_encoder_forward.17} parent=0 // loop_footer_branch
    %9 = sbr.rel target = $region3
  $region8: #{light_image_encoder_forward.17} parent=0 // loop_exit
    _

</llo_original>
